<compile_context>
chip_gen: v5e
topology: v5e:2x2
jax: 0.10.0
libtpu: 0.0.40
codegen_flags: <defaults>
</compile_context>

<pallas_src>
import functools
import numpy as np
import jax
import jax.numpy as jnp
from jax.experimental import pallas as pl
from jax.experimental.pallas import tpu as pltpu


# ---------------------------------------------------------------------------
# Hardware-aware limits / tiling helpers (plain Python, trace-time)
# ---------------------------------------------------------------------------
def _vmem_limit_bytes():
    """Generation-aware VMEM budget: ~48 MiB on v7x (64 MiB physical),
    up to 100 MiB on v5e/v6e (128 MiB physical)."""
    try:
        cap = pltpu.get_tpu_info().vmem_capacity_bytes
    except Exception:
        cap = 64 * 1024 * 1024          # conservative fallback (v7x-sized)
    return int(min(cap * 3 // 4, 100 * 1024 * 1024))


def _conv_tile_vmem_bytes(n, th, wc, cin, cout):
    """VMEM model for one conv row-tile: double-buffered blocks + on-chip temps."""
    bf, f4 = 2, 4
    blocks = (2 * n * th * wc * cin * bf        # main input block (x2 buffers)
              + 4 * n * wc * cin * bf           # two 1-row halo blocks (x2)
              + 2 * n * th * wc * cout * bf     # bf16 output block (x2)
              + 2 * 9 * cin * cout * bf         # folded weights
              + 2 * 2 * cout * f4)              # stats block
    temps = (n * (th + 2) * (wc + 2) * cin * bf     # padded tile value
             + n * th * wc * 3 * cin * bf           # per-dx patch matrix (K=3*Cin)
             + n * th * wc * cout * f4              # f32 accumulator
             + n * (th + 2) * wc * cin * f4)        # fused-prologue f32 temps
    return int(1.5 * (blocks + temps))


def _pick_row_tile(n, hc, wc, cin, cout, vmem_limit):
    """Largest row tile that fits the VMEM model; stop growing once the MXU M
    dimension (N*TH*W) is comfortably large so some grid steps remain."""
    budget = vmem_limit // 2
    best = 1
    for th in range(1, hc + 1):
        if hc % th:
            continue
        if th > 1 and _conv_tile_vmem_bytes(n, th, wc, cin, cout) > budget:
            break
        best = th
        if n * th * wc >= 512:
            break
    return best


def _pick_pool_tile(hp, wp, c, vmem_limit):
    budget = vmem_limit // 4
    best = 1
    for tph in range(1, hp + 1):
        if hp % tph:
            continue
        need = 3 * (2 * tph * wp * 2 * c * 4) + 3 * (tph * wp * c * 2)
        if tph > 1 and need > budget:
            break
        best = tph
    return best


def _pick_flat_tile(total_rows, cout, vmem_limit):
    if total_rows % 8:
        return total_rows
    budget = vmem_limit // 4
    best = 8
    for m in range(8, total_rows + 1, 8):
        if total_rows % m:
            continue
        need = int(1.5 * (2 * m * cout * 2 + 2 * m * cout * 4))
        if need > budget:
            break
        best = m
    return best


# ---------------------------------------------------------------------------
# Kernels
# ---------------------------------------------------------------------------
def _maxpool_kernel(x_ref, o_ref):
    """2x2 max pool, single input read, bf16 output.
    x_ref: (2*TPH, W/2, 2, C) f32 ; o_ref: (TPH, W/2, C) bf16."""
    t = x_ref[...]
    m = jnp.maximum(t[:, :, 0, :], t[:, :, 1, :])          # pool along W
    m = m.reshape(m.shape[0] // 2, 2, m.shape[1], m.shape[2])
    o_ref[...] = jnp.maximum(m[:, 0], m[:, 1]).astype(o_ref.dtype)   # pool along H


def _conv3x3_kernel(fuse_prologue, *refs):
    """3x3 conv (pad=1) on one batch-folded row tile + per-tile BN stats.

    Inputs (bf16): main rows (N, TH, W, Cin), top/bottom 1-row halos, folded
    weights (3, 3*Cin, Cout).  With fuse_prologue, also (1, Cin) f32 scale /
    shift of the PREVIOUS layer's BatchNorm, applied with ReLU to the loaded
    rows (halo zero padding stays zero).
    Outputs: raw conv result (N, TH*W, Cout) bf16 and (2, Cout) f32 [sum, sumsq].
    """
    if fuse_prologue:
        x_ref, top_ref, bot_ref, w_ref, sc_ref, sh_ref, y_ref, st_ref = refs
    else:
        x_ref, top_ref, bot_ref, w_ref, y_ref, st_ref = refs
        sc_ref = sh_ref = None

    n, th, wd, cin = x_ref.shape
    cout = w_ref.shape[-1]
    t = pl.program_id(0)
    last = pl.num_programs(0) - 1

    def prep(v):
        # Fused BN+ReLU of the previous layer (only on real rows).
        if not fuse_prologue:
            return v
        vf = (v.astype(jnp.float32) * sc_ref[...].reshape(1, 1, 1, cin)
              + sh_ref[...].reshape(1, 1, 1, cin))
        return jnp.maximum(vf, 0.0).astype(jnp.bfloat16)

    zero_row = jnp.zeros((n, 1, wd, cin), jnp.bfloat16)
    top = jnp.where(t > 0, prep(top_ref[...]), zero_row)       # mask image top
    bot = jnp.where(t < last, prep(bot_ref[...]), zero_row)    # mask image bottom

    rows = jnp.concatenate([top, prep(x_ref[...]), bot], axis=1)   # (n, th+2, wd, cin)
    zcol = jnp.zeros((n, th + 2, 1, cin), jnp.bfloat16)
    tile = jnp.concatenate([zcol, rows, zcol], axis=2)             # (n, th+2, wd+2, cin)

    # 3 MXU dots, K = 3*Cin: one sublane shift per dx, dy via free leading slices.
    acc = jnp.zeros((n * th * wd, cout), jnp.float32)
    for dx in range(3):
        shw = tile[:, :, dx:dx + wd, :]                            # (n, th+2, wd, cin)
        patches = jnp.concatenate(
            [shw[:, 0:th], shw[:, 1:th + 1], shw[:, 2:th + 2]], axis=-1)
        patches = patches.reshape(n * th * wd, 3 * cin)
        acc = acc + jnp.dot(patches, w_ref[dx],
                            preferred_element_type=jnp.float32)

    # BN partial stats from the f32 accumulator, single (2, Cout) store.
    st_ref[...] = jnp.concatenate(
        [jnp.sum(acc, axis=0, keepdims=True),
         jnp.sum(acc * acc, axis=0, keepdims=True)], axis=0)
    # Raw conv output in bf16 (halves pass-1 writeback / next layer's read).
    y_ref[...] = acc.reshape(n, th * wd, cout).astype(y_ref.dtype)


def _bn_relu_kernel(y_ref, sc_ref, sh_ref, o_ref):
    """Final-layer BN affine + ReLU (f32 epilogue, lane-dense Cout)."""
    o_ref[...] = jnp.maximum(
        y_ref[...].astype(jnp.float32) * sc_ref[...] + sh_ref[...], 0.0
    ).astype(o_ref.dtype)


# ---------------------------------------------------------------------------
# Wrappers
# ---------------------------------------------------------------------------
def maxpool2x2(x, vmem_limit):
    """nn.MaxPool2d(2) on NHWC f32 input; bf16 output (consumed by conv1)."""
    n, h, w, c = x.shape
    assert h % 2 == 0 and w % 2 == 0
    hp, wp = h // 2, w // 2
    x5 = x.reshape(n, h, wp, 2, c)          # free row-major reshape (no copy)
    tph = _pick_pool_tile(hp, wp, c, vmem_limit)
    nr = hp // tph
    return pl.pallas_call(
        _maxpool_kernel,
        grid=(n, nr),
        in_specs=[pl.BlockSpec((None, 2 * tph, wp, 2, c),
                               lambda i, r: (i, r, 0, 0, 0))],
        out_specs=pl.BlockSpec((None, tph, wp, c), lambda i, r: (i, r, 0, 0)),
        out_shape=jax.ShapeDtypeStruct((n, hp, wp, c), jnp.bfloat16),
        compiler_params=pltpu.CompilerParams(
            dimension_semantics=("parallel", "parallel"),
            vmem_limit_bytes=vmem_limit),
    )(x5)


def conv3x3_raw(x, w_folded, prologue=None, vmem_limit=None):
    """Conv2d(3x3, pad=1, no bias) on bf16 NHWC input.

    prologue: optional (scale, shift), each (1, Cin) f32 — the previous layer's
    BatchNorm+ReLU, fused into this conv's load path.
    Returns (raw conv output bf16 (N,H,W,Cout), per-row-tile stats (nh,2,Cout)).
    """
    n, hc, wc, cin = x.shape
    cout = w_folded.shape[-1]
    th = _pick_row_tile(n, hc, wc, cin, cout, vmem_limit)
    nh = hc // th

    kernel = functools.partial(_conv3x3_kernel, prologue is not None)
    in_specs = [
        pl.BlockSpec((n, th, wc, cin), lambda t: (0, t, 0, 0)),
        # 1-row top / bottom halos (clamped at the image boundary, masked in-kernel)
        pl.BlockSpec((n, 1, wc, cin),
                     lambda t: (0, jnp.maximum(t * th - 1, 0), 0, 0)),
        pl.BlockSpec((n, 1, wc, cin),
                     lambda t: (0, jnp.minimum((t + 1) * th, hc - 1), 0, 0)),
        pl.BlockSpec((3, 3 * cin, cout), lambda t: (0, 0, 0)),
    ]
    args = [x, x, x, w_folded]
    if prologue is not None:
        scale, shift = prologue
        in_specs += [pl.BlockSpec((1, cin), lambda t: (0, 0)),
                     pl.BlockSpec((1, cin), lambda t: (0, 0))]
        args += [scale, shift]

    y, st = pl.pallas_call(
        kernel,
        grid=(nh,),
        in_specs=in_specs,
        out_specs=[
            pl.BlockSpec((n, None, th * wc, cout), lambda t: (0, t, 0, 0)),
            pl.BlockSpec((None, 2, cout), lambda t: (t, 0, 0)),
        ],
        out_shape=[
            jax.ShapeDtypeStruct((n, nh, th * wc, cout), jnp.bfloat16),
            jax.ShapeDtypeStruct((nh, 2, cout), jnp.float32),
        ],
        compiler_params=pltpu.CompilerParams(
            dimension_semantics=("parallel",), vmem_limit_bytes=vmem_limit),
    )(*args)
    return y.reshape(n, hc, wc, cout), st      # reshape is layout-free


def bn_relu(y, scale, shift, vmem_limit):
    """Final BatchNorm affine + ReLU over the flattened activation (f32 out)."""
    n, hc, wc, cout = y.shape
    total = n * hc * wc
    yf = y.reshape(total, cout)
    mb = _pick_flat_tile(total, cout, vmem_limit)
    out = pl.pallas_call(
        _bn_relu_kernel,
        grid=(total // mb,),
        in_specs=[pl.BlockSpec((mb, cout), lambda i: (i, 0)),
                  pl.BlockSpec((1, cout), lambda i: (0, 0)),
                  pl.BlockSpec((1, cout), lambda i: (0, 0))],
        out_specs=pl.BlockSpec((mb, cout), lambda i: (i, 0)),
        out_shape=jax.ShapeDtypeStruct((total, cout), jnp.float32),
        compiler_params=pltpu.CompilerParams(
            dimension_semantics=("parallel",), vmem_limit_bytes=vmem_limit),
    )(yf, scale, shift)
    return out.reshape(n, hc, wc, cout)


# ---------------------------------------------------------------------------
# Parameter folding (layout glue) and BN stat folding
# ---------------------------------------------------------------------------
def _fold_weight(w_oihw):
    """PyTorch (Cout, Cin, kh, kw) -> (kw, kh*Cin, Cout) bf16 (dx-major, dy-major K)."""
    w = jnp.transpose(w_oihw, (3, 2, 1, 0))            # (dx, dy, cin, cout)
    _, kh, cin, cout = w.shape
    return w.reshape(3, kh * cin, cout).astype(jnp.bfloat16)


def _bn_scale_shift(stats, count, gamma, beta, eps):
    """Fold training-mode BatchNorm into a per-channel (scale, shift) pair."""
    s = jnp.sum(stats.astype(jnp.float32), axis=0)     # (2, Cout)
    mean = s[0] / count
    # f32 one-pass variance; clamp guards cancellation.
    # TODO(synk): switch to a shifted/Welford accumulation if tolerances demand.
    var = jnp.maximum(s[1] / count - mean * mean, 0.0)
    inv = jax.lax.rsqrt(var + eps)
    scale = gamma.astype(jnp.float32) * inv
    shift = beta.astype(jnp.float32) - mean * scale
    return scale.reshape(1, -1), shift.reshape(1, -1)


# ---------------------------------------------------------------------------
# Down = MaxPool2d(2) + DoubleConv(in, out)   (mid_channels defaults to out)
# ---------------------------------------------------------------------------
def down_forward(x_nchw, params, eps=1e-5):
    vmem_limit = _vmem_limit_bytes()

    x = jnp.transpose(x_nchw, (0, 2, 3, 1))                      # NCHW -> NHWC
    xp = maxpool2x2(x, vmem_limit)                               # bf16
    n, hc, wc, _ = xp.shape
    count = n * hc * wc

    p1, p2 = params["conv1"], params["conv2"]

    # conv1 (no prologue); its BN+ReLU is fused into conv2's load path.
    y1, st1 = conv3x3_raw(xp, _fold_weight(p1["w"]), None, vmem_limit)
    sc1, sh1 = _bn_scale_shift(st1, count, p1["gamma"], p1["beta"], eps)

    # conv2 with fused BN1+ReLU prologue.
    y2, st2 = conv3x3_raw(y1, _fold_weight(p2["w"]), (sc1, sh1), vmem_limit)
    sc2, sh2 = _bn_scale_shift(st2, count, p2["gamma"], p2["beta"], eps)

    # Final BN2+ReLU epilogue (f32 output).
    y = bn_relu(y2, sc2, sh2, vmem_limit)
    return jnp.transpose(y, (0, 3, 1, 2))                        # NHWC -> NCHW


def _conv_bn_params(key, cin, cout):
    k1, k2, k3 = jax.random.split(key, 3)
    return dict(
        # PyTorch OIHW layout.  Conv bias omitted: training-mode BatchNorm
        # subtracts the batch mean, which cancels a per-channel bias exactly.
        w=jax.random.normal(k1, (cout, cin, 3, 3), jnp.float32) / np.sqrt(9 * cin),
        gamma=1.0 + 0.1 * jax.random.normal(k2, (cout,), jnp.float32),
        beta=0.1 * jax.random.normal(k3, (cout,), jnp.float32),
    )


def init_down_params(key, in_channels, out_channels):
    k1, k2 = jax.random.split(key)
    return {"conv1": _conv_bn_params(k1, in_channels, out_channels),
            "conv2": _conv_bn_params(k2, out_channels, out_channels)}


# ---------------------------------------------------------------------------
if __name__ == "__main__":
    # Down(128, 256) on a 16x16 feature map: lane-dense channel counts
    # (multiples of 128) at a small, realistic UNet stage size.
    N, C_IN, H, W = 2, 128, 16, 16
    C_OUT = 256

    key = jax.random.PRNGKey(0)
    kx, kp = jax.random.split(key)
    x_nchw = jax.random.normal(kx, (N, C_IN, H, W), jnp.float32)
    params = init_down_params(kp, C_IN, C_OUT)

    fwd = jax.jit(down_forward)
    out = jax.block_until_ready(fwd(x_nchw, params))
    assert out.shape == (N, C_OUT, H // 2, W // 2), out.shape
    assert bool(jnp.all(jnp.isfinite(out)))
    print("KERNEL_OK")
</pallas_src>

<mosaic_0001>
module attributes {stable_mosaic.version = 11 : i64} {
  func.func @_conv3x3_kernel(%arg0: i32, %arg1: memref<2x8x8x128xbf16, #tpu.memory_space<vmem>>, %arg2: memref<2x1x8x128xbf16, #tpu.memory_space<vmem>>, %arg3: memref<2x1x8x128xbf16, #tpu.memory_space<vmem>>, %arg4: memref<3x384x256xbf16, #tpu.memory_space<vmem>>, %arg5: memref<2x1x64x256xbf16, #tpu.memory_space<vmem>>, %arg6: memref<1x2x256xf32, #tpu.memory_space<vmem>>) attributes {dimension_semantics = [#tpu.dimension_semantics<parallel>], iteration_bounds = array<i64: 1>, scalar_prefetch = 0 : i64, scratch_operands = 0 : i64, tpu.core_type = #tpu.core_type<tc>, window_params = [{transform_indices = @transform_0, window_bounds = array<i64: 2, 8, 8, 128>}, {transform_indices = @transform_1, window_bounds = array<i64: 2, 1, 8, 128>}, {transform_indices = @transform_2, window_bounds = array<i64: 2, 1, 8, 128>}, {pipeline_mode = #tpu.pipeline_mode<synchronous>, transform_indices = @transform_3, window_bounds = array<i64: 3, 384, 256>}, {transform_indices = @transform_4, window_bounds = array<i64: 2, 1, 64, 256>}, {transform_indices = @transform_5, window_bounds = array<i64: 1, 2, 256>}]} {
    %cst = arith.constant 0.000000e+00 : bf16
    %0 = vector.broadcast %cst : bf16 to vector<2x1x8x128xbf16>
    %c0_i32 = arith.constant 0 : i32
    %1 = arith.cmpi sgt, %arg0, %c0_i32 : i32
    %c0 = arith.constant 0 : index
    %c0_0 = arith.constant 0 : index
    %c0_1 = arith.constant 0 : index
    %c0_2 = arith.constant 0 : index
    %2 = vector.load %arg2[%c0, %c0_0, %c0_1, %c0_2] : memref<2x1x8x128xbf16, #tpu.memory_space<vmem>>, vector<2x1x8x128xbf16>
    %3 = arith.select %1, %2, %0 : vector<2x1x8x128xbf16>
    %c0_i32_3 = arith.constant 0 : i32
    %4 = arith.cmpi slt, %arg0, %c0_i32_3 : i32
    %c0_4 = arith.constant 0 : index
    %c0_5 = arith.constant 0 : index
    %c0_6 = arith.constant 0 : index
    %c0_7 = arith.constant 0 : index
    %5 = vector.load %arg3[%c0_4, %c0_5, %c0_6, %c0_7] : memref<2x1x8x128xbf16, #tpu.memory_space<vmem>>, vector<2x1x8x128xbf16>
    %6 = arith.select %4, %5, %0 : vector<2x1x8x128xbf16>
    %c0_8 = arith.constant 0 : index
    %c0_9 = arith.constant 0 : index
    %c0_10 = arith.constant 0 : index
    %c0_11 = arith.constant 0 : index
    %7 = vector.load %arg1[%c0_8, %c0_9, %c0_10, %c0_11] : memref<2x8x8x128xbf16, #tpu.memory_space<vmem>>, vector<2x8x8x128xbf16>
    %8 = tpu.concatenate %3, %7, %6 in 1 : vector<2x1x8x128xbf16>, vector<2x8x8x128xbf16>, vector<2x1x8x128xbf16> -> vector<2x10x8x128xbf16>
    %cst_12 = arith.constant 0.000000e+00 : bf16
    %9 = vector.broadcast %cst_12 : bf16 to vector<2x10x1x128xbf16>
    %10 = tpu.concatenate %9, %8, %9 in 2 : vector<2x10x1x128xbf16>, vector<2x10x8x128xbf16>, vector<2x10x1x128xbf16> -> vector<2x10x10x128xbf16>
    %cst_13 = arith.constant 0.000000e+00 : f32
    %11 = vector.broadcast %cst_13 : f32 to vector<128x256xf32>
    %12 = vector.extract_strided_slice %10 {offsets = [0, 0, 0, 0], sizes = [2, 10, 8, 128], strides = [1, 1, 1, 1]} : vector<2x10x10x128xbf16> to vector<2x10x8x128xbf16>
    %13 = vector.extract_strided_slice %12 {offsets = [0, 0, 0, 0], sizes = [2, 8, 8, 128], strides = [1, 1, 1, 1]} : vector<2x10x8x128xbf16> to vector<2x8x8x128xbf16>
    %14 = vector.extract_strided_slice %12 {offsets = [0, 1, 0, 0], sizes = [2, 8, 8, 128], strides = [1, 1, 1, 1]} : vector<2x10x8x128xbf16> to vector<2x8x8x128xbf16>
    %15 = vector.extract_strided_slice %12 {offsets = [0, 2, 0, 0], sizes = [2, 8, 8, 128], strides = [1, 1, 1, 1]} : vector<2x10x8x128xbf16> to vector<2x8x8x128xbf16>
    %16 = tpu.concatenate %13, %14, %15 in 3 : vector<2x8x8x128xbf16>, vector<2x8x8x128xbf16>, vector<2x8x8x128xbf16> -> vector<2x8x8x384xbf16>
    %17 = vector.shape_cast %16 : vector<2x8x8x384xbf16> to vector<128x384xbf16>
    %c0_14 = arith.constant 0 : index
    %c0_15 = arith.constant 0 : index
    %c0_16 = arith.constant 0 : index
    %18 = vector.load %arg4[%c0_14, %c0_15, %c0_16] : memref<3x384x256xbf16, #tpu.memory_space<vmem>>, vector<1x384x256xbf16>
    %19 = vector.shape_cast %18 : vector<1x384x256xbf16> to vector<384x256xbf16>
    %cst_17 = arith.constant dense<0.000000e+00> : vector<128x256xf32>
    %20 = tpu.matmul %17, %19, %cst_17 {dimension_numbers = #tpu.dot_dimension_numbers<[1], [0], [0], [1], [0, 0, 1, 1], [], []>} : vector<128x384xbf16>, vector<384x256xbf16>, vector<128x256xf32> -> vector<128x256xf32>
    %21 = arith.addf %11, %20 : vector<128x256xf32>
    %22 = vector.extract_strided_slice %10 {offsets = [0, 0, 1, 0], sizes = [2, 10, 8, 128], strides = [1, 1, 1, 1]} : vector<2x10x10x128xbf16> to vector<2x10x8x128xbf16>
    %23 = vector.extract_strided_slice %22 {offsets = [0, 0, 0, 0], sizes = [2, 8, 8, 128], strides = [1, 1, 1, 1]} : vector<2x10x8x128xbf16> to vector<2x8x8x128xbf16>
    %24 = vector.extract_strided_slice %22 {offsets = [0, 1, 0, 0], sizes = [2, 8, 8, 128], strides = [1, 1, 1, 1]} : vector<2x10x8x128xbf16> to vector<2x8x8x128xbf16>
    %25 = vector.extract_strided_slice %22 {offsets = [0, 2, 0, 0], sizes = [2, 8, 8, 128], strides = [1, 1, 1, 1]} : vector<2x10x8x128xbf16> to vector<2x8x8x128xbf16>
    %26 = tpu.concatenate %23, %24, %25 in 3 : vector<2x8x8x128xbf16>, vector<2x8x8x128xbf16>, vector<2x8x8x128xbf16> -> vector<2x8x8x384xbf16>
    %27 = vector.shape_cast %26 : vector<2x8x8x384xbf16> to vector<128x384xbf16>
    %c1 = arith.constant 1 : index
    %c0_18 = arith.constant 0 : index
    %c0_19 = arith.constant 0 : index
    %28 = vector.load %arg4[%c1, %c0_18, %c0_19] : memref<3x384x256xbf16, #tpu.memory_space<vmem>>, vector<1x384x256xbf16>
    %29 = vector.shape_cast %28 : vector<1x384x256xbf16> to vector<384x256xbf16>
    %cst_20 = arith.constant dense<0.000000e+00> : vector<128x256xf32>
    %30 = tpu.matmul %27, %29, %cst_20 {dimension_numbers = #tpu.dot_dimension_numbers<[1], [0], [0], [1], [0, 0, 1, 1], [], []>} : vector<128x384xbf16>, vector<384x256xbf16>, vector<128x256xf32> -> vector<128x256xf32>
    %31 = arith.addf %21, %30 : vector<128x256xf32>
    %32 = vector.extract_strided_slice %10 {offsets = [0, 0, 2, 0], sizes = [2, 10, 8, 128], strides = [1, 1, 1, 1]} : vector<2x10x10x128xbf16> to vector<2x10x8x128xbf16>
    %33 = vector.extract_strided_slice %32 {offsets = [0, 0, 0, 0], sizes = [2, 8, 8, 128], strides = [1, 1, 1, 1]} : vector<2x10x8x128xbf16> to vector<2x8x8x128xbf16>
    %34 = vector.extract_strided_slice %32 {offsets = [0, 1, 0, 0], sizes = [2, 8, 8, 128], strides = [1, 1, 1, 1]} : vector<2x10x8x128xbf16> to vector<2x8x8x128xbf16>
    %35 = vector.extract_strided_slice %32 {offsets = [0, 2, 0, 0], sizes = [2, 8, 8, 128], strides = [1, 1, 1, 1]} : vector<2x10x8x128xbf16> to vector<2x8x8x128xbf16>
    %36 = tpu.concatenate %33, %34, %35 in 3 : vector<2x8x8x128xbf16>, vector<2x8x8x128xbf16>, vector<2x8x8x128xbf16> -> vector<2x8x8x384xbf16>
    %37 = vector.shape_cast %36 : vector<2x8x8x384xbf16> to vector<128x384xbf16>
    %c2 = arith.constant 2 : index
    %c0_21 = arith.constant 0 : index
    %c0_22 = arith.constant 0 : index
    %38 = vector.load %arg4[%c2, %c0_21, %c0_22] : memref<3x384x256xbf16, #tpu.memory_space<vmem>>, vector<1x384x256xbf16>
    %39 = vector.shape_cast %38 : vector<1x384x256xbf16> to vector<384x256xbf16>
    %cst_23 = arith.constant dense<0.000000e+00> : vector<128x256xf32>
    %40 = tpu.matmul %37, %39, %cst_23 {dimension_numbers = #tpu.dot_dimension_numbers<[1], [0], [0], [1], [0, 0, 1, 1], [], []>} : vector<128x384xbf16>, vector<384x256xbf16>, vector<128x256xf32> -> vector<128x256xf32>
    %41 = arith.addf %31, %40 : vector<128x256xf32>
    %cst_24 = arith.constant dense<0.000000e+00> : vector<256xf32>
    %42 = vector.multi_reduction <add>, %41, %cst_24 [0] : vector<128x256xf32> to vector<256xf32>
    %43 = vector.shape_cast %42 : vector<256xf32> to vector<1x256xf32>
    %44 = arith.mulf %41, %41 : vector<128x256xf32>
    %cst_25 = arith.constant dense<0.000000e+00> : vector<256xf32>
    %45 = vector.multi_reduction <add>, %44, %cst_25 [0] : vector<128x256xf32> to vector<256xf32>
    %46 = vector.shape_cast %45 : vector<256xf32> to vector<1x256xf32>
    %47 = tpu.concatenate %43, %46 in 0 : vector<1x256xf32>, vector<1x256xf32> -> vector<2x256xf32>
    %c0_26 = arith.constant 0 : index
    %c0_27 = arith.constant 0 : index
    %c0_28 = arith.constant 0 : index
    %48 = vector.load %arg6[%c0_26, %c0_27, %c0_28] : memref<1x2x256xf32, #tpu.memory_space<vmem>>, vector<1x2x256xf32>
    %49 = vector.shape_cast %48 : vector<1x2x256xf32> to vector<2x256xf32>
    %50 = vector.shape_cast %47 : vector<2x256xf32> to vector<1x2x256xf32>
    tpu.vector_store %arg6[%c0_26, %c0_27, %c0_28], %50 {strides = array<i32>} : memref<1x2x256xf32, #tpu.memory_space<vmem>>, vector<1x2x256xf32>,
    %51 = vector.shape_cast %41 : vector<128x256xf32> to vector<2x64x256xf32>
    %52 = arith.truncf %51 : vector<2x64x256xf32> to vector<2x64x256xbf16>
    %c0_29 = arith.constant 0 : index
    %c0_30 = arith.constant 0 : index
    %c0_31 = arith.constant 0 : index
    %c0_32 = arith.constant 0 : index
    %53 = vector.load %arg5[%c0_29, %c0_30, %c0_31, %c0_32] : memref<2x1x64x256xbf16, #tpu.memory_space<vmem>>, vector<2x1x64x256xbf16>
    %54 = vector.shape_cast %53 : vector<2x1x64x256xbf16> to vector<2x64x256xbf16>
    %55 = vector.shape_cast %52 : vector<2x64x256xbf16> to vector<2x1x64x256xbf16>
    tpu.vector_store %arg5[%c0_29, %c0_30, %c0_31, %c0_32], %55 {strides = array<i32>} : memref<2x1x64x256xbf16, #tpu.memory_space<vmem>>, vector<2x1x64x256xbf16>,
    return
  }
  func.func @transform_0(%arg0: i32) -> (i32, i32, i32, i32) {
    %c0_i32 = arith.constant 0 : i32
    %c0_i32_0 = arith.constant 0 : i32
    %c0_i32_1 = arith.constant 0 : i32
    %c0_i32_2 = arith.constant 0 : i32
    return %c0_i32, %arg0, %c0_i32_0, %c0_i32_1 : i32, i32, i32, i32
  }
  func.func @transform_1(%arg0: i32) -> (i32, i32, i32, i32) {
    %c8_i32 = arith.constant 8 : i32
    %0 = arith.muli %arg0, %c8_i32 : i32
    %c1_i32 = arith.constant 1 : i32
    %1 = arith.subi %0, %c1_i32 : i32
    %c0_i32 = arith.constant 0 : i32
    %2 = arith.maxsi %1, %c0_i32 : i32
    %c0_i32_0 = arith.constant 0 : i32
    %c0_i32_1 = arith.constant 0 : i32
    %c0_i32_2 = arith.constant 0 : i32
    %c0_i32_3 = arith.constant 0 : i32
    return %c0_i32_0, %2, %c0_i32_1, %c0_i32_2 : i32, i32, i32, i32
  }
  func.func @transform_2(%arg0: i32) -> (i32, i32, i32, i32) {
    %c1_i32 = arith.constant 1 : i32
    %0 = arith.addi %arg0, %c1_i32 : i32
    %c8_i32 = arith.constant 8 : i32
    %1 = arith.muli %0, %c8_i32 : i32
    %c7_i32 = arith.constant 7 : i32
    %2 = arith.minsi %1, %c7_i32 : i32
    %c0_i32 = arith.constant 0 : i32
    %c0_i32_0 = arith.constant 0 : i32
    %c0_i32_1 = arith.constant 0 : i32
    %c0_i32_2 = arith.constant 0 : i32
    return %c0_i32, %2, %c0_i32_0, %c0_i32_1 : i32, i32, i32, i32
  }
  func.func @transform_3(%arg0: i32) -> (i32, i32, i32) {
    %c0_i32 = arith.constant 0 : i32
    %c0_i32_0 = arith.constant 0 : i32
    %c0_i32_1 = arith.constant 0 : i32
    %c0_i32_2 = arith.constant 0 : i32
    return %c0_i32, %c0_i32_0, %c0_i32_1 : i32, i32, i32
  }
  func.func @transform_4(%arg0: i32) -> (i32, i32, i32, i32) {
    %c0_i32 = arith.constant 0 : i32
    %c0_i32_0 = arith.constant 0 : i32
    %c0_i32_1 = arith.constant 0 : i32
    %c0_i32_2 = arith.constant 0 : i32
    return %c0_i32, %arg0, %c0_i32_0, %c0_i32_1 : i32, i32, i32, i32
  }
  func.func @transform_5(%arg0: i32) -> (i32, i32, i32) {
    %c0_i32 = arith.constant 0 : i32
    %c0_i32_0 = arith.constant 0 : i32
    %c0_i32_1 = arith.constant 0 : i32
    return %arg0, %c0_i32, %c0_i32_0 : i32, i32, i32
  }
}

module attributes {stable_mosaic.version = 11 : i64} {
  func.func @_maxpool_kernel(%arg0: i32, %arg1: i32, %arg2: memref<1x16x8x2x128xf32, #tpu.memory_space<vmem>>, %arg3: memref<1x8x8x128xbf16, #tpu.memory_space<vmem>>) attributes {dimension_semantics = [#tpu.dimension_semantics<parallel>, #tpu.dimension_semantics<parallel>], iteration_bounds = array<i64: 2, 1>, scalar_prefetch = 0 : i64, scratch_operands = 0 : i64, tpu.core_type = #tpu.core_type<tc>, window_params = [{transform_indices = @transform_0, window_bounds = array<i64: 1, 16, 8, 2, 128>}, {transform_indices = @transform_1, window_bounds = array<i64: 1, 8, 8, 128>}]} {
    %c0 = arith.constant 0 : index
    %c0_0 = arith.constant 0 : index
    %c0_1 = arith.constant 0 : index
    %c0_2 = arith.constant 0 : index
    %c0_3 = arith.constant 0 : index
    %0 = vector.load %arg2[%c0, %c0_0, %c0_1, %c0_2, %c0_3] : memref<1x16x8x2x128xf32, #tpu.memory_space<vmem>>, vector<1x16x8x2x128xf32>
    %1 = vector.shape_cast %0 : vector<1x16x8x2x128xf32> to vector<16x8x2x128xf32>
    %2 = vector.extract_strided_slice %1 {offsets = [0, 0, 0, 0], sizes = [16, 8, 1, 128], strides = [1, 1, 1, 1]} : vector<16x8x2x128xf32> to vector<16x8x1x128xf32>
    %3 = vector.shape_cast %2 : vector<16x8x1x128xf32> to vector<16x8x128xf32>
    %4 = vector.extract_strided_slice %1 {offsets = [0, 0, 1, 0], sizes = [16, 8, 1, 128], strides = [1, 1, 1, 1]} : vector<16x8x2x128xf32> to vector<16x8x1x128xf32>
    %5 = vector.shape_cast %4 : vector<16x8x1x128xf32> to vector<16x8x128xf32>
    %6 = arith.maximumf %3, %5 : vector<16x8x128xf32>
    %7 = vector.shape_cast %6 : vector<16x8x128xf32> to vector<8x2x8x128xf32>
    %8 = vector.extract_strided_slice %7 {offsets = [0, 0, 0, 0], sizes = [8, 1, 8, 128], strides = [1, 1, 1, 1]} : vector<8x2x8x128xf32> to vector<8x1x8x128xf32>
    %9 = vector.shape_cast %8 : vector<8x1x8x128xf32> to vector<8x8x128xf32>
    %10 = vector.extract_strided_slice %7 {offsets = [0, 1, 0, 0], sizes = [8, 1, 8, 128], strides = [1, 1, 1, 1]} : vector<8x2x8x128xf32> to vector<8x1x8x128xf32>
    %11 = vector.shape_cast %10 : vector<8x1x8x128xf32> to vector<8x8x128xf32>
    %12 = arith.maximumf %9, %11 : vector<8x8x128xf32>
    %13 = arith.truncf %12 : vector<8x8x128xf32> to vector<8x8x128xbf16>
    %c0_4 = arith.constant 0 : index
    %c0_5 = arith.constant 0 : index
    %c0_6 = arith.constant 0 : index
    %c0_7 = arith.constant 0 : index
    %14 = vector.load %arg3[%c0_4, %c0_5, %c0_6, %c0_7] : memref<1x8x8x128xbf16, #tpu.memory_space<vmem>>, vector<1x8x8x128xbf16>
    %15 = vector.shape_cast %14 : vector<1x8x8x128xbf16> to vector<8x8x128xbf16>
    %16 = vector.shape_cast %13 : vector<8x8x128xbf16> to vector<1x8x8x128xbf16>
    tpu.vector_store %arg3[%c0_4, %c0_5, %c0_6, %c0_7], %16 {strides = array<i32>} : memref<1x8x8x128xbf16, #tpu.memory_space<vmem>>, vector<1x8x8x128xbf16>,
    return
  }
  func.func @transform_0(%arg0: i32, %arg1: i32) -> (i32, i32, i32, i32, i32) {
    %c0_i32 = arith.constant 0 : i32
    %c0_i32_0 = arith.constant 0 : i32
    %c0_i32_1 = arith.constant 0 : i32
    %c0_i32_2 = arith.constant 0 : i32
    return %arg0, %arg1, %c0_i32, %c0_i32_0, %c0_i32_1 : i32, i32, i32, i32, i32
  }
  func.func @transform_1(%arg0: i32, %arg1: i32) -> (i32, i32, i32, i32) {
    %c0_i32 = arith.constant 0 : i32
    %c0_i32_0 = arith.constant 0 : i32
    %c0_i32_1 = arith.constant 0 : i32
    return %arg0, %arg1, %c0_i32, %c0_i32_0 : i32, i32, i32, i32
  }
}

module attributes {stable_mosaic.version = 11 : i64} {
  func.func @_conv3x3_kernel(%arg0: i32, %arg1: memref<2x8x8x256xbf16, #tpu.memory_space<vmem>>, %arg2: memref<2x1x8x256xbf16, #tpu.memory_space<vmem>>, %arg3: memref<2x1x8x256xbf16, #tpu.memory_space<vmem>>, %arg4: memref<3x768x256xbf16, #tpu.memory_space<vmem>>, %arg5: memref<1x256xf32, #tpu.memory_space<vmem>>, %arg6: memref<1x256xf32, #tpu.memory_space<vmem>>, %arg7: memref<2x1x64x256xbf16, #tpu.memory_space<vmem>>, %arg8: memref<1x2x256xf32, #tpu.memory_space<vmem>>) attributes {dimension_semantics = [#tpu.dimension_semantics<parallel>], iteration_bounds = array<i64: 1>, scalar_prefetch = 0 : i64, scratch_operands = 0 : i64, tpu.core_type = #tpu.core_type<tc>, window_params = [{transform_indices = @transform_0, window_bounds = array<i64: 2, 8, 8, 256>}, {transform_indices = @transform_1, window_bounds = array<i64: 2, 1, 8, 256>}, {transform_indices = @transform_2, window_bounds = array<i64: 2, 1, 8, 256>}, {pipeline_mode = #tpu.pipeline_mode<synchronous>, transform_indices = @transform_3, window_bounds = array<i64: 3, 768, 256>}, {pipeline_mode = #tpu.pipeline_mode<synchronous>, transform_indices = @transform_4, window_bounds = array<i64: 1, 256>}, {pipeline_mode = #tpu.pipeline_mode<synchronous>, transform_indices = @transform_5, window_bounds = array<i64: 1, 256>}, {transform_indices = @transform_6, window_bounds = array<i64: 2, 1, 64, 256>}, {transform_indices = @transform_7, window_bounds = array<i64: 1, 2, 256>}]} {
    %cst = arith.constant 0.000000e+00 : bf16
    %0 = vector.broadcast %cst : bf16 to vector<2x1x8x256xbf16>
    %c0_i32 = arith.constant 0 : i32
    %1 = arith.cmpi sgt, %arg0, %c0_i32 : i32
    %c0 = arith.constant 0 : index
    %c0_0 = arith.constant 0 : index
    %c0_1 = arith.constant 0 : index
    %c0_2 = arith.constant 0 : index
    %2 = vector.load %arg2[%c0, %c0_0, %c0_1, %c0_2] : memref<2x1x8x256xbf16, #tpu.memory_space<vmem>>, vector<2x1x8x256xbf16>
    %3 = arith.extf %2 : vector<2x1x8x256xbf16> to vector<2x1x8x256xf32>
    %c0_3 = arith.constant 0 : index
    %c0_4 = arith.constant 0 : index
    %4 = vector.load %arg5[%c0_3, %c0_4] : memref<1x256xf32, #tpu.memory_space<vmem>>, vector<1x256xf32>
    %5 = vector.shape_cast %4 : vector<1x256xf32> to vector<1x1x1x256xf32>
    %6 = vector.broadcast %5 : vector<1x1x1x256xf32> to vector<2x1x8x256xf32>
    %7 = arith.mulf %3, %6 : vector<2x1x8x256xf32>
    %c0_5 = arith.constant 0 : index
    %c0_6 = arith.constant 0 : index
    %8 = vector.load %arg6[%c0_5, %c0_6] : memref<1x256xf32, #tpu.memory_space<vmem>>, vector<1x256xf32>
    %9 = vector.shape_cast %8 : vector<1x256xf32> to vector<1x1x1x256xf32>
    %10 = vector.broadcast %9 : vector<1x1x1x256xf32> to vector<2x1x8x256xf32>
    %11 = arith.addf %7, %10 : vector<2x1x8x256xf32>
    %cst_7 = arith.constant 0.000000e+00 : f32
    %12 = vector.broadcast %cst_7 : f32 to vector<2x1x8x256xf32>
    %13 = arith.maximumf %11, %12 : vector<2x1x8x256xf32>
    %14 = arith.truncf %13 : vector<2x1x8x256xf32> to vector<2x1x8x256xbf16>
    %15 = arith.select %1, %14, %0 : vector<2x1x8x256xbf16>
    %c0_i32_8 = arith.constant 0 : i32
    %16 = arith.cmpi slt, %arg0, %c0_i32_8 : i32
    %c0_9 = arith.constant 0 : index
    %c0_10 = arith.constant 0 : index
    %c0_11 = arith.constant 0 : index
    %c0_12 = arith.constant 0 : index
    %17 = vector.load %arg3[%c0_9, %c0_10, %c0_11, %c0_12] : memref<2x1x8x256xbf16, #tpu.memory_space<vmem>>, vector<2x1x8x256xbf16>
    %18 = arith.extf %17 : vector<2x1x8x256xbf16> to vector<2x1x8x256xf32>
    %c0_13 = arith.constant 0 : index
    %c0_14 = arith.constant 0 : index
    %19 = vector.load %arg5[%c0_13, %c0_14] : memref<1x256xf32, #tpu.memory_space<vmem>>, vector<1x256xf32>
    %20 = vector.shape_cast %19 : vector<1x256xf32> to vector<1x1x1x256xf32>
    %21 = vector.broadcast %20 : vector<1x1x1x256xf32> to vector<2x1x8x256xf32>
    %22 = arith.mulf %18, %21 : vector<2x1x8x256xf32>
    %c0_15 = arith.constant 0 : index
    %c0_16 = arith.constant 0 : index
    %23 = vector.load %arg6[%c0_15, %c0_16] : memref<1x256xf32, #tpu.memory_space<vmem>>, vector<1x256xf32>
    %24 = vector.shape_cast %23 : vector<1x256xf32> to vector<1x1x1x256xf32>
    %25 = vector.broadcast %24 : vector<1x1x1x256xf32> to vector<2x1x8x256xf32>
    %26 = arith.addf %22, %25 : vector<2x1x8x256xf32>
    %cst_17 = arith.constant 0.000000e+00 : f32
    %27 = vector.broadcast %cst_17 : f32 to vector<2x1x8x256xf32>
    %28 = arith.maximumf %26, %27 : vector<2x1x8x256xf32>
    %29 = arith.truncf %28 : vector<2x1x8x256xf32> to vector<2x1x8x256xbf16>
    %30 = arith.select %16, %29, %0 : vector<2x1x8x256xbf16>
    %c0_18 = arith.constant 0 : index
    %c0_19 = arith.constant 0 : index
    %c0_20 = arith.constant 0 : index
    %c0_21 = arith.constant 0 : index
    %31 = vector.load %arg1[%c0_18, %c0_19, %c0_20, %c0_21] : memref<2x8x8x256xbf16, #tpu.memory_space<vmem>>, vector<2x8x8x256xbf16>
    %32 = arith.extf %31 : vector<2x8x8x256xbf16> to vector<2x8x8x256xf32>
    %c0_22 = arith.constant 0 : index
    %c0_23 = arith.constant 0 : index
    %33 = vector.load %arg5[%c0_22, %c0_23] : memref<1x256xf32, #tpu.memory_space<vmem>>, vector<1x256xf32>
    %34 = vector.shape_cast %33 : vector<1x256xf32> to vector<1x1x1x256xf32>
    %35 = vector.broadcast %34 : vector<1x1x1x256xf32> to vector<2x8x8x256xf32>
    %36 = arith.mulf %32, %35 : vector<2x8x8x256xf32>
    %c0_24 = arith.constant 0 : index
    %c0_25 = arith.constant 0 : index
    %37 = vector.load %arg6[%c0_24, %c0_25] : memref<1x256xf32, #tpu.memory_space<vmem>>, vector<1x256xf32>
    %38 = vector.shape_cast %37 : vector<1x256xf32> to vector<1x1x1x256xf32>
    %39 = vector.broadcast %38 : vector<1x1x1x256xf32> to vector<2x8x8x256xf32>
    %40 = arith.addf %36, %39 : vector<2x8x8x256xf32>
    %cst_26 = arith.constant 0.000000e+00 : f32
    %41 = vector.broadcast %cst_26 : f32 to vector<2x8x8x256xf32>
    %42 = arith.maximumf %40, %41 : vector<2x8x8x256xf32>
    %43 = arith.truncf %42 : vector<2x8x8x256xf32> to vector<2x8x8x256xbf16>
    %44 = tpu.concatenate %15, %43, %30 in 1 : vector<2x1x8x256xbf16>, vector<2x8x8x256xbf16>, vector<2x1x8x256xbf16> -> vector<2x10x8x256xbf16>
    %cst_27 = arith.constant 0.000000e+00 : bf16
    %45 = vector.broadcast %cst_27 : bf16 to vector<2x10x1x256xbf16>
    %46 = tpu.concatenate %45, %44, %45 in 2 : vector<2x10x1x256xbf16>, vector<2x10x8x256xbf16>, vector<2x10x1x256xbf16> -> vector<2x10x10x256xbf16>
    %cst_28 = arith.constant 0.000000e+00 : f32
    %47 = vector.broadcast %cst_28 : f32 to vector<128x256xf32>
    %48 = vector.extract_strided_slice %46 {offsets = [0, 0, 0, 0], sizes = [2, 10, 8, 256], strides = [1, 1, 1, 1]} : vector<2x10x10x256xbf16> to vector<2x10x8x256xbf16>
    %49 = vector.extract_strided_slice %48 {offsets = [0, 0, 0, 0], sizes = [2, 8, 8, 256], strides = [1, 1, 1, 1]} : vector<2x10x8x256xbf16> to vector<2x8x8x256xbf16>
    %50 = vector.extract_strided_slice %48 {offsets = [0, 1, 0, 0], sizes = [2, 8, 8, 256], strides = [1, 1, 1, 1]} : vector<2x10x8x256xbf16> to vector<2x8x8x256xbf16>
    %51 = vector.extract_strided_slice %48 {offsets = [0, 2, 0, 0], sizes = [2, 8, 8, 256], strides = [1, 1, 1, 1]} : vector<2x10x8x256xbf16> to vector<2x8x8x256xbf16>
    %52 = tpu.concatenate %49, %50, %51 in 3 : vector<2x8x8x256xbf16>, vector<2x8x8x256xbf16>, vector<2x8x8x256xbf16> -> vector<2x8x8x768xbf16>
    %53 = vector.shape_cast %52 : vector<2x8x8x768xbf16> to vector<128x768xbf16>
    %c0_29 = arith.constant 0 : index
    %c0_30 = arith.constant 0 : index
    %c0_31 = arith.constant 0 : index
    %54 = vector.load %arg4[%c0_29, %c0_30, %c0_31] : memref<3x768x256xbf16, #tpu.memory_space<vmem>>, vector<1x768x256xbf16>
    %55 = vector.shape_cast %54 : vector<1x768x256xbf16> to vector<768x256xbf16>
    %cst_32 = arith.constant dense<0.000000e+00> : vector<128x256xf32>
    %56 = tpu.matmul %53, %55, %cst_32 {dimension_numbers = #tpu.dot_dimension_numbers<[1], [0], [0], [1], [0, 0, 1, 1], [], []>} : vector<128x768xbf16>, vector<768x256xbf16>, vector<128x256xf32> -> vector<128x256xf32>
    %57 = arith.addf %47, %56 : vector<128x256xf32>
    %58 = vector.extract_strided_slice %46 {offsets = [0, 0, 1, 0], sizes = [2, 10, 8, 256], strides = [1, 1, 1, 1]} : vector<2x10x10x256xbf16> to vector<2x10x8x256xbf16>
    %59 = vector.extract_strided_slice %58 {offsets = [0, 0, 0, 0], sizes = [2, 8, 8, 256], strides = [1, 1, 1, 1]} : vector<2x10x8x256xbf16> to vector<2x8x8x256xbf16>
    %60 = vector.extract_strided_slice %58 {offsets = [0, 1, 0, 0], sizes = [2, 8, 8, 256], strides = [1, 1, 1, 1]} : vector<2x10x8x256xbf16> to vector<2x8x8x256xbf16>
    %61 = vector.extract_strided_slice %58 {offsets = [0, 2, 0, 0], sizes = [2, 8, 8, 256], strides = [1, 1, 1, 1]} : vector<2x10x8x256xbf16> to vector<2x8x8x256xbf16>
    %62 = tpu.concatenate %59, %60, %61 in 3 : vector<2x8x8x256xbf16>, vector<2x8x8x256xbf16>, vector<2x8x8x256xbf16> -> vector<2x8x8x768xbf16>
    %63 = vector.shape_cast %62 : vector<2x8x8x768xbf16> to vector<128x768xbf16>
    %c1 = arith.constant 1 : index
    %c0_33 = arith.constant 0 : index
    %c0_34 = arith.constant 0 : index
    %64 = vector.load %arg4[%c1, %c0_33, %c0_34] : memref<3x768x256xbf16, #tpu.memory_space<vmem>>, vector<1x768x256xbf16>
    %65 = vector.shape_cast %64 : vector<1x768x256xbf16> to vector<768x256xbf16>
    %cst_35 = arith.constant dense<0.000000e+00> : vector<128x256xf32>
    %66 = tpu.matmul %63, %65, %cst_35 {dimension_numbers = #tpu.dot_dimension_numbers<[1], [0], [0], [1], [0, 0, 1, 1], [], []>} : vector<128x768xbf16>, vector<768x256xbf16>, vector<128x256xf32> -> vector<128x256xf32>
    %67 = arith.addf %57, %66 : vector<128x256xf32>
    %68 = vector.extract_strided_slice %46 {offsets = [0, 0, 2, 0], sizes = [2, 10, 8, 256], strides = [1, 1, 1, 1]} : vector<2x10x10x256xbf16> to vector<2x10x8x256xbf16>
    %69 = vector.extract_strided_slice %68 {offsets = [0, 0, 0, 0], sizes = [2, 8, 8, 256], strides = [1, 1, 1, 1]} : vector<2x10x8x256xbf16> to vector<2x8x8x256xbf16>
    %70 = vector.extract_strided_slice %68 {offsets = [0, 1, 0, 0], sizes = [2, 8, 8, 256], strides = [1, 1, 1, 1]} : vector<2x10x8x256xbf16> to vector<2x8x8x256xbf16>
    %71 = vector.extract_strided_slice %68 {offsets = [0, 2, 0, 0], sizes = [2, 8, 8, 256], strides = [1, 1, 1, 1]} : vector<2x10x8x256xbf16> to vector<2x8x8x256xbf16>
    %72 = tpu.concatenate %69, %70, %71 in 3 : vector<2x8x8x256xbf16>, vector<2x8x8x256xbf16>, vector<2x8x8x256xbf16> -> vector<2x8x8x768xbf16>
    %73 = vector.shape_cast %72 : vector<2x8x8x768xbf16> to vector<128x768xbf16>
    %c2 = arith.constant 2 : index
    %c0_36 = arith.constant 0 : index
    %c0_37 = arith.constant 0 : index
    %74 = vector.load %arg4[%c2, %c0_36, %c0_37] : memref<3x768x256xbf16, #tpu.memory_space<vmem>>, vector<1x768x256xbf16>
    %75 = vector.shape_cast %74 : vector<1x768x256xbf16> to vector<768x256xbf16>
    %cst_38 = arith.constant dense<0.000000e+00> : vector<128x256xf32>
    %76 = tpu.matmul %73, %75, %cst_38 {dimension_numbers = #tpu.dot_dimension_numbers<[1], [0], [0], [1], [0, 0, 1, 1], [], []>} : vector<128x768xbf16>, vector<768x256xbf16>, vector<128x256xf32> -> vector<128x256xf32>
    %77 = arith.addf %67, %76 : vector<128x256xf32>
    %cst_39 = arith.constant dense<0.000000e+00> : vector<256xf32>
    %78 = vector.multi_reduction <add>, %77, %cst_39 [0] : vector<128x256xf32> to vector<256xf32>
    %79 = vector.shape_cast %78 : vector<256xf32> to vector<1x256xf32>
    %80 = arith.mulf %77, %77 : vector<128x256xf32>
    %cst_40 = arith.constant dense<0.000000e+00> : vector<256xf32>
    %81 = vector.multi_reduction <add>, %80, %cst_40 [0] : vector<128x256xf32> to vector<256xf32>
    %82 = vector.shape_cast %81 : vector<256xf32> to vector<1x256xf32>
    %83 = tpu.concatenate %79, %82 in 0 : vector<1x256xf32>, vector<1x256xf32> -> vector<2x256xf32>
    %c0_41 = arith.constant 0 : index
    %c0_42 = arith.constant 0 : index
    %c0_43 = arith.constant 0 : index
    %84 = vector.load %arg8[%c0_41, %c0_42, %c0_43] : memref<1x2x256xf32, #tpu.memory_space<vmem>>, vector<1x2x256xf32>
    %85 = vector.shape_cast %84 : vector<1x2x256xf32> to vector<2x256xf32>
    %86 = vector.shape_cast %83 : vector<2x256xf32> to vector<1x2x256xf32>
    tpu.vector_store %arg8[%c0_41, %c0_42, %c0_43], %86 {strides = array<i32>} : memref<1x2x256xf32, #tpu.memory_space<vmem>>, vector<1x2x256xf32>,
    %87 = vector.shape_cast %77 : vector<128x256xf32> to vector<2x64x256xf32>
    %88 = arith.truncf %87 : vector<2x64x256xf32> to vector<2x64x256xbf16>
    %c0_44 = arith.constant 0 : index
    %c0_45 = arith.constant 0 : index
    %c0_46 = arith.constant 0 : index
    %c0_47 = arith.constant 0 : index
    %89 = vector.load %arg7[%c0_44, %c0_45, %c0_46, %c0_47] : memref<2x1x64x256xbf16, #tpu.memory_space<vmem>>, vector<2x1x64x256xbf16>
    %90 = vector.shape_cast %89 : vector<2x1x64x256xbf16> to vector<2x64x256xbf16>
    %91 = vector.shape_cast %88 : vector<2x64x256xbf16> to vector<2x1x64x256xbf16>
    tpu.vector_store %arg7[%c0_44, %c0_45, %c0_46, %c0_47], %91 {strides = array<i32>} : memref<2x1x64x256xbf16, #tpu.memory_space<vmem>>, vector<2x1x64x256xbf16>,
    return
  }
  func.func @transform_0(%arg0: i32) -> (i32, i32, i32, i32) {
    %c0_i32 = arith.constant 0 : i32
    %c0_i32_0 = arith.constant 0 : i32
    %c0_i32_1 = arith.constant 0 : i32
    %c0_i32_2 = arith.constant 0 : i32
    return %c0_i32, %arg0, %c0_i32_0, %c0_i32_1 : i32, i32, i32, i32
  }
  func.func @transform_1(%arg0: i32) -> (i32, i32, i32, i32) {
    %c8_i32 = arith.constant 8 : i32
    %0 = arith.muli %arg0, %c8_i32 : i32
    %c1_i32 = arith.constant 1 : i32
    %1 = arith.subi %0, %c1_i32 : i32
    %c0_i32 = arith.constant 0 : i32
    %2 = arith.maxsi %1, %c0_i32 : i32
    %c0_i32_0 = arith.constant 0 : i32
    %c0_i32_1 = arith.constant 0 : i32
    %c0_i32_2 = arith.constant 0 : i32
    %c0_i32_3 = arith.constant 0 : i32
    return %c0_i32_0, %2, %c0_i32_1, %c0_i32_2 : i32, i32, i32, i32
  }
  func.func @transform_2(%arg0: i32) -> (i32, i32, i32, i32) {
    %c1_i32 = arith.constant 1 : i32
    %0 = arith.addi %arg0, %c1_i32 : i32
    %c8_i32 = arith.constant 8 : i32
    %1 = arith.muli %0, %c8_i32 : i32
    %c7_i32 = arith.constant 7 : i32
    %2 = arith.minsi %1, %c7_i32 : i32
    %c0_i32 = arith.constant 0 : i32
    %c0_i32_0 = arith.constant 0 : i32
    %c0_i32_1 = arith.constant 0 : i32
    %c0_i32_2 = arith.constant 0 : i32
    return %c0_i32, %2, %c0_i32_0, %c0_i32_1 : i32, i32, i32, i32
  }
  func.func @transform_3(%arg0: i32) -> (i32, i32, i32) {
    %c0_i32 = arith.constant 0 : i32
    %c0_i32_0 = arith.constant 0 : i32
    %c0_i32_1 = arith.constant 0 : i32
    %c0_i32_2 = arith.constant 0 : i32
    return %c0_i32, %c0_i32_0, %c0_i32_1 : i32, i32, i32
  }
  func.func @transform_4(%arg0: i32) -> (i32, i32) {
    %c0_i32 = arith.constant 0 : i32
    %c0_i32_0 = arith.constant 0 : i32
    %c0_i32_1 = arith.constant 0 : i32
    return %c0_i32, %c0_i32_0 : i32, i32
  }
  func.func @transform_5(%arg0: i32) -> (i32, i32) {
    %c0_i32 = arith.constant 0 : i32
    %c0_i32_0 = arith.constant 0 : i32
    %c0_i32_1 = arith.constant 0 : i32
    return %c0_i32, %c0_i32_0 : i32, i32
  }
  func.func @transform_6(%arg0: i32) -> (i32, i32, i32, i32) {
    %c0_i32 = arith.constant 0 : i32
    %c0_i32_0 = arith.constant 0 : i32
    %c0_i32_1 = arith.constant 0 : i32
    %c0_i32_2 = arith.constant 0 : i32
    return %c0_i32, %arg0, %c0_i32_0, %c0_i32_1 : i32, i32, i32, i32
  }
  func.func @transform_7(%arg0: i32) -> (i32, i32, i32) {
    %c0_i32 = arith.constant 0 : i32
    %c0_i32_0 = arith.constant 0 : i32
    %c0_i32_1 = arith.constant 0 : i32
    return %arg0, %c0_i32, %c0_i32_0 : i32, i32, i32
  }
}

module attributes {stable_mosaic.version = 11 : i64} {
  func.func @_bn_relu_kernel(%arg0: i32, %arg1: memref<128x256xbf16, #tpu.memory_space<vmem>>, %arg2: memref<1x256xf32, #tpu.memory_space<vmem>>, %arg3: memref<1x256xf32, #tpu.memory_space<vmem>>, %arg4: memref<128x256xf32, #tpu.memory_space<vmem>>) attributes {dimension_semantics = [#tpu.dimension_semantics<parallel>], iteration_bounds = array<i64: 1>, scalar_prefetch = 0 : i64, scratch_operands = 0 : i64, tpu.core_type = #tpu.core_type<tc>, window_params = [{transform_indices = @transform_0, window_bounds = array<i64: 128, 256>}, {pipeline_mode = #tpu.pipeline_mode<synchronous>, transform_indices = @transform_1, window_bounds = array<i64: 1, 256>}, {pipeline_mode = #tpu.pipeline_mode<synchronous>, transform_indices = @transform_2, window_bounds = array<i64: 1, 256>}, {transform_indices = @transform_3, window_bounds = array<i64: 128, 256>}]} {
    %c0 = arith.constant 0 : index
    %c0_0 = arith.constant 0 : index
    %0 = vector.load %arg1[%c0, %c0_0] : memref<128x256xbf16, #tpu.memory_space<vmem>>, vector<128x256xbf16>
    %1 = arith.extf %0 : vector<128x256xbf16> to vector<128x256xf32>
    %c0_1 = arith.constant 0 : index
    %c0_2 = arith.constant 0 : index
    %2 = vector.load %arg2[%c0_1, %c0_2] : memref<1x256xf32, #tpu.memory_space<vmem>>, vector<1x256xf32>
    %3 = vector.broadcast %2 : vector<1x256xf32> to vector<128x256xf32>
    %4 = arith.mulf %1, %3 : vector<128x256xf32>
    %c0_3 = arith.constant 0 : index
    %c0_4 = arith.constant 0 : index
    %5 = vector.load %arg3[%c0_3, %c0_4] : memref<1x256xf32, #tpu.memory_space<vmem>>, vector<1x256xf32>
    %6 = vector.broadcast %5 : vector<1x256xf32> to vector<128x256xf32>
    %7 = arith.addf %4, %6 : vector<128x256xf32>
    %cst = arith.constant 0.000000e+00 : f32
    %8 = vector.broadcast %cst : f32 to vector<128x256xf32>
    %9 = arith.maximumf %7, %8 : vector<128x256xf32>
    %c0_5 = arith.constant 0 : index
    %c0_6 = arith.constant 0 : index
    %10 = vector.load %arg4[%c0_5, %c0_6] : memref<128x256xf32, #tpu.memory_space<vmem>>, vector<128x256xf32>
    tpu.vector_store %arg4[%c0_5, %c0_6], %9 {strides = array<i32>} : memref<128x256xf32, #tpu.memory_space<vmem>>, vector<128x256xf32>,
    return
  }
  func.func @transform_0(%arg0: i32) -> (i32, i32) {
    %c0_i32 = arith.constant 0 : i32
    %c0_i32_0 = arith.constant 0 : i32
    return %arg0, %c0_i32 : i32, i32
  }
  func.func @transform_1(%arg0: i32) -> (i32, i32) {
    %c0_i32 = arith.constant 0 : i32
    %c0_i32_0 = arith.constant 0 : i32
    %c0_i32_1 = arith.constant 0 : i32
    return %c0_i32, %c0_i32_0 : i32, i32
  }
  func.func @transform_2(%arg0: i32) -> (i32, i32) {
    %c0_i32 = arith.constant 0 : i32
    %c0_i32_0 = arith.constant 0 : i32
    %c0_i32_1 = arith.constant 0 : i32
    return %c0_i32, %c0_i32_0 : i32, i32
  }
  func.func @transform_3(%arg0: i32) -> (i32, i32) {
    %c0_i32 = arith.constant 0 : i32
    %c0_i32_0 = arith.constant 0 : i32
    return %arg0, %c0_i32 : i32, i32
  }
}

</mosaic_0001>

<llo_original>
// kernel: down_forward.4
$region0: #{down_forward.4}
  #allocation0 [shape = 'u32[]', space=smem, size = 0x4, offset = 0x4, fixed_abs, tag = 'smem constant byte address 0x4 - core index']
  #allocation1 [shape = 'u32[72,128]{1,0:T(1,128)}', space=vmem, size = 0x9000, scoped, tag = 'internal scratch']
  %s0 = inlined_call_operand.hbm [shape: f32[2,16,8,2,128], index: 0, kind: input, shape index: {}]
  %s1 = inlined_call_operand.vmem [shape: bf16[2,8,8,128], index: 1, kind: output, shape index: {}]
  %s2 = sld [smem:[#allocation0]]
  $region41: #{down_forward.4} parent=0
    _
  %s4 = ssub.s32 1, %s2
  %s5 = scalar_select 0, %s4, %s2
  $region1: #{down_forward.4} parent=0
    #allocation2 [shape = 'u8[262144]{0}', space=vmem, size = 0x40000, scoped, tag = 'input window, operand 0']
    #allocation3 [shape = 's32[2]{0}', space=sflag, size = 0x8, scoped, tag = 'scoped memory for down_forward.4']
    %6 = vsyncpa [#allocation3], 0
    %s7 = scalar_lea.sflag [#allocation3], 1
    %8 = vsyncpa %s7, 0
    loop: start=0, step=1, limit=4
    $region2: #{down_forward.4} parent=1 // loop_pre_header
      _
    $region3: #{down_forward.4} parent=1 // loop_header
      %s10 = sphi 0, %s14
      %p11 = scmp.ge.s32.totalorder %s10, 4
      %s17 = sphi 0, %s29
      %s18 = sphi 0, %s25
      %s19 = sphi 0, %s17
      %s20 = sphi 0, %s18
      %s21 = sphi 0, %s19
      %s22 = sphi 0, %s20
      %s34 = sphi 0, %s36
      %s37 = sphi 0, %s34
      %s38 = sphi 0, %s37
      %s54 = sphi 0, %s38
      %s62 = sphi 0, %s64
      %s65 = sphi 0, %s62
      %s66 = sphi 0, %s65
      %s82 = sphi 0, %s66
    $region4: #{down_forward.4} parent=1 // loop_header_branch
      %13 = sbr.rel (%p11) target = $region8
    $region5: #{down_forward.4} parent=1 // loop_body
      %s15 = ssub.s32 %s10, 1
      %s16 = ssub.s32 %s10, 2
      %s23 = sadd.s32 1, %s18
      %p24 = scmp.ge.s32.totalorder %s23, 1
      %s25 = scalar_select %p24, 0, %s23
      %s26 = sadd.s32 1, %s17
      %s27 = scalar_select %p24, %s26, %s17
      %p28 = scmp.ge.s32.totalorder %s27, 2
      %s29 = scalar_select %p28, 0, %s27
      %s30 = ssub.s32 %s17, %s29
      %s31 = ssub.s32 %s18, %s25
      %s32 = sor.u32 %s30, %s31
      %p33 = scmp.eq.s32.totalorder %s32, 0
      %s35 = sadd.s32 %s34, 1
      %s36 = scalar_select %p33, %s34, %s35
      %p39 = pneg %p33
      %p40 = scmp.eq.s32.totalorder %s10, 1
      %p41 = por %p39, %p40
      %p42 = scmp.ne.s32.totalorder %s34, %s37
      %p43 = scmp.eq.s32.totalorder %s10, 0
      %p44 = por %p42, %p43
      %p45 = scmp.ne.s32.totalorder %s34, %s37
      %p46 = scmp.eq.s32.totalorder %s15, 1
      %p47 = por %p45, %p46
      %p48 = scmp.ne.s32.totalorder %s37, %s38
      %p49 = scmp.eq.s32.totalorder %s15, 0
      %p50 = por %p48, %p49
      %p51 = scmp.ne.s32.totalorder %s37, %s38
      %p52 = scmp.eq.s32.totalorder %s16, 1
      %p53 = por %p51, %p52
      %p55 = scmp.ne.s32.totalorder %s38, %s54
      %p56 = scmp.eq.s32.totalorder %s16, 0
      %p57 = por %p55, %p56
      %s58 = ssub.s32 %s17, %s29
      %s59 = ssub.s32 %s18, %s25
      %s60 = sor.u32 %s58, %s59
      %p61 = scmp.eq.s32.totalorder %s60, 0
      %s63 = sadd.s32 %s62, 1
      %s64 = scalar_select %p61, %s62, %s63
      %p67 = pneg %p61
      %p68 = scmp.eq.s32.totalorder %s10, 1
      %p69 = por %p67, %p68
      %p70 = scmp.ne.s32.totalorder %s62, %s65
      %p71 = scmp.eq.s32.totalorder %s10, 0
      %p72 = por %p70, %p71
      %p73 = scmp.ne.s32.totalorder %s62, %s65
      %p74 = scmp.eq.s32.totalorder %s15, 1
      %p75 = por %p73, %p74
      %p76 = scmp.ne.s32.totalorder %s65, %s66
      %p77 = scmp.eq.s32.totalorder %s15, 0
      %p78 = por %p76, %p77
      %p79 = scmp.ne.s32.totalorder %s65, %s66
      %p80 = scmp.eq.s32.totalorder %s16, 1
      %p81 = por %p79, %p80
      %p83 = scmp.ne.s32.totalorder %s66, %s82
      %p84 = scmp.eq.s32.totalorder %s16, 0
      %p85 = por %p83, %p84
      %p86 = scmp.le.s32.totalorder 1, %s10
      %p87 = scmp.lt.s32.totalorder %s10, 3
      %p88 = pnand %p86, %p87
      %p89 = pneg %p88
      // Predicated region
      $region9: #{down_forward.4} parent=5 // pred_check
        _
      $region10: #{down_forward.4} parent=5 // pred_check_branch
        %91 = sbr.rel (%p88) target = $region12
      $region11: #{down_forward.4} parent=5 // pred_region
        %s92 = ssub.s32 %s10, 1
      $region12: #{down_forward.4} parent=5 // pred_fallthru
        _
      %p93 = scmp.lt.s32.totalorder %s10, 2
      // Predicated region
      $region13: #{down_forward.4} parent=5 // pred_check
        %p94 = pneg %p93
      $region14: #{down_forward.4} parent=5 // pred_check_branch
        %96 = sbr.rel (%p94) target = $region16
      $region15: #{down_forward.4} parent=5 // pred_region
        // Predicated region
        $region17: #{down_forward.4} parent=15 // pred_check
          %p97 = pneg %p44
        $region18: #{down_forward.4} parent=15 // pred_check_branch
          %99 = sbr.rel (%p97) target = $region20
        $region19: #{down_forward.4} parent=15 // pred_region
          %s100 = sand.u32 %s34, 1
          %s101 = scalar_lea.sflag [#allocation3], %s100
          %s102 = sand.u32 %s34, 1
          %s103 = smul.addr %s102, 256
          %s104 = scalar_lea.vmem [#allocation2], %s103
          %s105 = smul.u32 16, %s18
          %107 = vsyncadd %s101, 0
          %s108 = smul.addr %s105, 8
          %s109 = smul.addr %s17, 128
          %s110 = sadd.s32 %s108, %s109
          %s111 = smul.addr %s110, 2
          %s112 = scalar_lea.hbm %s0, %s111
          %s113 = sshll.u32 %s112, 4
          %s114 = int_to_ptr.hbm [resolvable:$true] %s113
          %s115 = sshll.u32 %s104, 4
          %s116 = int_to_ptr.vmem [resolvable:$true] %s115
          %121 = dma.hbm_to_vmem [thread:$0]  %s114, 4096, %s116, %s101, 32, 32, 2
        $region20: #{down_forward.4} parent=15 // pred_fallthru
          _
      $region16: #{down_forward.4} parent=5 // pred_fallthru
        _
      %p122 = scmp.le.s32.totalorder 1, %s10
      %p123 = scmp.lt.s32.totalorder %s10, 3
      %p124 = pnand %p122, %p123
      %p125 = pneg %p124
      // Predicated region
      $region21: #{down_forward.4} parent=5 // pred_check
        _
      $region22: #{down_forward.4} parent=5 // pred_check_branch
        %127 = sbr.rel (%p124) target = $region24
      $region23: #{down_forward.4} parent=5 // pred_region
        %s128 = ssub.s32 %s10, 1
        %s129 = sand.u32 %s37, 1
        %s130 = scalar_lea.sflag [#allocation3], %s129
        %s131 = sand.u32 %s37, 1
        %s132 = smul.addr %s131, 256
        %s133 = scalar_lea.vmem [#allocation2], %s132
        // Predicated region
        $region25: #{down_forward.4} parent=23 // pred_check
          %p134 = pneg %p50
        $region26: #{down_forward.4} parent=23 // pred_check_branch
          %136 = sbr.rel (%p134) target = $region28
        $region27: #{down_forward.4} parent=23 // pred_region
          %138 = dma.done %s130, 4096
        $region28: #{down_forward.4} parent=23 // pred_fallthru
          _
        %s139 = sand.u32 %s37, 1
        %s140 = scalar_lea.sflag [#allocation3], %s139
        %s141 = sand.u32 %s37, 1
        %s142 = smul.addr %s141, 256
        %s143 = scalar_lea.vmem [#allocation2], %s142
        %p144 = pneg %p50
        %p145 = pneg %p47
        %p146 = pneg %p78
        %p147 = pneg %p75
        %s148 = smul.u32 8, %s20
        %p149 = scmp.lt.s32.totalorder %s19, 1
        %s150 = scalar_select %p149, %s19, 1
        %p151 = scmp.lt.s32.totalorder %s148, 7
        %s152 = scalar_select %p151, %s148, 7
        %s153 = smul.addr %s150, 8
        %s154 = sadd.s32 %s152, %s153
        %s155 = smul.addr %s154, 4
        %s156 = scalar_lea.vmem %s1, %s155
        %s157 = smul.u32 16, %s20
        %s158 = smul.u32 8, %s20
        %p159 = scmp.lt.s32.totalorder %s19, 1
        %s160 = scalar_select %p159, %s19, 1
        %p161 = scmp.lt.s32.totalorder %s158, 7
        %s162 = scalar_select %p161, %s158, 7
        %s163 = smul.addr %s160, 8
        %s164 = sadd.s32 %s162, %s163
        %s165 = smul.addr %s164, 4
        %s166 = scalar_lea.vmem %s1, %s165
        %s167 = smul.u32 8, %s20
        %v168 = vld [vmem:[%s133] sm:$0x3]
        %v169 = vld [vmem:[%s133 + $0x2] sm:$0x3]
        %v170 = vld [vmem:[%s133 + $0x4] sm:$0x3]
        %v171 = vld [vmem:[%s133 + $0x6] sm:$0x3]
        %v172 = vld [vmem:[%s133 + $0x8] sm:$0x3]
        %v173 = vld [vmem:[%s133 + $0xa] sm:$0x3]
        %v174 = vld [vmem:[%s133 + $0xc] sm:$0x3]
        %v175 = vld [vmem:[%s133 + $0xe] sm:$0x3]
        %v176 = vld [vmem:[%s133 + $0x10] sm:$0x3]
        %v177 = vld [vmem:[%s133 + $0x12] sm:$0x3]
        %v178 = vld [vmem:[%s133 + $0x14] sm:$0x3]
        %v179 = vld [vmem:[%s133 + $0x16] sm:$0x3]
        %v180 = vld [vmem:[%s133 + $0x18] sm:$0x3]
        %v181 = vld [vmem:[%s133 + $0x1a] sm:$0x3]
        %v182 = vld [vmem:[%s133 + $0x1c] sm:$0x3]
        %v183 = vld [vmem:[%s133 + $0x1e] sm:$0x3]
        %v184 = vld [vmem:[%s133 + $0x20] sm:$0x3]
        %v185 = vld [vmem:[%s133 + $0x22] sm:$0x3]
        %v186 = vld [vmem:[%s133 + $0x24] sm:$0x3]
        %v187 = vld [vmem:[%s133 + $0x26] sm:$0x3]
        %v188 = vld [vmem:[%s133 + $0x28] sm:$0x3]
        %v189 = vld [vmem:[%s133 + $0x2a] sm:$0x3]
        %v190 = vld [vmem:[%s133 + $0x2c] sm:$0x3]
        %v191 = vld [vmem:[%s133 + $0x2e] sm:$0x3]
        %v192 = vld [vmem:[%s133 + $0x30] sm:$0x3]
        %v193 = vld [vmem:[%s133 + $0x32] sm:$0x3]
        %v194 = vld [vmem:[%s133 + $0x34] sm:$0x3]
        %v195 = vld [vmem:[%s133 + $0x36] sm:$0x3]
        %v196 = vld [vmem:[%s133 + $0x38] sm:$0x3]
        %v197 = vld [vmem:[%s133 + $0x3a] sm:$0x3]
        %v198 = vld [vmem:[%s133 + $0x3c] sm:$0x3]
        %v199 = vld [vmem:[%s133 + $0x3e] sm:$0x3]
        %v200 = vld [vmem:[%s133 + $0x40] sm:$0x3]
        %v201 = vld [vmem:[%s133 + $0x42] sm:$0x3]
        %v202 = vld [vmem:[%s133 + $0x44] sm:$0x3]
        %v203 = vld [vmem:[%s133 + $0x46] sm:$0x3]
        %v204 = vld [vmem:[%s133 + $0x48] sm:$0x3]
        %v205 = vld [vmem:[%s133 + $0x4a] sm:$0x3]
        %v206 = vld [vmem:[%s133 + $0x4c] sm:$0x3]
        %v207 = vld [vmem:[%s133 + $0x4e] sm:$0x3]
        %v208 = vld [vmem:[%s133 + $0x50] sm:$0x3]
        %v209 = vld [vmem:[%s133 + $0x52] sm:$0x3]
        %v210 = vld [vmem:[%s133 + $0x54] sm:$0x3]
        %v211 = vld [vmem:[%s133 + $0x56] sm:$0x3]
        %v212 = vld [vmem:[%s133 + $0x58] sm:$0x3]
        %v213 = vld [vmem:[%s133 + $0x5a] sm:$0x3]
        %v214 = vld [vmem:[%s133 + $0x5c] sm:$0x3]
        %v215 = vld [vmem:[%s133 + $0x5e] sm:$0x3]
        %v216 = vld [vmem:[%s133 + $0x60] sm:$0x3]
        %v217 = vld [vmem:[%s133 + $0x62] sm:$0x3]
        %v218 = vld [vmem:[%s133 + $0x64] sm:$0x3]
        %v219 = vld [vmem:[%s133 + $0x66] sm:$0x3]
        %v220 = vld [vmem:[%s133 + $0x68] sm:$0x3]
        %v221 = vld [vmem:[%s133 + $0x6a] sm:$0x3]
        %v222 = vld [vmem:[%s133 + $0x6c] sm:$0x3]
        %v223 = vld [vmem:[%s133 + $0x6e] sm:$0x3]
        %v224 = vld [vmem:[%s133 + $0x70] sm:$0x3]
        %v225 = vld [vmem:[%s133 + $0x72] sm:$0x3]
        %v226 = vld [vmem:[%s133 + $0x74] sm:$0x3]
        %v227 = vld [vmem:[%s133 + $0x76] sm:$0x3]
        %v228 = vld [vmem:[%s133 + $0x78] sm:$0x3]
        %v229 = vld [vmem:[%s133 + $0x7a] sm:$0x3]
        %v230 = vld [vmem:[%s133 + $0x7c] sm:$0x3]
        %v231 = vld [vmem:[%s133 + $0x7e] sm:$0x3]
        %v232 = vld [vmem:[%s133 + $0x80] sm:$0x3]
        %v233 = vld [vmem:[%s133 + $0x82] sm:$0x3]
        %v234 = vld [vmem:[%s133 + $0x84] sm:$0x3]
        %v235 = vld [vmem:[%s133 + $0x86] sm:$0x3]
        %v236 = vld [vmem:[%s133 + $0x88] sm:$0x3]
        %v237 = vld [vmem:[%s133 + $0x8a] sm:$0x3]
        %v238 = vld [vmem:[%s133 + $0x8c] sm:$0x3]
        %v239 = vld [vmem:[%s133 + $0x8e] sm:$0x3]
        %v240 = vld [vmem:[%s133 + $0x90] sm:$0x3]
        %v241 = vld [vmem:[%s133 + $0x92] sm:$0x3]
        %v242 = vld [vmem:[%s133 + $0x94] sm:$0x3]
        %v243 = vld [vmem:[%s133 + $0x96] sm:$0x3]
        %v244 = vld [vmem:[%s133 + $0x98] sm:$0x3]
        %v245 = vld [vmem:[%s133 + $0x9a] sm:$0x3]
        %v246 = vld [vmem:[%s133 + $0x9c] sm:$0x3]
        %v247 = vld [vmem:[%s133 + $0x9e] sm:$0x3]
        %v248 = vld [vmem:[%s133 + $0xa0] sm:$0x3]
        %v249 = vld [vmem:[%s133 + $0xa2] sm:$0x3]
        %v250 = vld [vmem:[%s133 + $0xa4] sm:$0x3]
        %v251 = vld [vmem:[%s133 + $0xa6] sm:$0x3]
        %v252 = vld [vmem:[%s133 + $0xa8] sm:$0x3]
        %v253 = vld [vmem:[%s133 + $0xaa] sm:$0x3]
        %v254 = vld [vmem:[%s133 + $0xac] sm:$0x3]
        %v255 = vld [vmem:[%s133 + $0xae] sm:$0x3]
        %v256 = vld [vmem:[%s133 + $0xb0] sm:$0x3]
        %v257 = vld [vmem:[%s133 + $0xb2] sm:$0x3]
        %v258 = vld [vmem:[%s133 + $0xb4] sm:$0x3]
        %v259 = vld [vmem:[%s133 + $0xb6] sm:$0x3]
        %v260 = vld [vmem:[%s133 + $0xb8] sm:$0x3]
        %v261 = vld [vmem:[%s133 + $0xba] sm:$0x3]
        %v262 = vld [vmem:[%s133 + $0xbc] sm:$0x3]
        %v263 = vld [vmem:[%s133 + $0xbe] sm:$0x3]
        %v264 = vld [vmem:[%s133 + $0xc0] sm:$0x3]
        %v265 = vld [vmem:[%s133 + $0xc2] sm:$0x3]
        %v266 = vld [vmem:[%s133 + $0xc4] sm:$0x3]
        %v267 = vld [vmem:[%s133 + $0xc6] sm:$0x3]
        %v268 = vld [vmem:[%s133 + $0xc8] sm:$0x3]
        %v269 = vld [vmem:[%s133 + $0xca] sm:$0x3]
        %v270 = vld [vmem:[%s133 + $0xcc] sm:$0x3]
        %v271 = vld [vmem:[%s133 + $0xce] sm:$0x3]
        %v272 = vld [vmem:[%s133 + $0xd0] sm:$0x3]
        %v273 = vld [vmem:[%s133 + $0xd2] sm:$0x3]
        %v274 = vld [vmem:[%s133 + $0xd4] sm:$0x3]
        %v275 = vld [vmem:[%s133 + $0xd6] sm:$0x3]
        %v276 = vld [vmem:[%s133 + $0xd8] sm:$0x3]
        %v277 = vld [vmem:[%s133 + $0xda] sm:$0x3]
        %v278 = vld [vmem:[%s133 + $0xdc] sm:$0x3]
        %v279 = vld [vmem:[%s133 + $0xde] sm:$0x3]
        %v280 = vld [vmem:[%s133 + $0xe0] sm:$0x3]
        %v281 = vld [vmem:[%s133 + $0xe2] sm:$0x3]
        %v282 = vld [vmem:[%s133 + $0xe4] sm:$0x3]
        %v283 = vld [vmem:[%s133 + $0xe6] sm:$0x3]
        %v284 = vld [vmem:[%s133 + $0xe8] sm:$0x3]
        %v285 = vld [vmem:[%s133 + $0xea] sm:$0x3]
        %v286 = vld [vmem:[%s133 + $0xec] sm:$0x3]
        %v287 = vld [vmem:[%s133 + $0xee] sm:$0x3]
        %v288 = vld [vmem:[%s133 + $0xf0] sm:$0x3]
        %v289 = vld [vmem:[%s133 + $0xf2] sm:$0x3]
        %v290 = vld [vmem:[%s133 + $0xf4] sm:$0x3]
        %v291 = vld [vmem:[%s133 + $0xf6] sm:$0x3]
        %v292 = vld [vmem:[%s133 + $0xf8] sm:$0x3]
        %v293 = vld [vmem:[%s133 + $0xfa] sm:$0x3]
        %v294 = vld [vmem:[%s133 + $0xfc] sm:$0x3]
        %v295 = vld [vmem:[%s133 + $0xfe] sm:$0x3]
        %v424 = vrot.slane %v168, 1
        %v425 = vrot.slane %v169, 1
        %v426 = vrot.slane %v170, 1
        %v427 = vrot.slane %v171, 1
        %v428 = vrot.slane %v172, 1
        %v429 = vrot.slane %v173, 1
        %v430 = vrot.slane %v174, 1
        %v431 = vrot.slane %v175, 1
        %v432 = vrot.slane %v176, 1
        %v433 = vrot.slane %v177, 1
        %v434 = vrot.slane %v178, 1
        %v435 = vrot.slane %v179, 1
        %v436 = vrot.slane %v180, 1
        %v437 = vrot.slane %v181, 1
        %v438 = vrot.slane %v182, 1
        %v439 = vrot.slane %v183, 1
        %v440 = vrot.slane %v184, 1
        %v441 = vrot.slane %v185, 1
        %v442 = vrot.slane %v186, 1
        %v443 = vrot.slane %v187, 1
        %v444 = vrot.slane %v188, 1
        %v445 = vrot.slane %v189, 1
        %v446 = vrot.slane %v190, 1
        %v447 = vrot.slane %v191, 1
        %v448 = vrot.slane %v192, 1
        %v449 = vrot.slane %v193, 1
        %v450 = vrot.slane %v194, 1
        %v451 = vrot.slane %v195, 1
        %v452 = vrot.slane %v196, 1
        %v453 = vrot.slane %v197, 1
        %v454 = vrot.slane %v198, 1
        %v455 = vrot.slane %v199, 1
        %v456 = vrot.slane %v200, 1
        %v457 = vrot.slane %v201, 1
        %v458 = vrot.slane %v202, 1
        %v459 = vrot.slane %v203, 1
        %v460 = vrot.slane %v204, 1
        %v461 = vrot.slane %v205, 1
        %v462 = vrot.slane %v206, 1
        %v463 = vrot.slane %v207, 1
        %v464 = vrot.slane %v208, 1
        %v465 = vrot.slane %v209, 1
        %v466 = vrot.slane %v210, 1
        %v467 = vrot.slane %v211, 1
        %v468 = vrot.slane %v212, 1
        %v469 = vrot.slane %v213, 1
        %v470 = vrot.slane %v214, 1
        %v471 = vrot.slane %v215, 1
        %v472 = vrot.slane %v216, 1
        %v473 = vrot.slane %v217, 1
        %v474 = vrot.slane %v218, 1
        %v475 = vrot.slane %v219, 1
        %v476 = vrot.slane %v220, 1
        %v477 = vrot.slane %v221, 1
        %v478 = vrot.slane %v222, 1
        %v479 = vrot.slane %v223, 1
        %v480 = vrot.slane %v224, 1
        %v481 = vrot.slane %v225, 1
        %v482 = vrot.slane %v226, 1
        %v483 = vrot.slane %v227, 1
        %v484 = vrot.slane %v228, 1
        %v485 = vrot.slane %v229, 1
        %v486 = vrot.slane %v230, 1
        %v487 = vrot.slane %v231, 1
        %v488 = vrot.slane %v232, 1
        %v489 = vrot.slane %v233, 1
        %v490 = vrot.slane %v234, 1
        %v491 = vrot.slane %v235, 1
        %v492 = vrot.slane %v236, 1
        %v493 = vrot.slane %v237, 1
        %v494 = vrot.slane %v238, 1
        %v495 = vrot.slane %v239, 1
        %v496 = vrot.slane %v240, 1
        %v497 = vrot.slane %v241, 1
        %v498 = vrot.slane %v242, 1
        %v499 = vrot.slane %v243, 1
        %v500 = vrot.slane %v244, 1
        %v501 = vrot.slane %v245, 1
        %v502 = vrot.slane %v246, 1
        %v503 = vrot.slane %v247, 1
        %v504 = vrot.slane %v248, 1
        %v505 = vrot.slane %v249, 1
        %v506 = vrot.slane %v250, 1
        %v507 = vrot.slane %v251, 1
        %v508 = vrot.slane %v252, 1
        %v509 = vrot.slane %v253, 1
        %v510 = vrot.slane %v254, 1
        %v511 = vrot.slane %v255, 1
        %v512 = vrot.slane %v256, 1
        %v513 = vrot.slane %v257, 1
        %v514 = vrot.slane %v258, 1
        %v515 = vrot.slane %v259, 1
        %v516 = vrot.slane %v260, 1
        %v517 = vrot.slane %v261, 1
        %v518 = vrot.slane %v262, 1
        %v519 = vrot.slane %v263, 1
        %v520 = vrot.slane %v264, 1
        %v521 = vrot.slane %v265, 1
        %v522 = vrot.slane %v266, 1
        %v523 = vrot.slane %v267, 1
        %v524 = vrot.slane %v268, 1
        %v525 = vrot.slane %v269, 1
        %v526 = vrot.slane %v270, 1
        %v527 = vrot.slane %v271, 1
        %v528 = vrot.slane %v272, 1
        %v529 = vrot.slane %v273, 1
        %v530 = vrot.slane %v274, 1
        %v531 = vrot.slane %v275, 1
        %v532 = vrot.slane %v276, 1
        %v533 = vrot.slane %v277, 1
        %v534 = vrot.slane %v278, 1
        %v535 = vrot.slane %v279, 1
        %v536 = vrot.slane %v280, 1
        %v537 = vrot.slane %v281, 1
        %v538 = vrot.slane %v282, 1
        %v539 = vrot.slane %v283, 1
        %v540 = vrot.slane %v284, 1
        %v541 = vrot.slane %v285, 1
        %v542 = vrot.slane %v286, 1
        %v543 = vrot.slane %v287, 1
        %v544 = vrot.slane %v288, 1
        %v545 = vrot.slane %v289, 1
        %v546 = vrot.slane %v290, 1
        %v547 = vrot.slane %v291, 1
        %v548 = vrot.slane %v292, 1
        %v549 = vrot.slane %v293, 1
        %v550 = vrot.slane %v294, 1
        %v551 = vrot.slane %v295, 1
        %v680 = vmax.f32 %v168, %v424
        %v681 = vmax.f32 %v169, %v425
        %v682 = vmax.f32 %v170, %v426
        %v683 = vmax.f32 %v171, %v427
        %v684 = vmax.f32 %v172, %v428
        %v685 = vmax.f32 %v173, %v429
        %v686 = vmax.f32 %v174, %v430
        %v687 = vmax.f32 %v175, %v431
        %v688 = vmax.f32 %v176, %v432
        %v689 = vmax.f32 %v177, %v433
        %v690 = vmax.f32 %v178, %v434
        %v691 = vmax.f32 %v179, %v435
        %v692 = vmax.f32 %v180, %v436
        %v693 = vmax.f32 %v181, %v437
        %v694 = vmax.f32 %v182, %v438
        %v695 = vmax.f32 %v183, %v439
        %v696 = vmax.f32 %v184, %v440
        %v697 = vmax.f32 %v185, %v441
        %v698 = vmax.f32 %v186, %v442
        %v699 = vmax.f32 %v187, %v443
        %v700 = vmax.f32 %v188, %v444
        %v701 = vmax.f32 %v189, %v445
        %v702 = vmax.f32 %v190, %v446
        %v703 = vmax.f32 %v191, %v447
        %v704 = vmax.f32 %v192, %v448
        %v705 = vmax.f32 %v193, %v449
        %v706 = vmax.f32 %v194, %v450
        %v707 = vmax.f32 %v195, %v451
        %v708 = vmax.f32 %v196, %v452
        %v709 = vmax.f32 %v197, %v453
        %v710 = vmax.f32 %v198, %v454
        %v711 = vmax.f32 %v199, %v455
        %v712 = vmax.f32 %v200, %v456
        %v713 = vmax.f32 %v201, %v457
        %v714 = vmax.f32 %v202, %v458
        %v715 = vmax.f32 %v203, %v459
        %v716 = vmax.f32 %v204, %v460
        %v717 = vmax.f32 %v205, %v461
        %v718 = vmax.f32 %v206, %v462
        %v719 = vmax.f32 %v207, %v463
        %v720 = vmax.f32 %v208, %v464
        %v721 = vmax.f32 %v209, %v465
        %v722 = vmax.f32 %v210, %v466
        %v723 = vmax.f32 %v211, %v467
        %v724 = vmax.f32 %v212, %v468
        %v725 = vmax.f32 %v213, %v469
        %v726 = vmax.f32 %v214, %v470
        %v727 = vmax.f32 %v215, %v471
        %v728 = vmax.f32 %v216, %v472
        %v729 = vmax.f32 %v217, %v473
        %v730 = vmax.f32 %v218, %v474
        %v731 = vmax.f32 %v219, %v475
        %v732 = vmax.f32 %v220, %v476
        %v733 = vmax.f32 %v221, %v477
        %v734 = vmax.f32 %v222, %v478
        %v735 = vmax.f32 %v223, %v479
        %v736 = vmax.f32 %v224, %v480
        %v737 = vmax.f32 %v225, %v481
        %v738 = vmax.f32 %v226, %v482
        %v739 = vmax.f32 %v227, %v483
        %v740 = vmax.f32 %v228, %v484
        %v741 = vmax.f32 %v229, %v485
        %v742 = vmax.f32 %v230, %v486
        %v743 = vmax.f32 %v231, %v487
        %v744 = vmax.f32 %v232, %v488
        %v745 = vmax.f32 %v233, %v489
        %v746 = vmax.f32 %v234, %v490
        %v747 = vmax.f32 %v235, %v491
        %v748 = vmax.f32 %v236, %v492
        %v749 = vmax.f32 %v237, %v493
        %v750 = vmax.f32 %v238, %v494
        %v751 = vmax.f32 %v239, %v495
        %v752 = vmax.f32 %v240, %v496
        %v753 = vmax.f32 %v241, %v497
        %v754 = vmax.f32 %v242, %v498
        %v755 = vmax.f32 %v243, %v499
        %v756 = vmax.f32 %v244, %v500
        %v757 = vmax.f32 %v245, %v501
        %v758 = vmax.f32 %v246, %v502
        %v759 = vmax.f32 %v247, %v503
        %v760 = vmax.f32 %v248, %v504
        %v761 = vmax.f32 %v249, %v505
        %v762 = vmax.f32 %v250, %v506
        %v763 = vmax.f32 %v251, %v507
        %v764 = vmax.f32 %v252, %v508
        %v765 = vmax.f32 %v253, %v509
        %v766 = vmax.f32 %v254, %v510
        %v767 = vmax.f32 %v255, %v511
        %v768 = vmax.f32 %v256, %v512
        %v769 = vmax.f32 %v257, %v513
        %v770 = vmax.f32 %v258, %v514
        %v771 = vmax.f32 %v259, %v515
        %v772 = vmax.f32 %v260, %v516
        %v773 = vmax.f32 %v261, %v517
        %v774 = vmax.f32 %v262, %v518
        %v775 = vmax.f32 %v263, %v519
        %v776 = vmax.f32 %v264, %v520
        %v777 = vmax.f32 %v265, %v521
        %v778 = vmax.f32 %v266, %v522
        %v779 = vmax.f32 %v267, %v523
        %v780 = vmax.f32 %v268, %v524
        %v781 = vmax.f32 %v269, %v525
        %v782 = vmax.f32 %v270, %v526
        %v783 = vmax.f32 %v271, %v527
        %v784 = vmax.f32 %v272, %v528
        %v785 = vmax.f32 %v273, %v529
        %v786 = vmax.f32 %v274, %v530
        %v787 = vmax.f32 %v275, %v531
        %v788 = vmax.f32 %v276, %v532
        %v789 = vmax.f32 %v277, %v533
        %v790 = vmax.f32 %v278, %v534
        %v791 = vmax.f32 %v279, %v535
        %v792 = vmax.f32 %v280, %v536
        %v793 = vmax.f32 %v281, %v537
        %v794 = vmax.f32 %v282, %v538
        %v795 = vmax.f32 %v283, %v539
        %v796 = vmax.f32 %v284, %v540
        %v797 = vmax.f32 %v285, %v541
        %v798 = vmax.f32 %v286, %v542
        %v799 = vmax.f32 %v287, %v543
        %v800 = vmax.f32 %v288, %v544
        %v801 = vmax.f32 %v289, %v545
        %v802 = vmax.f32 %v290, %v546
        %v803 = vmax.f32 %v291, %v547
        %v804 = vmax.f32 %v292, %v548
        %v805 = vmax.f32 %v293, %v549
        %v806 = vmax.f32 %v294, %v550
        %v807 = vmax.f32 %v295, %v551
        %v808 = vmax.f32 %v680, %v688
        %v809 = vmax.f32 %v681, %v689
        %v810 = vmax.f32 %v682, %v690
        %v811 = vmax.f32 %v683, %v691
        %v812 = vmax.f32 %v684, %v692
        %v813 = vmax.f32 %v685, %v693
        %v814 = vmax.f32 %v686, %v694
        %v815 = vmax.f32 %v687, %v695
        %v816 = vmax.f32 %v696, %v704
        %v817 = vmax.f32 %v697, %v705
        %v818 = vmax.f32 %v698, %v706
        %v819 = vmax.f32 %v699, %v707
        %v820 = vmax.f32 %v700, %v708
        %v821 = vmax.f32 %v701, %v709
        %v822 = vmax.f32 %v702, %v710
        %v823 = vmax.f32 %v703, %v711
        %v824 = vmax.f32 %v712, %v720
        %v825 = vmax.f32 %v713, %v721
        %v826 = vmax.f32 %v714, %v722
        %v827 = vmax.f32 %v715, %v723
        %v828 = vmax.f32 %v716, %v724
        %v829 = vmax.f32 %v717, %v725
        %v830 = vmax.f32 %v718, %v726
        %v831 = vmax.f32 %v719, %v727
        %v832 = vmax.f32 %v728, %v736
        %v833 = vmax.f32 %v729, %v737
        %v834 = vmax.f32 %v730, %v738
        %v835 = vmax.f32 %v731, %v739
        %v836 = vmax.f32 %v732, %v740
        %v837 = vmax.f32 %v733, %v741
        %v838 = vmax.f32 %v734, %v742
        %v839 = vmax.f32 %v735, %v743
        %v840 = vmax.f32 %v744, %v752
        %v841 = vmax.f32 %v745, %v753
        %v842 = vmax.f32 %v746, %v754
        %v843 = vmax.f32 %v747, %v755
        %v844 = vmax.f32 %v748, %v756
        %v845 = vmax.f32 %v749, %v757
        %v846 = vmax.f32 %v750, %v758
        %v847 = vmax.f32 %v751, %v759
        %v848 = vmax.f32 %v760, %v768
        %v849 = vmax.f32 %v761, %v769
        %v850 = vmax.f32 %v762, %v770
        %v851 = vmax.f32 %v763, %v771
        %v852 = vmax.f32 %v764, %v772
        %v853 = vmax.f32 %v765, %v773
        %v854 = vmax.f32 %v766, %v774
        %v855 = vmax.f32 %v767, %v775
        %v856 = vmax.f32 %v776, %v784
        %v857 = vmax.f32 %v777, %v785
        %v858 = vmax.f32 %v778, %v786
        %v859 = vmax.f32 %v779, %v787
        %v860 = vmax.f32 %v780, %v788
        %v861 = vmax.f32 %v781, %v789
        %v862 = vmax.f32 %v782, %v790
        %v863 = vmax.f32 %v783, %v791
        %v864 = vmax.f32 %v792, %v800
        %v865 = vmax.f32 %v793, %v801
        %v866 = vmax.f32 %v794, %v802
        %v867 = vmax.f32 %v795, %v803
        %v868 = vmax.f32 %v796, %v804
        %v869 = vmax.f32 %v797, %v805
        %v870 = vmax.f32 %v798, %v806
        %v871 = vmax.f32 %v799, %v807
        %v872 = vpack.c.bf16 %v808, %v808
        %v873 = vpack.c.bf16 %v809, %v809
        %v874 = vpack.c.bf16 %v810, %v810
        %v875 = vpack.c.bf16 %v811, %v811
        %v876 = vpack.c.bf16 %v812, %v812
        %v877 = vpack.c.bf16 %v813, %v813
        %v878 = vpack.c.bf16 %v814, %v814
        %v879 = vpack.c.bf16 %v815, %v815
        %v880 = vpack.c.bf16 %v816, %v816
        %v881 = vpack.c.bf16 %v817, %v817
        %v882 = vpack.c.bf16 %v818, %v818
        %v883 = vpack.c.bf16 %v819, %v819
        %v884 = vpack.c.bf16 %v820, %v820
        %v885 = vpack.c.bf16 %v821, %v821
        %v886 = vpack.c.bf16 %v822, %v822
        %v887 = vpack.c.bf16 %v823, %v823
        %v888 = vpack.c.bf16 %v824, %v824
        %v889 = vpack.c.bf16 %v825, %v825
        %v890 = vpack.c.bf16 %v826, %v826
        %v891 = vpack.c.bf16 %v827, %v827
        %v892 = vpack.c.bf16 %v828, %v828
        %v893 = vpack.c.bf16 %v829, %v829
        %v894 = vpack.c.bf16 %v830, %v830
        %v895 = vpack.c.bf16 %v831, %v831
        %v896 = vpack.c.bf16 %v832, %v832
        %v897 = vpack.c.bf16 %v833, %v833
        %v898 = vpack.c.bf16 %v834, %v834
        %v899 = vpack.c.bf16 %v835, %v835
        %v900 = vpack.c.bf16 %v836, %v836
        %v901 = vpack.c.bf16 %v837, %v837
        %v902 = vpack.c.bf16 %v838, %v838
        %v903 = vpack.c.bf16 %v839, %v839
        %v904 = vpack.c.bf16 %v840, %v840
        %v905 = vpack.c.bf16 %v841, %v841
        %v906 = vpack.c.bf16 %v842, %v842
        %v907 = vpack.c.bf16 %v843, %v843
        %v908 = vpack.c.bf16 %v844, %v844
        %v909 = vpack.c.bf16 %v845, %v845
        %v910 = vpack.c.bf16 %v846, %v846
        %v911 = vpack.c.bf16 %v847, %v847
        %v912 = vpack.c.bf16 %v848, %v848
        %v913 = vpack.c.bf16 %v849, %v849
        %v914 = vpack.c.bf16 %v850, %v850
        %v915 = vpack.c.bf16 %v851, %v851
        %v916 = vpack.c.bf16 %v852, %v852
        %v917 = vpack.c.bf16 %v853, %v853
        %v918 = vpack.c.bf16 %v854, %v854
        %v919 = vpack.c.bf16 %v855, %v855
        %v920 = vpack.c.bf16 %v856, %v856
        %v921 = vpack.c.bf16 %v857, %v857
        %v922 = vpack.c.bf16 %v858, %v858
        %v923 = vpack.c.bf16 %v859, %v859
        %v924 = vpack.c.bf16 %v860, %v860
        %v925 = vpack.c.bf16 %v861, %v861
        %v926 = vpack.c.bf16 %v862, %v862
        %v927 = vpack.c.bf16 %v863, %v863
        %v928 = vpack.c.bf16 %v864, %v864
        %v929 = vpack.c.bf16 %v865, %v865
        %v930 = vpack.c.bf16 %v866, %v866
        %v931 = vpack.c.bf16 %v867, %v867
        %v932 = vpack.c.bf16 %v868, %v868
        %v933 = vpack.c.bf16 %v869, %v869
        %v934 = vpack.c.bf16 %v870, %v870
        %v935 = vpack.c.bf16 %v871, %v871
        %v1000 = vunpack.c.l.b16 %v872
        %v1001 = vunpack.c.l.b16 %v873
        %v1002 = vunpack.c.l.b16 %v874
        %v1003 = vunpack.c.l.b16 %v875
        %v1004 = vunpack.c.l.b16 %v876
        %v1005 = vunpack.c.l.b16 %v877
        %v1006 = vunpack.c.l.b16 %v878
        %v1007 = vunpack.c.l.b16 %v879
        %v1008 = vunpack.c.l.b16 %v880
        %v1009 = vunpack.c.l.b16 %v881
        %v1010 = vunpack.c.l.b16 %v882
        %v1011 = vunpack.c.l.b16 %v883
        %v1012 = vunpack.c.l.b16 %v884
        %v1013 = vunpack.c.l.b16 %v885
        %v1014 = vunpack.c.l.b16 %v886
        %v1015 = vunpack.c.l.b16 %v887
        %v1016 = vunpack.c.l.b16 %v888
        %v1017 = vunpack.c.l.b16 %v889
        %v1018 = vunpack.c.l.b16 %v890
        %v1019 = vunpack.c.l.b16 %v891
        %v1020 = vunpack.c.l.b16 %v892
        %v1021 = vunpack.c.l.b16 %v893
        %v1022 = vunpack.c.l.b16 %v894
        %v1023 = vunpack.c.l.b16 %v895
        %v1024 = vunpack.c.l.b16 %v896
        %v1025 = vunpack.c.l.b16 %v897
        %v1026 = vunpack.c.l.b16 %v898
        %v1027 = vunpack.c.l.b16 %v899
        %v1028 = vunpack.c.l.b16 %v900
        %v1029 = vunpack.c.l.b16 %v901
        %v1030 = vunpack.c.l.b16 %v902
        %v1031 = vunpack.c.l.b16 %v903
        %v1032 = vunpack.c.l.b16 %v904
        %v1033 = vunpack.c.l.b16 %v905
        %v1034 = vunpack.c.l.b16 %v906
        %v1035 = vunpack.c.l.b16 %v907
        %v1036 = vunpack.c.l.b16 %v908
        %v1037 = vunpack.c.l.b16 %v909
        %v1038 = vunpack.c.l.b16 %v910
        %v1039 = vunpack.c.l.b16 %v911
        %v1040 = vunpack.c.l.b16 %v912
        %v1041 = vunpack.c.l.b16 %v913
        %v1042 = vunpack.c.l.b16 %v914
        %v1043 = vunpack.c.l.b16 %v915
        %v1044 = vunpack.c.l.b16 %v916
        %v1045 = vunpack.c.l.b16 %v917
        %v1046 = vunpack.c.l.b16 %v918
        %v1047 = vunpack.c.l.b16 %v919
        %v1048 = vunpack.c.l.b16 %v920
        %v1049 = vunpack.c.l.b16 %v921
        %v1050 = vunpack.c.l.b16 %v922
        %v1051 = vunpack.c.l.b16 %v923
        %v1052 = vunpack.c.l.b16 %v924
        %v1053 = vunpack.c.l.b16 %v925
        %v1054 = vunpack.c.l.b16 %v926
        %v1055 = vunpack.c.l.b16 %v927
        %v1056 = vunpack.c.l.b16 %v928
        %v1057 = vunpack.c.l.b16 %v929
        %v1058 = vunpack.c.l.b16 %v930
        %v1059 = vunpack.c.l.b16 %v931
        %v1060 = vunpack.c.l.b16 %v932
        %v1061 = vunpack.c.l.b16 %v933
        %v1062 = vunpack.c.l.b16 %v934
        %v1063 = vunpack.c.l.b16 %v935
        %v1064 = vrot.slane %v1001, 7
        %vm1065 = vcmask 1041409
        %v1066 = vsel %vm1065, %v1064, %v1000
        %v1067 = vrot.slane %v1002, 6
        %vm1068 = vcmask 1042434
        %v1069 = vsel %vm1068, %v1067, %v1066
        %v1070 = vrot.slane %v1003, 5
        %vm1071 = vcmask 1043459
        %v1072 = vsel %vm1071, %v1070, %v1069
        %v1073 = vrot.slane %v1004, 4
        %vm1074 = vcmask 1044484
        %v1075 = vsel %vm1074, %v1073, %v1072
        %v1076 = vrot.slane %v1005, 3
        %vm1077 = vcmask 1045509
        %v1078 = vsel %vm1077, %v1076, %v1075
        %v1079 = vrot.slane %v1006, 2
        %vm1080 = vcmask 1046534
        %v1081 = vsel %vm1080, %v1079, %v1078
        %v1082 = vrot.slane %v1007, 1
        %vm1083 = vcmask 1047559
        %v1084 = vsel %vm1083, %v1082, %v1081
        %v1085 = vrot.slane %v1009, 7
        %v1086 = vsel %vm1065, %v1085, %v1008
        %v1087 = vrot.slane %v1010, 6
        %v1088 = vsel %vm1068, %v1087, %v1086
        %v1089 = vrot.slane %v1011, 5
        %v1090 = vsel %vm1071, %v1089, %v1088
        %v1091 = vrot.slane %v1012, 4
        %v1092 = vsel %vm1074, %v1091, %v1090
        %v1093 = vrot.slane %v1013, 3
        %v1094 = vsel %vm1077, %v1093, %v1092
        %v1095 = vrot.slane %v1014, 2
        %v1096 = vsel %vm1080, %v1095, %v1094
        %v1097 = vrot.slane %v1015, 1
        %v1098 = vsel %vm1083, %v1097, %v1096
        %v1099 = vrot.slane %v1017, 7
        %v1100 = vsel %vm1065, %v1099, %v1016
        %v1101 = vrot.slane %v1018, 6
        %v1102 = vsel %vm1068, %v1101, %v1100
        %v1103 = vrot.slane %v1019, 5
        %v1104 = vsel %vm1071, %v1103, %v1102
        %v1105 = vrot.slane %v1020, 4
        %v1106 = vsel %vm1074, %v1105, %v1104
        %v1107 = vrot.slane %v1021, 3
        %v1108 = vsel %vm1077, %v1107, %v1106
        %v1109 = vrot.slane %v1022, 2
        %v1110 = vsel %vm1080, %v1109, %v1108
        %v1111 = vrot.slane %v1023, 1
        %v1112 = vsel %vm1083, %v1111, %v1110
        %v1113 = vrot.slane %v1025, 7
        %v1114 = vsel %vm1065, %v1113, %v1024
        %v1115 = vrot.slane %v1026, 6
        %v1116 = vsel %vm1068, %v1115, %v1114
        %v1117 = vrot.slane %v1027, 5
        %v1118 = vsel %vm1071, %v1117, %v1116
        %v1119 = vrot.slane %v1028, 4
        %v1120 = vsel %vm1074, %v1119, %v1118
        %v1121 = vrot.slane %v1029, 3
        %v1122 = vsel %vm1077, %v1121, %v1120
        %v1123 = vrot.slane %v1030, 2
        %v1124 = vsel %vm1080, %v1123, %v1122
        %v1125 = vrot.slane %v1031, 1
        %v1126 = vsel %vm1083, %v1125, %v1124
        %v1127 = vrot.slane %v1033, 7
        %v1128 = vsel %vm1065, %v1127, %v1032
        %v1129 = vrot.slane %v1034, 6
        %v1130 = vsel %vm1068, %v1129, %v1128
        %v1131 = vrot.slane %v1035, 5
        %v1132 = vsel %vm1071, %v1131, %v1130
        %v1133 = vrot.slane %v1036, 4
        %v1134 = vsel %vm1074, %v1133, %v1132
        %v1135 = vrot.slane %v1037, 3
        %v1136 = vsel %vm1077, %v1135, %v1134
        %v1137 = vrot.slane %v1038, 2
        %v1138 = vsel %vm1080, %v1137, %v1136
        %v1139 = vrot.slane %v1039, 1
        %v1140 = vsel %vm1083, %v1139, %v1138
        %v1141 = vrot.slane %v1041, 7
        %v1142 = vsel %vm1065, %v1141, %v1040
        %v1143 = vrot.slane %v1042, 6
        %v1144 = vsel %vm1068, %v1143, %v1142
        %v1145 = vrot.slane %v1043, 5
        %v1146 = vsel %vm1071, %v1145, %v1144
        %v1147 = vrot.slane %v1044, 4
        %v1148 = vsel %vm1074, %v1147, %v1146
        %v1149 = vrot.slane %v1045, 3
        %v1150 = vsel %vm1077, %v1149, %v1148
        %v1151 = vrot.slane %v1046, 2
        %v1152 = vsel %vm1080, %v1151, %v1150
        %v1153 = vrot.slane %v1047, 1
        %v1154 = vsel %vm1083, %v1153, %v1152
        %v1155 = vrot.slane %v1049, 7
        %v1156 = vsel %vm1065, %v1155, %v1048
        %v1157 = vrot.slane %v1050, 6
        %v1158 = vsel %vm1068, %v1157, %v1156
        %v1159 = vrot.slane %v1051, 5
        %v1160 = vsel %vm1071, %v1159, %v1158
        %v1161 = vrot.slane %v1052, 4
        %v1162 = vsel %vm1074, %v1161, %v1160
        %v1163 = vrot.slane %v1053, 3
        %v1164 = vsel %vm1077, %v1163, %v1162
        %v1165 = vrot.slane %v1054, 2
        %v1166 = vsel %vm1080, %v1165, %v1164
        %v1167 = vrot.slane %v1055, 1
        %v1168 = vsel %vm1083, %v1167, %v1166
        %v1169 = vrot.slane %v1057, 7
        %v1170 = vsel %vm1065, %v1169, %v1056
        %v1171 = vrot.slane %v1058, 6
        %v1172 = vsel %vm1068, %v1171, %v1170
        %v1173 = vrot.slane %v1059, 5
        %v1174 = vsel %vm1071, %v1173, %v1172
        %v1175 = vrot.slane %v1060, 4
        %v1176 = vsel %vm1074, %v1175, %v1174
        %v1177 = vrot.slane %v1061, 3
        %v1178 = vsel %vm1077, %v1177, %v1176
        %v1179 = vrot.slane %v1062, 2
        %v1180 = vsel %vm1080, %v1179, %v1178
        %v1181 = vrot.slane %v1063, 1
        %v1182 = vsel %vm1083, %v1181, %v1180
        %v1183 = vpack.c.b16 %v1084, %v1084
        %v1184 = vpack.c.b16 %v1098, %v1098
        %v1185 = vpack.c.b16 %v1112, %v1112
        %v1186 = vpack.c.b16 %v1126, %v1126
        %v1187 = vpack.c.b16 %v1140, %v1140
        %v1188 = vpack.c.b16 %v1154, %v1154
        %v1189 = vpack.c.b16 %v1168, %v1168
        %v1190 = vpack.c.b16 %v1182, %v1182
        %1199 = vst [vmem:[%s166] sm:$0xf] %v1183
        %1200 = vst [vmem:[%s166 + $0x4] sm:$0xf] %v1184
        %1201 = vst [vmem:[%s166 + $0x8] sm:$0xf] %v1185
        %1202 = vst [vmem:[%s166 + $0xc] sm:$0xf] %v1186
        %1203 = vst [vmem:[%s166 + $0x10] sm:$0xf] %v1187
        %1204 = vst [vmem:[%s166 + $0x14] sm:$0xf] %v1188
        %1205 = vst [vmem:[%s166 + $0x18] sm:$0xf] %v1189
        %1206 = vst [vmem:[%s166 + $0x1c] sm:$0xf] %v1190
        %s1207 = smul.u32 8, %s20
        %p1208 = scmp.lt.s32.totalorder %s19, 1
        %s1209 = scalar_select %p1208, %s19, 1
        %p1210 = scmp.lt.s32.totalorder %s1207, 7
        %s1211 = scalar_select %p1210, %s1207, 7
        %s1212 = smul.addr %s1209, 8
        %s1213 = sadd.s32 %s1211, %s1212
        %s1214 = smul.addr %s1213, 4
        %s1215 = scalar_lea.vmem %s1, %s1214
        // Predicated region
        $region29: #{down_forward.4} parent=23 // pred_check
          %p1216 = pneg %p75
        $region30: #{down_forward.4} parent=23 // pred_check_branch
          %1218 = sbr.rel (%p1216) target = $region32
        $region31: #{down_forward.4} parent=23 // pred_region
          %s1219 = smul.u32 8, %s20
        $region32: #{down_forward.4} parent=23 // pred_fallthru
          _
      $region24: #{down_forward.4} parent=5 // pred_fallthru
        _
      %p1220 = scmp.le.s32.totalorder 2, %s10
      // Predicated region
      $region33: #{down_forward.4} parent=5 // pred_check
        %p1221 = pneg %p1220
      $region34: #{down_forward.4} parent=5 // pred_check_branch
        %1223 = sbr.rel (%p1221) target = $region36
      $region35: #{down_forward.4} parent=5 // pred_region
        %s1224 = ssub.s32 %s10, 2
        // Predicated region
        $region37: #{down_forward.4} parent=35 // pred_check
          %p1225 = pneg %p81
        $region38: #{down_forward.4} parent=35 // pred_check_branch
          %1227 = sbr.rel (%p1225) target = $region40
        $region39: #{down_forward.4} parent=35 // pred_region
          %s1228 = smul.u32 8, %s22
          %p1229 = scmp.lt.s32.totalorder %s21, 1
          %s1230 = scalar_select %p1229, %s21, 1
          %p1231 = scmp.lt.s32.totalorder %s1228, 7
          %s1232 = scalar_select %p1231, %s1228, 7
          %s1233 = smul.addr %s1230, 8
          %s1234 = sadd.s32 %s1232, %s1233
          %s1235 = smul.addr %s1234, 4
          %s1236 = scalar_lea.vmem %s1, %s1235
        $region40: #{down_forward.4} parent=35 // pred_fallthru
          _
      $region36: #{down_forward.4} parent=5 // pred_fallthru
        _
    $region6: #{down_forward.4} parent=1 // loop_footer
      %s14 = sadd.s32 1, %s10
    $region7: #{down_forward.4} parent=1 // loop_footer_branch
      %9 = sbr.rel target = $region3
    $region8: #{down_forward.4} parent=1 // loop_exit
      _
    %1237 = vsyncpa [#allocation3], 1
    %s1238 = scalar_lea.sflag [#allocation3], 1
    %1239 = vsyncpa %s1238, 1

// kernel: down_forward.7
$region0: #{down_forward.7}
  #allocation0 [shape = 'u32[]', space=smem, size = 0x4, offset = 0x4, fixed_abs, tag = 'smem constant byte address 0x4 - core index']
  #allocation1 [shape = 'u32[72,128]{1,0:T(1,128)}', space=vmem, size = 0x9000, scoped, tag = 'internal scratch']
  %s0 = inlined_call_operand.vmem [shape: bf16[128,256], index: 0, kind: input, shape index: {}]
  %s1 = inlined_call_operand.vmem [shape: f32[1,256], index: 1, kind: input, shape index: {}]
  %s2 = inlined_call_operand.vmem [shape: f32[1,256], index: 2, kind: input, shape index: {}]
  %s3 = inlined_call_operand.hbm [shape: f32[128,256], index: 3, kind: output, shape index: {}]
  %s4 = sld [smem:[#allocation0]]
  $region22: #{down_forward.7} parent=0
    _
  %s6 = ssub.s32 1, %s4
  %s7 = scalar_select 0, %s6, %s4
  $region1: #{down_forward.7} parent=0
    #allocation2 [shape = 'u8[131072]{0}', space=vmem, size = 0x20000, scoped, tag = 'output window, operand 0, single buffered']
    #allocation3 [shape = 's32[1]{0}', space=sflag, size = 0x4, scoped, tag = 'scoped memory for down_forward.7']
    %8 = vsyncpa [#allocation3], 0
    // Predicated region
    $region2: #{down_forward.7} parent=1 // pred_check
      _
    $region3: #{down_forward.7} parent=1 // pred_check_branch
      %10 = sbr.rel (0) target = $region5
    $region4: #{down_forward.7} parent=1 // pred_region
      _
    $region5: #{down_forward.7} parent=1 // pred_fallthru
      _
    // Predicated region
    $region6: #{down_forward.7} parent=1 // pred_check
      _
    $region7: #{down_forward.7} parent=1 // pred_check_branch
      %12 = sbr.rel (0) target = $region9
    $region8: #{down_forward.7} parent=1 // pred_region
      _
    $region9: #{down_forward.7} parent=1 // pred_fallthru
      _
    // Predicated region
    $region10: #{down_forward.7} parent=1 // pred_check
      _
    $region11: #{down_forward.7} parent=1 // pred_check_branch
      %14 = sbr.rel (0) target = $region13
    $region12: #{down_forward.7} parent=1 // pred_region
      _
    $region13: #{down_forward.7} parent=1 // pred_fallthru
      _
    %v15 = vld [vmem:[%s0] sm:$0xff]
    %v16 = vld [vmem:[%s0 + $0x8] sm:$0xff]
    %v17 = vld [vmem:[%s0 + $0x10] sm:$0xff]
    %v18 = vld [vmem:[%s0 + $0x18] sm:$0xff]
    %v19 = vld [vmem:[%s0 + $0x20] sm:$0xff]
    %v20 = vld [vmem:[%s0 + $0x28] sm:$0xff]
    %v21 = vld [vmem:[%s0 + $0x30] sm:$0xff]
    %v22 = vld [vmem:[%s0 + $0x38] sm:$0xff]
    %v23 = vld [vmem:[%s0 + $0x40] sm:$0xff]
    %v24 = vld [vmem:[%s0 + $0x48] sm:$0xff]
    %v25 = vld [vmem:[%s0 + $0x50] sm:$0xff]
    %v26 = vld [vmem:[%s0 + $0x58] sm:$0xff]
    %v27 = vld [vmem:[%s0 + $0x60] sm:$0xff]
    %v28 = vld [vmem:[%s0 + $0x68] sm:$0xff]
    %v29 = vld [vmem:[%s0 + $0x70] sm:$0xff]
    %v30 = vld [vmem:[%s0 + $0x78] sm:$0xff]
    %v31 = vunpack.c.l.bf16 %v15
    %v32 = vunpack.c.h.bf16 %v15
    %v33 = vunpack.c.l.bf16 %v16
    %v34 = vunpack.c.h.bf16 %v16
    %v35 = vunpack.c.l.bf16 %v17
    %v36 = vunpack.c.h.bf16 %v17
    %v37 = vunpack.c.l.bf16 %v18
    %v38 = vunpack.c.h.bf16 %v18
    %v39 = vunpack.c.l.bf16 %v19
    %v40 = vunpack.c.h.bf16 %v19
    %v41 = vunpack.c.l.bf16 %v20
    %v42 = vunpack.c.h.bf16 %v20
    %v43 = vunpack.c.l.bf16 %v21
    %v44 = vunpack.c.h.bf16 %v21
    %v45 = vunpack.c.l.bf16 %v22
    %v46 = vunpack.c.h.bf16 %v22
    %v47 = vunpack.c.l.bf16 %v23
    %v48 = vunpack.c.h.bf16 %v23
    %v49 = vunpack.c.l.bf16 %v24
    %v50 = vunpack.c.h.bf16 %v24
    %v51 = vunpack.c.l.bf16 %v25
    %v52 = vunpack.c.h.bf16 %v25
    %v53 = vunpack.c.l.bf16 %v26
    %v54 = vunpack.c.h.bf16 %v26
    %v55 = vunpack.c.l.bf16 %v27
    %v56 = vunpack.c.h.bf16 %v27
    %v57 = vunpack.c.l.bf16 %v28
    %v58 = vunpack.c.h.bf16 %v28
    %v59 = vunpack.c.l.bf16 %v29
    %v60 = vunpack.c.h.bf16 %v29
    %v61 = vunpack.c.l.bf16 %v30
    %v62 = vunpack.c.h.bf16 %v30
    %v63 = vld [vmem:[%s1] sm:$0x3]
    %v65 = vperm.slane %v63, 0
    %v66 = vperm.slane %v63, 1
    %v69 = vmul.f32 %v31, %v65
    %v70 = vmul.f32 %v32, %v66
    %v71 = vmul.f32 %v33, %v65
    %v72 = vmul.f32 %v34, %v66
    %v73 = vmul.f32 %v35, %v65
    %v74 = vmul.f32 %v36, %v66
    %v75 = vmul.f32 %v37, %v65
    %v76 = vmul.f32 %v38, %v66
    %v77 = vmul.f32 %v39, %v65
    %v78 = vmul.f32 %v40, %v66
    %v79 = vmul.f32 %v41, %v65
    %v80 = vmul.f32 %v42, %v66
    %v81 = vmul.f32 %v43, %v65
    %v82 = vmul.f32 %v44, %v66
    %v83 = vmul.f32 %v45, %v65
    %v84 = vmul.f32 %v46, %v66
    %v85 = vmul.f32 %v47, %v65
    %v86 = vmul.f32 %v48, %v66
    %v87 = vmul.f32 %v49, %v65
    %v88 = vmul.f32 %v50, %v66
    %v89 = vmul.f32 %v51, %v65
    %v90 = vmul.f32 %v52, %v66
    %v91 = vmul.f32 %v53, %v65
    %v92 = vmul.f32 %v54, %v66
    %v93 = vmul.f32 %v55, %v65
    %v94 = vmul.f32 %v56, %v66
    %v95 = vmul.f32 %v57, %v65
    %v96 = vmul.f32 %v58, %v66
    %v97 = vmul.f32 %v59, %v65
    %v98 = vmul.f32 %v60, %v66
    %v99 = vmul.f32 %v61, %v65
    %v100 = vmul.f32 %v62, %v66
    %v101 = vld [vmem:[%s2] sm:$0x3]
    %v103 = vperm.slane %v101, 0
    %v104 = vperm.slane %v101, 1
    %v107 = vadd.f32 %v69, %v103
    %v108 = vadd.f32 %v70, %v104
    %v109 = vadd.f32 %v71, %v103
    %v110 = vadd.f32 %v72, %v104
    %v111 = vadd.f32 %v73, %v103
    %v112 = vadd.f32 %v74, %v104
    %v113 = vadd.f32 %v75, %v103
    %v114 = vadd.f32 %v76, %v104
    %v115 = vadd.f32 %v77, %v103
    %v116 = vadd.f32 %v78, %v104
    %v117 = vadd.f32 %v79, %v103
    %v118 = vadd.f32 %v80, %v104
    %v119 = vadd.f32 %v81, %v103
    %v120 = vadd.f32 %v82, %v104
    %v121 = vadd.f32 %v83, %v103
    %v122 = vadd.f32 %v84, %v104
    %v123 = vadd.f32 %v85, %v103
    %v124 = vadd.f32 %v86, %v104
    %v125 = vadd.f32 %v87, %v103
    %v126 = vadd.f32 %v88, %v104
    %v127 = vadd.f32 %v89, %v103
    %v128 = vadd.f32 %v90, %v104
    %v129 = vadd.f32 %v91, %v103
    %v130 = vadd.f32 %v92, %v104
    %v131 = vadd.f32 %v93, %v103
    %v132 = vadd.f32 %v94, %v104
    %v133 = vadd.f32 %v95, %v103
    %v134 = vadd.f32 %v96, %v104
    %v135 = vadd.f32 %v97, %v103
    %v136 = vadd.f32 %v98, %v104
    %v137 = vadd.f32 %v99, %v103
    %v138 = vadd.f32 %v100, %v104
    %v139 = vmax.f32 %v107, 0.0
    %v140 = vmax.f32 %v108, 0.0
    %v141 = vmax.f32 %v109, 0.0
    %v142 = vmax.f32 %v110, 0.0
    %v143 = vmax.f32 %v111, 0.0
    %v144 = vmax.f32 %v112, 0.0
    %v145 = vmax.f32 %v113, 0.0
    %v146 = vmax.f32 %v114, 0.0
    %v147 = vmax.f32 %v115, 0.0
    %v148 = vmax.f32 %v116, 0.0
    %v149 = vmax.f32 %v117, 0.0
    %v150 = vmax.f32 %v118, 0.0
    %v151 = vmax.f32 %v119, 0.0
    %v152 = vmax.f32 %v120, 0.0
    %v153 = vmax.f32 %v121, 0.0
    %v154 = vmax.f32 %v122, 0.0
    %v155 = vmax.f32 %v123, 0.0
    %v156 = vmax.f32 %v124, 0.0
    %v157 = vmax.f32 %v125, 0.0
    %v158 = vmax.f32 %v126, 0.0
    %v159 = vmax.f32 %v127, 0.0
    %v160 = vmax.f32 %v128, 0.0
    %v161 = vmax.f32 %v129, 0.0
    %v162 = vmax.f32 %v130, 0.0
    %v163 = vmax.f32 %v131, 0.0
    %v164 = vmax.f32 %v132, 0.0
    %v165 = vmax.f32 %v133, 0.0
    %v166 = vmax.f32 %v134, 0.0
    %v167 = vmax.f32 %v135, 0.0
    %v168 = vmax.f32 %v136, 0.0
    %v169 = vmax.f32 %v137, 0.0
    %v170 = vmax.f32 %v138, 0.0
    %171 = vst [vmem:[#allocation2] sm:$0xff] %v139
    %172 = vst [vmem:[#allocation2 + $0x8] sm:$0xff] %v140
    %173 = vst [vmem:[#allocation2 + $0x10] sm:$0xff] %v141
    %174 = vst [vmem:[#allocation2 + $0x18] sm:$0xff] %v142
    %175 = vst [vmem:[#allocation2 + $0x20] sm:$0xff] %v143
    %176 = vst [vmem:[#allocation2 + $0x28] sm:$0xff] %v144
    %177 = vst [vmem:[#allocation2 + $0x30] sm:$0xff] %v145
    %178 = vst [vmem:[#allocation2 + $0x38] sm:$0xff] %v146
    %179 = vst [vmem:[#allocation2 + $0x40] sm:$0xff] %v147
    %180 = vst [vmem:[#allocation2 + $0x48] sm:$0xff] %v148
    %181 = vst [vmem:[#allocation2 + $0x50] sm:$0xff] %v149
    %182 = vst [vmem:[#allocation2 + $0x58] sm:$0xff] %v150
    %183 = vst [vmem:[#allocation2 + $0x60] sm:$0xff] %v151
    %184 = vst [vmem:[#allocation2 + $0x68] sm:$0xff] %v152
    %185 = vst [vmem:[#allocation2 + $0x70] sm:$0xff] %v153
    %186 = vst [vmem:[#allocation2 + $0x78] sm:$0xff] %v154
    %187 = vst [vmem:[#allocation2 + $0x80] sm:$0xff] %v155
    %188 = vst [vmem:[#allocation2 + $0x88] sm:$0xff] %v156
    %189 = vst [vmem:[#allocation2 + $0x90] sm:$0xff] %v157
    %190 = vst [vmem:[#allocation2 + $0x98] sm:$0xff] %v158
    %191 = vst [vmem:[#allocation2 + $0xa0] sm:$0xff] %v159
    %192 = vst [vmem:[#allocation2 + $0xa8] sm:$0xff] %v160
    %193 = vst [vmem:[#allocation2 + $0xb0] sm:$0xff] %v161
    %194 = vst [vmem:[#allocation2 + $0xb8] sm:$0xff] %v162
    %195 = vst [vmem:[#allocation2 + $0xc0] sm:$0xff] %v163
    %196 = vst [vmem:[#allocation2 + $0xc8] sm:$0xff] %v164
    %197 = vst [vmem:[#allocation2 + $0xd0] sm:$0xff] %v165
    %198 = vst [vmem:[#allocation2 + $0xd8] sm:$0xff] %v166
    %199 = vst [vmem:[#allocation2 + $0xe0] sm:$0xff] %v167
    %200 = vst [vmem:[#allocation2 + $0xe8] sm:$0xff] %v168
    %201 = vst [vmem:[#allocation2 + $0xf0] sm:$0xff] %v169
    %202 = vst [vmem:[#allocation2 + $0xf8] sm:$0xff] %v170
    // Predicated region
    $region14: #{down_forward.7} parent=1 // pred_check
      _
    $region15: #{down_forward.7} parent=1 // pred_check_branch
      %204 = sbr.rel (0) target = $region17
    $region16: #{down_forward.7} parent=1 // pred_region
      %206 = vsyncadd [#allocation3], 0
      %s207 = sshll.u32 [#allocation2], 4
      %s208 = int_to_ptr.vmem [resolvable:$true] %s207
      %s209 = sshll.u32 %s3, 4
      %s210 = int_to_ptr.hbm [resolvable:$true] %s209
      %215 = dma.vmem_to_hbm [thread:$0]  %s208, 4096, %s210, [#allocation3], 256, 256, 16
    $region17: #{down_forward.7} parent=1 // pred_fallthru
      _
    // Predicated region
    $region18: #{down_forward.7} parent=1 // pred_check
      _
    $region19: #{down_forward.7} parent=1 // pred_check_branch
      %217 = sbr.rel (0) target = $region21
    $region20: #{down_forward.7} parent=1 // pred_region
      %219 = dma.done [#allocation3], 4096
    $region21: #{down_forward.7} parent=1 // pred_fallthru
      _
    %220 = vsyncpa [#allocation3], 1

// kernel: down_forward.5
$region0: #{down_forward.5}
  #allocation0 [shape = 'u32[]', space=smem, size = 0x4, offset = 0x4, fixed_abs, tag = 'smem constant byte address 0x4 - core index']
  #allocation1 [shape = 'u32[72,128]{1,0:T(1,128)}', space=vmem, size = 0x9000, scoped, tag = 'internal scratch']
  %s0 = inlined_call_operand.vmem [shape: bf16[2,8,8,128], index: 0, kind: input, shape index: {}, may-alias: {0,1,2}]
  %s1 = inlined_call_operand.vmem [shape: bf16[2,8,8,128], index: 1, kind: input, shape index: {}, may-alias: {0,1,2}]
  %s2 = inlined_call_operand.vmem [shape: bf16[2,8,8,128], index: 2, kind: input, shape index: {}, may-alias: {0,1,2}]
  %s3 = inlined_call_operand.vmem [shape: bf16[3,384,256], index: 3, kind: input, shape index: {}]
  %s4 = inlined_call_operand.vmem [shape: bf16[2,1,64,256], index: 4, kind: output, shape index: {0}]
  %s5 = inlined_call_operand.vmem [shape: f32[1,2,256], index: 5, kind: output, shape index: {1}]
  %6 = xla_tuple %s4, %s5
  %s7 = sld [smem:[#allocation0]]
  $region116: #{down_forward.5} parent=0
    _
  %s9 = ssub.s32 1, %s7
  %s10 = scalar_select 0, %s9, %s7
  $region1: #{down_forward.5} parent=0
    #allocation2 [shape = 'u8[4096]{0}', space=vmem, size = 0x1000, scoped, tag = 'input window, operand 1, single buffered']
    #allocation3 [shape = 'u8[4096]{0}', space=vmem, size = 0x1000, scoped, tag = 'input window, operand 2, single buffered']
    // Predicated region
    $region2: #{down_forward.5} parent=1 // pred_check
      _
    $region3: #{down_forward.5} parent=1 // pred_check_branch
      %12 = sbr.rel (0) target = $region5
    $region4: #{down_forward.5} parent=1 // pred_region
      _
    $region5: #{down_forward.5} parent=1 // pred_fallthru
      _
    // Predicated region
    $region6: #{down_forward.5} parent=1 // pred_check
      _
    $region7: #{down_forward.5} parent=1 // pred_check_branch
      %14 = sbr.rel (0) target = $region9
    $region8: #{down_forward.5} parent=1 // pred_region
      %s15 = smul.u32 0, 8
      %s16 = ssub.s32 %s15, 1
      %p17 = scmp.gt.s32.totalorder %s16, 0
      %s18 = scalar_select %p17, %s16, 0
      %s19 = smul.addr %s18, 4
      %s20 = scalar_lea.vmem %s1, %s19
      // Predicated region
      $region10: #{down_forward.5} parent=8 // pred_check
        _
      $region11: #{down_forward.5} parent=8 // pred_check_branch
        %22 = sbr.rel (0) target = $region13
      $region12: #{down_forward.5} parent=8 // pred_region
        // Predicated region
        $region14: #{down_forward.5} parent=12 // pred_check
          _
        $region15: #{down_forward.5} parent=12 // pred_check_branch
          %24 = sbr.rel target = $region17
        $region16: #{down_forward.5} parent=12 // pred_region
          // Predicated region
          $region29: #{down_forward.5} parent=16 // pred_check
            _
          $region30: #{down_forward.5} parent=16 // pred_check_branch
            %42 = sbr.rel (0) target = $region32
          $region31: #{down_forward.5} parent=16 // pred_region
            loop: start=0, step=1, limit=1
            $region33: #{down_forward.5} parent=31 // loop_pre_header
              _
            $region34: #{down_forward.5} parent=31 // loop_header
              %s44 = sphi 0, %s48
              %p45 = scmp.ge.s32.totalorder %s44, 1
              %s49 = sphi %s20, %s20
              %s50 = sphi [#allocation2], [#allocation2]
            $region35: #{down_forward.5} parent=31 // loop_header_branch
              %47 = sbr.rel (%p45) target = $region39
            $region36: #{down_forward.5} parent=31 // loop_body
              _
            $region37: #{down_forward.5} parent=31 // loop_footer
              %s48 = sadd.s32 1, %s44
            $region38: #{down_forward.5} parent=31 // loop_footer_branch
              %43 = sbr.rel target = $region34
            $region39: #{down_forward.5} parent=31 // loop_exit
              _
            %s52 = ssub.s32 16, 1
            loop: start=0, step=1, limit=1
            $region40: #{down_forward.5} parent=31 // loop_pre_header
              _
            $region41: #{down_forward.5} parent=31 // loop_header
              %s54 = sphi 0, %s58
              %p55 = scmp.ge.s32.totalorder %s54, 1
              %s59 = sphi %s20, %s20
              %s60 = sphi [#allocation2], [#allocation2]
            $region42: #{down_forward.5} parent=31 // loop_header_branch
              %57 = sbr.rel (%p55) target = $region46
            $region43: #{down_forward.5} parent=31 // loop_body
              %v61 = vld [vmem:[%s59] sm:%s52]
              %62 = vst [vmem:[%s60] sm:%s52] %v61
              %v63 = vld [vmem:[%s59 + $0x20] sm:%s52]
              %64 = vst [vmem:[%s60 + $0x4] sm:%s52] %v63
            $region44: #{down_forward.5} parent=31 // loop_footer
              %s58 = sadd.s32 1, %s54
            $region45: #{down_forward.5} parent=31 // loop_footer_branch
              %53 = sbr.rel target = $region41
            $region46: #{down_forward.5} parent=31 // loop_exit
              _
          $region32: #{down_forward.5} parent=16 // pred_fallthru
            _
        $region17: #{down_forward.5} parent=12 // pred_fallthru
          _
        // Predicated region
        $region18: #{down_forward.5} parent=12 // pred_check
          _
        $region19: #{down_forward.5} parent=12 // pred_check_branch
          %26 = sbr.rel (0) target = $region21
        $region20: #{down_forward.5} parent=12 // pred_region
          %s28 = ssub.s32 16, 1
          loop: start=0, step=1, limit=1
          $region22: #{down_forward.5} parent=20 // loop_pre_header
            _
          $region23: #{down_forward.5} parent=20 // loop_header
            %s30 = sphi 0, %s34
            %p31 = scmp.ge.s32.totalorder %s30, 1
            %s35 = sphi %s20, %s20
            %s36 = sphi [#allocation2], [#allocation2]
          $region24: #{down_forward.5} parent=20 // loop_header_branch
            %33 = sbr.rel (%p31) target = $region28
          $region25: #{down_forward.5} parent=20 // loop_body
            %v37 = vld [vmem:[%s35] sm:%s28]
            %38 = vst [vmem:[%s36] sm:%s28] %v37
            %v39 = vld [vmem:[%s35 + $0x20] sm:%s28]
            %40 = vst [vmem:[%s36 + $0x4] sm:%s28] %v39
          $region26: #{down_forward.5} parent=20 // loop_footer
            %s34 = sadd.s32 1, %s30
          $region27: #{down_forward.5} parent=20 // loop_footer_branch
            %29 = sbr.rel target = $region23
          $region28: #{down_forward.5} parent=20 // loop_exit
            _
        $region21: #{down_forward.5} parent=12 // pred_fallthru
          _
      $region13: #{down_forward.5} parent=8 // pred_fallthru
        _
      %65 = vnop
    $region9: #{down_forward.5} parent=1 // pred_fallthru
      _
    // Predicated region
    $region47: #{down_forward.5} parent=1 // pred_check
      _
    $region48: #{down_forward.5} parent=1 // pred_check_branch
      %67 = sbr.rel (0) target = $region50
    $region49: #{down_forward.5} parent=1 // pred_region
      %s68 = sadd.s32 0, 1
      %s69 = smul.u32 %s68, 8
      %p70 = scmp.lt.s32.totalorder %s69, 7
      %s71 = scalar_select %p70, %s69, 7
      %s72 = smul.addr %s71, 4
      %s73 = scalar_lea.vmem %s2, %s72
      // Predicated region
      $region51: #{down_forward.5} parent=49 // pred_check
        _
      $region52: #{down_forward.5} parent=49 // pred_check_branch
        %75 = sbr.rel (0) target = $region54
      $region53: #{down_forward.5} parent=49 // pred_region
        // Predicated region
        $region55: #{down_forward.5} parent=53 // pred_check
          _
        $region56: #{down_forward.5} parent=53 // pred_check_branch
          %77 = sbr.rel target = $region58
        $region57: #{down_forward.5} parent=53 // pred_region
          // Predicated region
          $region70: #{down_forward.5} parent=57 // pred_check
            _
          $region71: #{down_forward.5} parent=57 // pred_check_branch
            %95 = sbr.rel (0) target = $region73
          $region72: #{down_forward.5} parent=57 // pred_region
            loop: start=0, step=1, limit=1
            $region74: #{down_forward.5} parent=72 // loop_pre_header
              _
            $region75: #{down_forward.5} parent=72 // loop_header
              %s97 = sphi 0, %s101
              %p98 = scmp.ge.s32.totalorder %s97, 1
              %s102 = sphi %s73, %s73
              %s103 = sphi [#allocation3], [#allocation3]
            $region76: #{down_forward.5} parent=72 // loop_header_branch
              %100 = sbr.rel (%p98) target = $region80
            $region77: #{down_forward.5} parent=72 // loop_body
              _
            $region78: #{down_forward.5} parent=72 // loop_footer
              %s101 = sadd.s32 1, %s97
            $region79: #{down_forward.5} parent=72 // loop_footer_branch
              %96 = sbr.rel target = $region75
            $region80: #{down_forward.5} parent=72 // loop_exit
              _
            %s105 = ssub.s32 16, 1
            loop: start=0, step=1, limit=1
            $region81: #{down_forward.5} parent=72 // loop_pre_header
              _
            $region82: #{down_forward.5} parent=72 // loop_header
              %s107 = sphi 0, %s111
              %p108 = scmp.ge.s32.totalorder %s107, 1
              %s112 = sphi %s73, %s73
              %s113 = sphi [#allocation3], [#allocation3]
            $region83: #{down_forward.5} parent=72 // loop_header_branch
              %110 = sbr.rel (%p108) target = $region87
            $region84: #{down_forward.5} parent=72 // loop_body
              %v114 = vld [vmem:[%s112] sm:%s105]
              %115 = vst [vmem:[%s113] sm:%s105] %v114
              %v116 = vld [vmem:[%s112 + $0x20] sm:%s105]
              %117 = vst [vmem:[%s113 + $0x4] sm:%s105] %v116
            $region85: #{down_forward.5} parent=72 // loop_footer
              %s111 = sadd.s32 1, %s107
            $region86: #{down_forward.5} parent=72 // loop_footer_branch
              %106 = sbr.rel target = $region82
            $region87: #{down_forward.5} parent=72 // loop_exit
              _
          $region73: #{down_forward.5} parent=57 // pred_fallthru
            _
        $region58: #{down_forward.5} parent=53 // pred_fallthru
          _
        // Predicated region
        $region59: #{down_forward.5} parent=53 // pred_check
          _
        $region60: #{down_forward.5} parent=53 // pred_check_branch
          %79 = sbr.rel (0) target = $region62
        $region61: #{down_forward.5} parent=53 // pred_region
          %s81 = ssub.s32 16, 1
          loop: start=0, step=1, limit=1
          $region63: #{down_forward.5} parent=61 // loop_pre_header
            _
          $region64: #{down_forward.5} parent=61 // loop_header
            %s83 = sphi 0, %s87
            %p84 = scmp.ge.s32.totalorder %s83, 1
            %s88 = sphi %s73, %s73
            %s89 = sphi [#allocation3], [#allocation3]
          $region65: #{down_forward.5} parent=61 // loop_header_branch
            %86 = sbr.rel (%p84) target = $region69
          $region66: #{down_forward.5} parent=61 // loop_body
            %v90 = vld [vmem:[%s88] sm:%s81]
            %91 = vst [vmem:[%s89] sm:%s81] %v90
            %v92 = vld [vmem:[%s88 + $0x20] sm:%s81]
            %93 = vst [vmem:[%s89 + $0x4] sm:%s81] %v92
          $region67: #{down_forward.5} parent=61 // loop_footer
            %s87 = sadd.s32 1, %s83
          $region68: #{down_forward.5} parent=61 // loop_footer_branch
            %82 = sbr.rel target = $region64
          $region69: #{down_forward.5} parent=61 // loop_exit
            _
        $region62: #{down_forward.5} parent=53 // pred_fallthru
          _
      $region54: #{down_forward.5} parent=49 // pred_fallthru
        _
      %118 = vnop
    $region50: #{down_forward.5} parent=1 // pred_fallthru
      _
    // Predicated region
    $region88: #{down_forward.5} parent=1 // pred_check
      _
    $region89: #{down_forward.5} parent=1 // pred_check_branch
      %120 = sbr.rel (0) target = $region91
    $region90: #{down_forward.5} parent=1 // pred_region
      _
    $region91: #{down_forward.5} parent=1 // pred_fallthru
      _
    // Predicated region
    $region92: #{down_forward.5} parent=1 // pred_check
      _
    $region93: #{down_forward.5} parent=1 // pred_check_branch
      %122 = sbr.rel (0) target = $region95
    $region94: #{down_forward.5} parent=1 // pred_region
      _
    $region95: #{down_forward.5} parent=1 // pred_fallthru
      _
    // Predicated region
    $region96: #{down_forward.5} parent=1 // pred_check
      _
    $region97: #{down_forward.5} parent=1 // pred_check_branch
      %124 = sbr.rel (0) target = $region99
    $region98: #{down_forward.5} parent=1 // pred_region
      _
    $region99: #{down_forward.5} parent=1 // pred_fallthru
      _
    %s125 = smul.u32 0, 8
    %s126 = ssub.s32 %s125, 1
    %p127 = scmp.gt.s32.totalorder %s126, 0
    %s128 = scalar_select %p127, %s126, 0
    %s129 = sadd.s32 0, 1
    %s130 = smul.u32 %s129, 8
    %p131 = scmp.lt.s32.totalorder %s130, 7
    %s132 = scalar_select %p131, %s130, 7
    %p134 = scmp.gt.s32.totalorder 0, 0
    %v135 = vld [vmem:[#allocation2] sm:$0xf]
    %v136 = vld [vmem:[#allocation2 + $0x4] sm:$0xf]
    %s137 = scalar_select %p134, 1, 0
    %v138 = vstv %s137
    %vm139 = vcmp.eq.s32.totalorder %v138, 1
    %v140 = vsel %vm139, %v135, 0
    %v141 = vsel %vm139, %v136, 0
    %p142 = scmp.lt.s32.totalorder 0, 0
    %v143 = vld [vmem:[#allocation3] sm:$0xf]
    %v144 = vld [vmem:[#allocation3 + $0x4] sm:$0xf]
    %s145 = scalar_select %p142, 1, 0
    %v146 = vstv %s145
    %vm147 = vcmp.eq.s32.totalorder %v146, 1
    %v148 = vsel %vm147, %v143, 0
    %v149 = vsel %vm147, %v144, 0
    %v150 = vld [vmem:[%s0] sm:$0xf]
    %v151 = vld [vmem:[%s0 + $0x4] sm:$0xf]
    %v152 = vld [vmem:[%s0 + $0x8] sm:$0xf]
    %v153 = vld [vmem:[%s0 + $0xc] sm:$0xf]
    %v154 = vld [vmem:[%s0 + $0x10] sm:$0xf]
    %v155 = vld [vmem:[%s0 + $0x14] sm:$0xf]
    %v156 = vld [vmem:[%s0 + $0x18] sm:$0xf]
    %v157 = vld [vmem:[%s0 + $0x1c] sm:$0xf]
    %v158 = vld [vmem:[%s0 + $0x20] sm:$0xf]
    %v159 = vld [vmem:[%s0 + $0x24] sm:$0xf]
    %v160 = vld [vmem:[%s0 + $0x28] sm:$0xf]
    %v161 = vld [vmem:[%s0 + $0x2c] sm:$0xf]
    %v162 = vld [vmem:[%s0 + $0x30] sm:$0xf]
    %v163 = vld [vmem:[%s0 + $0x34] sm:$0xf]
    %v164 = vld [vmem:[%s0 + $0x38] sm:$0xf]
    %v165 = vld [vmem:[%s0 + $0x3c] sm:$0xf]
    %v186 = vunpack.c.l.b16 %v140
    %v187 = vunpack.c.l.b16 %v150
    %v188 = vunpack.c.l.b16 %v151
    %v189 = vunpack.c.l.b16 %v152
    %v190 = vunpack.c.l.b16 %v153
    %v191 = vunpack.c.l.b16 %v154
    %v192 = vunpack.c.l.b16 %v155
    %v193 = vunpack.c.l.b16 %v156
    %v194 = vunpack.c.l.b16 %v157
    %v195 = vunpack.c.l.b16 %v148
    %v196 = vunpack.c.l.b16 %v141
    %v197 = vunpack.c.l.b16 %v158
    %v198 = vunpack.c.l.b16 %v159
    %v199 = vunpack.c.l.b16 %v160
    %v200 = vunpack.c.l.b16 %v161
    %v201 = vunpack.c.l.b16 %v162
    %v202 = vunpack.c.l.b16 %v163
    %v203 = vunpack.c.l.b16 %v164
    %v204 = vunpack.c.l.b16 %v165
    %v205 = vunpack.c.l.b16 %v149
    %v206 = vpack.c.b16 %v186, %v186
    %v207 = vpack.c.b16 %v187, %v187
    %v208 = vpack.c.b16 %v188, %v188
    %v209 = vpack.c.b16 %v189, %v189
    %v210 = vpack.c.b16 %v190, %v190
    %v211 = vpack.c.b16 %v191, %v191
    %v212 = vpack.c.b16 %v192, %v192
    %v213 = vpack.c.b16 %v193, %v193
    %v214 = vpack.c.b16 %v194, %v194
    %v215 = vpack.c.b16 %v195, %v195
    %v216 = vpack.c.b16 %v196, %v196
    %v217 = vpack.c.b16 %v197, %v197
    %v218 = vpack.c.b16 %v198, %v198
    %v219 = vpack.c.b16 %v199, %v199
    %v220 = vpack.c.b16 %v200, %v200
    %v221 = vpack.c.b16 %v201, %v201
    %v222 = vpack.c.b16 %v202, %v202
    %v223 = vpack.c.b16 %v203, %v203
    %v224 = vpack.c.b16 %v204, %v204
    %v225 = vpack.c.b16 %v205, %v205
    %v227 = vshrl.u32 %v206, 16
    %v229 = vrot.slane %v227, 7
    %v230 = vshll.u32 %v206, 16
    %v232 = vor.u32 %v229, %v230
    %v234 = vshrl.u32 %v207, 16
    %v236 = vrot.slane %v234, 7
    %v237 = vshll.u32 %v207, 16
    %v239 = vor.u32 %v236, %v237
    %v241 = vshrl.u32 %v208, 16
    %v243 = vrot.slane %v241, 7
    %v244 = vshll.u32 %v208, 16
    %v246 = vor.u32 %v243, %v244
    %v248 = vshrl.u32 %v209, 16
    %v250 = vrot.slane %v248, 7
    %v251 = vshll.u32 %v209, 16
    %v253 = vor.u32 %v250, %v251
    %v255 = vshrl.u32 %v210, 16
    %v257 = vrot.slane %v255, 7
    %v258 = vshll.u32 %v210, 16
    %v260 = vor.u32 %v257, %v258
    %v262 = vshrl.u32 %v211, 16
    %v264 = vrot.slane %v262, 7
    %v265 = vshll.u32 %v211, 16
    %v267 = vor.u32 %v264, %v265
    %v269 = vshrl.u32 %v212, 16
    %v271 = vrot.slane %v269, 7
    %v272 = vshll.u32 %v212, 16
    %v274 = vor.u32 %v271, %v272
    %v276 = vshrl.u32 %v213, 16
    %v278 = vrot.slane %v276, 7
    %v279 = vshll.u32 %v213, 16
    %v281 = vor.u32 %v278, %v279
    %v283 = vshrl.u32 %v214, 16
    %v285 = vrot.slane %v283, 7
    %v286 = vshll.u32 %v214, 16
    %v288 = vor.u32 %v285, %v286
    %v290 = vshrl.u32 %v215, 16
    %v292 = vrot.slane %v290, 7
    %v293 = vshll.u32 %v215, 16
    %v295 = vor.u32 %v292, %v293
    %v297 = vshrl.u32 %v216, 16
    %v299 = vrot.slane %v297, 7
    %v300 = vshll.u32 %v216, 16
    %v302 = vor.u32 %v299, %v300
    %v304 = vshrl.u32 %v217, 16
    %v306 = vrot.slane %v304, 7
    %v307 = vshll.u32 %v217, 16
    %v309 = vor.u32 %v306, %v307
    %v311 = vshrl.u32 %v218, 16
    %v313 = vrot.slane %v311, 7
    %v314 = vshll.u32 %v218, 16
    %v316 = vor.u32 %v313, %v314
    %v318 = vshrl.u32 %v219, 16
    %v320 = vrot.slane %v318, 7
    %v321 = vshll.u32 %v219, 16
    %v323 = vor.u32 %v320, %v321
    %v325 = vshrl.u32 %v220, 16
    %v327 = vrot.slane %v325, 7
    %v328 = vshll.u32 %v220, 16
    %v330 = vor.u32 %v327, %v328
    %v332 = vshrl.u32 %v221, 16
    %v334 = vrot.slane %v332, 7
    %v335 = vshll.u32 %v221, 16
    %v337 = vor.u32 %v334, %v335
    %v339 = vshrl.u32 %v222, 16
    %v341 = vrot.slane %v339, 7
    %v342 = vshll.u32 %v222, 16
    %v344 = vor.u32 %v341, %v342
    %v346 = vshrl.u32 %v223, 16
    %v348 = vrot.slane %v346, 7
    %v349 = vshll.u32 %v223, 16
    %v351 = vor.u32 %v348, %v349
    %v353 = vshrl.u32 %v224, 16
    %v355 = vrot.slane %v353, 7
    %v356 = vshll.u32 %v224, 16
    %v358 = vor.u32 %v355, %v356
    %v360 = vshrl.u32 %v225, 16
    %v362 = vrot.slane %v360, 7
    %v363 = vshll.u32 %v225, 16
    %v365 = vor.u32 %v362, %v363
    %vm386 = vcmask 1040384
    %vm387 = vsmask.f32 256
    %vm388 = vmand %vm386, %vm387
    %v389 = vsel %vm388, 0, %v232
    %v390 = vsel %vm388, 0, %v239
    %v391 = vsel %vm388, 0, %v246
    %v392 = vsel %vm388, 0, %v253
    %v393 = vsel %vm388, 0, %v260
    %v394 = vsel %vm388, 0, %v267
    %v395 = vsel %vm388, 0, %v274
    %v396 = vsel %vm388, 0, %v281
    %v397 = vsel %vm388, 0, %v288
    %v398 = vsel %vm388, 0, %v295
    %v399 = vsel %vm388, 0, %v302
    %v400 = vsel %vm388, 0, %v309
    %v401 = vsel %vm388, 0, %v316
    %v402 = vsel %vm388, 0, %v323
    %v403 = vsel %vm388, 0, %v330
    %v404 = vsel %vm388, 0, %v337
    %v405 = vsel %vm388, 0, %v344
    %v406 = vsel %vm388, 0, %v351
    %v407 = vsel %vm388, 0, %v358
    %v408 = vsel %vm388, 0, %v365
    %vm409 = vcmask 1044480
    %vm410 = vsmask.f32 4352
    %vm411 = vmand %vm409, %vm410
    %v412 = vsel %vm411, %v389, 0
    %v413 = vsel %vm411, %v390, 0
    %v414 = vsel %vm411, %v391, 0
    %v415 = vsel %vm411, %v392, 0
    %v416 = vsel %vm411, %v393, 0
    %v417 = vsel %vm411, %v394, 0
    %v418 = vsel %vm411, %v395, 0
    %v419 = vsel %vm411, %v396, 0
    %v420 = vsel %vm411, %v397, 0
    %v421 = vsel %vm411, %v398, 0
    %v422 = vsel %vm411, %v399, 0
    %v423 = vsel %vm411, %v400, 0
    %v424 = vsel %vm411, %v401, 0
    %v425 = vsel %vm411, %v402, 0
    %v426 = vsel %vm411, %v403, 0
    %v427 = vsel %vm411, %v404, 0
    %v428 = vsel %vm411, %v405, 0
    %v429 = vsel %vm411, %v406, 0
    %v430 = vsel %vm411, %v407, 0
    %v431 = vsel %vm411, %v408, 0
    %v452 = vunpack.c.l.b16 %v412
    %v453 = vunpack.c.l.b16 %v413
    %v454 = vunpack.c.l.b16 %v414
    %v455 = vunpack.c.l.b16 %v415
    %v456 = vunpack.c.l.b16 %v416
    %v457 = vunpack.c.l.b16 %v417
    %v458 = vunpack.c.l.b16 %v418
    %v459 = vunpack.c.l.b16 %v419
    %v460 = vunpack.c.l.b16 %v420
    %v461 = vunpack.c.l.b16 %v421
    %v462 = vunpack.c.l.b16 %v422
    %v463 = vunpack.c.l.b16 %v423
    %v464 = vunpack.c.l.b16 %v424
    %v465 = vunpack.c.l.b16 %v425
    %v466 = vunpack.c.l.b16 %v426
    %v467 = vunpack.c.l.b16 %v427
    %v468 = vunpack.c.l.b16 %v428
    %v469 = vunpack.c.l.b16 %v429
    %v470 = vunpack.c.l.b16 %v430
    %v471 = vunpack.c.l.b16 %v431
    %v472 = vld [vmem:[%s3] sm:$0xff]
    %v473 = vld [vmem:[%s3 + $0x8] sm:$0xff]
    %v474 = vld [vmem:[%s3 + $0x10] sm:$0xff]
    %v475 = vld [vmem:[%s3 + $0x18] sm:$0xff]
    %v476 = vld [vmem:[%s3 + $0x20] sm:$0xff]
    %v477 = vld [vmem:[%s3 + $0x28] sm:$0xff]
    %v478 = vld [vmem:[%s3 + $0x30] sm:$0xff]
    %v479 = vld [vmem:[%s3 + $0x38] sm:$0xff]
    %v480 = vld [vmem:[%s3 + $0x40] sm:$0xff]
    %v481 = vld [vmem:[%s3 + $0x48] sm:$0xff]
    %v482 = vld [vmem:[%s3 + $0x50] sm:$0xff]
    %v483 = vld [vmem:[%s3 + $0x58] sm:$0xff]
    %v484 = vld [vmem:[%s3 + $0x60] sm:$0xff]
    %v485 = vld [vmem:[%s3 + $0x68] sm:$0xff]
    %v486 = vld [vmem:[%s3 + $0x70] sm:$0xff]
    %v487 = vld [vmem:[%s3 + $0x78] sm:$0xff]
    %v488 = vld [vmem:[%s3 + $0x80] sm:$0xff]
    %v489 = vld [vmem:[%s3 + $0x88] sm:$0xff]
    %v490 = vld [vmem:[%s3 + $0x90] sm:$0xff]
    %v491 = vld [vmem:[%s3 + $0x98] sm:$0xff]
    %v492 = vld [vmem:[%s3 + $0xa0] sm:$0xff]
    %v493 = vld [vmem:[%s3 + $0xa8] sm:$0xff]
    %v494 = vld [vmem:[%s3 + $0xb0] sm:$0xff]
    %v495 = vld [vmem:[%s3 + $0xb8] sm:$0xff]
    %v496 = vld [vmem:[%s3 + $0xc0] sm:$0xff]
    %v497 = vld [vmem:[%s3 + $0xc8] sm:$0xff]
    %v498 = vld [vmem:[%s3 + $0xd0] sm:$0xff]
    %v499 = vld [vmem:[%s3 + $0xd8] sm:$0xff]
    %v500 = vld [vmem:[%s3 + $0xe0] sm:$0xff]
    %v501 = vld [vmem:[%s3 + $0xe8] sm:$0xff]
    %v502 = vld [vmem:[%s3 + $0xf0] sm:$0xff]
    %v503 = vld [vmem:[%s3 + $0xf8] sm:$0xff]
    %v504 = vld [vmem:[%s3 + $0x100] sm:$0xff]
    %v505 = vld [vmem:[%s3 + $0x108] sm:$0xff]
    %v506 = vld [vmem:[%s3 + $0x110] sm:$0xff]
    %v507 = vld [vmem:[%s3 + $0x118] sm:$0xff]
    %v508 = vld [vmem:[%s3 + $0x120] sm:$0xff]
    %v509 = vld [vmem:[%s3 + $0x128] sm:$0xff]
    %v510 = vld [vmem:[%s3 + $0x130] sm:$0xff]
    %v511 = vld [vmem:[%s3 + $0x138] sm:$0xff]
    %v512 = vld [vmem:[%s3 + $0x140] sm:$0xff]
    %v513 = vld [vmem:[%s3 + $0x148] sm:$0xff]
    %v514 = vld [vmem:[%s3 + $0x150] sm:$0xff]
    %v515 = vld [vmem:[%s3 + $0x158] sm:$0xff]
    %v516 = vld [vmem:[%s3 + $0x160] sm:$0xff]
    %v517 = vld [vmem:[%s3 + $0x168] sm:$0xff]
    %v518 = vld [vmem:[%s3 + $0x170] sm:$0xff]
    %v519 = vld [vmem:[%s3 + $0x178] sm:$0xff]
    %v520 = vunpack.c.h.b16 %v412
    %v521 = vunpack.c.h.b16 %v413
    %v522 = vunpack.c.h.b16 %v414
    %v523 = vunpack.c.h.b16 %v415
    %v524 = vunpack.c.h.b16 %v416
    %v525 = vunpack.c.h.b16 %v417
    %v526 = vunpack.c.h.b16 %v418
    %v527 = vunpack.c.h.b16 %v419
    %v528 = vunpack.c.h.b16 %v420
    %v529 = vunpack.c.h.b16 %v421
    %v530 = vunpack.c.h.b16 %v422
    %v531 = vunpack.c.h.b16 %v423
    %v532 = vunpack.c.h.b16 %v424
    %v533 = vunpack.c.h.b16 %v425
    %v534 = vunpack.c.h.b16 %v426
    %v535 = vunpack.c.h.b16 %v427
    %v536 = vunpack.c.h.b16 %v428
    %v537 = vunpack.c.h.b16 %v429
    %v538 = vunpack.c.h.b16 %v430
    %v539 = vunpack.c.h.b16 %v431
    %v540 = vpack.c.b16 %v453, %v452
    %v541 = vpack.c.b16 %v454, %v454
    %v542 = vpack.c.b16 %v521, %v520
    %v543 = vpack.c.b16 %v522, %v522
    %v544 = vpack.c.b16 %v454, %v453
    %v545 = vpack.c.b16 %v455, %v455
    %v546 = vpack.c.b16 %v522, %v521
    %v547 = vpack.c.b16 %v523, %v523
    %v548 = vpack.c.b16 %v455, %v454
    %v549 = vpack.c.b16 %v456, %v456
    %v550 = vpack.c.b16 %v523, %v522
    %v551 = vpack.c.b16 %v524, %v524
    %v552 = vpack.c.b16 %v456, %v455
    %v553 = vpack.c.b16 %v457, %v457
    %v554 = vpack.c.b16 %v524, %v523
    %v555 = vpack.c.b16 %v525, %v525
    %v556 = vpack.c.b16 %v457, %v456
    %v557 = vpack.c.b16 %v458, %v458
    %v558 = vpack.c.b16 %v525, %v524
    %v559 = vpack.c.b16 %v526, %v526
    %v560 = vpack.c.b16 %v458, %v457
    %v561 = vpack.c.b16 %v459, %v459
    %v562 = vpack.c.b16 %v526, %v525
    %v563 = vpack.c.b16 %v527, %v527
    %v564 = vpack.c.b16 %v459, %v458
    %v565 = vpack.c.b16 %v460, %v460
    %v566 = vpack.c.b16 %v527, %v526
    %v567 = vpack.c.b16 %v528, %v528
    %v568 = vpack.c.b16 %v460, %v459
    %v569 = vpack.c.b16 %v461, %v461
    %v570 = vpack.c.b16 %v528, %v527
    %v571 = vpack.c.b16 %v529, %v529
    %v572 = vpack.c.b16 %v463, %v462
    %v573 = vpack.c.b16 %v464, %v464
    %v574 = vpack.c.b16 %v531, %v530
    %v575 = vpack.c.b16 %v532, %v532
    %v576 = vpack.c.b16 %v464, %v463
    %v577 = vpack.c.b16 %v465, %v465
    %v578 = vpack.c.b16 %v532, %v531
    %v579 = vpack.c.b16 %v533, %v533
    %v580 = vpack.c.b16 %v465, %v464
    %v581 = vpack.c.b16 %v466, %v466
    %v582 = vpack.c.b16 %v533, %v532
    %v583 = vpack.c.b16 %v534, %v534
    %v584 = vpack.c.b16 %v466, %v465
    %v585 = vpack.c.b16 %v467, %v467
    %v586 = vpack.c.b16 %v534, %v533
    %v587 = vpack.c.b16 %v535, %v535
    %v588 = vpack.c.b16 %v467, %v466
    %v589 = vpack.c.b16 %v468, %v468
    %v590 = vpack.c.b16 %v535, %v534
    %v591 = vpack.c.b16 %v536, %v536
    %v592 = vpack.c.b16 %v468, %v467
    %v593 = vpack.c.b16 %v469, %v469
    %v594 = vpack.c.b16 %v536, %v535
    %v595 = vpack.c.b16 %v537, %v537
    %v596 = vpack.c.b16 %v469, %v468
    %v597 = vpack.c.b16 %v470, %v470
    %v598 = vpack.c.b16 %v537, %v536
    %v599 = vpack.c.b16 %v538, %v538
    %v600 = vpack.c.b16 %v470, %v469
    %v601 = vpack.c.b16 %v471, %v471
    %v602 = vpack.c.b16 %v538, %v537
    %v603 = vpack.c.b16 %v539, %v539
    %vm604 = vsmask.f32 3328
    %vm605 = vsmask.f32 7440
    %vm606 = vmor %vm604, %vm605
    %v608 = vshrl.u32 %v540, 16
    %v610 = vrot.slane %v608, 4
    %v611 = vshll.u32 %v540, 16
    %v613 = vrot.slane %v611, 5
    %v614 = vor.u32 %v610, %v613
    %v615 = vrot.slane %v614, 4
    %v617 = vshll.u32 %v542, 16
    %v619 = vrot.slane %v617, 5
    %v620 = vsel %vm606, %v615, %v619
    %v622 = vshrl.u32 %v541, 16
    %v624 = vrot.slane %v622, 4
    %v625 = vshll.u32 %v541, 16
    %v627 = vrot.slane %v625, 5
    %v628 = vor.u32 %v624, %v627
    %v629 = vrot.slane %v628, 4
    %v631 = vshll.u32 %v543, 16
    %v633 = vrot.slane %v631, 5
    %v634 = vsel %vm606, %v629, %v633
    %v636 = vshrl.u32 %v544, 16
    %v638 = vrot.slane %v636, 4
    %v639 = vshll.u32 %v544, 16
    %v641 = vrot.slane %v639, 5
    %v642 = vor.u32 %v638, %v641
    %v643 = vrot.slane %v642, 4
    %v645 = vshll.u32 %v546, 16
    %v647 = vrot.slane %v645, 5
    %v648 = vsel %vm606, %v643, %v647
    %v650 = vshrl.u32 %v545, 16
    %v652 = vrot.slane %v650, 4
    %v653 = vshll.u32 %v545, 16
    %v655 = vrot.slane %v653, 5
    %v656 = vor.u32 %v652, %v655
    %v657 = vrot.slane %v656, 4
    %v659 = vshll.u32 %v547, 16
    %v661 = vrot.slane %v659, 5
    %v662 = vsel %vm606, %v657, %v661
    %v664 = vshrl.u32 %v548, 16
    %v666 = vrot.slane %v664, 4
    %v667 = vshll.u32 %v548, 16
    %v669 = vrot.slane %v667, 5
    %v670 = vor.u32 %v666, %v669
    %v671 = vrot.slane %v670, 4
    %v673 = vshll.u32 %v550, 16
    %v675 = vrot.slane %v673, 5
    %v676 = vsel %vm606, %v671, %v675
    %v678 = vshrl.u32 %v549, 16
    %v680 = vrot.slane %v678, 4
    %v681 = vshll.u32 %v549, 16
    %v683 = vrot.slane %v681, 5
    %v684 = vor.u32 %v680, %v683
    %v685 = vrot.slane %v684, 4
    %v687 = vshll.u32 %v551, 16
    %v689 = vrot.slane %v687, 5
    %v690 = vsel %vm606, %v685, %v689
    %v692 = vshrl.u32 %v552, 16
    %v694 = vrot.slane %v692, 4
    %v695 = vshll.u32 %v552, 16
    %v697 = vrot.slane %v695, 5
    %v698 = vor.u32 %v694, %v697
    %v699 = vrot.slane %v698, 4
    %v701 = vshll.u32 %v554, 16
    %v703 = vrot.slane %v701, 5
    %v704 = vsel %vm606, %v699, %v703
    %v706 = vshrl.u32 %v553, 16
    %v708 = vrot.slane %v706, 4
    %v709 = vshll.u32 %v553, 16
    %v711 = vrot.slane %v709, 5
    %v712 = vor.u32 %v708, %v711
    %v713 = vrot.slane %v712, 4
    %v715 = vshll.u32 %v555, 16
    %v717 = vrot.slane %v715, 5
    %v718 = vsel %vm606, %v713, %v717
    %v720 = vshrl.u32 %v556, 16
    %v722 = vrot.slane %v720, 4
    %v723 = vshll.u32 %v556, 16
    %v725 = vrot.slane %v723, 5
    %v726 = vor.u32 %v722, %v725
    %v727 = vrot.slane %v726, 4
    %v729 = vshll.u32 %v558, 16
    %v731 = vrot.slane %v729, 5
    %v732 = vsel %vm606, %v727, %v731
    %v734 = vshrl.u32 %v557, 16
    %v736 = vrot.slane %v734, 4
    %v737 = vshll.u32 %v557, 16
    %v739 = vrot.slane %v737, 5
    %v740 = vor.u32 %v736, %v739
    %v741 = vrot.slane %v740, 4
    %v743 = vshll.u32 %v559, 16
    %v745 = vrot.slane %v743, 5
    %v746 = vsel %vm606, %v741, %v745
    %v748 = vshrl.u32 %v560, 16
    %v750 = vrot.slane %v748, 4
    %v751 = vshll.u32 %v560, 16
    %v753 = vrot.slane %v751, 5
    %v754 = vor.u32 %v750, %v753
    %v755 = vrot.slane %v754, 4
    %v757 = vshll.u32 %v562, 16
    %v759 = vrot.slane %v757, 5
    %v760 = vsel %vm606, %v755, %v759
    %v762 = vshrl.u32 %v561, 16
    %v764 = vrot.slane %v762, 4
    %v765 = vshll.u32 %v561, 16
    %v767 = vrot.slane %v765, 5
    %v768 = vor.u32 %v764, %v767
    %v769 = vrot.slane %v768, 4
    %v771 = vshll.u32 %v563, 16
    %v773 = vrot.slane %v771, 5
    %v774 = vsel %vm606, %v769, %v773
    %v776 = vshrl.u32 %v564, 16
    %v778 = vrot.slane %v776, 4
    %v779 = vshll.u32 %v564, 16
    %v781 = vrot.slane %v779, 5
    %v782 = vor.u32 %v778, %v781
    %v783 = vrot.slane %v782, 4
    %v785 = vshll.u32 %v566, 16
    %v787 = vrot.slane %v785, 5
    %v788 = vsel %vm606, %v783, %v787
    %v790 = vshrl.u32 %v565, 16
    %v792 = vrot.slane %v790, 4
    %v793 = vshll.u32 %v565, 16
    %v795 = vrot.slane %v793, 5
    %v796 = vor.u32 %v792, %v795
    %v797 = vrot.slane %v796, 4
    %v799 = vshll.u32 %v567, 16
    %v801 = vrot.slane %v799, 5
    %v802 = vsel %vm606, %v797, %v801
    %v804 = vshrl.u32 %v568, 16
    %v806 = vrot.slane %v804, 4
    %v807 = vshll.u32 %v568, 16
    %v809 = vrot.slane %v807, 5
    %v810 = vor.u32 %v806, %v809
    %v811 = vrot.slane %v810, 4
    %v813 = vshll.u32 %v570, 16
    %v815 = vrot.slane %v813, 5
    %v816 = vsel %vm606, %v811, %v815
    %v818 = vshrl.u32 %v569, 16
    %v820 = vrot.slane %v818, 4
    %v821 = vshll.u32 %v569, 16
    %v823 = vrot.slane %v821, 5
    %v824 = vor.u32 %v820, %v823
    %v825 = vrot.slane %v824, 4
    %v827 = vshll.u32 %v571, 16
    %v829 = vrot.slane %v827, 5
    %v830 = vsel %vm606, %v825, %v829
    %v832 = vshrl.u32 %v572, 16
    %v834 = vrot.slane %v832, 4
    %v835 = vshll.u32 %v572, 16
    %v837 = vrot.slane %v835, 5
    %v838 = vor.u32 %v834, %v837
    %v839 = vrot.slane %v838, 4
    %v841 = vshll.u32 %v574, 16
    %v843 = vrot.slane %v841, 5
    %v844 = vsel %vm606, %v839, %v843
    %v846 = vshrl.u32 %v573, 16
    %v848 = vrot.slane %v846, 4
    %v849 = vshll.u32 %v573, 16
    %v851 = vrot.slane %v849, 5
    %v852 = vor.u32 %v848, %v851
    %v853 = vrot.slane %v852, 4
    %v855 = vshll.u32 %v575, 16
    %v857 = vrot.slane %v855, 5
    %v858 = vsel %vm606, %v853, %v857
    %v860 = vshrl.u32 %v576, 16
    %v862 = vrot.slane %v860, 4
    %v863 = vshll.u32 %v576, 16
    %v865 = vrot.slane %v863, 5
    %v866 = vor.u32 %v862, %v865
    %v867 = vrot.slane %v866, 4
    %v869 = vshll.u32 %v578, 16
    %v871 = vrot.slane %v869, 5
    %v872 = vsel %vm606, %v867, %v871
    %v874 = vshrl.u32 %v577, 16
    %v876 = vrot.slane %v874, 4
    %v877 = vshll.u32 %v577, 16
    %v879 = vrot.slane %v877, 5
    %v880 = vor.u32 %v876, %v879
    %v881 = vrot.slane %v880, 4
    %v883 = vshll.u32 %v579, 16
    %v885 = vrot.slane %v883, 5
    %v886 = vsel %vm606, %v881, %v885
    %v888 = vshrl.u32 %v580, 16
    %v890 = vrot.slane %v888, 4
    %v891 = vshll.u32 %v580, 16
    %v893 = vrot.slane %v891, 5
    %v894 = vor.u32 %v890, %v893
    %v895 = vrot.slane %v894, 4
    %v897 = vshll.u32 %v582, 16
    %v899 = vrot.slane %v897, 5
    %v900 = vsel %vm606, %v895, %v899
    %v902 = vshrl.u32 %v581, 16
    %v904 = vrot.slane %v902, 4
    %v905 = vshll.u32 %v581, 16
    %v907 = vrot.slane %v905, 5
    %v908 = vor.u32 %v904, %v907
    %v909 = vrot.slane %v908, 4
    %v911 = vshll.u32 %v583, 16
    %v913 = vrot.slane %v911, 5
    %v914 = vsel %vm606, %v909, %v913
    %v916 = vshrl.u32 %v584, 16
    %v918 = vrot.slane %v916, 4
    %v919 = vshll.u32 %v584, 16
    %v921 = vrot.slane %v919, 5
    %v922 = vor.u32 %v918, %v921
    %v923 = vrot.slane %v922, 4
    %v925 = vshll.u32 %v586, 16
    %v927 = vrot.slane %v925, 5
    %v928 = vsel %vm606, %v923, %v927
    %v930 = vshrl.u32 %v585, 16
    %v932 = vrot.slane %v930, 4
    %v933 = vshll.u32 %v585, 16
    %v935 = vrot.slane %v933, 5
    %v936 = vor.u32 %v932, %v935
    %v937 = vrot.slane %v936, 4
    %v939 = vshll.u32 %v587, 16
    %v941 = vrot.slane %v939, 5
    %v942 = vsel %vm606, %v937, %v941
    %v944 = vshrl.u32 %v588, 16
    %v946 = vrot.slane %v944, 4
    %v947 = vshll.u32 %v588, 16
    %v949 = vrot.slane %v947, 5
    %v950 = vor.u32 %v946, %v949
    %v951 = vrot.slane %v950, 4
    %v953 = vshll.u32 %v590, 16
    %v955 = vrot.slane %v953, 5
    %v956 = vsel %vm606, %v951, %v955
    %v958 = vshrl.u32 %v589, 16
    %v960 = vrot.slane %v958, 4
    %v961 = vshll.u32 %v589, 16
    %v963 = vrot.slane %v961, 5
    %v964 = vor.u32 %v960, %v963
    %v965 = vrot.slane %v964, 4
    %v967 = vshll.u32 %v591, 16
    %v969 = vrot.slane %v967, 5
    %v970 = vsel %vm606, %v965, %v969
    %v972 = vshrl.u32 %v592, 16
    %v974 = vrot.slane %v972, 4
    %v975 = vshll.u32 %v592, 16
    %v977 = vrot.slane %v975, 5
    %v978 = vor.u32 %v974, %v977
    %v979 = vrot.slane %v978, 4
    %v981 = vshll.u32 %v594, 16
    %v983 = vrot.slane %v981, 5
    %v984 = vsel %vm606, %v979, %v983
    %v986 = vshrl.u32 %v593, 16
    %v988 = vrot.slane %v986, 4
    %v989 = vshll.u32 %v593, 16
    %v991 = vrot.slane %v989, 5
    %v992 = vor.u32 %v988, %v991
    %v993 = vrot.slane %v992, 4
    %v995 = vshll.u32 %v595, 16
    %v997 = vrot.slane %v995, 5
    %v998 = vsel %vm606, %v993, %v997
    %v1000 = vshrl.u32 %v596, 16
    %v1002 = vrot.slane %v1000, 4
    %v1003 = vshll.u32 %v596, 16
    %v1005 = vrot.slane %v1003, 5
    %v1006 = vor.u32 %v1002, %v1005
    %v1007 = vrot.slane %v1006, 4
    %v1009 = vshll.u32 %v598, 16
    %v1011 = vrot.slane %v1009, 5
    %v1012 = vsel %vm606, %v1007, %v1011
    %v1014 = vshrl.u32 %v597, 16
    %v1016 = vrot.slane %v1014, 4
    %v1017 = vshll.u32 %v597, 16
    %v1019 = vrot.slane %v1017, 5
    %v1020 = vor.u32 %v1016, %v1019
    %v1021 = vrot.slane %v1020, 4
    %v1023 = vshll.u32 %v599, 16
    %v1025 = vrot.slane %v1023, 5
    %v1026 = vsel %vm606, %v1021, %v1025
    %v1028 = vshrl.u32 %v600, 16
    %v1030 = vrot.slane %v1028, 4
    %v1031 = vshll.u32 %v600, 16
    %v1033 = vrot.slane %v1031, 5
    %v1034 = vor.u32 %v1030, %v1033
    %v1035 = vrot.slane %v1034, 4
    %v1037 = vshll.u32 %v602, 16
    %v1039 = vrot.slane %v1037, 5
    %v1040 = vsel %vm606, %v1035, %v1039
    %v1042 = vshrl.u32 %v601, 16
    %v1044 = vrot.slane %v1042, 4
    %v1045 = vshll.u32 %v601, 16
    %v1047 = vrot.slane %v1045, 5
    %v1048 = vor.u32 %v1044, %v1047
    %v1049 = vrot.slane %v1048, 4
    %v1051 = vshll.u32 %v603, 16
    %v1053 = vrot.slane %v1051, 5
    %v1054 = vsel %vm606, %v1049, %v1053
    %s1055 = scalar_lea.vmem %s3, 384
    %v1056 = vld [vmem:[%s1055] sm:$0xff]
    %v1057 = vld [vmem:[%s1055 + $0x8] sm:$0xff]
    %v1058 = vld [vmem:[%s1055 + $0x10] sm:$0xff]
    %v1059 = vld [vmem:[%s1055 + $0x18] sm:$0xff]
    %v1060 = vld [vmem:[%s1055 + $0x20] sm:$0xff]
    %v1061 = vld [vmem:[%s1055 + $0x28] sm:$0xff]
    %v1062 = vld [vmem:[%s1055 + $0x30] sm:$0xff]
    %v1063 = vld [vmem:[%s1055 + $0x38] sm:$0xff]
    %v1064 = vld [vmem:[%s1055 + $0x40] sm:$0xff]
    %v1065 = vld [vmem:[%s1055 + $0x48] sm:$0xff]
    %v1066 = vld [vmem:[%s1055 + $0x50] sm:$0xff]
    %v1067 = vld [vmem:[%s1055 + $0x58] sm:$0xff]
    %v1068 = vld [vmem:[%s1055 + $0x60] sm:$0xff]
    %v1069 = vld [vmem:[%s1055 + $0x68] sm:$0xff]
    %v1070 = vld [vmem:[%s1055 + $0x70] sm:$0xff]
    %v1071 = vld [vmem:[%s1055 + $0x78] sm:$0xff]
    %v1072 = vld [vmem:[%s1055 + $0x80] sm:$0xff]
    %v1073 = vld [vmem:[%s1055 + $0x88] sm:$0xff]
    %v1074 = vld [vmem:[%s1055 + $0x90] sm:$0xff]
    %v1075 = vld [vmem:[%s1055 + $0x98] sm:$0xff]
    %v1076 = vld [vmem:[%s1055 + $0xa0] sm:$0xff]
    %v1077 = vld [vmem:[%s1055 + $0xa8] sm:$0xff]
    %v1078 = vld [vmem:[%s1055 + $0xb0] sm:$0xff]
    %v1079 = vld [vmem:[%s1055 + $0xb8] sm:$0xff]
    %v1080 = vld [vmem:[%s1055 + $0xc0] sm:$0xff]
    %v1081 = vld [vmem:[%s1055 + $0xc8] sm:$0xff]
    %v1082 = vld [vmem:[%s1055 + $0xd0] sm:$0xff]
    %v1083 = vld [vmem:[%s1055 + $0xd8] sm:$0xff]
    %v1084 = vld [vmem:[%s1055 + $0xe0] sm:$0xff]
    %v1085 = vld [vmem:[%s1055 + $0xe8] sm:$0xff]
    %v1086 = vld [vmem:[%s1055 + $0xf0] sm:$0xff]
    %v1087 = vld [vmem:[%s1055 + $0xf8] sm:$0xff]
    %v1088 = vld [vmem:[%s1055 + $0x100] sm:$0xff]
    %v1089 = vld [vmem:[%s1055 + $0x108] sm:$0xff]
    %v1090 = vld [vmem:[%s1055 + $0x110] sm:$0xff]
    %v1091 = vld [vmem:[%s1055 + $0x118] sm:$0xff]
    %v1092 = vld [vmem:[%s1055 + $0x120] sm:$0xff]
    %v1093 = vld [vmem:[%s1055 + $0x128] sm:$0xff]
    %v1094 = vld [vmem:[%s1055 + $0x130] sm:$0xff]
    %v1095 = vld [vmem:[%s1055 + $0x138] sm:$0xff]
    %v1096 = vld [vmem:[%s1055 + $0x140] sm:$0xff]
    %v1097 = vld [vmem:[%s1055 + $0x148] sm:$0xff]
    %v1098 = vld [vmem:[%s1055 + $0x150] sm:$0xff]
    %v1099 = vld [vmem:[%s1055 + $0x158] sm:$0xff]
    %v1100 = vld [vmem:[%s1055 + $0x160] sm:$0xff]
    %v1101 = vld [vmem:[%s1055 + $0x168] sm:$0xff]
    %v1102 = vld [vmem:[%s1055 + $0x170] sm:$0xff]
    %v1103 = vld [vmem:[%s1055 + $0x178] sm:$0xff]
    %v1104 = vunpack.c.l.b16 %v620
    %v1105 = vunpack.c.h.b16 %v620
    %v1106 = vunpack.c.l.b16 %v634
    %v1107 = vunpack.c.l.b16 %v648
    %v1108 = vunpack.c.h.b16 %v648
    %v1109 = vunpack.c.l.b16 %v662
    %v1110 = vunpack.c.l.b16 %v676
    %v1111 = vunpack.c.h.b16 %v676
    %v1112 = vunpack.c.l.b16 %v690
    %v1113 = vunpack.c.l.b16 %v704
    %v1114 = vunpack.c.h.b16 %v704
    %v1115 = vunpack.c.l.b16 %v718
    %v1116 = vunpack.c.l.b16 %v732
    %v1117 = vunpack.c.h.b16 %v732
    %v1118 = vunpack.c.l.b16 %v746
    %v1119 = vunpack.c.l.b16 %v760
    %v1120 = vunpack.c.h.b16 %v760
    %v1121 = vunpack.c.l.b16 %v774
    %v1122 = vunpack.c.l.b16 %v788
    %v1123 = vunpack.c.h.b16 %v788
    %v1124 = vunpack.c.l.b16 %v802
    %v1125 = vunpack.c.l.b16 %v816
    %v1126 = vunpack.c.h.b16 %v816
    %v1127 = vunpack.c.l.b16 %v830
    %v1128 = vunpack.c.l.b16 %v844
    %v1129 = vunpack.c.h.b16 %v844
    %v1130 = vunpack.c.l.b16 %v858
    %v1131 = vunpack.c.l.b16 %v872
    %v1132 = vunpack.c.h.b16 %v872
    %v1133 = vunpack.c.l.b16 %v886
    %v1134 = vunpack.c.l.b16 %v900
    %v1135 = vunpack.c.h.b16 %v900
    %v1136 = vunpack.c.l.b16 %v914
    %v1137 = vunpack.c.l.b16 %v928
    %v1138 = vunpack.c.h.b16 %v928
    %v1139 = vunpack.c.l.b16 %v942
    %v1140 = vunpack.c.l.b16 %v956
    %v1141 = vunpack.c.h.b16 %v956
    %v1142 = vunpack.c.l.b16 %v970
    %v1143 = vunpack.c.l.b16 %v984
    %v1144 = vunpack.c.h.b16 %v984
    %v1145 = vunpack.c.l.b16 %v998
    %v1146 = vunpack.c.l.b16 %v1012
    %v1147 = vunpack.c.h.b16 %v1012
    %v1148 = vunpack.c.l.b16 %v1026
    %v1149 = vunpack.c.l.b16 %v1040
    %v1150 = vunpack.c.h.b16 %v1040
    %v1151 = vunpack.c.l.b16 %v1054
    %v1152 = vpack.c.b16 %v1107, %v1104
    %v1153 = vpack.c.b16 %v1108, %v1105
    %v1154 = vpack.c.b16 %v1109, %v1106
    %v1155 = vpack.c.b16 %v1113, %v1110
    %v1156 = vpack.c.b16 %v1114, %v1111
    %v1157 = vpack.c.b16 %v1115, %v1112
    %v1158 = vpack.c.b16 %v1119, %v1116
    %v1159 = vpack.c.b16 %v1120, %v1117
    %v1160 = vpack.c.b16 %v1121, %v1118
    %v1161 = vpack.c.b16 %v1125, %v1122
    %v1162 = vpack.c.b16 %v1126, %v1123
    %v1163 = vpack.c.b16 %v1127, %v1124
    %v1164 = vpack.c.b16 %v1131, %v1128
    %v1165 = vpack.c.b16 %v1132, %v1129
    %v1166 = vpack.c.b16 %v1133, %v1130
    %v1167 = vpack.c.b16 %v1137, %v1134
    %v1168 = vpack.c.b16 %v1138, %v1135
    %v1169 = vpack.c.b16 %v1139, %v1136
    %v1170 = vpack.c.b16 %v1143, %v1140
    %v1171 = vpack.c.b16 %v1144, %v1141
    %v1172 = vpack.c.b16 %v1145, %v1142
    %v1173 = vpack.c.b16 %v1149, %v1146
    %v1174 = vpack.c.b16 %v1150, %v1147
    %v1175 = vpack.c.b16 %v1151, %v1148
    %v1248 = vunpack.c.l.b16 %v1056
    %v1249 = vunpack.c.h.b16 %v1056
    %v1250 = vunpack.c.l.b16 %v1057
    %v1251 = vunpack.c.h.b16 %v1057
    %v1252 = vunpack.c.l.b16 %v1058
    %v1253 = vunpack.c.h.b16 %v1058
    %v1254 = vunpack.c.l.b16 %v1059
    %v1255 = vunpack.c.h.b16 %v1059
    %v1256 = vunpack.c.l.b16 %v1060
    %v1257 = vunpack.c.h.b16 %v1060
    %v1258 = vunpack.c.l.b16 %v1061
    %v1259 = vunpack.c.h.b16 %v1061
    %v1260 = vunpack.c.l.b16 %v1062
    %v1261 = vunpack.c.h.b16 %v1062
    %v1262 = vunpack.c.l.b16 %v1063
    %v1263 = vunpack.c.h.b16 %v1063
    %v1264 = vunpack.c.l.b16 %v1064
    %v1265 = vunpack.c.h.b16 %v1064
    %v1266 = vunpack.c.l.b16 %v1065
    %v1267 = vunpack.c.h.b16 %v1065
    %v1268 = vunpack.c.l.b16 %v1066
    %v1269 = vunpack.c.h.b16 %v1066
    %v1270 = vunpack.c.l.b16 %v1067
    %v1271 = vunpack.c.h.b16 %v1067
    %v1272 = vunpack.c.l.b16 %v1068
    %v1273 = vunpack.c.h.b16 %v1068
    %v1274 = vunpack.c.l.b16 %v1069
    %v1275 = vunpack.c.h.b16 %v1069
    %v1276 = vunpack.c.l.b16 %v1070
    %v1277 = vunpack.c.h.b16 %v1070
    %v1278 = vunpack.c.l.b16 %v1071
    %v1279 = vunpack.c.h.b16 %v1071
    %v1280 = vunpack.c.l.b16 %v1072
    %v1281 = vunpack.c.h.b16 %v1072
    %v1282 = vunpack.c.l.b16 %v1073
    %v1283 = vunpack.c.h.b16 %v1073
    %v1284 = vunpack.c.l.b16 %v1074
    %v1285 = vunpack.c.h.b16 %v1074
    %v1286 = vunpack.c.l.b16 %v1075
    %v1287 = vunpack.c.h.b16 %v1075
    %v1288 = vunpack.c.l.b16 %v1076
    %v1289 = vunpack.c.h.b16 %v1076
    %v1290 = vunpack.c.l.b16 %v1077
    %v1291 = vunpack.c.h.b16 %v1077
    %v1292 = vunpack.c.l.b16 %v1078
    %v1293 = vunpack.c.h.b16 %v1078
    %v1294 = vunpack.c.l.b16 %v1079
    %v1295 = vunpack.c.h.b16 %v1079
    %v1296 = vunpack.c.l.b16 %v1080
    %v1297 = vunpack.c.h.b16 %v1080
    %v1298 = vunpack.c.l.b16 %v1081
    %v1299 = vunpack.c.h.b16 %v1081
    %v1300 = vunpack.c.l.b16 %v1082
    %v1301 = vunpack.c.h.b16 %v1082
    %v1302 = vunpack.c.l.b16 %v1083
    %v1303 = vunpack.c.h.b16 %v1083
    %v1304 = vunpack.c.l.b16 %v1084
    %v1305 = vunpack.c.h.b16 %v1084
    %v1306 = vunpack.c.l.b16 %v1085
    %v1307 = vunpack.c.h.b16 %v1085
    %v1308 = vunpack.c.l.b16 %v1086
    %v1309 = vunpack.c.h.b16 %v1086
    %v1310 = vunpack.c.l.b16 %v1087
    %v1311 = vunpack.c.h.b16 %v1087
    %v1312 = vunpack.c.l.b16 %v1088
    %v1313 = vunpack.c.h.b16 %v1088
    %v1314 = vunpack.c.l.b16 %v1089
    %v1315 = vunpack.c.h.b16 %v1089
    %v1316 = vunpack.c.l.b16 %v1090
    %v1317 = vunpack.c.h.b16 %v1090
    %v1318 = vunpack.c.l.b16 %v1091
    %v1319 = vunpack.c.h.b16 %v1091
    %v1320 = vunpack.c.l.b16 %v1092
    %v1321 = vunpack.c.h.b16 %v1092
    %v1322 = vunpack.c.l.b16 %v1093
    %v1323 = vunpack.c.h.b16 %v1093
    %v1324 = vunpack.c.l.b16 %v1094
    %v1325 = vunpack.c.h.b16 %v1094
    %v1326 = vunpack.c.l.b16 %v1095
    %v1327 = vunpack.c.h.b16 %v1095
    %v1328 = vunpack.c.l.b16 %v1096
    %v1329 = vunpack.c.h.b16 %v1096
    %v1330 = vunpack.c.l.b16 %v1097
    %v1331 = vunpack.c.h.b16 %v1097
    %v1332 = vunpack.c.l.b16 %v1098
    %v1333 = vunpack.c.h.b16 %v1098
    %v1334 = vunpack.c.l.b16 %v1099
    %v1335 = vunpack.c.h.b16 %v1099
    %v1336 = vunpack.c.l.b16 %v1100
    %v1337 = vunpack.c.h.b16 %v1100
    %v1338 = vunpack.c.l.b16 %v1101
    %v1339 = vunpack.c.h.b16 %v1101
    %v1340 = vunpack.c.l.b16 %v1102
    %v1341 = vunpack.c.h.b16 %v1102
    %v1342 = vunpack.c.l.b16 %v1103
    %v1343 = vunpack.c.h.b16 %v1103
    %v1344 = vpack.c.b16 %v1250, %v1248
    %v1345 = vpack.c.b16 %v1251, %v1249
    %v1346 = vpack.c.b16 %v1254, %v1252
    %v1347 = vpack.c.b16 %v1255, %v1253
    %v1348 = vpack.c.b16 %v1258, %v1256
    %v1349 = vpack.c.b16 %v1259, %v1257
    %v1350 = vpack.c.b16 %v1262, %v1260
    %v1351 = vpack.c.b16 %v1263, %v1261
    %v1352 = vpack.c.b16 %v1266, %v1264
    %v1353 = vpack.c.b16 %v1267, %v1265
    %v1354 = vpack.c.b16 %v1270, %v1268
    %v1355 = vpack.c.b16 %v1271, %v1269
    %v1356 = vpack.c.b16 %v1274, %v1272
    %v1357 = vpack.c.b16 %v1275, %v1273
    %v1358 = vpack.c.b16 %v1278, %v1276
    %v1359 = vpack.c.b16 %v1279, %v1277
    %v1360 = vpack.c.b16 %v1282, %v1280
    %v1361 = vpack.c.b16 %v1283, %v1281
    %v1362 = vpack.c.b16 %v1286, %v1284
    %v1363 = vpack.c.b16 %v1287, %v1285
    %v1364 = vpack.c.b16 %v1290, %v1288
    %v1365 = vpack.c.b16 %v1291, %v1289
    %v1366 = vpack.c.b16 %v1294, %v1292
    %v1367 = vpack.c.b16 %v1295, %v1293
    %v1368 = vpack.c.b16 %v1298, %v1296
    %v1369 = vpack.c.b16 %v1299, %v1297
    %v1370 = vpack.c.b16 %v1302, %v1300
    %v1371 = vpack.c.b16 %v1303, %v1301
    %v1372 = vpack.c.b16 %v1306, %v1304
    %v1373 = vpack.c.b16 %v1307, %v1305
    %v1374 = vpack.c.b16 %v1310, %v1308
    %v1375 = vpack.c.b16 %v1311, %v1309
    %v1376 = vpack.c.b16 %v1314, %v1312
    %v1377 = vpack.c.b16 %v1315, %v1313
    %v1378 = vpack.c.b16 %v1318, %v1316
    %v1379 = vpack.c.b16 %v1319, %v1317
    %v1380 = vpack.c.b16 %v1322, %v1320
    %v1381 = vpack.c.b16 %v1323, %v1321
    %v1382 = vpack.c.b16 %v1326, %v1324
    %v1383 = vpack.c.b16 %v1327, %v1325
    %v1384 = vpack.c.b16 %v1330, %v1328
    %v1385 = vpack.c.b16 %v1331, %v1329
    %v1386 = vpack.c.b16 %v1334, %v1332
    %v1387 = vpack.c.b16 %v1335, %v1333
    %v1388 = vpack.c.b16 %v1338, %v1336
    %v1389 = vpack.c.b16 %v1339, %v1337
    %v1390 = vpack.c.b16 %v1342, %v1340
    %v1391 = vpack.c.b16 %v1343, %v1341
    %1440 = vmatpush.bf16.msra.mxu0 %v1358
    %1441 = vmatpush.bf16.msra.mxu0 %v1356
    %1442 = vmatpush.bf16.msra.mxu0 %v1354
    %1443 = vmatpush.bf16.msra.mxu0 %v1352
    %1444 = vmatpush.bf16.msra.mxu0 %v1350
    %1445 = vmatpush.bf16.msra.mxu0 %v1348
    %1446 = vmatpush.bf16.msra.mxu0 %v1346
    %1447 = vmatpush.bf16.msra.mxu0 %v1344
    %1448 = vmatmul.bf16.gmra.mxu0 %v1152
    %v1449 = vpop.f32.mrf.mxu0
    %v1450 = vadd.f32 0.0, %v1449
    %v1451 = vpop.f32.mrf.mxu0
    %v1452 = vadd.f32 0.0, %v1451
    %1453 = vmatmul.bf16.gmra.mxu0 %v1155
    %v1454 = vpop.f32.mrf.mxu0
    %v1455 = vadd.f32 0.0, %v1454
    %v1456 = vpop.f32.mrf.mxu0
    %v1457 = vadd.f32 0.0, %v1456
    %1458 = vmatmul.bf16.gmra.mxu0 %v1158
    %v1459 = vpop.f32.mrf.mxu0
    %v1460 = vadd.f32 0.0, %v1459
    %v1461 = vpop.f32.mrf.mxu0
    %v1462 = vadd.f32 0.0, %v1461
    %1463 = vmatmul.bf16.gmra.mxu0 %v1161
    %v1464 = vpop.f32.mrf.mxu0
    %v1465 = vadd.f32 0.0, %v1464
    %v1466 = vpop.f32.mrf.mxu0
    %v1467 = vadd.f32 0.0, %v1466
    %1468 = vmatmul.bf16.gmra.mxu0 %v1164
    %v1469 = vpop.f32.mrf.mxu0
    %v1470 = vadd.f32 0.0, %v1469
    %v1471 = vpop.f32.mrf.mxu0
    %v1472 = vadd.f32 0.0, %v1471
    %1473 = vmatmul.bf16.gmra.mxu0 %v1167
    %v1474 = vpop.f32.mrf.mxu0
    %v1475 = vadd.f32 0.0, %v1474
    %v1476 = vpop.f32.mrf.mxu0
    %v1477 = vadd.f32 0.0, %v1476
    %1478 = vmatmul.bf16.gmra.mxu0 %v1170
    %v1479 = vpop.f32.mrf.mxu0
    %v1480 = vadd.f32 0.0, %v1479
    %v1481 = vpop.f32.mrf.mxu0
    %v1482 = vadd.f32 0.0, %v1481
    %1483 = vmatmul.bf16.gmra.mxu0 %v1173
    %v1484 = vpop.f32.mrf.mxu0
    %v1485 = vadd.f32 0.0, %v1484
    %v1486 = vpop.f32.mrf.mxu0
    %v1487 = vadd.f32 0.0, %v1486
    %1488 = vdwg.mxu0
    %1489 = vmatpush.bf16.msra.mxu0 %v1374
    %1490 = vmatpush.bf16.msra.mxu0 %v1372
    %1491 = vmatpush.bf16.msra.mxu0 %v1370
    %1492 = vmatpush.bf16.msra.mxu0 %v1368
    %1493 = vmatpush.bf16.msra.mxu0 %v1366
    %1494 = vmatpush.bf16.msra.mxu0 %v1364
    %1495 = vmatpush.bf16.msra.mxu0 %v1362
    %1496 = vmatpush.bf16.msra.mxu0 %v1360
    %1497 = vmatmul.bf16.gmra.mxu0 %v1153
    %v1498 = vpop.f32.mrf.mxu0
    %v1499 = vadd.f32 %v1450, %v1498
    %v1500 = vpop.f32.mrf.mxu0
    %v1501 = vadd.f32 %v1452, %v1500
    %1502 = vmatmul.bf16.gmra.mxu0 %v1156
    %v1503 = vpop.f32.mrf.mxu0
    %v1504 = vadd.f32 %v1455, %v1503
    %v1505 = vpop.f32.mrf.mxu0
    %v1506 = vadd.f32 %v1457, %v1505
    %1507 = vmatmul.bf16.gmra.mxu0 %v1159
    %v1508 = vpop.f32.mrf.mxu0
    %v1509 = vadd.f32 %v1460, %v1508
    %v1510 = vpop.f32.mrf.mxu0
    %v1511 = vadd.f32 %v1462, %v1510
    %1512 = vmatmul.bf16.gmra.mxu0 %v1162
    %v1513 = vpop.f32.mrf.mxu0
    %v1514 = vadd.f32 %v1465, %v1513
    %v1515 = vpop.f32.mrf.mxu0
    %v1516 = vadd.f32 %v1467, %v1515
    %1517 = vmatmul.bf16.gmra.mxu0 %v1165
    %v1518 = vpop.f32.mrf.mxu0
    %v1519 = vadd.f32 %v1470, %v1518
    %v1520 = vpop.f32.mrf.mxu0
    %v1521 = vadd.f32 %v1472, %v1520
    %1522 = vmatmul.bf16.gmra.mxu0 %v1168
    %v1523 = vpop.f32.mrf.mxu0
    %v1524 = vadd.f32 %v1475, %v1523
    %v1525 = vpop.f32.mrf.mxu0
    %v1526 = vadd.f32 %v1477, %v1525
    %1527 = vmatmul.bf16.gmra.mxu0 %v1171
    %v1528 = vpop.f32.mrf.mxu0
    %v1529 = vadd.f32 %v1480, %v1528
    %v1530 = vpop.f32.mrf.mxu0
    %v1531 = vadd.f32 %v1482, %v1530
    %1532 = vmatmul.bf16.gmra.mxu0 %v1174
    %v1533 = vpop.f32.mrf.mxu0
    %v1534 = vadd.f32 %v1485, %v1533
    %v1535 = vpop.f32.mrf.mxu0
    %v1536 = vadd.f32 %v1487, %v1535
    %1537 = vdwg.mxu0
    %1538 = vmatpush.bf16.msra.mxu0 %v1390
    %1539 = vmatpush.bf16.msra.mxu0 %v1388
    %1540 = vmatpush.bf16.msra.mxu0 %v1386
    %1541 = vmatpush.bf16.msra.mxu0 %v1384
    %1542 = vmatpush.bf16.msra.mxu0 %v1382
    %1543 = vmatpush.bf16.msra.mxu0 %v1380
    %1544 = vmatpush.bf16.msra.mxu0 %v1378
    %1545 = vmatpush.bf16.msra.mxu0 %v1376
    %1546 = vmatmul.bf16.gmra.mxu0 %v1154
    %v1547 = vpop.f32.mrf.mxu0
    %v1548 = vadd.f32 %v1499, %v1547
    %v1549 = vpop.f32.mrf.mxu0
    %v1550 = vadd.f32 %v1501, %v1549
    %1551 = vmatmul.bf16.gmra.mxu0 %v1157
    %v1552 = vpop.f32.mrf.mxu0
    %v1553 = vadd.f32 %v1504, %v1552
    %v1554 = vpop.f32.mrf.mxu0
    %v1555 = vadd.f32 %v1506, %v1554
    %1556 = vmatmul.bf16.gmra.mxu0 %v1160
    %v1557 = vpop.f32.mrf.mxu0
    %v1558 = vadd.f32 %v1509, %v1557
    %v1559 = vpop.f32.mrf.mxu0
    %v1560 = vadd.f32 %v1511, %v1559
    %1561 = vmatmul.bf16.gmra.mxu0 %v1163
    %v1562 = vpop.f32.mrf.mxu0
    %v1563 = vadd.f32 %v1514, %v1562
    %v1564 = vpop.f32.mrf.mxu0
    %v1565 = vadd.f32 %v1516, %v1564
    %1566 = vmatmul.bf16.gmra.mxu0 %v1166
    %v1567 = vpop.f32.mrf.mxu0
    %v1568 = vadd.f32 %v1519, %v1567
    %v1569 = vpop.f32.mrf.mxu0
    %v1570 = vadd.f32 %v1521, %v1569
    %1571 = vmatmul.bf16.gmra.mxu0 %v1169
    %v1572 = vpop.f32.mrf.mxu0
    %v1573 = vadd.f32 %v1524, %v1572
    %v1574 = vpop.f32.mrf.mxu0
    %v1575 = vadd.f32 %v1526, %v1574
    %1576 = vmatmul.bf16.gmra.mxu0 %v1172
    %v1577 = vpop.f32.mrf.mxu0
    %v1578 = vadd.f32 %v1529, %v1577
    %v1579 = vpop.f32.mrf.mxu0
    %v1580 = vadd.f32 %v1531, %v1579
    %1581 = vmatmul.bf16.gmra.mxu0 %v1175
    %v1582 = vpop.f32.mrf.mxu0
    %v1583 = vadd.f32 %v1534, %v1582
    %v1584 = vpop.f32.mrf.mxu0
    %v1585 = vadd.f32 %v1536, %v1584
    %1586 = vdwg.mxu0
    %1587 = vmatpush.bf16.msra.mxu0 %v1359
    %1588 = vmatpush.bf16.msra.mxu0 %v1357
    %1589 = vmatpush.bf16.msra.mxu0 %v1355
    %1590 = vmatpush.bf16.msra.mxu0 %v1353
    %1591 = vmatpush.bf16.msra.mxu0 %v1351
    %1592 = vmatpush.bf16.msra.mxu0 %v1349
    %1593 = vmatpush.bf16.msra.mxu0 %v1347
    %1594 = vmatpush.bf16.msra.mxu0 %v1345
    %1595 = vmatmul.bf16.gmra.mxu0 %v1152
    %v1596 = vpop.f32.mrf.mxu0
    %v1597 = vadd.f32 0.0, %v1596
    %v1598 = vpop.f32.mrf.mxu0
    %v1599 = vadd.f32 0.0, %v1598
    %1600 = vmatmul.bf16.gmra.mxu0 %v1155
    %v1601 = vpop.f32.mrf.mxu0
    %v1602 = vadd.f32 0.0, %v1601
    %v1603 = vpop.f32.mrf.mxu0
    %v1604 = vadd.f32 0.0, %v1603
    %1605 = vmatmul.bf16.gmra.mxu0 %v1158
    %v1606 = vpop.f32.mrf.mxu0
    %v1607 = vadd.f32 0.0, %v1606
    %v1608 = vpop.f32.mrf.mxu0
    %v1609 = vadd.f32 0.0, %v1608
    %1610 = vmatmul.bf16.gmra.mxu0 %v1161
    %v1611 = vpop.f32.mrf.mxu0
    %v1612 = vadd.f32 0.0, %v1611
    %v1613 = vpop.f32.mrf.mxu0
    %v1614 = vadd.f32 0.0, %v1613
    %1615 = vmatmul.bf16.gmra.mxu0 %v1164
    %v1616 = vpop.f32.mrf.mxu0
    %v1617 = vadd.f32 0.0, %v1616
    %v1618 = vpop.f32.mrf.mxu0
    %v1619 = vadd.f32 0.0, %v1618
    %1620 = vmatmul.bf16.gmra.mxu0 %v1167
    %v1621 = vpop.f32.mrf.mxu0
    %v1622 = vadd.f32 0.0, %v1621
    %v1623 = vpop.f32.mrf.mxu0
    %v1624 = vadd.f32 0.0, %v1623
    %1625 = vmatmul.bf16.gmra.mxu0 %v1170
    %v1626 = vpop.f32.mrf.mxu0
    %v1627 = vadd.f32 0.0, %v1626
    %v1628 = vpop.f32.mrf.mxu0
    %v1629 = vadd.f32 0.0, %v1628
    %1630 = vmatmul.bf16.gmra.mxu0 %v1173
    %v1631 = vpop.f32.mrf.mxu0
    %v1632 = vadd.f32 0.0, %v1631
    %v1633 = vpop.f32.mrf.mxu0
    %v1634 = vadd.f32 0.0, %v1633
    %1635 = vdwg.mxu0
    %1636 = vmatpush.bf16.msra.mxu0 %v1375
    %1637 = vmatpush.bf16.msra.mxu0 %v1373
    %1638 = vmatpush.bf16.msra.mxu0 %v1371
    %1639 = vmatpush.bf16.msra.mxu0 %v1369
    %1640 = vmatpush.bf16.msra.mxu0 %v1367
    %1641 = vmatpush.bf16.msra.mxu0 %v1365
    %1642 = vmatpush.bf16.msra.mxu0 %v1363
    %1643 = vmatpush.bf16.msra.mxu0 %v1361
    %1644 = vmatmul.bf16.gmra.mxu0 %v1153
    %v1645 = vpop.f32.mrf.mxu0
    %v1646 = vadd.f32 %v1597, %v1645
    %v1647 = vpop.f32.mrf.mxu0
    %v1648 = vadd.f32 %v1599, %v1647
    %1649 = vmatmul.bf16.gmra.mxu0 %v1156
    %v1650 = vpop.f32.mrf.mxu0
    %v1651 = vadd.f32 %v1602, %v1650
    %v1652 = vpop.f32.mrf.mxu0
    %v1653 = vadd.f32 %v1604, %v1652
    %1654 = vmatmul.bf16.gmra.mxu0 %v1159
    %v1655 = vpop.f32.mrf.mxu0
    %v1656 = vadd.f32 %v1607, %v1655
    %v1657 = vpop.f32.mrf.mxu0
    %v1658 = vadd.f32 %v1609, %v1657
    %1659 = vmatmul.bf16.gmra.mxu0 %v1162
    %v1660 = vpop.f32.mrf.mxu0
    %v1661 = vadd.f32 %v1612, %v1660
    %v1662 = vpop.f32.mrf.mxu0
    %v1663 = vadd.f32 %v1614, %v1662
    %1664 = vmatmul.bf16.gmra.mxu0 %v1165
    %v1665 = vpop.f32.mrf.mxu0
    %v1666 = vadd.f32 %v1617, %v1665
    %v1667 = vpop.f32.mrf.mxu0
    %v1668 = vadd.f32 %v1619, %v1667
    %1669 = vmatmul.bf16.gmra.mxu0 %v1168
    %v1670 = vpop.f32.mrf.mxu0
    %v1671 = vadd.f32 %v1622, %v1670
    %v1672 = vpop.f32.mrf.mxu0
    %v1673 = vadd.f32 %v1624, %v1672
    %1674 = vmatmul.bf16.gmra.mxu0 %v1171
    %v1675 = vpop.f32.mrf.mxu0
    %v1676 = vadd.f32 %v1627, %v1675
    %v1677 = vpop.f32.mrf.mxu0
    %v1678 = vadd.f32 %v1629, %v1677
    %1679 = vmatmul.bf16.gmra.mxu0 %v1174
    %v1680 = vpop.f32.mrf.mxu0
    %v1681 = vadd.f32 %v1632, %v1680
    %v1682 = vpop.f32.mrf.mxu0
    %v1683 = vadd.f32 %v1634, %v1682
    %1684 = vdwg.mxu0
    %1685 = vmatpush.bf16.msra.mxu0 %v1391
    %1686 = vmatpush.bf16.msra.mxu0 %v1389
    %1687 = vmatpush.bf16.msra.mxu0 %v1387
    %1688 = vmatpush.bf16.msra.mxu0 %v1385
    %1689 = vmatpush.bf16.msra.mxu0 %v1383
    %1690 = vmatpush.bf16.msra.mxu0 %v1381
    %1691 = vmatpush.bf16.msra.mxu0 %v1379
    %1692 = vmatpush.bf16.msra.mxu0 %v1377
    %1693 = vmatmul.bf16.gmra.mxu0 %v1154
    %v1694 = vpop.f32.mrf.mxu0
    %v1695 = vadd.f32 %v1646, %v1694
    %v1696 = vpop.f32.mrf.mxu0
    %v1697 = vadd.f32 %v1648, %v1696
    %1698 = vmatmul.bf16.gmra.mxu0 %v1157
    %v1699 = vpop.f32.mrf.mxu0
    %v1700 = vadd.f32 %v1651, %v1699
    %v1701 = vpop.f32.mrf.mxu0
    %v1702 = vadd.f32 %v1653, %v1701
    %1703 = vmatmul.bf16.gmra.mxu0 %v1160
    %v1704 = vpop.f32.mrf.mxu0
    %v1705 = vadd.f32 %v1656, %v1704
    %v1706 = vpop.f32.mrf.mxu0
    %v1707 = vadd.f32 %v1658, %v1706
    %1708 = vmatmul.bf16.gmra.mxu0 %v1163
    %v1709 = vpop.f32.mrf.mxu0
    %v1710 = vadd.f32 %v1661, %v1709
    %v1711 = vpop.f32.mrf.mxu0
    %v1712 = vadd.f32 %v1663, %v1711
    %1713 = vmatmul.bf16.gmra.mxu0 %v1166
    %v1714 = vpop.f32.mrf.mxu0
    %v1715 = vadd.f32 %v1666, %v1714
    %v1716 = vpop.f32.mrf.mxu0
    %v1717 = vadd.f32 %v1668, %v1716
    %1718 = vmatmul.bf16.gmra.mxu0 %v1169
    %v1719 = vpop.f32.mrf.mxu0
    %v1720 = vadd.f32 %v1671, %v1719
    %v1721 = vpop.f32.mrf.mxu0
    %v1722 = vadd.f32 %v1673, %v1721
    %1723 = vmatmul.bf16.gmra.mxu0 %v1172
    %v1724 = vpop.f32.mrf.mxu0
    %v1725 = vadd.f32 %v1676, %v1724
    %v1726 = vpop.f32.mrf.mxu0
    %v1727 = vadd.f32 %v1678, %v1726
    %1728 = vmatmul.bf16.gmra.mxu0 %v1175
    %v1729 = vpop.f32.mrf.mxu0
    %v1730 = vadd.f32 %v1681, %v1729
    %v1731 = vpop.f32.mrf.mxu0
    %v1732 = vadd.f32 %v1683, %v1731
    %1733 = vdwg.mxu0
    %v1734 = vpack.c.b16 %v461, %v460
    %v1735 = vpack.c.b16 %v471, %v470
    %v1802 = vunpack.c.l.b16 %v472
    %v1803 = vunpack.c.h.b16 %v472
    %v1804 = vunpack.c.l.b16 %v473
    %v1805 = vunpack.c.h.b16 %v473
    %v1806 = vunpack.c.l.b16 %v474
    %v1807 = vunpack.c.h.b16 %v474
    %v1808 = vunpack.c.l.b16 %v475
    %v1809 = vunpack.c.h.b16 %v475
    %v1810 = vunpack.c.l.b16 %v476
    %v1811 = vunpack.c.h.b16 %v476
    %v1812 = vunpack.c.l.b16 %v477
    %v1813 = vunpack.c.h.b16 %v477
    %v1814 = vunpack.c.l.b16 %v478
    %v1815 = vunpack.c.h.b16 %v478
    %v1816 = vunpack.c.l.b16 %v479
    %v1817 = vunpack.c.h.b16 %v479
    %v1818 = vunpack.c.l.b16 %v480
    %v1819 = vunpack.c.h.b16 %v480
    %v1820 = vunpack.c.l.b16 %v481
    %v1821 = vunpack.c.h.b16 %v481
    %v1822 = vunpack.c.l.b16 %v482
    %v1823 = vunpack.c.h.b16 %v482
    %v1824 = vunpack.c.l.b16 %v483
    %v1825 = vunpack.c.h.b16 %v483
    %v1826 = vunpack.c.l.b16 %v484
    %v1827 = vunpack.c.h.b16 %v484
    %v1828 = vunpack.c.l.b16 %v485
    %v1829 = vunpack.c.h.b16 %v485
    %v1830 = vunpack.c.l.b16 %v486
    %v1831 = vunpack.c.h.b16 %v486
    %v1832 = vunpack.c.l.b16 %v487
    %v1833 = vunpack.c.h.b16 %v487
    %v1834 = vunpack.c.l.b16 %v488
    %v1835 = vunpack.c.h.b16 %v488
    %v1836 = vunpack.c.l.b16 %v489
    %v1837 = vunpack.c.h.b16 %v489
    %v1838 = vunpack.c.l.b16 %v490
    %v1839 = vunpack.c.h.b16 %v490
    %v1840 = vunpack.c.l.b16 %v491
    %v1841 = vunpack.c.h.b16 %v491
    %v1842 = vunpack.c.l.b16 %v492
    %v1843 = vunpack.c.h.b16 %v492
    %v1844 = vunpack.c.l.b16 %v493
    %v1845 = vunpack.c.h.b16 %v493
    %v1846 = vunpack.c.l.b16 %v494
    %v1847 = vunpack.c.h.b16 %v494
    %v1848 = vunpack.c.l.b16 %v495
    %v1849 = vunpack.c.h.b16 %v495
    %v1850 = vunpack.c.l.b16 %v496
    %v1851 = vunpack.c.h.b16 %v496
    %v1852 = vunpack.c.l.b16 %v497
    %v1853 = vunpack.c.h.b16 %v497
    %v1854 = vunpack.c.l.b16 %v498
    %v1855 = vunpack.c.h.b16 %v498
    %v1856 = vunpack.c.l.b16 %v499
    %v1857 = vunpack.c.h.b16 %v499
    %v1858 = vunpack.c.l.b16 %v500
    %v1859 = vunpack.c.h.b16 %v500
    %v1860 = vunpack.c.l.b16 %v501
    %v1861 = vunpack.c.h.b16 %v501
    %v1862 = vunpack.c.l.b16 %v502
    %v1863 = vunpack.c.h.b16 %v502
    %v1864 = vunpack.c.l.b16 %v503
    %v1865 = vunpack.c.h.b16 %v503
    %v1866 = vunpack.c.l.b16 %v504
    %v1867 = vunpack.c.h.b16 %v504
    %v1868 = vunpack.c.l.b16 %v505
    %v1869 = vunpack.c.h.b16 %v505
    %v1870 = vunpack.c.l.b16 %v506
    %v1871 = vunpack.c.h.b16 %v506
    %v1872 = vunpack.c.l.b16 %v507
    %v1873 = vunpack.c.h.b16 %v507
    %v1874 = vunpack.c.l.b16 %v508
    %v1875 = vunpack.c.h.b16 %v508
    %v1876 = vunpack.c.l.b16 %v509
    %v1877 = vunpack.c.h.b16 %v509
    %v1878 = vunpack.c.l.b16 %v510
    %v1879 = vunpack.c.h.b16 %v510
    %v1880 = vunpack.c.l.b16 %v511
    %v1881 = vunpack.c.h.b16 %v511
    %v1882 = vunpack.c.l.b16 %v512
    %v1883 = vunpack.c.h.b16 %v512
    %v1884 = vunpack.c.l.b16 %v513
    %v1885 = vunpack.c.h.b16 %v513
    %v1886 = vunpack.c.l.b16 %v514
    %v1887 = vunpack.c.h.b16 %v514
    %v1888 = vunpack.c.l.b16 %v515
    %v1889 = vunpack.c.h.b16 %v515
    %v1890 = vunpack.c.l.b16 %v516
    %v1891 = vunpack.c.h.b16 %v516
    %v1892 = vunpack.c.l.b16 %v517
    %v1893 = vunpack.c.h.b16 %v517
    %v1894 = vunpack.c.l.b16 %v518
    %v1895 = vunpack.c.h.b16 %v518
    %v1896 = vunpack.c.l.b16 %v519
    %v1897 = vunpack.c.h.b16 %v519
    %v1898 = vpack.c.b16 %v1804, %v1802
    %v1899 = vpack.c.b16 %v1805, %v1803
    %v1900 = vpack.c.b16 %v1808, %v1806
    %v1901 = vpack.c.b16 %v1809, %v1807
    %v1902 = vpack.c.b16 %v1812, %v1810
    %v1903 = vpack.c.b16 %v1813, %v1811
    %v1904 = vpack.c.b16 %v1816, %v1814
    %v1905 = vpack.c.b16 %v1817, %v1815
    %v1906 = vpack.c.b16 %v1820, %v1818
    %v1907 = vpack.c.b16 %v1821, %v1819
    %v1908 = vpack.c.b16 %v1824, %v1822
    %v1909 = vpack.c.b16 %v1825, %v1823
    %v1910 = vpack.c.b16 %v1828, %v1826
    %v1911 = vpack.c.b16 %v1829, %v1827
    %v1912 = vpack.c.b16 %v1832, %v1830
    %v1913 = vpack.c.b16 %v1833, %v1831
    %v1914 = vpack.c.b16 %v1836, %v1834
    %v1915 = vpack.c.b16 %v1837, %v1835
    %v1916 = vpack.c.b16 %v1840, %v1838
    %v1917 = vpack.c.b16 %v1841, %v1839
    %v1918 = vpack.c.b16 %v1844, %v1842
    %v1919 = vpack.c.b16 %v1845, %v1843
    %v1920 = vpack.c.b16 %v1848, %v1846
    %v1921 = vpack.c.b16 %v1849, %v1847
    %v1922 = vpack.c.b16 %v1852, %v1850
    %v1923 = vpack.c.b16 %v1853, %v1851
    %v1924 = vpack.c.b16 %v1856, %v1854
    %v1925 = vpack.c.b16 %v1857, %v1855
    %v1926 = vpack.c.b16 %v1860, %v1858
    %v1927 = vpack.c.b16 %v1861, %v1859
    %v1928 = vpack.c.b16 %v1864, %v1862
    %v1929 = vpack.c.b16 %v1865, %v1863
    %v1930 = vpack.c.b16 %v1868, %v1866
    %v1931 = vpack.c.b16 %v1869, %v1867
    %v1932 = vpack.c.b16 %v1872, %v1870
    %v1933 = vpack.c.b16 %v1873, %v1871
    %v1934 = vpack.c.b16 %v1876, %v1874
    %v1935 = vpack.c.b16 %v1877, %v1875
    %v1936 = vpack.c.b16 %v1880, %v1878
    %v1937 = vpack.c.b16 %v1881, %v1879
    %v1938 = vpack.c.b16 %v1884, %v1882
    %v1939 = vpack.c.b16 %v1885, %v1883
    %v1940 = vpack.c.b16 %v1888, %v1886
    %v1941 = vpack.c.b16 %v1889, %v1887
    %v1942 = vpack.c.b16 %v1892, %v1890
    %v1943 = vpack.c.b16 %v1893, %v1891
    %v1944 = vpack.c.b16 %v1896, %v1894
    %v1945 = vpack.c.b16 %v1897, %v1895
    %1994 = vmatpush.bf16.msra.mxu0 %v1912
    %1995 = vmatpush.bf16.msra.mxu0 %v1910
    %1996 = vmatpush.bf16.msra.mxu0 %v1908
    %1997 = vmatpush.bf16.msra.mxu0 %v1906
    %1998 = vmatpush.bf16.msra.mxu0 %v1904
    %1999 = vmatpush.bf16.msra.mxu0 %v1902
    %2000 = vmatpush.bf16.msra.mxu0 %v1900
    %2001 = vmatpush.bf16.msra.mxu0 %v1898
    %2002 = vmatmul.bf16.gmra.mxu0 %v540
    %v2003 = vpop.f32.mrf.mxu0
    %v2004 = vadd.f32 %v1548, %v2003
    %v2005 = vpop.f32.mrf.mxu0
    %v2006 = vadd.f32 %v1550, %v2005
    %2007 = vmatmul.bf16.gmra.mxu0 %v548
    %v2008 = vpop.f32.mrf.mxu0
    %v2009 = vadd.f32 %v1553, %v2008
    %v2010 = vpop.f32.mrf.mxu0
    %v2011 = vadd.f32 %v1555, %v2010
    %2012 = vmatmul.bf16.gmra.mxu0 %v556
    %v2013 = vpop.f32.mrf.mxu0
    %v2014 = vadd.f32 %v1558, %v2013
    %v2015 = vpop.f32.mrf.mxu0
    %v2016 = vadd.f32 %v1560, %v2015
    %2017 = vmatmul.bf16.gmra.mxu0 %v564
    %v2018 = vpop.f32.mrf.mxu0
    %v2019 = vadd.f32 %v1563, %v2018
    %v2020 = vpop.f32.mrf.mxu0
    %v2021 = vadd.f32 %v1565, %v2020
    %2022 = vmatmul.bf16.gmra.mxu0 %v572
    %v2023 = vpop.f32.mrf.mxu0
    %v2024 = vadd.f32 %v1568, %v2023
    %v2025 = vpop.f32.mrf.mxu0
    %v2026 = vadd.f32 %v1570, %v2025
    %2027 = vmatmul.bf16.gmra.mxu0 %v580
    %v2028 = vpop.f32.mrf.mxu0
    %v2029 = vadd.f32 %v1573, %v2028
    %v2030 = vpop.f32.mrf.mxu0
    %v2031 = vadd.f32 %v1575, %v2030
    %2032 = vmatmul.bf16.gmra.mxu0 %v588
    %v2033 = vpop.f32.mrf.mxu0
    %v2034 = vadd.f32 %v1578, %v2033
    %v2035 = vpop.f32.mrf.mxu0
    %v2036 = vadd.f32 %v1580, %v2035
    %2037 = vmatmul.bf16.gmra.mxu0 %v596
    %v2038 = vpop.f32.mrf.mxu0
    %v2039 = vadd.f32 %v1583, %v2038
    %v2040 = vpop.f32.mrf.mxu0
    %v2041 = vadd.f32 %v1585, %v2040
    %2042 = vdwg.mxu0
    %2043 = vmatpush.bf16.msra.mxu0 %v1928
    %2044 = vmatpush.bf16.msra.mxu0 %v1926
    %2045 = vmatpush.bf16.msra.mxu0 %v1924
    %2046 = vmatpush.bf16.msra.mxu0 %v1922
    %2047 = vmatpush.bf16.msra.mxu0 %v1920
    %2048 = vmatpush.bf16.msra.mxu0 %v1918
    %2049 = vmatpush.bf16.msra.mxu0 %v1916
    %2050 = vmatpush.bf16.msra.mxu0 %v1914
    %2051 = vmatmul.bf16.gmra.mxu0 %v544
    %v2052 = vpop.f32.mrf.mxu0
    %v2053 = vadd.f32 %v2004, %v2052
    %v2054 = vpop.f32.mrf.mxu0
    %v2055 = vadd.f32 %v2006, %v2054
    %2056 = vmatmul.bf16.gmra.mxu0 %v552
    %v2057 = vpop.f32.mrf.mxu0
    %v2058 = vadd.f32 %v2009, %v2057
    %v2059 = vpop.f32.mrf.mxu0
    %v2060 = vadd.f32 %v2011, %v2059
    %2061 = vmatmul.bf16.gmra.mxu0 %v560
    %v2062 = vpop.f32.mrf.mxu0
    %v2063 = vadd.f32 %v2014, %v2062
    %v2064 = vpop.f32.mrf.mxu0
    %v2065 = vadd.f32 %v2016, %v2064
    %2066 = vmatmul.bf16.gmra.mxu0 %v568
    %v2067 = vpop.f32.mrf.mxu0
    %v2068 = vadd.f32 %v2019, %v2067
    %v2069 = vpop.f32.mrf.mxu0
    %v2070 = vadd.f32 %v2021, %v2069
    %2071 = vmatmul.bf16.gmra.mxu0 %v576
    %v2072 = vpop.f32.mrf.mxu0
    %v2073 = vadd.f32 %v2024, %v2072
    %v2074 = vpop.f32.mrf.mxu0
    %v2075 = vadd.f32 %v2026, %v2074
    %2076 = vmatmul.bf16.gmra.mxu0 %v584
    %v2077 = vpop.f32.mrf.mxu0
    %v2078 = vadd.f32 %v2029, %v2077
    %v2079 = vpop.f32.mrf.mxu0
    %v2080 = vadd.f32 %v2031, %v2079
    %2081 = vmatmul.bf16.gmra.mxu0 %v592
    %v2082 = vpop.f32.mrf.mxu0
    %v2083 = vadd.f32 %v2034, %v2082
    %v2084 = vpop.f32.mrf.mxu0
    %v2085 = vadd.f32 %v2036, %v2084
    %2086 = vmatmul.bf16.gmra.mxu0 %v600
    %v2087 = vpop.f32.mrf.mxu0
    %v2088 = vadd.f32 %v2039, %v2087
    %v2089 = vpop.f32.mrf.mxu0
    %v2090 = vadd.f32 %v2041, %v2089
    %2091 = vdwg.mxu0
    %2092 = vmatpush.bf16.msra.mxu0 %v1944
    %2093 = vmatpush.bf16.msra.mxu0 %v1942
    %2094 = vmatpush.bf16.msra.mxu0 %v1940
    %2095 = vmatpush.bf16.msra.mxu0 %v1938
    %2096 = vmatpush.bf16.msra.mxu0 %v1936
    %2097 = vmatpush.bf16.msra.mxu0 %v1934
    %2098 = vmatpush.bf16.msra.mxu0 %v1932
    %2099 = vmatpush.bf16.msra.mxu0 %v1930
    %2100 = vmatmul.bf16.gmra.mxu0 %v548
    %v2101 = vpop.f32.mrf.mxu0
    %v2102 = vadd.f32 %v2053, %v2101
    %v2103 = vpop.f32.mrf.mxu0
    %v2104 = vadd.f32 %v2055, %v2103
    %2105 = vmatmul.bf16.gmra.mxu0 %v556
    %v2106 = vpop.f32.mrf.mxu0
    %v2107 = vadd.f32 %v2058, %v2106
    %v2108 = vpop.f32.mrf.mxu0
    %v2109 = vadd.f32 %v2060, %v2108
    %2110 = vmatmul.bf16.gmra.mxu0 %v564
    %v2111 = vpop.f32.mrf.mxu0
    %v2112 = vadd.f32 %v2063, %v2111
    %v2113 = vpop.f32.mrf.mxu0
    %v2114 = vadd.f32 %v2065, %v2113
    %2115 = vmatmul.bf16.gmra.mxu0 %v1734
    %v2116 = vpop.f32.mrf.mxu0
    %v2117 = vadd.f32 %v2068, %v2116
    %v2118 = vpop.f32.mrf.mxu0
    %v2119 = vadd.f32 %v2070, %v2118
    %2120 = vmatmul.bf16.gmra.mxu0 %v580
    %v2121 = vpop.f32.mrf.mxu0
    %v2122 = vadd.f32 %v2073, %v2121
    %v2123 = vpop.f32.mrf.mxu0
    %v2124 = vadd.f32 %v2075, %v2123
    %2125 = vmatmul.bf16.gmra.mxu0 %v588
    %v2126 = vpop.f32.mrf.mxu0
    %v2127 = vadd.f32 %v2078, %v2126
    %v2128 = vpop.f32.mrf.mxu0
    %v2129 = vadd.f32 %v2080, %v2128
    %2130 = vmatmul.bf16.gmra.mxu0 %v596
    %v2131 = vpop.f32.mrf.mxu0
    %v2132 = vadd.f32 %v2083, %v2131
    %v2133 = vpop.f32.mrf.mxu0
    %v2134 = vadd.f32 %v2085, %v2133
    %2135 = vmatmul.bf16.gmra.mxu0 %v1735
    %v2136 = vpop.f32.mrf.mxu0
    %v2137 = vadd.f32 %v2088, %v2136
    %v2138 = vpop.f32.mrf.mxu0
    %v2139 = vadd.f32 %v2090, %v2138
    %2140 = vdwg.mxu0
    %2141 = vmatpush.bf16.msra.mxu0 %v1913
    %2142 = vmatpush.bf16.msra.mxu0 %v1911
    %2143 = vmatpush.bf16.msra.mxu0 %v1909
    %2144 = vmatpush.bf16.msra.mxu0 %v1907
    %2145 = vmatpush.bf16.msra.mxu0 %v1905
    %2146 = vmatpush.bf16.msra.mxu0 %v1903
    %2147 = vmatpush.bf16.msra.mxu0 %v1901
    %2148 = vmatpush.bf16.msra.mxu0 %v1899
    %2149 = vmatmul.bf16.gmra.mxu0 %v540
    %v2150 = vpop.f32.mrf.mxu0
    %v2151 = vadd.f32 %v1695, %v2150
    %v2152 = vpop.f32.mrf.mxu0
    %v2153 = vadd.f32 %v1697, %v2152
    %2154 = vmatmul.bf16.gmra.mxu0 %v548
    %v2155 = vpop.f32.mrf.mxu0
    %v2156 = vadd.f32 %v1700, %v2155
    %v2157 = vpop.f32.mrf.mxu0
    %v2158 = vadd.f32 %v1702, %v2157
    %2159 = vmatmul.bf16.gmra.mxu0 %v556
    %v2160 = vpop.f32.mrf.mxu0
    %v2161 = vadd.f32 %v1705, %v2160
    %v2162 = vpop.f32.mrf.mxu0
    %v2163 = vadd.f32 %v1707, %v2162
    %2164 = vmatmul.bf16.gmra.mxu0 %v564
    %v2165 = vpop.f32.mrf.mxu0
    %v2166 = vadd.f32 %v1710, %v2165
    %v2167 = vpop.f32.mrf.mxu0
    %v2168 = vadd.f32 %v1712, %v2167
    %2169 = vmatmul.bf16.gmra.mxu0 %v572
    %v2170 = vpop.f32.mrf.mxu0
    %v2171 = vadd.f32 %v1715, %v2170
    %v2172 = vpop.f32.mrf.mxu0
    %v2173 = vadd.f32 %v1717, %v2172
    %2174 = vmatmul.bf16.gmra.mxu0 %v580
    %v2175 = vpop.f32.mrf.mxu0
    %v2176 = vadd.f32 %v1720, %v2175
    %v2177 = vpop.f32.mrf.mxu0
    %v2178 = vadd.f32 %v1722, %v2177
    %2179 = vmatmul.bf16.gmra.mxu0 %v588
    %v2180 = vpop.f32.mrf.mxu0
    %v2181 = vadd.f32 %v1725, %v2180
    %v2182 = vpop.f32.mrf.mxu0
    %v2183 = vadd.f32 %v1727, %v2182
    %2184 = vmatmul.bf16.gmra.mxu0 %v596
    %v2185 = vpop.f32.mrf.mxu0
    %v2186 = vadd.f32 %v1730, %v2185
    %v2187 = vpop.f32.mrf.mxu0
    %v2188 = vadd.f32 %v1732, %v2187
    %2189 = vdwg.mxu0
    %2190 = vmatpush.bf16.msra.mxu0 %v1929
    %2191 = vmatpush.bf16.msra.mxu0 %v1927
    %2192 = vmatpush.bf16.msra.mxu0 %v1925
    %2193 = vmatpush.bf16.msra.mxu0 %v1923
    %2194 = vmatpush.bf16.msra.mxu0 %v1921
    %2195 = vmatpush.bf16.msra.mxu0 %v1919
    %2196 = vmatpush.bf16.msra.mxu0 %v1917
    %2197 = vmatpush.bf16.msra.mxu0 %v1915
    %2198 = vmatmul.bf16.gmra.mxu0 %v544
    %v2199 = vpop.f32.mrf.mxu0
    %v2200 = vadd.f32 %v2151, %v2199
    %v2201 = vpop.f32.mrf.mxu0
    %v2202 = vadd.f32 %v2153, %v2201
    %2203 = vmatmul.bf16.gmra.mxu0 %v552
    %v2204 = vpop.f32.mrf.mxu0
    %v2205 = vadd.f32 %v2156, %v2204
    %v2206 = vpop.f32.mrf.mxu0
    %v2207 = vadd.f32 %v2158, %v2206
    %2208 = vmatmul.bf16.gmra.mxu0 %v560
    %v2209 = vpop.f32.mrf.mxu0
    %v2210 = vadd.f32 %v2161, %v2209
    %v2211 = vpop.f32.mrf.mxu0
    %v2212 = vadd.f32 %v2163, %v2211
    %2213 = vmatmul.bf16.gmra.mxu0 %v568
    %v2214 = vpop.f32.mrf.mxu0
    %v2215 = vadd.f32 %v2166, %v2214
    %v2216 = vpop.f32.mrf.mxu0
    %v2217 = vadd.f32 %v2168, %v2216
    %2218 = vmatmul.bf16.gmra.mxu0 %v576
    %v2219 = vpop.f32.mrf.mxu0
    %v2220 = vadd.f32 %v2171, %v2219
    %v2221 = vpop.f32.mrf.mxu0
    %v2222 = vadd.f32 %v2173, %v2221
    %2223 = vmatmul.bf16.gmra.mxu0 %v584
    %v2224 = vpop.f32.mrf.mxu0
    %v2225 = vadd.f32 %v2176, %v2224
    %v2226 = vpop.f32.mrf.mxu0
    %v2227 = vadd.f32 %v2178, %v2226
    %2228 = vmatmul.bf16.gmra.mxu0 %v592
    %v2229 = vpop.f32.mrf.mxu0
    %v2230 = vadd.f32 %v2181, %v2229
    %v2231 = vpop.f32.mrf.mxu0
    %v2232 = vadd.f32 %v2183, %v2231
    %2233 = vmatmul.bf16.gmra.mxu0 %v600
    %v2234 = vpop.f32.mrf.mxu0
    %v2235 = vadd.f32 %v2186, %v2234
    %v2236 = vpop.f32.mrf.mxu0
    %v2237 = vadd.f32 %v2188, %v2236
    %2238 = vdwg.mxu0
    %2239 = vmatpush.bf16.msra.mxu0 %v1945
    %2240 = vmatpush.bf16.msra.mxu0 %v1943
    %2241 = vmatpush.bf16.msra.mxu0 %v1941
    %2242 = vmatpush.bf16.msra.mxu0 %v1939
    %2243 = vmatpush.bf16.msra.mxu0 %v1937
    %2244 = vmatpush.bf16.msra.mxu0 %v1935
    %2245 = vmatpush.bf16.msra.mxu0 %v1933
    %2246 = vmatpush.bf16.msra.mxu0 %v1931
    %2247 = vmatmul.bf16.gmra.mxu0 %v548
    %v2248 = vpop.f32.mrf.mxu0
    %v2249 = vadd.f32 %v2200, %v2248
    %v2250 = vpop.f32.mrf.mxu0
    %v2251 = vadd.f32 %v2202, %v2250
    %2252 = vmatmul.bf16.gmra.mxu0 %v556
    %v2253 = vpop.f32.mrf.mxu0
    %v2254 = vadd.f32 %v2205, %v2253
    %v2255 = vpop.f32.mrf.mxu0
    %v2256 = vadd.f32 %v2207, %v2255
    %2257 = vmatmul.bf16.gmra.mxu0 %v564
    %v2258 = vpop.f32.mrf.mxu0
    %v2259 = vadd.f32 %v2210, %v2258
    %v2260 = vpop.f32.mrf.mxu0
    %v2261 = vadd.f32 %v2212, %v2260
    %2262 = vmatmul.bf16.gmra.mxu0 %v1734
    %v2263 = vpop.f32.mrf.mxu0
    %v2264 = vadd.f32 %v2215, %v2263
    %v2265 = vpop.f32.mrf.mxu0
    %v2266 = vadd.f32 %v2217, %v2265
    %2267 = vmatmul.bf16.gmra.mxu0 %v580
    %v2268 = vpop.f32.mrf.mxu0
    %v2269 = vadd.f32 %v2220, %v2268
    %v2270 = vpop.f32.mrf.mxu0
    %v2271 = vadd.f32 %v2222, %v2270
    %2272 = vmatmul.bf16.gmra.mxu0 %v588
    %v2273 = vpop.f32.mrf.mxu0
    %v2274 = vadd.f32 %v2225, %v2273
    %v2275 = vpop.f32.mrf.mxu0
    %v2276 = vadd.f32 %v2227, %v2275
    %2277 = vmatmul.bf16.gmra.mxu0 %v596
    %v2278 = vpop.f32.mrf.mxu0
    %v2279 = vadd.f32 %v2230, %v2278
    %v2280 = vpop.f32.mrf.mxu0
    %v2281 = vadd.f32 %v2232, %v2280
    %2282 = vmatmul.bf16.gmra.mxu0 %v1735
    %v2283 = vpop.f32.mrf.mxu0
    %v2284 = vadd.f32 %v2235, %v2283
    %v2285 = vpop.f32.mrf.mxu0
    %v2286 = vadd.f32 %v2237, %v2285
    %2287 = vdwg.mxu0
    %vm2288 = vcmask 1042432
    %vm2289 = vcmask 1046532
    %vm2290 = vmor %vm2288, %vm2289
    %v2291 = vrot.slane %v540, 5
    %v2292 = vrot.slane %v2291, 4
    %v2293 = vrot.slane %v542, 5
    %v2294 = vsel %vm2290, %v2292, %v2293
    %v2295 = vrot.slane %v541, 5
    %v2296 = vrot.slane %v2295, 4
    %v2297 = vrot.slane %v543, 5
    %v2298 = vsel %vm2290, %v2296, %v2297
    %v2299 = vrot.slane %v544, 5
    %v2300 = vrot.slane %v2299, 4
    %v2301 = vrot.slane %v546, 5
    %v2302 = vsel %vm2290, %v2300, %v2301
    %v2303 = vrot.slane %v545, 5
    %v2304 = vrot.slane %v2303, 4
    %v2305 = vrot.slane %v547, 5
    %v2306 = vsel %vm2290, %v2304, %v2305
    %v2307 = vrot.slane %v548, 5
    %v2308 = vrot.slane %v2307, 4
    %v2309 = vrot.slane %v550, 5
    %v2310 = vsel %vm2290, %v2308, %v2309
    %v2311 = vrot.slane %v549, 5
    %v2312 = vrot.slane %v2311, 4
    %v2313 = vrot.slane %v551, 5
    %v2314 = vsel %vm2290, %v2312, %v2313
    %v2315 = vrot.slane %v552, 5
    %v2316 = vrot.slane %v2315, 4
    %v2317 = vrot.slane %v554, 5
    %v2318 = vsel %vm2290, %v2316, %v2317
    %v2319 = vrot.slane %v553, 5
    %v2320 = vrot.slane %v2319, 4
    %v2321 = vrot.slane %v555, 5
    %v2322 = vsel %vm2290, %v2320, %v2321
    %v2323 = vrot.slane %v556, 5
    %v2324 = vrot.slane %v2323, 4
    %v2325 = vrot.slane %v558, 5
    %v2326 = vsel %vm2290, %v2324, %v2325
    %v2327 = vrot.slane %v557, 5
    %v2328 = vrot.slane %v2327, 4
    %v2329 = vrot.slane %v559, 5
    %v2330 = vsel %vm2290, %v2328, %v2329
    %v2331 = vrot.slane %v560, 5
    %v2332 = vrot.slane %v2331, 4
    %v2333 = vrot.slane %v562, 5
    %v2334 = vsel %vm2290, %v2332, %v2333
    %v2335 = vrot.slane %v561, 5
    %v2336 = vrot.slane %v2335, 4
    %v2337 = vrot.slane %v563, 5
    %v2338 = vsel %vm2290, %v2336, %v2337
    %v2339 = vrot.slane %v564, 5
    %v2340 = vrot.slane %v2339, 4
    %v2341 = vrot.slane %v566, 5
    %v2342 = vsel %vm2290, %v2340, %v2341
    %v2343 = vrot.slane %v565, 5
    %v2344 = vrot.slane %v2343, 4
    %v2345 = vrot.slane %v567, 5
    %v2346 = vsel %vm2290, %v2344, %v2345
    %v2347 = vrot.slane %v568, 5
    %v2348 = vrot.slane %v2347, 4
    %v2349 = vrot.slane %v570, 5
    %v2350 = vsel %vm2290, %v2348, %v2349
    %v2351 = vrot.slane %v569, 5
    %v2352 = vrot.slane %v2351, 4
    %v2353 = vrot.slane %v571, 5
    %v2354 = vsel %vm2290, %v2352, %v2353
    %v2355 = vrot.slane %v572, 5
    %v2356 = vrot.slane %v2355, 4
    %v2357 = vrot.slane %v574, 5
    %v2358 = vsel %vm2290, %v2356, %v2357
    %v2359 = vrot.slane %v573, 5
    %v2360 = vrot.slane %v2359, 4
    %v2361 = vrot.slane %v575, 5
    %v2362 = vsel %vm2290, %v2360, %v2361
    %v2363 = vrot.slane %v576, 5
    %v2364 = vrot.slane %v2363, 4
    %v2365 = vrot.slane %v578, 5
    %v2366 = vsel %vm2290, %v2364, %v2365
    %v2367 = vrot.slane %v577, 5
    %v2368 = vrot.slane %v2367, 4
    %v2369 = vrot.slane %v579, 5
    %v2370 = vsel %vm2290, %v2368, %v2369
    %v2371 = vrot.slane %v580, 5
    %v2372 = vrot.slane %v2371, 4
    %v2373 = vrot.slane %v582, 5
    %v2374 = vsel %vm2290, %v2372, %v2373
    %v2375 = vrot.slane %v581, 5
    %v2376 = vrot.slane %v2375, 4
    %v2377 = vrot.slane %v583, 5
    %v2378 = vsel %vm2290, %v2376, %v2377
    %v2379 = vrot.slane %v584, 5
    %v2380 = vrot.slane %v2379, 4
    %v2381 = vrot.slane %v586, 5
    %v2382 = vsel %vm2290, %v2380, %v2381
    %v2383 = vrot.slane %v585, 5
    %v2384 = vrot.slane %v2383, 4
    %v2385 = vrot.slane %v587, 5
    %v2386 = vsel %vm2290, %v2384, %v2385
    %v2387 = vrot.slane %v588, 5
    %v2388 = vrot.slane %v2387, 4
    %v2389 = vrot.slane %v590, 5
    %v2390 = vsel %vm2290, %v2388, %v2389
    %v2391 = vrot.slane %v589, 5
    %v2392 = vrot.slane %v2391, 4
    %v2393 = vrot.slane %v591, 5
    %v2394 = vsel %vm2290, %v2392, %v2393
    %v2395 = vrot.slane %v592, 5
    %v2396 = vrot.slane %v2395, 4
    %v2397 = vrot.slane %v594, 5
    %v2398 = vsel %vm2290, %v2396, %v2397
    %v2399 = vrot.slane %v593, 5
    %v2400 = vrot.slane %v2399, 4
    %v2401 = vrot.slane %v595, 5
    %v2402 = vsel %vm2290, %v2400, %v2401
    %v2403 = vrot.slane %v596, 5
    %v2404 = vrot.slane %v2403, 4
    %v2405 = vrot.slane %v598, 5
    %v2406 = vsel %vm2290, %v2404, %v2405
    %v2407 = vrot.slane %v597, 5
    %v2408 = vrot.slane %v2407, 4
    %v2409 = vrot.slane %v599, 5
    %v2410 = vsel %vm2290, %v2408, %v2409
    %v2411 = vrot.slane %v600, 5
    %v2412 = vrot.slane %v2411, 4
    %v2413 = vrot.slane %v602, 5
    %v2414 = vsel %vm2290, %v2412, %v2413
    %v2415 = vrot.slane %v601, 5
    %v2416 = vrot.slane %v2415, 4
    %v2417 = vrot.slane %v603, 5
    %v2418 = vsel %vm2290, %v2416, %v2417
    %s2419 = scalar_lea.vmem %s3, 768
    %v2420 = vld [vmem:[%s2419] sm:$0xff]
    %v2421 = vld [vmem:[%s2419 + $0x8] sm:$0xff]
    %v2422 = vld [vmem:[%s2419 + $0x10] sm:$0xff]
    %v2423 = vld [vmem:[%s2419 + $0x18] sm:$0xff]
    %v2424 = vld [vmem:[%s2419 + $0x20] sm:$0xff]
    %v2425 = vld [vmem:[%s2419 + $0x28] sm:$0xff]
    %v2426 = vld [vmem:[%s2419 + $0x30] sm:$0xff]
    %v2427 = vld [vmem:[%s2419 + $0x38] sm:$0xff]
    %v2428 = vld [vmem:[%s2419 + $0x40] sm:$0xff]
    %v2429 = vld [vmem:[%s2419 + $0x48] sm:$0xff]
    %v2430 = vld [vmem:[%s2419 + $0x50] sm:$0xff]
    %v2431 = vld [vmem:[%s2419 + $0x58] sm:$0xff]
    %v2432 = vld [vmem:[%s2419 + $0x60] sm:$0xff]
    %v2433 = vld [vmem:[%s2419 + $0x68] sm:$0xff]
    %v2434 = vld [vmem:[%s2419 + $0x70] sm:$0xff]
    %v2435 = vld [vmem:[%s2419 + $0x78] sm:$0xff]
    %v2436 = vld [vmem:[%s2419 + $0x80] sm:$0xff]
    %v2437 = vld [vmem:[%s2419 + $0x88] sm:$0xff]
    %v2438 = vld [vmem:[%s2419 + $0x90] sm:$0xff]
    %v2439 = vld [vmem:[%s2419 + $0x98] sm:$0xff]
    %v2440 = vld [vmem:[%s2419 + $0xa0] sm:$0xff]
    %v2441 = vld [vmem:[%s2419 + $0xa8] sm:$0xff]
    %v2442 = vld [vmem:[%s2419 + $0xb0] sm:$0xff]
    %v2443 = vld [vmem:[%s2419 + $0xb8] sm:$0xff]
    %v2444 = vld [vmem:[%s2419 + $0xc0] sm:$0xff]
    %v2445 = vld [vmem:[%s2419 + $0xc8] sm:$0xff]
    %v2446 = vld [vmem:[%s2419 + $0xd0] sm:$0xff]
    %v2447 = vld [vmem:[%s2419 + $0xd8] sm:$0xff]
    %v2448 = vld [vmem:[%s2419 + $0xe0] sm:$0xff]
    %v2449 = vld [vmem:[%s2419 + $0xe8] sm:$0xff]
    %v2450 = vld [vmem:[%s2419 + $0xf0] sm:$0xff]
    %v2451 = vld [vmem:[%s2419 + $0xf8] sm:$0xff]
    %v2452 = vld [vmem:[%s2419 + $0x100] sm:$0xff]
    %v2453 = vld [vmem:[%s2419 + $0x108] sm:$0xff]
    %v2454 = vld [vmem:[%s2419 + $0x110] sm:$0xff]
    %v2455 = vld [vmem:[%s2419 + $0x118] sm:$0xff]
    %v2456 = vld [vmem:[%s2419 + $0x120] sm:$0xff]
    %v2457 = vld [vmem:[%s2419 + $0x128] sm:$0xff]
    %v2458 = vld [vmem:[%s2419 + $0x130] sm:$0xff]
    %v2459 = vld [vmem:[%s2419 + $0x138] sm:$0xff]
    %v2460 = vld [vmem:[%s2419 + $0x140] sm:$0xff]
    %v2461 = vld [vmem:[%s2419 + $0x148] sm:$0xff]
    %v2462 = vld [vmem:[%s2419 + $0x150] sm:$0xff]
    %v2463 = vld [vmem:[%s2419 + $0x158] sm:$0xff]
    %v2464 = vld [vmem:[%s2419 + $0x160] sm:$0xff]
    %v2465 = vld [vmem:[%s2419 + $0x168] sm:$0xff]
    %v2466 = vld [vmem:[%s2419 + $0x170] sm:$0xff]
    %v2467 = vld [vmem:[%s2419 + $0x178] sm:$0xff]
    %v2468 = vunpack.c.l.b16 %v2294
    %v2469 = vunpack.c.h.b16 %v2294
    %v2470 = vunpack.c.l.b16 %v2298
    %v2471 = vunpack.c.l.b16 %v2302
    %v2472 = vunpack.c.h.b16 %v2302
    %v2473 = vunpack.c.l.b16 %v2306
    %v2474 = vunpack.c.l.b16 %v2310
    %v2475 = vunpack.c.h.b16 %v2310
    %v2476 = vunpack.c.l.b16 %v2314
    %v2477 = vunpack.c.l.b16 %v2318
    %v2478 = vunpack.c.h.b16 %v2318
    %v2479 = vunpack.c.l.b16 %v2322
    %v2480 = vunpack.c.l.b16 %v2326
    %v2481 = vunpack.c.h.b16 %v2326
    %v2482 = vunpack.c.l.b16 %v2330
    %v2483 = vunpack.c.l.b16 %v2334
    %v2484 = vunpack.c.h.b16 %v2334
    %v2485 = vunpack.c.l.b16 %v2338
    %v2486 = vunpack.c.l.b16 %v2342
    %v2487 = vunpack.c.h.b16 %v2342
    %v2488 = vunpack.c.l.b16 %v2346
    %v2489 = vunpack.c.l.b16 %v2350
    %v2490 = vunpack.c.h.b16 %v2350
    %v2491 = vunpack.c.l.b16 %v2354
    %v2492 = vunpack.c.l.b16 %v2358
    %v2493 = vunpack.c.h.b16 %v2358
    %v2494 = vunpack.c.l.b16 %v2362
    %v2495 = vunpack.c.l.b16 %v2366
    %v2496 = vunpack.c.h.b16 %v2366
    %v2497 = vunpack.c.l.b16 %v2370
    %v2498 = vunpack.c.l.b16 %v2374
    %v2499 = vunpack.c.h.b16 %v2374
    %v2500 = vunpack.c.l.b16 %v2378
    %v2501 = vunpack.c.l.b16 %v2382
    %v2502 = vunpack.c.h.b16 %v2382
    %v2503 = vunpack.c.l.b16 %v2386
    %v2504 = vunpack.c.l.b16 %v2390
    %v2505 = vunpack.c.h.b16 %v2390
    %v2506 = vunpack.c.l.b16 %v2394
    %v2507 = vunpack.c.l.b16 %v2398
    %v2508 = vunpack.c.h.b16 %v2398
    %v2509 = vunpack.c.l.b16 %v2402
    %v2510 = vunpack.c.l.b16 %v2406
    %v2511 = vunpack.c.h.b16 %v2406
    %v2512 = vunpack.c.l.b16 %v2410
    %v2513 = vunpack.c.l.b16 %v2414
    %v2514 = vunpack.c.h.b16 %v2414
    %v2515 = vunpack.c.l.b16 %v2418
    %v2516 = vpack.c.b16 %v2471, %v2468
    %v2517 = vpack.c.b16 %v2472, %v2469
    %v2518 = vpack.c.b16 %v2473, %v2470
    %v2519 = vpack.c.b16 %v2477, %v2474
    %v2520 = vpack.c.b16 %v2478, %v2475
    %v2521 = vpack.c.b16 %v2479, %v2476
    %v2522 = vpack.c.b16 %v2483, %v2480
    %v2523 = vpack.c.b16 %v2484, %v2481
    %v2524 = vpack.c.b16 %v2485, %v2482
    %v2525 = vpack.c.b16 %v2489, %v2486
    %v2526 = vpack.c.b16 %v2490, %v2487
    %v2527 = vpack.c.b16 %v2491, %v2488
    %v2528 = vpack.c.b16 %v2495, %v2492
    %v2529 = vpack.c.b16 %v2496, %v2493
    %v2530 = vpack.c.b16 %v2497, %v2494
    %v2531 = vpack.c.b16 %v2501, %v2498
    %v2532 = vpack.c.b16 %v2502, %v2499
    %v2533 = vpack.c.b16 %v2503, %v2500
    %v2534 = vpack.c.b16 %v2507, %v2504
    %v2535 = vpack.c.b16 %v2508, %v2505
    %v2536 = vpack.c.b16 %v2509, %v2506
    %v2537 = vpack.c.b16 %v2513, %v2510
    %v2538 = vpack.c.b16 %v2514, %v2511
    %v2539 = vpack.c.b16 %v2515, %v2512
    %v2612 = vunpack.c.l.b16 %v2420
    %v2613 = vunpack.c.h.b16 %v2420
    %v2614 = vunpack.c.l.b16 %v2421
    %v2615 = vunpack.c.h.b16 %v2421
    %v2616 = vunpack.c.l.b16 %v2422
    %v2617 = vunpack.c.h.b16 %v2422
    %v2618 = vunpack.c.l.b16 %v2423
    %v2619 = vunpack.c.h.b16 %v2423
    %v2620 = vunpack.c.l.b16 %v2424
    %v2621 = vunpack.c.h.b16 %v2424
    %v2622 = vunpack.c.l.b16 %v2425
    %v2623 = vunpack.c.h.b16 %v2425
    %v2624 = vunpack.c.l.b16 %v2426
    %v2625 = vunpack.c.h.b16 %v2426
    %v2626 = vunpack.c.l.b16 %v2427
    %v2627 = vunpack.c.h.b16 %v2427
    %v2628 = vunpack.c.l.b16 %v2428
    %v2629 = vunpack.c.h.b16 %v2428
    %v2630 = vunpack.c.l.b16 %v2429
    %v2631 = vunpack.c.h.b16 %v2429
    %v2632 = vunpack.c.l.b16 %v2430
    %v2633 = vunpack.c.h.b16 %v2430
    %v2634 = vunpack.c.l.b16 %v2431
    %v2635 = vunpack.c.h.b16 %v2431
    %v2636 = vunpack.c.l.b16 %v2432
    %v2637 = vunpack.c.h.b16 %v2432
    %v2638 = vunpack.c.l.b16 %v2433
    %v2639 = vunpack.c.h.b16 %v2433
    %v2640 = vunpack.c.l.b16 %v2434
    %v2641 = vunpack.c.h.b16 %v2434
    %v2642 = vunpack.c.l.b16 %v2435
    %v2643 = vunpack.c.h.b16 %v2435
    %v2644 = vunpack.c.l.b16 %v2436
    %v2645 = vunpack.c.h.b16 %v2436
    %v2646 = vunpack.c.l.b16 %v2437
    %v2647 = vunpack.c.h.b16 %v2437
    %v2648 = vunpack.c.l.b16 %v2438
    %v2649 = vunpack.c.h.b16 %v2438
    %v2650 = vunpack.c.l.b16 %v2439
    %v2651 = vunpack.c.h.b16 %v2439
    %v2652 = vunpack.c.l.b16 %v2440
    %v2653 = vunpack.c.h.b16 %v2440
    %v2654 = vunpack.c.l.b16 %v2441
    %v2655 = vunpack.c.h.b16 %v2441
    %v2656 = vunpack.c.l.b16 %v2442
    %v2657 = vunpack.c.h.b16 %v2442
    %v2658 = vunpack.c.l.b16 %v2443
    %v2659 = vunpack.c.h.b16 %v2443
    %v2660 = vunpack.c.l.b16 %v2444
    %v2661 = vunpack.c.h.b16 %v2444
    %v2662 = vunpack.c.l.b16 %v2445
    %v2663 = vunpack.c.h.b16 %v2445
    %v2664 = vunpack.c.l.b16 %v2446
    %v2665 = vunpack.c.h.b16 %v2446
    %v2666 = vunpack.c.l.b16 %v2447
    %v2667 = vunpack.c.h.b16 %v2447
    %v2668 = vunpack.c.l.b16 %v2448
    %v2669 = vunpack.c.h.b16 %v2448
    %v2670 = vunpack.c.l.b16 %v2449
    %v2671 = vunpack.c.h.b16 %v2449
    %v2672 = vunpack.c.l.b16 %v2450
    %v2673 = vunpack.c.h.b16 %v2450
    %v2674 = vunpack.c.l.b16 %v2451
    %v2675 = vunpack.c.h.b16 %v2451
    %v2676 = vunpack.c.l.b16 %v2452
    %v2677 = vunpack.c.h.b16 %v2452
    %v2678 = vunpack.c.l.b16 %v2453
    %v2679 = vunpack.c.h.b16 %v2453
    %v2680 = vunpack.c.l.b16 %v2454
    %v2681 = vunpack.c.h.b16 %v2454
    %v2682 = vunpack.c.l.b16 %v2455
    %v2683 = vunpack.c.h.b16 %v2455
    %v2684 = vunpack.c.l.b16 %v2456
    %v2685 = vunpack.c.h.b16 %v2456
    %v2686 = vunpack.c.l.b16 %v2457
    %v2687 = vunpack.c.h.b16 %v2457
    %v2688 = vunpack.c.l.b16 %v2458
    %v2689 = vunpack.c.h.b16 %v2458
    %v2690 = vunpack.c.l.b16 %v2459
    %v2691 = vunpack.c.h.b16 %v2459
    %v2692 = vunpack.c.l.b16 %v2460
    %v2693 = vunpack.c.h.b16 %v2460
    %v2694 = vunpack.c.l.b16 %v2461
    %v2695 = vunpack.c.h.b16 %v2461
    %v2696 = vunpack.c.l.b16 %v2462
    %v2697 = vunpack.c.h.b16 %v2462
    %v2698 = vunpack.c.l.b16 %v2463
    %v2699 = vunpack.c.h.b16 %v2463
    %v2700 = vunpack.c.l.b16 %v2464
    %v2701 = vunpack.c.h.b16 %v2464
    %v2702 = vunpack.c.l.b16 %v2465
    %v2703 = vunpack.c.h.b16 %v2465
    %v2704 = vunpack.c.l.b16 %v2466
    %v2705 = vunpack.c.h.b16 %v2466
    %v2706 = vunpack.c.l.b16 %v2467
    %v2707 = vunpack.c.h.b16 %v2467
    %v2708 = vpack.c.b16 %v2614, %v2612
    %v2709 = vpack.c.b16 %v2615, %v2613
    %v2710 = vpack.c.b16 %v2618, %v2616
    %v2711 = vpack.c.b16 %v2619, %v2617
    %v2712 = vpack.c.b16 %v2622, %v2620
    %v2713 = vpack.c.b16 %v2623, %v2621
    %v2714 = vpack.c.b16 %v2626, %v2624
    %v2715 = vpack.c.b16 %v2627, %v2625
    %v2716 = vpack.c.b16 %v2630, %v2628
    %v2717 = vpack.c.b16 %v2631, %v2629
    %v2718 = vpack.c.b16 %v2634, %v2632
    %v2719 = vpack.c.b16 %v2635, %v2633
    %v2720 = vpack.c.b16 %v2638, %v2636
    %v2721 = vpack.c.b16 %v2639, %v2637
    %v2722 = vpack.c.b16 %v2642, %v2640
    %v2723 = vpack.c.b16 %v2643, %v2641
    %v2724 = vpack.c.b16 %v2646, %v2644
    %v2725 = vpack.c.b16 %v2647, %v2645
    %v2726 = vpack.c.b16 %v2650, %v2648
    %v2727 = vpack.c.b16 %v2651, %v2649
    %v2728 = vpack.c.b16 %v2654, %v2652
    %v2729 = vpack.c.b16 %v2655, %v2653
    %v2730 = vpack.c.b16 %v2658, %v2656
    %v2731 = vpack.c.b16 %v2659, %v2657
    %v2732 = vpack.c.b16 %v2662, %v2660
    %v2733 = vpack.c.b16 %v2663, %v2661
    %v2734 = vpack.c.b16 %v2666, %v2664
    %v2735 = vpack.c.b16 %v2667, %v2665
    %v2736 = vpack.c.b16 %v2670, %v2668
    %v2737 = vpack.c.b16 %v2671, %v2669
    %v2738 = vpack.c.b16 %v2674, %v2672
    %v2739 = vpack.c.b16 %v2675, %v2673
    %v2740 = vpack.c.b16 %v2678, %v2676
    %v2741 = vpack.c.b16 %v2679, %v2677
    %v2742 = vpack.c.b16 %v2682, %v2680
    %v2743 = vpack.c.b16 %v2683, %v2681
    %v2744 = vpack.c.b16 %v2686, %v2684
    %v2745 = vpack.c.b16 %v2687, %v2685
    %v2746 = vpack.c.b16 %v2690, %v2688
    %v2747 = vpack.c.b16 %v2691, %v2689
    %v2748 = vpack.c.b16 %v2694, %v2692
    %v2749 = vpack.c.b16 %v2695, %v2693
    %v2750 = vpack.c.b16 %v2698, %v2696
    %v2751 = vpack.c.b16 %v2699, %v2697
    %v2752 = vpack.c.b16 %v2702, %v2700
    %v2753 = vpack.c.b16 %v2703, %v2701
    %v2754 = vpack.c.b16 %v2706, %v2704
    %v2755 = vpack.c.b16 %v2707, %v2705
    %2804 = vmatpush.bf16.msra.mxu0 %v2722
    %2805 = vmatpush.bf16.msra.mxu0 %v2720
    %2806 = vmatpush.bf16.msra.mxu0 %v2718
    %2807 = vmatpush.bf16.msra.mxu0 %v2716
    %2808 = vmatpush.bf16.msra.mxu0 %v2714
    %2809 = vmatpush.bf16.msra.mxu0 %v2712
    %2810 = vmatpush.bf16.msra.mxu0 %v2710
    %2811 = vmatpush.bf16.msra.mxu0 %v2708
    %2812 = vmatmul.bf16.gmra.mxu0 %v2516
    %v2813 = vpop.f32.mrf.mxu0
    %v2814 = vadd.f32 0.0, %v2813
    %v2815 = vpop.f32.mrf.mxu0
    %v2816 = vadd.f32 0.0, %v2815
    %2817 = vmatmul.bf16.gmra.mxu0 %v2519
    %v2818 = vpop.f32.mrf.mxu0
    %v2819 = vadd.f32 0.0, %v2818
    %v2820 = vpop.f32.mrf.mxu0
    %v2821 = vadd.f32 0.0, %v2820
    %2822 = vmatmul.bf16.gmra.mxu0 %v2522
    %v2823 = vpop.f32.mrf.mxu0
    %v2824 = vadd.f32 0.0, %v2823
    %v2825 = vpop.f32.mrf.mxu0
    %v2826 = vadd.f32 0.0, %v2825
    %2827 = vmatmul.bf16.gmra.mxu0 %v2525
    %v2828 = vpop.f32.mrf.mxu0
    %v2829 = vadd.f32 0.0, %v2828
    %v2830 = vpop.f32.mrf.mxu0
    %v2831 = vadd.f32 0.0, %v2830
    %2832 = vmatmul.bf16.gmra.mxu0 %v2528
    %v2833 = vpop.f32.mrf.mxu0
    %v2834 = vadd.f32 0.0, %v2833
    %v2835 = vpop.f32.mrf.mxu0
    %v2836 = vadd.f32 0.0, %v2835
    %2837 = vmatmul.bf16.gmra.mxu0 %v2531
    %v2838 = vpop.f32.mrf.mxu0
    %v2839 = vadd.f32 0.0, %v2838
    %v2840 = vpop.f32.mrf.mxu0
    %v2841 = vadd.f32 0.0, %v2840
    %2842 = vmatmul.bf16.gmra.mxu0 %v2534
    %v2843 = vpop.f32.mrf.mxu0
    %v2844 = vadd.f32 0.0, %v2843
    %v2845 = vpop.f32.mrf.mxu0
    %v2846 = vadd.f32 0.0, %v2845
    %2847 = vmatmul.bf16.gmra.mxu0 %v2537
    %v2848 = vpop.f32.mrf.mxu0
    %v2849 = vadd.f32 0.0, %v2848
    %v2850 = vpop.f32.mrf.mxu0
    %v2851 = vadd.f32 0.0, %v2850
    %2852 = vdwg.mxu0
    %2853 = vmatpush.bf16.msra.mxu0 %v2738
    %2854 = vmatpush.bf16.msra.mxu0 %v2736
    %2855 = vmatpush.bf16.msra.mxu0 %v2734
    %2856 = vmatpush.bf16.msra.mxu0 %v2732
    %2857 = vmatpush.bf16.msra.mxu0 %v2730
    %2858 = vmatpush.bf16.msra.mxu0 %v2728
    %2859 = vmatpush.bf16.msra.mxu0 %v2726
    %2860 = vmatpush.bf16.msra.mxu0 %v2724
    %2861 = vmatmul.bf16.gmra.mxu0 %v2517
    %v2862 = vpop.f32.mrf.mxu0
    %v2863 = vadd.f32 %v2814, %v2862
    %v2864 = vpop.f32.mrf.mxu0
    %v2865 = vadd.f32 %v2816, %v2864
    %2866 = vmatmul.bf16.gmra.mxu0 %v2520
    %v2867 = vpop.f32.mrf.mxu0
    %v2868 = vadd.f32 %v2819, %v2867
    %v2869 = vpop.f32.mrf.mxu0
    %v2870 = vadd.f32 %v2821, %v2869
    %2871 = vmatmul.bf16.gmra.mxu0 %v2523
    %v2872 = vpop.f32.mrf.mxu0
    %v2873 = vadd.f32 %v2824, %v2872
    %v2874 = vpop.f32.mrf.mxu0
    %v2875 = vadd.f32 %v2826, %v2874
    %2876 = vmatmul.bf16.gmra.mxu0 %v2526
    %v2877 = vpop.f32.mrf.mxu0
    %v2878 = vadd.f32 %v2829, %v2877
    %v2879 = vpop.f32.mrf.mxu0
    %v2880 = vadd.f32 %v2831, %v2879
    %2881 = vmatmul.bf16.gmra.mxu0 %v2529
    %v2882 = vpop.f32.mrf.mxu0
    %v2883 = vadd.f32 %v2834, %v2882
    %v2884 = vpop.f32.mrf.mxu0
    %v2885 = vadd.f32 %v2836, %v2884
    %2886 = vmatmul.bf16.gmra.mxu0 %v2532
    %v2887 = vpop.f32.mrf.mxu0
    %v2888 = vadd.f32 %v2839, %v2887
    %v2889 = vpop.f32.mrf.mxu0
    %v2890 = vadd.f32 %v2841, %v2889
    %2891 = vmatmul.bf16.gmra.mxu0 %v2535
    %v2892 = vpop.f32.mrf.mxu0
    %v2893 = vadd.f32 %v2844, %v2892
    %v2894 = vpop.f32.mrf.mxu0
    %v2895 = vadd.f32 %v2846, %v2894
    %2896 = vmatmul.bf16.gmra.mxu0 %v2538
    %v2897 = vpop.f32.mrf.mxu0
    %v2898 = vadd.f32 %v2849, %v2897
    %v2899 = vpop.f32.mrf.mxu0
    %v2900 = vadd.f32 %v2851, %v2899
    %2901 = vdwg.mxu0
    %2902 = vmatpush.bf16.msra.mxu0 %v2754
    %2903 = vmatpush.bf16.msra.mxu0 %v2752
    %2904 = vmatpush.bf16.msra.mxu0 %v2750
    %2905 = vmatpush.bf16.msra.mxu0 %v2748
    %2906 = vmatpush.bf16.msra.mxu0 %v2746
    %2907 = vmatpush.bf16.msra.mxu0 %v2744
    %2908 = vmatpush.bf16.msra.mxu0 %v2742
    %2909 = vmatpush.bf16.msra.mxu0 %v2740
    %2910 = vmatmul.bf16.gmra.mxu0 %v2518
    %v2911 = vpop.f32.mrf.mxu0
    %v2912 = vadd.f32 %v2863, %v2911
    %v2913 = vpop.f32.mrf.mxu0
    %v2914 = vadd.f32 %v2865, %v2913
    %2915 = vmatmul.bf16.gmra.mxu0 %v2521
    %v2916 = vpop.f32.mrf.mxu0
    %v2917 = vadd.f32 %v2868, %v2916
    %v2918 = vpop.f32.mrf.mxu0
    %v2919 = vadd.f32 %v2870, %v2918
    %2920 = vmatmul.bf16.gmra.mxu0 %v2524
    %v2921 = vpop.f32.mrf.mxu0
    %v2922 = vadd.f32 %v2873, %v2921
    %v2923 = vpop.f32.mrf.mxu0
    %v2924 = vadd.f32 %v2875, %v2923
    %2925 = vmatmul.bf16.gmra.mxu0 %v2527
    %v2926 = vpop.f32.mrf.mxu0
    %v2927 = vadd.f32 %v2878, %v2926
    %v2928 = vpop.f32.mrf.mxu0
    %v2929 = vadd.f32 %v2880, %v2928
    %2930 = vmatmul.bf16.gmra.mxu0 %v2530
    %v2931 = vpop.f32.mrf.mxu0
    %v2932 = vadd.f32 %v2883, %v2931
    %v2933 = vpop.f32.mrf.mxu0
    %v2934 = vadd.f32 %v2885, %v2933
    %2935 = vmatmul.bf16.gmra.mxu0 %v2533
    %v2936 = vpop.f32.mrf.mxu0
    %v2937 = vadd.f32 %v2888, %v2936
    %v2938 = vpop.f32.mrf.mxu0
    %v2939 = vadd.f32 %v2890, %v2938
    %2940 = vmatmul.bf16.gmra.mxu0 %v2536
    %v2941 = vpop.f32.mrf.mxu0
    %v2942 = vadd.f32 %v2893, %v2941
    %v2943 = vpop.f32.mrf.mxu0
    %v2944 = vadd.f32 %v2895, %v2943
    %2945 = vmatmul.bf16.gmra.mxu0 %v2539
    %v2946 = vpop.f32.mrf.mxu0
    %v2947 = vadd.f32 %v2898, %v2946
    %v2948 = vpop.f32.mrf.mxu0
    %v2949 = vadd.f32 %v2900, %v2948
    %2950 = vdwg.mxu0
    %2951 = vmatpush.bf16.msra.mxu0 %v2723
    %2952 = vmatpush.bf16.msra.mxu0 %v2721
    %2953 = vmatpush.bf16.msra.mxu0 %v2719
    %2954 = vmatpush.bf16.msra.mxu0 %v2717
    %2955 = vmatpush.bf16.msra.mxu0 %v2715
    %2956 = vmatpush.bf16.msra.mxu0 %v2713
    %2957 = vmatpush.bf16.msra.mxu0 %v2711
    %2958 = vmatpush.bf16.msra.mxu0 %v2709
    %2959 = vmatmul.bf16.gmra.mxu0 %v2516
    %v2960 = vpop.f32.mrf.mxu0
    %v2961 = vadd.f32 0.0, %v2960
    %v2962 = vpop.f32.mrf.mxu0
    %v2963 = vadd.f32 0.0, %v2962
    %2964 = vmatmul.bf16.gmra.mxu0 %v2519
    %v2965 = vpop.f32.mrf.mxu0
    %v2966 = vadd.f32 0.0, %v2965
    %v2967 = vpop.f32.mrf.mxu0
    %v2968 = vadd.f32 0.0, %v2967
    %2969 = vmatmul.bf16.gmra.mxu0 %v2522
    %v2970 = vpop.f32.mrf.mxu0
    %v2971 = vadd.f32 0.0, %v2970
    %v2972 = vpop.f32.mrf.mxu0
    %v2973 = vadd.f32 0.0, %v2972
    %2974 = vmatmul.bf16.gmra.mxu0 %v2525
    %v2975 = vpop.f32.mrf.mxu0
    %v2976 = vadd.f32 0.0, %v2975
    %v2977 = vpop.f32.mrf.mxu0
    %v2978 = vadd.f32 0.0, %v2977
    %2979 = vmatmul.bf16.gmra.mxu0 %v2528
    %v2980 = vpop.f32.mrf.mxu0
    %v2981 = vadd.f32 0.0, %v2980
    %v2982 = vpop.f32.mrf.mxu0
    %v2983 = vadd.f32 0.0, %v2982
    %2984 = vmatmul.bf16.gmra.mxu0 %v2531
    %v2985 = vpop.f32.mrf.mxu0
    %v2986 = vadd.f32 0.0, %v2985
    %v2987 = vpop.f32.mrf.mxu0
    %v2988 = vadd.f32 0.0, %v2987
    %2989 = vmatmul.bf16.gmra.mxu0 %v2534
    %v2990 = vpop.f32.mrf.mxu0
    %v2991 = vadd.f32 0.0, %v2990
    %v2992 = vpop.f32.mrf.mxu0
    %v2993 = vadd.f32 0.0, %v2992
    %2994 = vmatmul.bf16.gmra.mxu0 %v2537
    %v2995 = vpop.f32.mrf.mxu0
    %v2996 = vadd.f32 0.0, %v2995
    %v2997 = vpop.f32.mrf.mxu0
    %v2998 = vadd.f32 0.0, %v2997
    %2999 = vdwg.mxu0
    %3000 = vmatpush.bf16.msra.mxu0 %v2739
    %3001 = vmatpush.bf16.msra.mxu0 %v2737
    %3002 = vmatpush.bf16.msra.mxu0 %v2735
    %3003 = vmatpush.bf16.msra.mxu0 %v2733
    %3004 = vmatpush.bf16.msra.mxu0 %v2731
    %3005 = vmatpush.bf16.msra.mxu0 %v2729
    %3006 = vmatpush.bf16.msra.mxu0 %v2727
    %3007 = vmatpush.bf16.msra.mxu0 %v2725
    %3008 = vmatmul.bf16.gmra.mxu0 %v2517
    %v3009 = vpop.f32.mrf.mxu0
    %v3010 = vadd.f32 %v2961, %v3009
    %v3011 = vpop.f32.mrf.mxu0
    %v3012 = vadd.f32 %v2963, %v3011
    %3013 = vmatmul.bf16.gmra.mxu0 %v2520
    %v3014 = vpop.f32.mrf.mxu0
    %v3015 = vadd.f32 %v2966, %v3014
    %v3016 = vpop.f32.mrf.mxu0
    %v3017 = vadd.f32 %v2968, %v3016
    %3018 = vmatmul.bf16.gmra.mxu0 %v2523
    %v3019 = vpop.f32.mrf.mxu0
    %v3020 = vadd.f32 %v2971, %v3019
    %v3021 = vpop.f32.mrf.mxu0
    %v3022 = vadd.f32 %v2973, %v3021
    %3023 = vmatmul.bf16.gmra.mxu0 %v2526
    %v3024 = vpop.f32.mrf.mxu0
    %v3025 = vadd.f32 %v2976, %v3024
    %v3026 = vpop.f32.mrf.mxu0
    %v3027 = vadd.f32 %v2978, %v3026
    %3028 = vmatmul.bf16.gmra.mxu0 %v2529
    %v3029 = vpop.f32.mrf.mxu0
    %v3030 = vadd.f32 %v2981, %v3029
    %v3031 = vpop.f32.mrf.mxu0
    %v3032 = vadd.f32 %v2983, %v3031
    %3033 = vmatmul.bf16.gmra.mxu0 %v2532
    %v3034 = vpop.f32.mrf.mxu0
    %v3035 = vadd.f32 %v2986, %v3034
    %v3036 = vpop.f32.mrf.mxu0
    %v3037 = vadd.f32 %v2988, %v3036
    %3038 = vmatmul.bf16.gmra.mxu0 %v2535
    %v3039 = vpop.f32.mrf.mxu0
    %v3040 = vadd.f32 %v2991, %v3039
    %v3041 = vpop.f32.mrf.mxu0
    %v3042 = vadd.f32 %v2993, %v3041
    %3043 = vmatmul.bf16.gmra.mxu0 %v2538
    %v3044 = vpop.f32.mrf.mxu0
    %v3045 = vadd.f32 %v2996, %v3044
    %v3046 = vpop.f32.mrf.mxu0
    %v3047 = vadd.f32 %v2998, %v3046
    %3048 = vdwg.mxu0
    %3049 = vmatpush.bf16.msra.mxu0 %v2755
    %3050 = vmatpush.bf16.msra.mxu0 %v2753
    %3051 = vmatpush.bf16.msra.mxu0 %v2751
    %3052 = vmatpush.bf16.msra.mxu0 %v2749
    %3053 = vmatpush.bf16.msra.mxu0 %v2747
    %3054 = vmatpush.bf16.msra.mxu0 %v2745
    %3055 = vmatpush.bf16.msra.mxu0 %v2743
    %3056 = vmatpush.bf16.msra.mxu0 %v2741
    %3057 = vmatmul.bf16.gmra.mxu0 %v2518
    %v3058 = vpop.f32.mrf.mxu0
    %v3059 = vadd.f32 %v3010, %v3058
    %v3060 = vpop.f32.mrf.mxu0
    %v3061 = vadd.f32 %v3012, %v3060
    %3062 = vmatmul.bf16.gmra.mxu0 %v2521
    %v3063 = vpop.f32.mrf.mxu0
    %v3064 = vadd.f32 %v3015, %v3063
    %v3065 = vpop.f32.mrf.mxu0
    %v3066 = vadd.f32 %v3017, %v3065
    %3067 = vmatmul.bf16.gmra.mxu0 %v2524
    %v3068 = vpop.f32.mrf.mxu0
    %v3069 = vadd.f32 %v3020, %v3068
    %v3070 = vpop.f32.mrf.mxu0
    %v3071 = vadd.f32 %v3022, %v3070
    %3072 = vmatmul.bf16.gmra.mxu0 %v2527
    %v3073 = vpop.f32.mrf.mxu0
    %v3074 = vadd.f32 %v3025, %v3073
    %v3075 = vpop.f32.mrf.mxu0
    %v3076 = vadd.f32 %v3027, %v3075
    %3077 = vmatmul.bf16.gmra.mxu0 %v2530
    %v3078 = vpop.f32.mrf.mxu0
    %v3079 = vadd.f32 %v3030, %v3078
    %v3080 = vpop.f32.mrf.mxu0
    %v3081 = vadd.f32 %v3032, %v3080
    %3082 = vmatmul.bf16.gmra.mxu0 %v2533
    %v3083 = vpop.f32.mrf.mxu0
    %v3084 = vadd.f32 %v3035, %v3083
    %v3085 = vpop.f32.mrf.mxu0
    %v3086 = vadd.f32 %v3037, %v3085
    %3087 = vmatmul.bf16.gmra.mxu0 %v2536
    %v3088 = vpop.f32.mrf.mxu0
    %v3089 = vadd.f32 %v3040, %v3088
    %v3090 = vpop.f32.mrf.mxu0
    %v3091 = vadd.f32 %v3042, %v3090
    %3092 = vmatmul.bf16.gmra.mxu0 %v2539
    %v3093 = vpop.f32.mrf.mxu0
    %v3094 = vadd.f32 %v3045, %v3093
    %v3095 = vpop.f32.mrf.mxu0
    %v3096 = vadd.f32 %v3047, %v3095
    %3097 = vdwg.mxu0
    %v3098 = vadd.f32 %v2102, %v2912
    %v3099 = vadd.f32 %v2249, %v3059
    %v3100 = vadd.f32 %v2104, %v2914
    %v3101 = vadd.f32 %v2251, %v3061
    %v3102 = vadd.f32 %v2107, %v2917
    %v3103 = vadd.f32 %v2254, %v3064
    %v3104 = vadd.f32 %v2109, %v2919
    %v3105 = vadd.f32 %v2256, %v3066
    %v3106 = vadd.f32 %v2112, %v2922
    %v3107 = vadd.f32 %v2259, %v3069
    %v3108 = vadd.f32 %v2114, %v2924
    %v3109 = vadd.f32 %v2261, %v3071
    %v3110 = vadd.f32 %v2117, %v2927
    %v3111 = vadd.f32 %v2264, %v3074
    %v3112 = vadd.f32 %v2119, %v2929
    %v3113 = vadd.f32 %v2266, %v3076
    %v3114 = vadd.f32 %v2122, %v2932
    %v3115 = vadd.f32 %v2269, %v3079
    %v3116 = vadd.f32 %v2124, %v2934
    %v3117 = vadd.f32 %v2271, %v3081
    %v3118 = vadd.f32 %v2127, %v2937
    %v3119 = vadd.f32 %v2274, %v3084
    %v3120 = vadd.f32 %v2129, %v2939
    %v3121 = vadd.f32 %v2276, %v3086
    %v3122 = vadd.f32 %v2132, %v2942
    %v3123 = vadd.f32 %v2279, %v3089
    %v3124 = vadd.f32 %v2134, %v2944
    %v3125 = vadd.f32 %v2281, %v3091
    %v3126 = vadd.f32 %v2137, %v2947
    %v3127 = vadd.f32 %v2284, %v3094
    %v3128 = vadd.f32 %v2139, %v2949
    %v3129 = vadd.f32 %v2286, %v3096
    %v3130 = vadd.f32 %v3098, %v3100
    %v3131 = vadd.f32 %v3130, %v3102
    %v3132 = vadd.f32 %v3131, %v3104
    %v3133 = vadd.f32 %v3132, %v3106
    %v3134 = vadd.f32 %v3133, %v3108
    %v3135 = vadd.f32 %v3134, %v3110
    %v3136 = vadd.f32 %v3135, %v3112
    %v3137 = vadd.f32 %v3136, %v3114
    %v3138 = vadd.f32 %v3137, %v3116
    %v3139 = vadd.f32 %v3138, %v3118
    %v3140 = vadd.f32 %v3139, %v3120
    %v3141 = vadd.f32 %v3140, %v3122
    %v3142 = vadd.f32 %v3141, %v3124
    %v3143 = vadd.f32 %v3142, %v3126
    %v3144 = vadd.f32 %v3143, %v3128
    %v3145 = vrot.slane %v3144, 4
    %v3146 = vadd.f32 %v3144, %v3145
    %v3147 = vrot.slane %v3146, 2
    %v3148 = vadd.f32 %v3146, %v3147
    %v3149 = vrot.slane %v3148, 1
    %v3150 = vadd.f32 %v3148, %v3149
    %v3151 = vadd.f32 %v3099, %v3101
    %v3152 = vadd.f32 %v3151, %v3103
    %v3153 = vadd.f32 %v3152, %v3105
    %v3154 = vadd.f32 %v3153, %v3107
    %v3155 = vadd.f32 %v3154, %v3109
    %v3156 = vadd.f32 %v3155, %v3111
    %v3157 = vadd.f32 %v3156, %v3113
    %v3158 = vadd.f32 %v3157, %v3115
    %v3159 = vadd.f32 %v3158, %v3117
    %v3160 = vadd.f32 %v3159, %v3119
    %v3161 = vadd.f32 %v3160, %v3121
    %v3162 = vadd.f32 %v3161, %v3123
    %v3163 = vadd.f32 %v3162, %v3125
    %v3164 = vadd.f32 %v3163, %v3127
    %v3165 = vadd.f32 %v3164, %v3129
    %v3166 = vrot.slane %v3165, 4
    %v3167 = vadd.f32 %v3165, %v3166
    %v3168 = vrot.slane %v3167, 2
    %v3169 = vadd.f32 %v3167, %v3168
    %v3170 = vrot.slane %v3169, 1
    %v3171 = vadd.f32 %v3169, %v3170
    %v3172 = vmul.f32 %v3098, %v3098
    %v3173 = vmul.f32 %v3099, %v3099
    %v3174 = vmul.f32 %v3100, %v3100
    %v3175 = vmul.f32 %v3101, %v3101
    %v3176 = vmul.f32 %v3102, %v3102
    %v3177 = vmul.f32 %v3103, %v3103
    %v3178 = vmul.f32 %v3104, %v3104
    %v3179 = vmul.f32 %v3105, %v3105
    %v3180 = vmul.f32 %v3106, %v3106
    %v3181 = vmul.f32 %v3107, %v3107
    %v3182 = vmul.f32 %v3108, %v3108
    %v3183 = vmul.f32 %v3109, %v3109
    %v3184 = vmul.f32 %v3110, %v3110
    %v3185 = vmul.f32 %v3111, %v3111
    %v3186 = vmul.f32 %v3112, %v3112
    %v3187 = vmul.f32 %v3113, %v3113
    %v3188 = vmul.f32 %v3114, %v3114
    %v3189 = vmul.f32 %v3115, %v3115
    %v3190 = vmul.f32 %v3116, %v3116
    %v3191 = vmul.f32 %v3117, %v3117
    %v3192 = vmul.f32 %v3118, %v3118
    %v3193 = vmul.f32 %v3119, %v3119
    %v3194 = vmul.f32 %v3120, %v3120
    %v3195 = vmul.f32 %v3121, %v3121
    %v3196 = vmul.f32 %v3122, %v3122
    %v3197 = vmul.f32 %v3123, %v3123
    %v3198 = vmul.f32 %v3124, %v3124
    %v3199 = vmul.f32 %v3125, %v3125
    %v3200 = vmul.f32 %v3126, %v3126
    %v3201 = vmul.f32 %v3127, %v3127
    %v3202 = vmul.f32 %v3128, %v3128
    %v3203 = vmul.f32 %v3129, %v3129
    %v3204 = vadd.f32 %v3172, %v3174
    %v3205 = vadd.f32 %v3204, %v3176
    %v3206 = vadd.f32 %v3205, %v3178
    %v3207 = vadd.f32 %v3206, %v3180
    %v3208 = vadd.f32 %v3207, %v3182
    %v3209 = vadd.f32 %v3208, %v3184
    %v3210 = vadd.f32 %v3209, %v3186
    %v3211 = vadd.f32 %v3210, %v3188
    %v3212 = vadd.f32 %v3211, %v3190
    %v3213 = vadd.f32 %v3212, %v3192
    %v3214 = vadd.f32 %v3213, %v3194
    %v3215 = vadd.f32 %v3214, %v3196
    %v3216 = vadd.f32 %v3215, %v3198
    %v3217 = vadd.f32 %v3216, %v3200
    %v3218 = vadd.f32 %v3217, %v3202
    %v3219 = vrot.slane %v3218, 4
    %v3220 = vadd.f32 %v3218, %v3219
    %v3221 = vrot.slane %v3220, 2
    %v3222 = vadd.f32 %v3220, %v3221
    %v3223 = vrot.slane %v3222, 1
    %v3224 = vadd.f32 %v3222, %v3223
    %v3225 = vadd.f32 %v3173, %v3175
    %v3226 = vadd.f32 %v3225, %v3177
    %v3227 = vadd.f32 %v3226, %v3179
    %v3228 = vadd.f32 %v3227, %v3181
    %v3229 = vadd.f32 %v3228, %v3183
    %v3230 = vadd.f32 %v3229, %v3185
    %v3231 = vadd.f32 %v3230, %v3187
    %v3232 = vadd.f32 %v3231, %v3189
    %v3233 = vadd.f32 %v3232, %v3191
    %v3234 = vadd.f32 %v3233, %v3193
    %v3235 = vadd.f32 %v3234, %v3195
    %v3236 = vadd.f32 %v3235, %v3197
    %v3237 = vadd.f32 %v3236, %v3199
    %v3238 = vadd.f32 %v3237, %v3201
    %v3239 = vadd.f32 %v3238, %v3203
    %v3240 = vrot.slane %v3239, 4
    %v3241 = vadd.f32 %v3239, %v3240
    %v3242 = vrot.slane %v3241, 2
    %v3243 = vadd.f32 %v3241, %v3242
    %v3244 = vrot.slane %v3243, 1
    %v3245 = vadd.f32 %v3243, %v3244
    %vm3246 = vcmask 1040384
    %v3247 = vsel %vm3246, %v3150, %v3224
    %v3248 = vsel %vm3246, %v3171, %v3245
    %v3251 = vrot.slane %v3248, 6
    %vm3252 = vcmask 1041408
    %v3253 = vsel %vm3252, %v3247, %v3251
    %3255 = vst [vmem:[%s5] sm:$0xf] %v3253
    %v3256 = vpack.c.bf16 %v3099, %v3098
    %v3257 = vpack.c.bf16 %v3101, %v3100
    %v3258 = vpack.c.bf16 %v3103, %v3102
    %v3259 = vpack.c.bf16 %v3105, %v3104
    %v3260 = vpack.c.bf16 %v3107, %v3106
    %v3261 = vpack.c.bf16 %v3109, %v3108
    %v3262 = vpack.c.bf16 %v3111, %v3110
    %v3263 = vpack.c.bf16 %v3113, %v3112
    %v3264 = vpack.c.bf16 %v3115, %v3114
    %v3265 = vpack.c.bf16 %v3117, %v3116
    %v3266 = vpack.c.bf16 %v3119, %v3118
    %v3267 = vpack.c.bf16 %v3121, %v3120
    %v3268 = vpack.c.bf16 %v3123, %v3122
    %v3269 = vpack.c.bf16 %v3125, %v3124
    %v3270 = vpack.c.bf16 %v3127, %v3126
    %v3271 = vpack.c.bf16 %v3129, %v3128
    %3272 = vst [vmem:[%s4] sm:$0xff] %v3256
    %3273 = vst [vmem:[%s4 + $0x8] sm:$0xff] %v3257
    %3274 = vst [vmem:[%s4 + $0x10] sm:$0xff] %v3258
    %3275 = vst [vmem:[%s4 + $0x18] sm:$0xff] %v3259
    %3276 = vst [vmem:[%s4 + $0x20] sm:$0xff] %v3260
    %3277 = vst [vmem:[%s4 + $0x28] sm:$0xff] %v3261
    %3278 = vst [vmem:[%s4 + $0x30] sm:$0xff] %v3262
    %3279 = vst [vmem:[%s4 + $0x38] sm:$0xff] %v3263
    %3280 = vst [vmem:[%s4 + $0x40] sm:$0xff] %v3264
    %3281 = vst [vmem:[%s4 + $0x48] sm:$0xff] %v3265
    %3282 = vst [vmem:[%s4 + $0x50] sm:$0xff] %v3266
    %3283 = vst [vmem:[%s4 + $0x58] sm:$0xff] %v3267
    %3284 = vst [vmem:[%s4 + $0x60] sm:$0xff] %v3268
    %3285 = vst [vmem:[%s4 + $0x68] sm:$0xff] %v3269
    %3286 = vst [vmem:[%s4 + $0x70] sm:$0xff] %v3270
    %3287 = vst [vmem:[%s4 + $0x78] sm:$0xff] %v3271
    // Predicated region
    $region100: #{down_forward.5} parent=1 // pred_check
      _
    $region101: #{down_forward.5} parent=1 // pred_check_branch
      %3289 = sbr.rel (0) target = $region103
    $region102: #{down_forward.5} parent=1 // pred_region
      _
    $region103: #{down_forward.5} parent=1 // pred_fallthru
      _
    // Predicated region
    $region104: #{down_forward.5} parent=1 // pred_check
      _
    $region105: #{down_forward.5} parent=1 // pred_check_branch
      %3291 = sbr.rel (0) target = $region107
    $region106: #{down_forward.5} parent=1 // pred_region
      _
    $region107: #{down_forward.5} parent=1 // pred_fallthru
      _
    // Predicated region
    $region108: #{down_forward.5} parent=1 // pred_check
      _
    $region109: #{down_forward.5} parent=1 // pred_check_branch
      %3293 = sbr.rel (0) target = $region111
    $region110: #{down_forward.5} parent=1 // pred_region
      _
    $region111: #{down_forward.5} parent=1 // pred_fallthru
      _
    // Predicated region
    $region112: #{down_forward.5} parent=1 // pred_check
      _
    $region113: #{down_forward.5} parent=1 // pred_check_branch
      %3295 = sbr.rel (0) target = $region115
    $region114: #{down_forward.5} parent=1 // pred_region
      _
    $region115: #{down_forward.5} parent=1 // pred_fallthru
      _

// kernel: down_forward.6
$region0: #{down_forward.6}
  #allocation0 [shape = 'u32[]', space=smem, size = 0x4, offset = 0x4, fixed_abs, tag = 'smem constant byte address 0x4 - core index']
  #allocation1 [shape = 'u32[72,128]{1,0:T(1,128)}', space=vmem, size = 0x9000, scoped, tag = 'internal scratch']
  %s0 = inlined_call_operand.vmem [shape: bf16[2,8,8,256], index: 0, kind: input, shape index: {}, may-alias: {0,1,2}]
  %s1 = inlined_call_operand.vmem [shape: bf16[2,8,8,256], index: 1, kind: input, shape index: {}, may-alias: {0,1,2}]
  %s2 = inlined_call_operand.vmem [shape: bf16[2,8,8,256], index: 2, kind: input, shape index: {}, may-alias: {0,1,2}]
  %s3 = inlined_call_operand.vmem [shape: bf16[3,768,256], index: 3, kind: input, shape index: {}]
  %s4 = inlined_call_operand.vmem [shape: f32[1,256], index: 4, kind: input, shape index: {}]
  %s5 = inlined_call_operand.vmem [shape: f32[1,256], index: 5, kind: input, shape index: {}]
  %s6 = inlined_call_operand.vmem [shape: bf16[2,1,64,256], index: 6, kind: output, shape index: {0}]
  %s7 = inlined_call_operand.vmem [shape: f32[1,2,256], index: 7, kind: output, shape index: {1}]
  %8 = xla_tuple %s6, %s7
  %s9 = sld [smem:[#allocation0]]
  $region118: #{down_forward.6} parent=0
    _
  %s11 = ssub.s32 1, %s9
  %s12 = scalar_select 0, %s11, %s9
  $region1: #{down_forward.6} parent=0
    #allocation2 [shape = 'u8[8192]{0}', space=vmem, size = 0x2000, scoped, tag = 'input window, operand 1, single buffered']
    #allocation3 [shape = 'u8[8192]{0}', space=vmem, size = 0x2000, scoped, tag = 'input window, operand 2, single buffered']
    // Predicated region
    $region2: #{down_forward.6} parent=1 // pred_check
      _
    $region3: #{down_forward.6} parent=1 // pred_check_branch
      %14 = sbr.rel (0) target = $region5
    $region4: #{down_forward.6} parent=1 // pred_region
      _
    $region5: #{down_forward.6} parent=1 // pred_fallthru
      _
    // Predicated region
    $region6: #{down_forward.6} parent=1 // pred_check
      _
    $region7: #{down_forward.6} parent=1 // pred_check_branch
      %16 = sbr.rel (0) target = $region9
    $region8: #{down_forward.6} parent=1 // pred_region
      %s17 = smul.u32 0, 8
      %s18 = ssub.s32 %s17, 1
      %p19 = scmp.gt.s32.totalorder %s18, 0
      %s20 = scalar_select %p19, %s18, 0
      %s21 = smul.addr %s20, 2
      %s22 = smul.addr %s21, 4
      %s23 = scalar_lea.vmem %s1, %s22
      // Predicated region
      $region10: #{down_forward.6} parent=8 // pred_check
        _
      $region11: #{down_forward.6} parent=8 // pred_check_branch
        %25 = sbr.rel (0) target = $region13
      $region12: #{down_forward.6} parent=8 // pred_region
        // Predicated region
        $region14: #{down_forward.6} parent=12 // pred_check
          _
        $region15: #{down_forward.6} parent=12 // pred_check_branch
          %27 = sbr.rel (0) target = $region17
        $region16: #{down_forward.6} parent=12 // pred_region
          // Predicated region
          $region29: #{down_forward.6} parent=16 // pred_check
            _
          $region30: #{down_forward.6} parent=16 // pred_check_branch
            %45 = sbr.rel (0) target = $region32
          $region31: #{down_forward.6} parent=16 // pred_region
            loop: start=0, step=1, limit=1
            $region33: #{down_forward.6} parent=31 // loop_pre_header
              _
            $region34: #{down_forward.6} parent=31 // loop_header
              %s47 = sphi 0, %s51
              %p48 = scmp.ge.s32.totalorder %s47, 1
              %s52 = sphi %s23, %s23
              %s53 = sphi [#allocation2], [#allocation2]
            $region35: #{down_forward.6} parent=31 // loop_header_branch
              %50 = sbr.rel (%p48) target = $region39
            $region36: #{down_forward.6} parent=31 // loop_body
              %v54 = vld [vmem:[%s52] sm:$0xff]
              %55 = vst [vmem:[%s53] sm:$0xff] %v54
              %v56 = vld [vmem:[%s52 + $0x40] sm:$0xff]
              %57 = vst [vmem:[%s53 + $0x8] sm:$0xff] %v56
            $region37: #{down_forward.6} parent=31 // loop_footer
              %s51 = sadd.s32 1, %s47
            $region38: #{down_forward.6} parent=31 // loop_footer_branch
              %46 = sbr.rel target = $region34
            $region39: #{down_forward.6} parent=31 // loop_exit
              _
          $region32: #{down_forward.6} parent=16 // pred_fallthru
            _
          // Predicated region
          $region40: #{down_forward.6} parent=16 // pred_check
            _
          $region41: #{down_forward.6} parent=16 // pred_check_branch
            %59 = sbr.rel target = $region43
          $region42: #{down_forward.6} parent=16 // pred_region
            _
          $region43: #{down_forward.6} parent=16 // pred_fallthru
            _
        $region17: #{down_forward.6} parent=12 // pred_fallthru
          _
        // Predicated region
        $region18: #{down_forward.6} parent=12 // pred_check
          _
        $region19: #{down_forward.6} parent=12 // pred_check_branch
          %29 = sbr.rel target = $region21
        $region20: #{down_forward.6} parent=12 // pred_region
          %s31 = ssub.s32 256, 1
          loop: start=0, step=1, limit=1
          $region22: #{down_forward.6} parent=20 // loop_pre_header
            _
          $region23: #{down_forward.6} parent=20 // loop_header
            %s33 = sphi 0, %s37
            %p34 = scmp.ge.s32.totalorder %s33, 1
            %s38 = sphi %s23, %s23
            %s39 = sphi [#allocation2], [#allocation2]
          $region24: #{down_forward.6} parent=20 // loop_header_branch
            %36 = sbr.rel (%p34) target = $region28
          $region25: #{down_forward.6} parent=20 // loop_body
            %v40 = vld [vmem:[%s38] sm:%s31]
            %41 = vst [vmem:[%s39] sm:%s31] %v40
            %v42 = vld [vmem:[%s38 + $0x40] sm:%s31]
            %43 = vst [vmem:[%s39 + $0x8] sm:%s31] %v42
          $region26: #{down_forward.6} parent=20 // loop_footer
            %s37 = sadd.s32 1, %s33
          $region27: #{down_forward.6} parent=20 // loop_footer_branch
            %32 = sbr.rel target = $region23
          $region28: #{down_forward.6} parent=20 // loop_exit
            _
        $region21: #{down_forward.6} parent=12 // pred_fallthru
          _
      $region13: #{down_forward.6} parent=8 // pred_fallthru
        _
      %60 = vnop
    $region9: #{down_forward.6} parent=1 // pred_fallthru
      _
    // Predicated region
    $region44: #{down_forward.6} parent=1 // pred_check
      _
    $region45: #{down_forward.6} parent=1 // pred_check_branch
      %62 = sbr.rel (0) target = $region47
    $region46: #{down_forward.6} parent=1 // pred_region
      %s63 = sadd.s32 0, 1
      %s64 = smul.u32 %s63, 8
      %p65 = scmp.lt.s32.totalorder %s64, 7
      %s66 = scalar_select %p65, %s64, 7
      %s67 = smul.addr %s66, 2
      %s68 = smul.addr %s67, 4
      %s69 = scalar_lea.vmem %s2, %s68
      // Predicated region
      $region48: #{down_forward.6} parent=46 // pred_check
        _
      $region49: #{down_forward.6} parent=46 // pred_check_branch
        %71 = sbr.rel (0) target = $region51
      $region50: #{down_forward.6} parent=46 // pred_region
        // Predicated region
        $region52: #{down_forward.6} parent=50 // pred_check
          _
        $region53: #{down_forward.6} parent=50 // pred_check_branch
          %73 = sbr.rel (0) target = $region55
        $region54: #{down_forward.6} parent=50 // pred_region
          // Predicated region
          $region67: #{down_forward.6} parent=54 // pred_check
            _
          $region68: #{down_forward.6} parent=54 // pred_check_branch
            %91 = sbr.rel (0) target = $region70
          $region69: #{down_forward.6} parent=54 // pred_region
            loop: start=0, step=1, limit=1
            $region71: #{down_forward.6} parent=69 // loop_pre_header
              _
            $region72: #{down_forward.6} parent=69 // loop_header
              %s93 = sphi 0, %s97
              %p94 = scmp.ge.s32.totalorder %s93, 1
              %s98 = sphi %s69, %s69
              %s99 = sphi [#allocation3], [#allocation3]
            $region73: #{down_forward.6} parent=69 // loop_header_branch
              %96 = sbr.rel (%p94) target = $region77
            $region74: #{down_forward.6} parent=69 // loop_body
              %v100 = vld [vmem:[%s98] sm:$0xff]
              %101 = vst [vmem:[%s99] sm:$0xff] %v100
              %v102 = vld [vmem:[%s98 + $0x40] sm:$0xff]
              %103 = vst [vmem:[%s99 + $0x8] sm:$0xff] %v102
            $region75: #{down_forward.6} parent=69 // loop_footer
              %s97 = sadd.s32 1, %s93
            $region76: #{down_forward.6} parent=69 // loop_footer_branch
              %92 = sbr.rel target = $region72
            $region77: #{down_forward.6} parent=69 // loop_exit
              _
          $region70: #{down_forward.6} parent=54 // pred_fallthru
            _
          // Predicated region
          $region78: #{down_forward.6} parent=54 // pred_check
            _
          $region79: #{down_forward.6} parent=54 // pred_check_branch
            %105 = sbr.rel target = $region81
          $region80: #{down_forward.6} parent=54 // pred_region
            _
          $region81: #{down_forward.6} parent=54 // pred_fallthru
            _
        $region55: #{down_forward.6} parent=50 // pred_fallthru
          _
        // Predicated region
        $region56: #{down_forward.6} parent=50 // pred_check
          _
        $region57: #{down_forward.6} parent=50 // pred_check_branch
          %75 = sbr.rel target = $region59
        $region58: #{down_forward.6} parent=50 // pred_region
          %s77 = ssub.s32 256, 1
          loop: start=0, step=1, limit=1
          $region60: #{down_forward.6} parent=58 // loop_pre_header
            _
          $region61: #{down_forward.6} parent=58 // loop_header
            %s79 = sphi 0, %s83
            %p80 = scmp.ge.s32.totalorder %s79, 1
            %s84 = sphi %s69, %s69
            %s85 = sphi [#allocation3], [#allocation3]
          $region62: #{down_forward.6} parent=58 // loop_header_branch
            %82 = sbr.rel (%p80) target = $region66
          $region63: #{down_forward.6} parent=58 // loop_body
            %v86 = vld [vmem:[%s84] sm:%s77]
            %87 = vst [vmem:[%s85] sm:%s77] %v86
            %v88 = vld [vmem:[%s84 + $0x40] sm:%s77]
            %89 = vst [vmem:[%s85 + $0x8] sm:%s77] %v88
          $region64: #{down_forward.6} parent=58 // loop_footer
            %s83 = sadd.s32 1, %s79
          $region65: #{down_forward.6} parent=58 // loop_footer_branch
            %78 = sbr.rel target = $region61
          $region66: #{down_forward.6} parent=58 // loop_exit
            _
        $region59: #{down_forward.6} parent=50 // pred_fallthru
          _
      $region51: #{down_forward.6} parent=46 // pred_fallthru
        _
      %106 = vnop
    $region47: #{down_forward.6} parent=1 // pred_fallthru
      _
    // Predicated region
    $region82: #{down_forward.6} parent=1 // pred_check
      _
    $region83: #{down_forward.6} parent=1 // pred_check_branch
      %108 = sbr.rel (0) target = $region85
    $region84: #{down_forward.6} parent=1 // pred_region
      _
    $region85: #{down_forward.6} parent=1 // pred_fallthru
      _
    // Predicated region
    $region86: #{down_forward.6} parent=1 // pred_check
      _
    $region87: #{down_forward.6} parent=1 // pred_check_branch
      %110 = sbr.rel (0) target = $region89
    $region88: #{down_forward.6} parent=1 // pred_region
      _
    $region89: #{down_forward.6} parent=1 // pred_fallthru
      _
    // Predicated region
    $region90: #{down_forward.6} parent=1 // pred_check
      _
    $region91: #{down_forward.6} parent=1 // pred_check_branch
      %112 = sbr.rel (0) target = $region93
    $region92: #{down_forward.6} parent=1 // pred_region
      _
    $region93: #{down_forward.6} parent=1 // pred_fallthru
      _
    // Predicated region
    $region94: #{down_forward.6} parent=1 // pred_check
      _
    $region95: #{down_forward.6} parent=1 // pred_check_branch
      %114 = sbr.rel (0) target = $region97
    $region96: #{down_forward.6} parent=1 // pred_region
      _
    $region97: #{down_forward.6} parent=1 // pred_fallthru
      _
    // Predicated region
    $region98: #{down_forward.6} parent=1 // pred_check
      _
    $region99: #{down_forward.6} parent=1 // pred_check_branch
      %116 = sbr.rel (0) target = $region101
    $region100: #{down_forward.6} parent=1 // pred_region
      _
    $region101: #{down_forward.6} parent=1 // pred_fallthru
      _
    %s117 = smul.u32 0, 8
    %s118 = ssub.s32 %s117, 1
    %p119 = scmp.gt.s32.totalorder %s118, 0
    %s120 = scalar_select %p119, %s118, 0
    %s121 = sadd.s32 0, 1
    %s122 = smul.u32 %s121, 8
    %p123 = scmp.lt.s32.totalorder %s122, 7
    %s124 = scalar_select %p123, %s122, 7
    %p126 = scmp.gt.s32.totalorder 0, 0
    %v127 = vld [vmem:[#allocation2] sm:$0xff]
    %v128 = vld [vmem:[#allocation2 + $0x8] sm:$0xff]
    %v129 = vunpack.c.l.bf16 %v127
    %v130 = vunpack.c.h.bf16 %v127
    %v131 = vunpack.c.l.bf16 %v128
    %v132 = vunpack.c.h.bf16 %v128
    %v133 = vld [vmem:[%s4] sm:$0x3]
    %v135 = vperm.slane %v133, 0
    %v136 = vperm.slane %v133, 1
    %v139 = vmul.f32 %v129, %v135
    %v140 = vmul.f32 %v130, %v136
    %v141 = vmul.f32 %v131, %v135
    %v142 = vmul.f32 %v132, %v136
    %v143 = vld [vmem:[%s5] sm:$0x3]
    %v145 = vperm.slane %v143, 0
    %v146 = vperm.slane %v143, 1
    %v149 = vadd.f32 %v139, %v145
    %v150 = vadd.f32 %v140, %v146
    %v151 = vadd.f32 %v141, %v145
    %v152 = vadd.f32 %v142, %v146
    %v153 = vmax.f32 %v149, 0.0
    %v154 = vmax.f32 %v150, 0.0
    %v155 = vmax.f32 %v151, 0.0
    %v156 = vmax.f32 %v152, 0.0
    %v157 = vpack.c.bf16 %v154, %v153
    %v158 = vpack.c.bf16 %v156, %v155
    %s159 = scalar_select %p126, 1, 0
    %v160 = vstv %s159
    %vm161 = vcmp.eq.s32.totalorder %v160, 1
    %v162 = vsel %vm161, %v157, 0
    %v163 = vsel %vm161, %v158, 0
    %p164 = scmp.lt.s32.totalorder 0, 0
    %v165 = vld [vmem:[#allocation3] sm:$0xff]
    %v166 = vld [vmem:[#allocation3 + $0x8] sm:$0xff]
    %v167 = vunpack.c.l.bf16 %v165
    %v168 = vunpack.c.h.bf16 %v165
    %v169 = vunpack.c.l.bf16 %v166
    %v170 = vunpack.c.h.bf16 %v166
    %v171 = vmul.f32 %v167, %v135
    %v172 = vmul.f32 %v168, %v136
    %v173 = vmul.f32 %v169, %v135
    %v174 = vmul.f32 %v170, %v136
    %v175 = vadd.f32 %v171, %v145
    %v176 = vadd.f32 %v172, %v146
    %v177 = vadd.f32 %v173, %v145
    %v178 = vadd.f32 %v174, %v146
    %v179 = vmax.f32 %v175, 0.0
    %v180 = vmax.f32 %v176, 0.0
    %v181 = vmax.f32 %v177, 0.0
    %v182 = vmax.f32 %v178, 0.0
    %v183 = vpack.c.bf16 %v180, %v179
    %v184 = vpack.c.bf16 %v182, %v181
    %s185 = scalar_select %p164, 1, 0
    %v186 = vstv %s185
    %vm187 = vcmp.eq.s32.totalorder %v186, 1
    %v188 = vsel %vm187, %v183, 0
    %v189 = vsel %vm187, %v184, 0
    %v190 = vld [vmem:[%s0] sm:$0xff]
    %v191 = vld [vmem:[%s0 + $0x8] sm:$0xff]
    %v192 = vld [vmem:[%s0 + $0x10] sm:$0xff]
    %v193 = vld [vmem:[%s0 + $0x18] sm:$0xff]
    %v194 = vld [vmem:[%s0 + $0x20] sm:$0xff]
    %v195 = vld [vmem:[%s0 + $0x28] sm:$0xff]
    %v196 = vld [vmem:[%s0 + $0x30] sm:$0xff]
    %v197 = vld [vmem:[%s0 + $0x38] sm:$0xff]
    %v198 = vld [vmem:[%s0 + $0x40] sm:$0xff]
    %v199 = vld [vmem:[%s0 + $0x48] sm:$0xff]
    %v200 = vld [vmem:[%s0 + $0x50] sm:$0xff]
    %v201 = vld [vmem:[%s0 + $0x58] sm:$0xff]
    %v202 = vld [vmem:[%s0 + $0x60] sm:$0xff]
    %v203 = vld [vmem:[%s0 + $0x68] sm:$0xff]
    %v204 = vld [vmem:[%s0 + $0x70] sm:$0xff]
    %v205 = vld [vmem:[%s0 + $0x78] sm:$0xff]
    %v206 = vunpack.c.l.bf16 %v190
    %v207 = vunpack.c.h.bf16 %v190
    %v208 = vunpack.c.l.bf16 %v191
    %v209 = vunpack.c.h.bf16 %v191
    %v210 = vunpack.c.l.bf16 %v192
    %v211 = vunpack.c.h.bf16 %v192
    %v212 = vunpack.c.l.bf16 %v193
    %v213 = vunpack.c.h.bf16 %v193
    %v214 = vunpack.c.l.bf16 %v194
    %v215 = vunpack.c.h.bf16 %v194
    %v216 = vunpack.c.l.bf16 %v195
    %v217 = vunpack.c.h.bf16 %v195
    %v218 = vunpack.c.l.bf16 %v196
    %v219 = vunpack.c.h.bf16 %v196
    %v220 = vunpack.c.l.bf16 %v197
    %v221 = vunpack.c.h.bf16 %v197
    %v222 = vunpack.c.l.bf16 %v198
    %v223 = vunpack.c.h.bf16 %v198
    %v224 = vunpack.c.l.bf16 %v199
    %v225 = vunpack.c.h.bf16 %v199
    %v226 = vunpack.c.l.bf16 %v200
    %v227 = vunpack.c.h.bf16 %v200
    %v228 = vunpack.c.l.bf16 %v201
    %v229 = vunpack.c.h.bf16 %v201
    %v230 = vunpack.c.l.bf16 %v202
    %v231 = vunpack.c.h.bf16 %v202
    %v232 = vunpack.c.l.bf16 %v203
    %v233 = vunpack.c.h.bf16 %v203
    %v234 = vunpack.c.l.bf16 %v204
    %v235 = vunpack.c.h.bf16 %v204
    %v236 = vunpack.c.l.bf16 %v205
    %v237 = vunpack.c.h.bf16 %v205
    %v238 = vmul.f32 %v206, %v135
    %v239 = vmul.f32 %v207, %v136
    %v240 = vmul.f32 %v208, %v135
    %v241 = vmul.f32 %v209, %v136
    %v242 = vmul.f32 %v210, %v135
    %v243 = vmul.f32 %v211, %v136
    %v244 = vmul.f32 %v212, %v135
    %v245 = vmul.f32 %v213, %v136
    %v246 = vmul.f32 %v214, %v135
    %v247 = vmul.f32 %v215, %v136
    %v248 = vmul.f32 %v216, %v135
    %v249 = vmul.f32 %v217, %v136
    %v250 = vmul.f32 %v218, %v135
    %v251 = vmul.f32 %v219, %v136
    %v252 = vmul.f32 %v220, %v135
    %v253 = vmul.f32 %v221, %v136
    %v254 = vmul.f32 %v222, %v135
    %v255 = vmul.f32 %v223, %v136
    %v256 = vmul.f32 %v224, %v135
    %v257 = vmul.f32 %v225, %v136
    %v258 = vmul.f32 %v226, %v135
    %v259 = vmul.f32 %v227, %v136
    %v260 = vmul.f32 %v228, %v135
    %v261 = vmul.f32 %v229, %v136
    %v262 = vmul.f32 %v230, %v135
    %v263 = vmul.f32 %v231, %v136
    %v264 = vmul.f32 %v232, %v135
    %v265 = vmul.f32 %v233, %v136
    %v266 = vmul.f32 %v234, %v135
    %v267 = vmul.f32 %v235, %v136
    %v268 = vmul.f32 %v236, %v135
    %v269 = vmul.f32 %v237, %v136
    %v270 = vadd.f32 %v238, %v145
    %v271 = vadd.f32 %v239, %v146
    %v272 = vadd.f32 %v240, %v145
    %v273 = vadd.f32 %v241, %v146
    %v274 = vadd.f32 %v242, %v145
    %v275 = vadd.f32 %v243, %v146
    %v276 = vadd.f32 %v244, %v145
    %v277 = vadd.f32 %v245, %v146
    %v278 = vadd.f32 %v246, %v145
    %v279 = vadd.f32 %v247, %v146
    %v280 = vadd.f32 %v248, %v145
    %v281 = vadd.f32 %v249, %v146
    %v282 = vadd.f32 %v250, %v145
    %v283 = vadd.f32 %v251, %v146
    %v284 = vadd.f32 %v252, %v145
    %v285 = vadd.f32 %v253, %v146
    %v286 = vadd.f32 %v254, %v145
    %v287 = vadd.f32 %v255, %v146
    %v288 = vadd.f32 %v256, %v145
    %v289 = vadd.f32 %v257, %v146
    %v290 = vadd.f32 %v258, %v145
    %v291 = vadd.f32 %v259, %v146
    %v292 = vadd.f32 %v260, %v145
    %v293 = vadd.f32 %v261, %v146
    %v294 = vadd.f32 %v262, %v145
    %v295 = vadd.f32 %v263, %v146
    %v296 = vadd.f32 %v264, %v145
    %v297 = vadd.f32 %v265, %v146
    %v298 = vadd.f32 %v266, %v145
    %v299 = vadd.f32 %v267, %v146
    %v300 = vadd.f32 %v268, %v145
    %v301 = vadd.f32 %v269, %v146
    %v302 = vmax.f32 %v270, 0.0
    %v303 = vmax.f32 %v271, 0.0
    %v304 = vmax.f32 %v272, 0.0
    %v305 = vmax.f32 %v273, 0.0
    %v306 = vmax.f32 %v274, 0.0
    %v307 = vmax.f32 %v275, 0.0
    %v308 = vmax.f32 %v276, 0.0
    %v309 = vmax.f32 %v277, 0.0
    %v310 = vmax.f32 %v278, 0.0
    %v311 = vmax.f32 %v279, 0.0
    %v312 = vmax.f32 %v280, 0.0
    %v313 = vmax.f32 %v281, 0.0
    %v314 = vmax.f32 %v282, 0.0
    %v315 = vmax.f32 %v283, 0.0
    %v316 = vmax.f32 %v284, 0.0
    %v317 = vmax.f32 %v285, 0.0
    %v318 = vmax.f32 %v286, 0.0
    %v319 = vmax.f32 %v287, 0.0
    %v320 = vmax.f32 %v288, 0.0
    %v321 = vmax.f32 %v289, 0.0
    %v322 = vmax.f32 %v290, 0.0
    %v323 = vmax.f32 %v291, 0.0
    %v324 = vmax.f32 %v292, 0.0
    %v325 = vmax.f32 %v293, 0.0
    %v326 = vmax.f32 %v294, 0.0
    %v327 = vmax.f32 %v295, 0.0
    %v328 = vmax.f32 %v296, 0.0
    %v329 = vmax.f32 %v297, 0.0
    %v330 = vmax.f32 %v298, 0.0
    %v331 = vmax.f32 %v299, 0.0
    %v332 = vmax.f32 %v300, 0.0
    %v333 = vmax.f32 %v301, 0.0
    %v334 = vpack.c.bf16 %v303, %v302
    %v335 = vpack.c.bf16 %v305, %v304
    %v336 = vpack.c.bf16 %v307, %v306
    %v337 = vpack.c.bf16 %v309, %v308
    %v338 = vpack.c.bf16 %v311, %v310
    %v339 = vpack.c.bf16 %v313, %v312
    %v340 = vpack.c.bf16 %v315, %v314
    %v341 = vpack.c.bf16 %v317, %v316
    %v342 = vpack.c.bf16 %v319, %v318
    %v343 = vpack.c.bf16 %v321, %v320
    %v344 = vpack.c.bf16 %v323, %v322
    %v345 = vpack.c.bf16 %v325, %v324
    %v346 = vpack.c.bf16 %v327, %v326
    %v347 = vpack.c.bf16 %v329, %v328
    %v348 = vpack.c.bf16 %v331, %v330
    %v349 = vpack.c.bf16 %v333, %v332
    %v370 = vunpack.c.l.b16 %v162
    %v371 = vunpack.c.h.b16 %v162
    %v372 = vunpack.c.l.b16 %v334
    %v373 = vunpack.c.h.b16 %v334
    %v374 = vunpack.c.l.b16 %v335
    %v375 = vunpack.c.h.b16 %v335
    %v376 = vunpack.c.l.b16 %v336
    %v377 = vunpack.c.h.b16 %v336
    %v378 = vunpack.c.l.b16 %v337
    %v379 = vunpack.c.h.b16 %v337
    %v380 = vunpack.c.l.b16 %v338
    %v381 = vunpack.c.h.b16 %v338
    %v382 = vunpack.c.l.b16 %v339
    %v383 = vunpack.c.h.b16 %v339
    %v384 = vunpack.c.l.b16 %v340
    %v385 = vunpack.c.h.b16 %v340
    %v386 = vunpack.c.l.b16 %v341
    %v387 = vunpack.c.h.b16 %v341
    %v388 = vunpack.c.l.b16 %v188
    %v389 = vunpack.c.h.b16 %v188
    %v390 = vunpack.c.l.b16 %v163
    %v391 = vunpack.c.h.b16 %v163
    %v392 = vunpack.c.l.b16 %v342
    %v393 = vunpack.c.h.b16 %v342
    %v394 = vunpack.c.l.b16 %v343
    %v395 = vunpack.c.h.b16 %v343
    %v396 = vunpack.c.l.b16 %v344
    %v397 = vunpack.c.h.b16 %v344
    %v398 = vunpack.c.l.b16 %v345
    %v399 = vunpack.c.h.b16 %v345
    %v400 = vunpack.c.l.b16 %v346
    %v401 = vunpack.c.h.b16 %v346
    %v402 = vunpack.c.l.b16 %v347
    %v403 = vunpack.c.h.b16 %v347
    %v404 = vunpack.c.l.b16 %v348
    %v405 = vunpack.c.h.b16 %v348
    %v406 = vunpack.c.l.b16 %v349
    %v407 = vunpack.c.h.b16 %v349
    %v408 = vunpack.c.l.b16 %v189
    %v409 = vunpack.c.h.b16 %v189
    %v410 = vpack.c.b16 %v370, %v370
    %v411 = vpack.c.b16 %v371, %v371
    %v412 = vpack.c.b16 %v372, %v372
    %v413 = vpack.c.b16 %v373, %v373
    %v414 = vpack.c.b16 %v374, %v374
    %v415 = vpack.c.b16 %v375, %v375
    %v416 = vpack.c.b16 %v376, %v376
    %v417 = vpack.c.b16 %v377, %v377
    %v418 = vpack.c.b16 %v378, %v378
    %v419 = vpack.c.b16 %v379, %v379
    %v420 = vpack.c.b16 %v380, %v380
    %v421 = vpack.c.b16 %v381, %v381
    %v422 = vpack.c.b16 %v382, %v382
    %v423 = vpack.c.b16 %v383, %v383
    %v424 = vpack.c.b16 %v384, %v384
    %v425 = vpack.c.b16 %v385, %v385
    %v426 = vpack.c.b16 %v386, %v386
    %v427 = vpack.c.b16 %v387, %v387
    %v428 = vpack.c.b16 %v388, %v388
    %v429 = vpack.c.b16 %v389, %v389
    %v430 = vpack.c.b16 %v390, %v390
    %v431 = vpack.c.b16 %v391, %v391
    %v432 = vpack.c.b16 %v392, %v392
    %v433 = vpack.c.b16 %v393, %v393
    %v434 = vpack.c.b16 %v394, %v394
    %v435 = vpack.c.b16 %v395, %v395
    %v436 = vpack.c.b16 %v396, %v396
    %v437 = vpack.c.b16 %v397, %v397
    %v438 = vpack.c.b16 %v398, %v398
    %v439 = vpack.c.b16 %v399, %v399
    %v440 = vpack.c.b16 %v400, %v400
    %v441 = vpack.c.b16 %v401, %v401
    %v442 = vpack.c.b16 %v402, %v402
    %v443 = vpack.c.b16 %v403, %v403
    %v444 = vpack.c.b16 %v404, %v404
    %v445 = vpack.c.b16 %v405, %v405
    %v446 = vpack.c.b16 %v406, %v406
    %v447 = vpack.c.b16 %v407, %v407
    %v448 = vpack.c.b16 %v408, %v408
    %v449 = vpack.c.b16 %v409, %v409
    %v451 = vshrl.u32 %v410, 16
    %v453 = vrot.slane %v451, 7
    %v454 = vshll.u32 %v410, 16
    %v456 = vor.u32 %v453, %v454
    %v458 = vshrl.u32 %v411, 16
    %v460 = vrot.slane %v458, 7
    %v461 = vshll.u32 %v411, 16
    %v463 = vor.u32 %v460, %v461
    %v465 = vshrl.u32 %v412, 16
    %v467 = vrot.slane %v465, 7
    %v468 = vshll.u32 %v412, 16
    %v470 = vor.u32 %v467, %v468
    %v472 = vshrl.u32 %v413, 16
    %v474 = vrot.slane %v472, 7
    %v475 = vshll.u32 %v413, 16
    %v477 = vor.u32 %v474, %v475
    %v479 = vshrl.u32 %v414, 16
    %v481 = vrot.slane %v479, 7
    %v482 = vshll.u32 %v414, 16
    %v484 = vor.u32 %v481, %v482
    %v486 = vshrl.u32 %v415, 16
    %v488 = vrot.slane %v486, 7
    %v489 = vshll.u32 %v415, 16
    %v491 = vor.u32 %v488, %v489
    %v493 = vshrl.u32 %v416, 16
    %v495 = vrot.slane %v493, 7
    %v496 = vshll.u32 %v416, 16
    %v498 = vor.u32 %v495, %v496
    %v500 = vshrl.u32 %v417, 16
    %v502 = vrot.slane %v500, 7
    %v503 = vshll.u32 %v417, 16
    %v505 = vor.u32 %v502, %v503
    %v507 = vshrl.u32 %v418, 16
    %v509 = vrot.slane %v507, 7
    %v510 = vshll.u32 %v418, 16
    %v512 = vor.u32 %v509, %v510
    %v514 = vshrl.u32 %v419, 16
    %v516 = vrot.slane %v514, 7
    %v517 = vshll.u32 %v419, 16
    %v519 = vor.u32 %v516, %v517
    %v521 = vshrl.u32 %v420, 16
    %v523 = vrot.slane %v521, 7
    %v524 = vshll.u32 %v420, 16
    %v526 = vor.u32 %v523, %v524
    %v528 = vshrl.u32 %v421, 16
    %v530 = vrot.slane %v528, 7
    %v531 = vshll.u32 %v421, 16
    %v533 = vor.u32 %v530, %v531
    %v535 = vshrl.u32 %v422, 16
    %v537 = vrot.slane %v535, 7
    %v538 = vshll.u32 %v422, 16
    %v540 = vor.u32 %v537, %v538
    %v542 = vshrl.u32 %v423, 16
    %v544 = vrot.slane %v542, 7
    %v545 = vshll.u32 %v423, 16
    %v547 = vor.u32 %v544, %v545
    %v549 = vshrl.u32 %v424, 16
    %v551 = vrot.slane %v549, 7
    %v552 = vshll.u32 %v424, 16
    %v554 = vor.u32 %v551, %v552
    %v556 = vshrl.u32 %v425, 16
    %v558 = vrot.slane %v556, 7
    %v559 = vshll.u32 %v425, 16
    %v561 = vor.u32 %v558, %v559
    %v563 = vshrl.u32 %v426, 16
    %v565 = vrot.slane %v563, 7
    %v566 = vshll.u32 %v426, 16
    %v568 = vor.u32 %v565, %v566
    %v570 = vshrl.u32 %v427, 16
    %v572 = vrot.slane %v570, 7
    %v573 = vshll.u32 %v427, 16
    %v575 = vor.u32 %v572, %v573
    %v577 = vshrl.u32 %v428, 16
    %v579 = vrot.slane %v577, 7
    %v580 = vshll.u32 %v428, 16
    %v582 = vor.u32 %v579, %v580
    %v584 = vshrl.u32 %v429, 16
    %v586 = vrot.slane %v584, 7
    %v587 = vshll.u32 %v429, 16
    %v589 = vor.u32 %v586, %v587
    %v591 = vshrl.u32 %v430, 16
    %v593 = vrot.slane %v591, 7
    %v594 = vshll.u32 %v430, 16
    %v596 = vor.u32 %v593, %v594
    %v598 = vshrl.u32 %v431, 16
    %v600 = vrot.slane %v598, 7
    %v601 = vshll.u32 %v431, 16
    %v603 = vor.u32 %v600, %v601
    %v605 = vshrl.u32 %v432, 16
    %v607 = vrot.slane %v605, 7
    %v608 = vshll.u32 %v432, 16
    %v610 = vor.u32 %v607, %v608
    %v612 = vshrl.u32 %v433, 16
    %v614 = vrot.slane %v612, 7
    %v615 = vshll.u32 %v433, 16
    %v617 = vor.u32 %v614, %v615
    %v619 = vshrl.u32 %v434, 16
    %v621 = vrot.slane %v619, 7
    %v622 = vshll.u32 %v434, 16
    %v624 = vor.u32 %v621, %v622
    %v626 = vshrl.u32 %v435, 16
    %v628 = vrot.slane %v626, 7
    %v629 = vshll.u32 %v435, 16
    %v631 = vor.u32 %v628, %v629
    %v633 = vshrl.u32 %v436, 16
    %v635 = vrot.slane %v633, 7
    %v636 = vshll.u32 %v436, 16
    %v638 = vor.u32 %v635, %v636
    %v640 = vshrl.u32 %v437, 16
    %v642 = vrot.slane %v640, 7
    %v643 = vshll.u32 %v437, 16
    %v645 = vor.u32 %v642, %v643
    %v647 = vshrl.u32 %v438, 16
    %v649 = vrot.slane %v647, 7
    %v650 = vshll.u32 %v438, 16
    %v652 = vor.u32 %v649, %v650
    %v654 = vshrl.u32 %v439, 16
    %v656 = vrot.slane %v654, 7
    %v657 = vshll.u32 %v439, 16
    %v659 = vor.u32 %v656, %v657
    %v661 = vshrl.u32 %v440, 16
    %v663 = vrot.slane %v661, 7
    %v664 = vshll.u32 %v440, 16
    %v666 = vor.u32 %v663, %v664
    %v668 = vshrl.u32 %v441, 16
    %v670 = vrot.slane %v668, 7
    %v671 = vshll.u32 %v441, 16
    %v673 = vor.u32 %v670, %v671
    %v675 = vshrl.u32 %v442, 16
    %v677 = vrot.slane %v675, 7
    %v678 = vshll.u32 %v442, 16
    %v680 = vor.u32 %v677, %v678
    %v682 = vshrl.u32 %v443, 16
    %v684 = vrot.slane %v682, 7
    %v685 = vshll.u32 %v443, 16
    %v687 = vor.u32 %v684, %v685
    %v689 = vshrl.u32 %v444, 16
    %v691 = vrot.slane %v689, 7
    %v692 = vshll.u32 %v444, 16
    %v694 = vor.u32 %v691, %v692
    %v696 = vshrl.u32 %v445, 16
    %v698 = vrot.slane %v696, 7
    %v699 = vshll.u32 %v445, 16
    %v701 = vor.u32 %v698, %v699
    %v703 = vshrl.u32 %v446, 16
    %v705 = vrot.slane %v703, 7
    %v706 = vshll.u32 %v446, 16
    %v708 = vor.u32 %v705, %v706
    %v710 = vshrl.u32 %v447, 16
    %v712 = vrot.slane %v710, 7
    %v713 = vshll.u32 %v447, 16
    %v715 = vor.u32 %v712, %v713
    %v717 = vshrl.u32 %v448, 16
    %v719 = vrot.slane %v717, 7
    %v720 = vshll.u32 %v448, 16
    %v722 = vor.u32 %v719, %v720
    %v724 = vshrl.u32 %v449, 16
    %v726 = vrot.slane %v724, 7
    %v727 = vshll.u32 %v449, 16
    %v729 = vor.u32 %v726, %v727
    %vm770 = vcmask 1040384
    %vm771 = vsmask.f32 256
    %vm772 = vmand %vm770, %vm771
    %v773 = vsel %vm772, 0, %v456
    %v774 = vsel %vm772, 0, %v463
    %v775 = vsel %vm772, 0, %v470
    %v776 = vsel %vm772, 0, %v477
    %v777 = vsel %vm772, 0, %v484
    %v778 = vsel %vm772, 0, %v491
    %v779 = vsel %vm772, 0, %v498
    %v780 = vsel %vm772, 0, %v505
    %v781 = vsel %vm772, 0, %v512
    %v782 = vsel %vm772, 0, %v519
    %v783 = vsel %vm772, 0, %v526
    %v784 = vsel %vm772, 0, %v533
    %v785 = vsel %vm772, 0, %v540
    %v786 = vsel %vm772, 0, %v547
    %v787 = vsel %vm772, 0, %v554
    %v788 = vsel %vm772, 0, %v561
    %v789 = vsel %vm772, 0, %v568
    %v790 = vsel %vm772, 0, %v575
    %v791 = vsel %vm772, 0, %v582
    %v792 = vsel %vm772, 0, %v589
    %v793 = vsel %vm772, 0, %v596
    %v794 = vsel %vm772, 0, %v603
    %v795 = vsel %vm772, 0, %v610
    %v796 = vsel %vm772, 0, %v617
    %v797 = vsel %vm772, 0, %v624
    %v798 = vsel %vm772, 0, %v631
    %v799 = vsel %vm772, 0, %v638
    %v800 = vsel %vm772, 0, %v645
    %v801 = vsel %vm772, 0, %v652
    %v802 = vsel %vm772, 0, %v659
    %v803 = vsel %vm772, 0, %v666
    %v804 = vsel %vm772, 0, %v673
    %v805 = vsel %vm772, 0, %v680
    %v806 = vsel %vm772, 0, %v687
    %v807 = vsel %vm772, 0, %v694
    %v808 = vsel %vm772, 0, %v701
    %v809 = vsel %vm772, 0, %v708
    %v810 = vsel %vm772, 0, %v715
    %v811 = vsel %vm772, 0, %v722
    %v812 = vsel %vm772, 0, %v729
    %vm813 = vcmask 1044480
    %vm814 = vsmask.f32 4352
    %vm815 = vmand %vm813, %vm814
    %v816 = vsel %vm815, %v773, 0
    %v817 = vsel %vm815, %v774, 0
    %v818 = vsel %vm815, %v775, 0
    %v819 = vsel %vm815, %v776, 0
    %v820 = vsel %vm815, %v777, 0
    %v821 = vsel %vm815, %v778, 0
    %v822 = vsel %vm815, %v779, 0
    %v823 = vsel %vm815, %v780, 0
    %v824 = vsel %vm815, %v781, 0
    %v825 = vsel %vm815, %v782, 0
    %v826 = vsel %vm815, %v783, 0
    %v827 = vsel %vm815, %v784, 0
    %v828 = vsel %vm815, %v785, 0
    %v829 = vsel %vm815, %v786, 0
    %v830 = vsel %vm815, %v787, 0
    %v831 = vsel %vm815, %v788, 0
    %v832 = vsel %vm815, %v789, 0
    %v833 = vsel %vm815, %v790, 0
    %v834 = vsel %vm815, %v791, 0
    %v835 = vsel %vm815, %v792, 0
    %v836 = vsel %vm815, %v793, 0
    %v837 = vsel %vm815, %v794, 0
    %v838 = vsel %vm815, %v795, 0
    %v839 = vsel %vm815, %v796, 0
    %v840 = vsel %vm815, %v797, 0
    %v841 = vsel %vm815, %v798, 0
    %v842 = vsel %vm815, %v799, 0
    %v843 = vsel %vm815, %v800, 0
    %v844 = vsel %vm815, %v801, 0
    %v845 = vsel %vm815, %v802, 0
    %v846 = vsel %vm815, %v803, 0
    %v847 = vsel %vm815, %v804, 0
    %v848 = vsel %vm815, %v805, 0
    %v849 = vsel %vm815, %v806, 0
    %v850 = vsel %vm815, %v807, 0
    %v851 = vsel %vm815, %v808, 0
    %v852 = vsel %vm815, %v809, 0
    %v853 = vsel %vm815, %v810, 0
    %v854 = vsel %vm815, %v811, 0
    %v855 = vsel %vm815, %v812, 0
    %v896 = vunpack.c.l.b16 %v816
    %v897 = vunpack.c.l.b16 %v817
    %v898 = vunpack.c.l.b16 %v818
    %v899 = vunpack.c.l.b16 %v819
    %v900 = vunpack.c.l.b16 %v820
    %v901 = vunpack.c.l.b16 %v821
    %v902 = vunpack.c.l.b16 %v822
    %v903 = vunpack.c.l.b16 %v823
    %v904 = vunpack.c.l.b16 %v824
    %v905 = vunpack.c.l.b16 %v825
    %v906 = vunpack.c.l.b16 %v826
    %v907 = vunpack.c.l.b16 %v827
    %v908 = vunpack.c.l.b16 %v828
    %v909 = vunpack.c.l.b16 %v829
    %v910 = vunpack.c.l.b16 %v830
    %v911 = vunpack.c.l.b16 %v831
    %v912 = vunpack.c.l.b16 %v832
    %v913 = vunpack.c.l.b16 %v833
    %v914 = vunpack.c.l.b16 %v834
    %v915 = vunpack.c.l.b16 %v835
    %v916 = vunpack.c.l.b16 %v836
    %v917 = vunpack.c.l.b16 %v837
    %v918 = vunpack.c.l.b16 %v838
    %v919 = vunpack.c.l.b16 %v839
    %v920 = vunpack.c.l.b16 %v840
    %v921 = vunpack.c.l.b16 %v841
    %v922 = vunpack.c.l.b16 %v842
    %v923 = vunpack.c.l.b16 %v843
    %v924 = vunpack.c.l.b16 %v844
    %v925 = vunpack.c.l.b16 %v845
    %v926 = vunpack.c.l.b16 %v846
    %v927 = vunpack.c.l.b16 %v847
    %v928 = vunpack.c.l.b16 %v848
    %v929 = vunpack.c.l.b16 %v849
    %v930 = vunpack.c.l.b16 %v850
    %v931 = vunpack.c.l.b16 %v851
    %v932 = vunpack.c.l.b16 %v852
    %v933 = vunpack.c.l.b16 %v853
    %v934 = vunpack.c.l.b16 %v854
    %v935 = vunpack.c.l.b16 %v855
    %v936 = vld [vmem:[%s3] sm:$0xff]
    %v937 = vld [vmem:[%s3 + $0x8] sm:$0xff]
    %v938 = vld [vmem:[%s3 + $0x10] sm:$0xff]
    %v939 = vld [vmem:[%s3 + $0x18] sm:$0xff]
    %v940 = vld [vmem:[%s3 + $0x20] sm:$0xff]
    %v941 = vld [vmem:[%s3 + $0x28] sm:$0xff]
    %v942 = vld [vmem:[%s3 + $0x30] sm:$0xff]
    %v943 = vld [vmem:[%s3 + $0x38] sm:$0xff]
    %v944 = vld [vmem:[%s3 + $0x40] sm:$0xff]
    %v945 = vld [vmem:[%s3 + $0x48] sm:$0xff]
    %v946 = vld [vmem:[%s3 + $0x50] sm:$0xff]
    %v947 = vld [vmem:[%s3 + $0x58] sm:$0xff]
    %v948 = vld [vmem:[%s3 + $0x60] sm:$0xff]
    %v949 = vld [vmem:[%s3 + $0x68] sm:$0xff]
    %v950 = vld [vmem:[%s3 + $0x70] sm:$0xff]
    %v951 = vld [vmem:[%s3 + $0x78] sm:$0xff]
    %v952 = vld [vmem:[%s3 + $0x80] sm:$0xff]
    %v953 = vld [vmem:[%s3 + $0x88] sm:$0xff]
    %v954 = vld [vmem:[%s3 + $0x90] sm:$0xff]
    %v955 = vld [vmem:[%s3 + $0x98] sm:$0xff]
    %v956 = vld [vmem:[%s3 + $0xa0] sm:$0xff]
    %v957 = vld [vmem:[%s3 + $0xa8] sm:$0xff]
    %v958 = vld [vmem:[%s3 + $0xb0] sm:$0xff]
    %v959 = vld [vmem:[%s3 + $0xb8] sm:$0xff]
    %v960 = vld [vmem:[%s3 + $0xc0] sm:$0xff]
    %v961 = vld [vmem:[%s3 + $0xc8] sm:$0xff]
    %v962 = vld [vmem:[%s3 + $0xd0] sm:$0xff]
    %v963 = vld [vmem:[%s3 + $0xd8] sm:$0xff]
    %v964 = vld [vmem:[%s3 + $0xe0] sm:$0xff]
    %v965 = vld [vmem:[%s3 + $0xe8] sm:$0xff]
    %v966 = vld [vmem:[%s3 + $0xf0] sm:$0xff]
    %v967 = vld [vmem:[%s3 + $0xf8] sm:$0xff]
    %v968 = vld [vmem:[%s3 + $0x100] sm:$0xff]
    %v969 = vld [vmem:[%s3 + $0x108] sm:$0xff]
    %v970 = vld [vmem:[%s3 + $0x110] sm:$0xff]
    %v971 = vld [vmem:[%s3 + $0x118] sm:$0xff]
    %v972 = vld [vmem:[%s3 + $0x120] sm:$0xff]
    %v973 = vld [vmem:[%s3 + $0x128] sm:$0xff]
    %v974 = vld [vmem:[%s3 + $0x130] sm:$0xff]
    %v975 = vld [vmem:[%s3 + $0x138] sm:$0xff]
    %v976 = vld [vmem:[%s3 + $0x140] sm:$0xff]
    %v977 = vld [vmem:[%s3 + $0x148] sm:$0xff]
    %v978 = vld [vmem:[%s3 + $0x150] sm:$0xff]
    %v979 = vld [vmem:[%s3 + $0x158] sm:$0xff]
    %v980 = vld [vmem:[%s3 + $0x160] sm:$0xff]
    %v981 = vld [vmem:[%s3 + $0x168] sm:$0xff]
    %v982 = vld [vmem:[%s3 + $0x170] sm:$0xff]
    %v983 = vld [vmem:[%s3 + $0x178] sm:$0xff]
    %v984 = vld [vmem:[%s3 + $0x180] sm:$0xff]
    %v985 = vld [vmem:[%s3 + $0x188] sm:$0xff]
    %v986 = vld [vmem:[%s3 + $0x190] sm:$0xff]
    %v987 = vld [vmem:[%s3 + $0x198] sm:$0xff]
    %v988 = vld [vmem:[%s3 + $0x1a0] sm:$0xff]
    %v989 = vld [vmem:[%s3 + $0x1a8] sm:$0xff]
    %v990 = vld [vmem:[%s3 + $0x1b0] sm:$0xff]
    %v991 = vld [vmem:[%s3 + $0x1b8] sm:$0xff]
    %v992 = vld [vmem:[%s3 + $0x1c0] sm:$0xff]
    %v993 = vld [vmem:[%s3 + $0x1c8] sm:$0xff]
    %v994 = vld [vmem:[%s3 + $0x1d0] sm:$0xff]
    %v995 = vld [vmem:[%s3 + $0x1d8] sm:$0xff]
    %v996 = vld [vmem:[%s3 + $0x1e0] sm:$0xff]
    %v997 = vld [vmem:[%s3 + $0x1e8] sm:$0xff]
    %v998 = vld [vmem:[%s3 + $0x1f0] sm:$0xff]
    %v999 = vld [vmem:[%s3 + $0x1f8] sm:$0xff]
    %v1000 = vld [vmem:[%s3 + $0x200] sm:$0xff]
    %v1001 = vld [vmem:[%s3 + $0x208] sm:$0xff]
    %v1002 = vld [vmem:[%s3 + $0x210] sm:$0xff]
    %v1003 = vld [vmem:[%s3 + $0x218] sm:$0xff]
    %v1004 = vld [vmem:[%s3 + $0x220] sm:$0xff]
    %v1005 = vld [vmem:[%s3 + $0x228] sm:$0xff]
    %v1006 = vld [vmem:[%s3 + $0x230] sm:$0xff]
    %v1007 = vld [vmem:[%s3 + $0x238] sm:$0xff]
    %v1008 = vld [vmem:[%s3 + $0x240] sm:$0xff]
    %v1009 = vld [vmem:[%s3 + $0x248] sm:$0xff]
    %v1010 = vld [vmem:[%s3 + $0x250] sm:$0xff]
    %v1011 = vld [vmem:[%s3 + $0x258] sm:$0xff]
    %v1012 = vld [vmem:[%s3 + $0x260] sm:$0xff]
    %v1013 = vld [vmem:[%s3 + $0x268] sm:$0xff]
    %v1014 = vld [vmem:[%s3 + $0x270] sm:$0xff]
    %v1015 = vld [vmem:[%s3 + $0x278] sm:$0xff]
    %v1016 = vld [vmem:[%s3 + $0x280] sm:$0xff]
    %v1017 = vld [vmem:[%s3 + $0x288] sm:$0xff]
    %v1018 = vld [vmem:[%s3 + $0x290] sm:$0xff]
    %v1019 = vld [vmem:[%s3 + $0x298] sm:$0xff]
    %v1020 = vld [vmem:[%s3 + $0x2a0] sm:$0xff]
    %v1021 = vld [vmem:[%s3 + $0x2a8] sm:$0xff]
    %v1022 = vld [vmem:[%s3 + $0x2b0] sm:$0xff]
    %v1023 = vld [vmem:[%s3 + $0x2b8] sm:$0xff]
    %v1024 = vld [vmem:[%s3 + $0x2c0] sm:$0xff]
    %v1025 = vld [vmem:[%s3 + $0x2c8] sm:$0xff]
    %v1026 = vld [vmem:[%s3 + $0x2d0] sm:$0xff]
    %v1027 = vld [vmem:[%s3 + $0x2d8] sm:$0xff]
    %v1028 = vld [vmem:[%s3 + $0x2e0] sm:$0xff]
    %v1029 = vld [vmem:[%s3 + $0x2e8] sm:$0xff]
    %v1030 = vld [vmem:[%s3 + $0x2f0] sm:$0xff]
    %v1031 = vld [vmem:[%s3 + $0x2f8] sm:$0xff]
    %v1032 = vunpack.c.h.b16 %v816
    %v1033 = vunpack.c.h.b16 %v817
    %v1034 = vunpack.c.h.b16 %v818
    %v1035 = vunpack.c.h.b16 %v819
    %v1036 = vunpack.c.h.b16 %v820
    %v1037 = vunpack.c.h.b16 %v821
    %v1038 = vunpack.c.h.b16 %v822
    %v1039 = vunpack.c.h.b16 %v823
    %v1040 = vunpack.c.h.b16 %v824
    %v1041 = vunpack.c.h.b16 %v825
    %v1042 = vunpack.c.h.b16 %v826
    %v1043 = vunpack.c.h.b16 %v827
    %v1044 = vunpack.c.h.b16 %v828
    %v1045 = vunpack.c.h.b16 %v829
    %v1046 = vunpack.c.h.b16 %v830
    %v1047 = vunpack.c.h.b16 %v831
    %v1048 = vunpack.c.h.b16 %v832
    %v1049 = vunpack.c.h.b16 %v833
    %v1050 = vunpack.c.h.b16 %v834
    %v1051 = vunpack.c.h.b16 %v835
    %v1052 = vunpack.c.h.b16 %v836
    %v1053 = vunpack.c.h.b16 %v837
    %v1054 = vunpack.c.h.b16 %v838
    %v1055 = vunpack.c.h.b16 %v839
    %v1056 = vunpack.c.h.b16 %v840
    %v1057 = vunpack.c.h.b16 %v841
    %v1058 = vunpack.c.h.b16 %v842
    %v1059 = vunpack.c.h.b16 %v843
    %v1060 = vunpack.c.h.b16 %v844
    %v1061 = vunpack.c.h.b16 %v845
    %v1062 = vunpack.c.h.b16 %v846
    %v1063 = vunpack.c.h.b16 %v847
    %v1064 = vunpack.c.h.b16 %v848
    %v1065 = vunpack.c.h.b16 %v849
    %v1066 = vunpack.c.h.b16 %v850
    %v1067 = vunpack.c.h.b16 %v851
    %v1068 = vunpack.c.h.b16 %v852
    %v1069 = vunpack.c.h.b16 %v853
    %v1070 = vunpack.c.h.b16 %v854
    %v1071 = vunpack.c.h.b16 %v855
    %v1072 = vpack.c.b16 %v897, %v896
    %v1073 = vpack.c.b16 %v899, %v898
    %v1074 = vpack.c.b16 %v901, %v900
    %v1075 = vpack.c.b16 %v1033, %v1032
    %v1076 = vpack.c.b16 %v1035, %v1034
    %v1077 = vpack.c.b16 %v1037, %v1036
    %v1078 = vpack.c.b16 %v903, %v902
    %v1079 = vpack.c.b16 %v1039, %v1038
    %v1080 = vpack.c.b16 %v905, %v904
    %v1081 = vpack.c.b16 %v1041, %v1040
    %v1082 = vpack.c.b16 %v907, %v906
    %v1083 = vpack.c.b16 %v1043, %v1042
    %v1084 = vpack.c.b16 %v909, %v908
    %v1085 = vpack.c.b16 %v1045, %v1044
    %v1086 = vpack.c.b16 %v911, %v910
    %v1087 = vpack.c.b16 %v1047, %v1046
    %v1088 = vpack.c.b16 %v913, %v912
    %v1089 = vpack.c.b16 %v1049, %v1048
    %v1090 = vpack.c.b16 %v915, %v914
    %v1091 = vpack.c.b16 %v1051, %v1050
    %v1092 = vpack.c.b16 %v917, %v916
    %v1093 = vpack.c.b16 %v919, %v918
    %v1094 = vpack.c.b16 %v921, %v920
    %v1095 = vpack.c.b16 %v1053, %v1052
    %v1096 = vpack.c.b16 %v1055, %v1054
    %v1097 = vpack.c.b16 %v1057, %v1056
    %v1098 = vpack.c.b16 %v923, %v922
    %v1099 = vpack.c.b16 %v1059, %v1058
    %v1100 = vpack.c.b16 %v925, %v924
    %v1101 = vpack.c.b16 %v1061, %v1060
    %v1102 = vpack.c.b16 %v927, %v926
    %v1103 = vpack.c.b16 %v1063, %v1062
    %v1104 = vpack.c.b16 %v929, %v928
    %v1105 = vpack.c.b16 %v1065, %v1064
    %v1106 = vpack.c.b16 %v931, %v930
    %v1107 = vpack.c.b16 %v1067, %v1066
    %v1108 = vpack.c.b16 %v933, %v932
    %v1109 = vpack.c.b16 %v1069, %v1068
    %v1110 = vpack.c.b16 %v935, %v934
    %v1111 = vpack.c.b16 %v1071, %v1070
    %vm1112 = vsmask.f32 3328
    %vm1113 = vsmask.f32 7440
    %vm1114 = vmor %vm1112, %vm1113
    %v1116 = vshrl.u32 %v1072, 16
    %v1118 = vrot.slane %v1116, 4
    %v1119 = vshll.u32 %v1072, 16
    %v1121 = vrot.slane %v1119, 5
    %v1122 = vor.u32 %v1118, %v1121
    %v1123 = vrot.slane %v1122, 4
    %v1125 = vshll.u32 %v1075, 16
    %v1127 = vrot.slane %v1125, 5
    %v1128 = vsel %vm1114, %v1123, %v1127
    %v1130 = vshrl.u32 %v1073, 16
    %v1132 = vrot.slane %v1130, 4
    %v1133 = vshll.u32 %v1073, 16
    %v1135 = vrot.slane %v1133, 5
    %v1136 = vor.u32 %v1132, %v1135
    %v1137 = vrot.slane %v1136, 4
    %v1139 = vshll.u32 %v1076, 16
    %v1141 = vrot.slane %v1139, 5
    %v1142 = vsel %vm1114, %v1137, %v1141
    %v1144 = vshrl.u32 %v1074, 16
    %v1146 = vrot.slane %v1144, 4
    %v1147 = vshll.u32 %v1074, 16
    %v1149 = vrot.slane %v1147, 5
    %v1150 = vor.u32 %v1146, %v1149
    %v1151 = vrot.slane %v1150, 4
    %v1153 = vshll.u32 %v1077, 16
    %v1155 = vrot.slane %v1153, 5
    %v1156 = vsel %vm1114, %v1151, %v1155
    %v1158 = vshrl.u32 %v1078, 16
    %v1160 = vrot.slane %v1158, 4
    %v1161 = vshll.u32 %v1078, 16
    %v1163 = vrot.slane %v1161, 5
    %v1164 = vor.u32 %v1160, %v1163
    %v1165 = vrot.slane %v1164, 4
    %v1167 = vshll.u32 %v1079, 16
    %v1169 = vrot.slane %v1167, 5
    %v1170 = vsel %vm1114, %v1165, %v1169
    %v1172 = vshrl.u32 %v1080, 16
    %v1174 = vrot.slane %v1172, 4
    %v1175 = vshll.u32 %v1080, 16
    %v1177 = vrot.slane %v1175, 5
    %v1178 = vor.u32 %v1174, %v1177
    %v1179 = vrot.slane %v1178, 4
    %v1181 = vshll.u32 %v1081, 16
    %v1183 = vrot.slane %v1181, 5
    %v1184 = vsel %vm1114, %v1179, %v1183
    %v1186 = vshrl.u32 %v1082, 16
    %v1188 = vrot.slane %v1186, 4
    %v1189 = vshll.u32 %v1082, 16
    %v1191 = vrot.slane %v1189, 5
    %v1192 = vor.u32 %v1188, %v1191
    %v1193 = vrot.slane %v1192, 4
    %v1195 = vshll.u32 %v1083, 16
    %v1197 = vrot.slane %v1195, 5
    %v1198 = vsel %vm1114, %v1193, %v1197
    %v1200 = vshrl.u32 %v1084, 16
    %v1202 = vrot.slane %v1200, 4
    %v1203 = vshll.u32 %v1084, 16
    %v1205 = vrot.slane %v1203, 5
    %v1206 = vor.u32 %v1202, %v1205
    %v1207 = vrot.slane %v1206, 4
    %v1209 = vshll.u32 %v1085, 16
    %v1211 = vrot.slane %v1209, 5
    %v1212 = vsel %vm1114, %v1207, %v1211
    %v1214 = vshrl.u32 %v1086, 16
    %v1216 = vrot.slane %v1214, 4
    %v1217 = vshll.u32 %v1086, 16
    %v1219 = vrot.slane %v1217, 5
    %v1220 = vor.u32 %v1216, %v1219
    %v1221 = vrot.slane %v1220, 4
    %v1223 = vshll.u32 %v1087, 16
    %v1225 = vrot.slane %v1223, 5
    %v1226 = vsel %vm1114, %v1221, %v1225
    %v1228 = vshrl.u32 %v1088, 16
    %v1230 = vrot.slane %v1228, 4
    %v1231 = vshll.u32 %v1088, 16
    %v1233 = vrot.slane %v1231, 5
    %v1234 = vor.u32 %v1230, %v1233
    %v1235 = vrot.slane %v1234, 4
    %v1237 = vshll.u32 %v1089, 16
    %v1239 = vrot.slane %v1237, 5
    %v1240 = vsel %vm1114, %v1235, %v1239
    %v1242 = vshrl.u32 %v1090, 16
    %v1244 = vrot.slane %v1242, 4
    %v1245 = vshll.u32 %v1090, 16
    %v1247 = vrot.slane %v1245, 5
    %v1248 = vor.u32 %v1244, %v1247
    %v1249 = vrot.slane %v1248, 4
    %v1251 = vshll.u32 %v1091, 16
    %v1253 = vrot.slane %v1251, 5
    %v1254 = vsel %vm1114, %v1249, %v1253
    %v1256 = vshrl.u32 %v1092, 16
    %v1258 = vrot.slane %v1256, 4
    %v1259 = vshll.u32 %v1092, 16
    %v1261 = vrot.slane %v1259, 5
    %v1262 = vor.u32 %v1258, %v1261
    %v1263 = vrot.slane %v1262, 4
    %v1265 = vshll.u32 %v1095, 16
    %v1267 = vrot.slane %v1265, 5
    %v1268 = vsel %vm1114, %v1263, %v1267
    %v1270 = vshrl.u32 %v1093, 16
    %v1272 = vrot.slane %v1270, 4
    %v1273 = vshll.u32 %v1093, 16
    %v1275 = vrot.slane %v1273, 5
    %v1276 = vor.u32 %v1272, %v1275
    %v1277 = vrot.slane %v1276, 4
    %v1279 = vshll.u32 %v1096, 16
    %v1281 = vrot.slane %v1279, 5
    %v1282 = vsel %vm1114, %v1277, %v1281
    %v1284 = vshrl.u32 %v1094, 16
    %v1286 = vrot.slane %v1284, 4
    %v1287 = vshll.u32 %v1094, 16
    %v1289 = vrot.slane %v1287, 5
    %v1290 = vor.u32 %v1286, %v1289
    %v1291 = vrot.slane %v1290, 4
    %v1293 = vshll.u32 %v1097, 16
    %v1295 = vrot.slane %v1293, 5
    %v1296 = vsel %vm1114, %v1291, %v1295
    %v1298 = vshrl.u32 %v1098, 16
    %v1300 = vrot.slane %v1298, 4
    %v1301 = vshll.u32 %v1098, 16
    %v1303 = vrot.slane %v1301, 5
    %v1304 = vor.u32 %v1300, %v1303
    %v1305 = vrot.slane %v1304, 4
    %v1307 = vshll.u32 %v1099, 16
    %v1309 = vrot.slane %v1307, 5
    %v1310 = vsel %vm1114, %v1305, %v1309
    %v1312 = vshrl.u32 %v1100, 16
    %v1314 = vrot.slane %v1312, 4
    %v1315 = vshll.u32 %v1100, 16
    %v1317 = vrot.slane %v1315, 5
    %v1318 = vor.u32 %v1314, %v1317
    %v1319 = vrot.slane %v1318, 4
    %v1321 = vshll.u32 %v1101, 16
    %v1323 = vrot.slane %v1321, 5
    %v1324 = vsel %vm1114, %v1319, %v1323
    %v1326 = vshrl.u32 %v1102, 16
    %v1328 = vrot.slane %v1326, 4
    %v1329 = vshll.u32 %v1102, 16
    %v1331 = vrot.slane %v1329, 5
    %v1332 = vor.u32 %v1328, %v1331
    %v1333 = vrot.slane %v1332, 4
    %v1335 = vshll.u32 %v1103, 16
    %v1337 = vrot.slane %v1335, 5
    %v1338 = vsel %vm1114, %v1333, %v1337
    %v1340 = vshrl.u32 %v1104, 16
    %v1342 = vrot.slane %v1340, 4
    %v1343 = vshll.u32 %v1104, 16
    %v1345 = vrot.slane %v1343, 5
    %v1346 = vor.u32 %v1342, %v1345
    %v1347 = vrot.slane %v1346, 4
    %v1349 = vshll.u32 %v1105, 16
    %v1351 = vrot.slane %v1349, 5
    %v1352 = vsel %vm1114, %v1347, %v1351
    %v1354 = vshrl.u32 %v1106, 16
    %v1356 = vrot.slane %v1354, 4
    %v1357 = vshll.u32 %v1106, 16
    %v1359 = vrot.slane %v1357, 5
    %v1360 = vor.u32 %v1356, %v1359
    %v1361 = vrot.slane %v1360, 4
    %v1363 = vshll.u32 %v1107, 16
    %v1365 = vrot.slane %v1363, 5
    %v1366 = vsel %vm1114, %v1361, %v1365
    %v1368 = vshrl.u32 %v1108, 16
    %v1370 = vrot.slane %v1368, 4
    %v1371 = vshll.u32 %v1108, 16
    %v1373 = vrot.slane %v1371, 5
    %v1374 = vor.u32 %v1370, %v1373
    %v1375 = vrot.slane %v1374, 4
    %v1377 = vshll.u32 %v1109, 16
    %v1379 = vrot.slane %v1377, 5
    %v1380 = vsel %vm1114, %v1375, %v1379
    %v1382 = vshrl.u32 %v1110, 16
    %v1384 = vrot.slane %v1382, 4
    %v1385 = vshll.u32 %v1110, 16
    %v1387 = vrot.slane %v1385, 5
    %v1388 = vor.u32 %v1384, %v1387
    %v1389 = vrot.slane %v1388, 4
    %v1391 = vshll.u32 %v1111, 16
    %v1393 = vrot.slane %v1391, 5
    %v1394 = vsel %vm1114, %v1389, %v1393
    %s1395 = scalar_lea.vmem %s3, 768
    %v1396 = vld [vmem:[%s1395] sm:$0xff]
    %v1397 = vld [vmem:[%s1395 + $0x8] sm:$0xff]
    %v1398 = vld [vmem:[%s1395 + $0x10] sm:$0xff]
    %v1399 = vld [vmem:[%s1395 + $0x18] sm:$0xff]
    %v1400 = vld [vmem:[%s1395 + $0x20] sm:$0xff]
    %v1401 = vld [vmem:[%s1395 + $0x28] sm:$0xff]
    %v1402 = vld [vmem:[%s1395 + $0x30] sm:$0xff]
    %v1403 = vld [vmem:[%s1395 + $0x38] sm:$0xff]
    %v1404 = vld [vmem:[%s1395 + $0x40] sm:$0xff]
    %v1405 = vld [vmem:[%s1395 + $0x48] sm:$0xff]
    %v1406 = vld [vmem:[%s1395 + $0x50] sm:$0xff]
    %v1407 = vld [vmem:[%s1395 + $0x58] sm:$0xff]
    %v1408 = vld [vmem:[%s1395 + $0x60] sm:$0xff]
    %v1409 = vld [vmem:[%s1395 + $0x68] sm:$0xff]
    %v1410 = vld [vmem:[%s1395 + $0x70] sm:$0xff]
    %v1411 = vld [vmem:[%s1395 + $0x78] sm:$0xff]
    %v1412 = vld [vmem:[%s1395 + $0x80] sm:$0xff]
    %v1413 = vld [vmem:[%s1395 + $0x88] sm:$0xff]
    %v1414 = vld [vmem:[%s1395 + $0x90] sm:$0xff]
    %v1415 = vld [vmem:[%s1395 + $0x98] sm:$0xff]
    %v1416 = vld [vmem:[%s1395 + $0xa0] sm:$0xff]
    %v1417 = vld [vmem:[%s1395 + $0xa8] sm:$0xff]
    %v1418 = vld [vmem:[%s1395 + $0xb0] sm:$0xff]
    %v1419 = vld [vmem:[%s1395 + $0xb8] sm:$0xff]
    %v1420 = vld [vmem:[%s1395 + $0xc0] sm:$0xff]
    %v1421 = vld [vmem:[%s1395 + $0xc8] sm:$0xff]
    %v1422 = vld [vmem:[%s1395 + $0xd0] sm:$0xff]
    %v1423 = vld [vmem:[%s1395 + $0xd8] sm:$0xff]
    %v1424 = vld [vmem:[%s1395 + $0xe0] sm:$0xff]
    %v1425 = vld [vmem:[%s1395 + $0xe8] sm:$0xff]
    %v1426 = vld [vmem:[%s1395 + $0xf0] sm:$0xff]
    %v1427 = vld [vmem:[%s1395 + $0xf8] sm:$0xff]
    %v1428 = vld [vmem:[%s1395 + $0x100] sm:$0xff]
    %v1429 = vld [vmem:[%s1395 + $0x108] sm:$0xff]
    %v1430 = vld [vmem:[%s1395 + $0x110] sm:$0xff]
    %v1431 = vld [vmem:[%s1395 + $0x118] sm:$0xff]
    %v1432 = vld [vmem:[%s1395 + $0x120] sm:$0xff]
    %v1433 = vld [vmem:[%s1395 + $0x128] sm:$0xff]
    %v1434 = vld [vmem:[%s1395 + $0x130] sm:$0xff]
    %v1435 = vld [vmem:[%s1395 + $0x138] sm:$0xff]
    %v1436 = vld [vmem:[%s1395 + $0x140] sm:$0xff]
    %v1437 = vld [vmem:[%s1395 + $0x148] sm:$0xff]
    %v1438 = vld [vmem:[%s1395 + $0x150] sm:$0xff]
    %v1439 = vld [vmem:[%s1395 + $0x158] sm:$0xff]
    %v1440 = vld [vmem:[%s1395 + $0x160] sm:$0xff]
    %v1441 = vld [vmem:[%s1395 + $0x168] sm:$0xff]
    %v1442 = vld [vmem:[%s1395 + $0x170] sm:$0xff]
    %v1443 = vld [vmem:[%s1395 + $0x178] sm:$0xff]
    %v1444 = vld [vmem:[%s1395 + $0x180] sm:$0xff]
    %v1445 = vld [vmem:[%s1395 + $0x188] sm:$0xff]
    %v1446 = vld [vmem:[%s1395 + $0x190] sm:$0xff]
    %v1447 = vld [vmem:[%s1395 + $0x198] sm:$0xff]
    %v1448 = vld [vmem:[%s1395 + $0x1a0] sm:$0xff]
    %v1449 = vld [vmem:[%s1395 + $0x1a8] sm:$0xff]
    %v1450 = vld [vmem:[%s1395 + $0x1b0] sm:$0xff]
    %v1451 = vld [vmem:[%s1395 + $0x1b8] sm:$0xff]
    %v1452 = vld [vmem:[%s1395 + $0x1c0] sm:$0xff]
    %v1453 = vld [vmem:[%s1395 + $0x1c8] sm:$0xff]
    %v1454 = vld [vmem:[%s1395 + $0x1d0] sm:$0xff]
    %v1455 = vld [vmem:[%s1395 + $0x1d8] sm:$0xff]
    %v1456 = vld [vmem:[%s1395 + $0x1e0] sm:$0xff]
    %v1457 = vld [vmem:[%s1395 + $0x1e8] sm:$0xff]
    %v1458 = vld [vmem:[%s1395 + $0x1f0] sm:$0xff]
    %v1459 = vld [vmem:[%s1395 + $0x1f8] sm:$0xff]
    %v1460 = vld [vmem:[%s1395 + $0x200] sm:$0xff]
    %v1461 = vld [vmem:[%s1395 + $0x208] sm:$0xff]
    %v1462 = vld [vmem:[%s1395 + $0x210] sm:$0xff]
    %v1463 = vld [vmem:[%s1395 + $0x218] sm:$0xff]
    %v1464 = vld [vmem:[%s1395 + $0x220] sm:$0xff]
    %v1465 = vld [vmem:[%s1395 + $0x228] sm:$0xff]
    %v1466 = vld [vmem:[%s1395 + $0x230] sm:$0xff]
    %v1467 = vld [vmem:[%s1395 + $0x238] sm:$0xff]
    %v1468 = vld [vmem:[%s1395 + $0x240] sm:$0xff]
    %v1469 = vld [vmem:[%s1395 + $0x248] sm:$0xff]
    %v1470 = vld [vmem:[%s1395 + $0x250] sm:$0xff]
    %v1471 = vld [vmem:[%s1395 + $0x258] sm:$0xff]
    %v1472 = vld [vmem:[%s1395 + $0x260] sm:$0xff]
    %v1473 = vld [vmem:[%s1395 + $0x268] sm:$0xff]
    %v1474 = vld [vmem:[%s1395 + $0x270] sm:$0xff]
    %v1475 = vld [vmem:[%s1395 + $0x278] sm:$0xff]
    %v1476 = vld [vmem:[%s1395 + $0x280] sm:$0xff]
    %v1477 = vld [vmem:[%s1395 + $0x288] sm:$0xff]
    %v1478 = vld [vmem:[%s1395 + $0x290] sm:$0xff]
    %v1479 = vld [vmem:[%s1395 + $0x298] sm:$0xff]
    %v1480 = vld [vmem:[%s1395 + $0x2a0] sm:$0xff]
    %v1481 = vld [vmem:[%s1395 + $0x2a8] sm:$0xff]
    %v1482 = vld [vmem:[%s1395 + $0x2b0] sm:$0xff]
    %v1483 = vld [vmem:[%s1395 + $0x2b8] sm:$0xff]
    %v1484 = vld [vmem:[%s1395 + $0x2c0] sm:$0xff]
    %v1485 = vld [vmem:[%s1395 + $0x2c8] sm:$0xff]
    %v1486 = vld [vmem:[%s1395 + $0x2d0] sm:$0xff]
    %v1487 = vld [vmem:[%s1395 + $0x2d8] sm:$0xff]
    %v1488 = vld [vmem:[%s1395 + $0x2e0] sm:$0xff]
    %v1489 = vld [vmem:[%s1395 + $0x2e8] sm:$0xff]
    %v1490 = vld [vmem:[%s1395 + $0x2f0] sm:$0xff]
    %v1491 = vld [vmem:[%s1395 + $0x2f8] sm:$0xff]
    %v1492 = vunpack.c.l.b16 %v1128
    %v1493 = vunpack.c.h.b16 %v1128
    %v1494 = vunpack.c.l.b16 %v1142
    %v1495 = vunpack.c.h.b16 %v1142
    %v1496 = vunpack.c.l.b16 %v1156
    %v1497 = vunpack.c.h.b16 %v1156
    %v1498 = vunpack.c.l.b16 %v1170
    %v1499 = vunpack.c.h.b16 %v1170
    %v1500 = vunpack.c.l.b16 %v1184
    %v1501 = vunpack.c.h.b16 %v1184
    %v1502 = vunpack.c.l.b16 %v1198
    %v1503 = vunpack.c.h.b16 %v1198
    %v1504 = vunpack.c.l.b16 %v1212
    %v1505 = vunpack.c.h.b16 %v1212
    %v1506 = vunpack.c.l.b16 %v1226
    %v1507 = vunpack.c.h.b16 %v1226
    %v1508 = vunpack.c.l.b16 %v1240
    %v1509 = vunpack.c.h.b16 %v1240
    %v1510 = vunpack.c.l.b16 %v1254
    %v1511 = vunpack.c.h.b16 %v1254
    %v1512 = vunpack.c.l.b16 %v1268
    %v1513 = vunpack.c.h.b16 %v1268
    %v1514 = vunpack.c.l.b16 %v1282
    %v1515 = vunpack.c.h.b16 %v1282
    %v1516 = vunpack.c.l.b16 %v1296
    %v1517 = vunpack.c.h.b16 %v1296
    %v1518 = vunpack.c.l.b16 %v1310
    %v1519 = vunpack.c.h.b16 %v1310
    %v1520 = vunpack.c.l.b16 %v1324
    %v1521 = vunpack.c.h.b16 %v1324
    %v1522 = vunpack.c.l.b16 %v1338
    %v1523 = vunpack.c.h.b16 %v1338
    %v1524 = vunpack.c.l.b16 %v1352
    %v1525 = vunpack.c.h.b16 %v1352
    %v1526 = vunpack.c.l.b16 %v1366
    %v1527 = vunpack.c.h.b16 %v1366
    %v1528 = vunpack.c.l.b16 %v1380
    %v1529 = vunpack.c.h.b16 %v1380
    %v1530 = vunpack.c.l.b16 %v1394
    %v1531 = vunpack.c.h.b16 %v1394
    %v1532 = vpack.c.b16 %v1494, %v1492
    %v1533 = vpack.c.b16 %v1495, %v1493
    %v1534 = vpack.c.b16 %v1496, %v1494
    %v1535 = vpack.c.b16 %v1497, %v1495
    %v1536 = vpack.c.b16 %v1498, %v1496
    %v1537 = vpack.c.b16 %v1499, %v1497
    %v1538 = vpack.c.b16 %v1500, %v1498
    %v1539 = vpack.c.b16 %v1501, %v1499
    %v1540 = vpack.c.b16 %v1502, %v1500
    %v1541 = vpack.c.b16 %v1503, %v1501
    %v1542 = vpack.c.b16 %v1504, %v1502
    %v1543 = vpack.c.b16 %v1505, %v1503
    %v1544 = vpack.c.b16 %v1506, %v1504
    %v1545 = vpack.c.b16 %v1507, %v1505
    %v1546 = vpack.c.b16 %v1508, %v1506
    %v1547 = vpack.c.b16 %v1509, %v1507
    %v1548 = vpack.c.b16 %v1510, %v1508
    %v1549 = vpack.c.b16 %v1511, %v1509
    %v1550 = vpack.c.b16 %v1514, %v1512
    %v1551 = vpack.c.b16 %v1515, %v1513
    %v1552 = vpack.c.b16 %v1516, %v1514
    %v1553 = vpack.c.b16 %v1517, %v1515
    %v1554 = vpack.c.b16 %v1518, %v1516
    %v1555 = vpack.c.b16 %v1519, %v1517
    %v1556 = vpack.c.b16 %v1520, %v1518
    %v1557 = vpack.c.b16 %v1521, %v1519
    %v1558 = vpack.c.b16 %v1522, %v1520
    %v1559 = vpack.c.b16 %v1523, %v1521
    %v1560 = vpack.c.b16 %v1524, %v1522
    %v1561 = vpack.c.b16 %v1525, %v1523
    %v1562 = vpack.c.b16 %v1526, %v1524
    %v1563 = vpack.c.b16 %v1527, %v1525
    %v1564 = vpack.c.b16 %v1528, %v1526
    %v1565 = vpack.c.b16 %v1529, %v1527
    %v1566 = vpack.c.b16 %v1530, %v1528
    %v1567 = vpack.c.b16 %v1531, %v1529
    %v1700 = vunpack.c.l.b16 %v1396
    %v1701 = vunpack.c.h.b16 %v1396
    %v1702 = vunpack.c.l.b16 %v1397
    %v1703 = vunpack.c.h.b16 %v1397
    %v1704 = vunpack.c.l.b16 %v1398
    %v1705 = vunpack.c.h.b16 %v1398
    %v1706 = vunpack.c.l.b16 %v1399
    %v1707 = vunpack.c.h.b16 %v1399
    %v1708 = vunpack.c.l.b16 %v1400
    %v1709 = vunpack.c.h.b16 %v1400
    %v1710 = vunpack.c.l.b16 %v1401
    %v1711 = vunpack.c.h.b16 %v1401
    %v1712 = vunpack.c.l.b16 %v1402
    %v1713 = vunpack.c.h.b16 %v1402
    %v1714 = vunpack.c.l.b16 %v1403
    %v1715 = vunpack.c.h.b16 %v1403
    %v1716 = vunpack.c.l.b16 %v1404
    %v1717 = vunpack.c.h.b16 %v1404
    %v1718 = vunpack.c.l.b16 %v1405
    %v1719 = vunpack.c.h.b16 %v1405
    %v1720 = vunpack.c.l.b16 %v1406
    %v1721 = vunpack.c.h.b16 %v1406
    %v1722 = vunpack.c.l.b16 %v1407
    %v1723 = vunpack.c.h.b16 %v1407
    %v1724 = vunpack.c.l.b16 %v1408
    %v1725 = vunpack.c.h.b16 %v1408
    %v1726 = vunpack.c.l.b16 %v1409
    %v1727 = vunpack.c.h.b16 %v1409
    %v1728 = vunpack.c.l.b16 %v1410
    %v1729 = vunpack.c.h.b16 %v1410
    %v1730 = vunpack.c.l.b16 %v1411
    %v1731 = vunpack.c.h.b16 %v1411
    %v1732 = vunpack.c.l.b16 %v1412
    %v1733 = vunpack.c.h.b16 %v1412
    %v1734 = vunpack.c.l.b16 %v1413
    %v1735 = vunpack.c.h.b16 %v1413
    %v1736 = vunpack.c.l.b16 %v1414
    %v1737 = vunpack.c.h.b16 %v1414
    %v1738 = vunpack.c.l.b16 %v1415
    %v1739 = vunpack.c.h.b16 %v1415
    %v1740 = vunpack.c.l.b16 %v1416
    %v1741 = vunpack.c.h.b16 %v1416
    %v1742 = vunpack.c.l.b16 %v1417
    %v1743 = vunpack.c.h.b16 %v1417
    %v1744 = vunpack.c.l.b16 %v1418
    %v1745 = vunpack.c.h.b16 %v1418
    %v1746 = vunpack.c.l.b16 %v1419
    %v1747 = vunpack.c.h.b16 %v1419
    %v1748 = vunpack.c.l.b16 %v1420
    %v1749 = vunpack.c.h.b16 %v1420
    %v1750 = vunpack.c.l.b16 %v1421
    %v1751 = vunpack.c.h.b16 %v1421
    %v1752 = vunpack.c.l.b16 %v1422
    %v1753 = vunpack.c.h.b16 %v1422
    %v1754 = vunpack.c.l.b16 %v1423
    %v1755 = vunpack.c.h.b16 %v1423
    %v1756 = vunpack.c.l.b16 %v1424
    %v1757 = vunpack.c.h.b16 %v1424
    %v1758 = vunpack.c.l.b16 %v1425
    %v1759 = vunpack.c.h.b16 %v1425
    %v1760 = vunpack.c.l.b16 %v1426
    %v1761 = vunpack.c.h.b16 %v1426
    %v1762 = vunpack.c.l.b16 %v1427
    %v1763 = vunpack.c.h.b16 %v1427
    %v1764 = vunpack.c.l.b16 %v1428
    %v1765 = vunpack.c.h.b16 %v1428
    %v1766 = vunpack.c.l.b16 %v1429
    %v1767 = vunpack.c.h.b16 %v1429
    %v1768 = vunpack.c.l.b16 %v1430
    %v1769 = vunpack.c.h.b16 %v1430
    %v1770 = vunpack.c.l.b16 %v1431
    %v1771 = vunpack.c.h.b16 %v1431
    %v1772 = vunpack.c.l.b16 %v1432
    %v1773 = vunpack.c.h.b16 %v1432
    %v1774 = vunpack.c.l.b16 %v1433
    %v1775 = vunpack.c.h.b16 %v1433
    %v1776 = vunpack.c.l.b16 %v1434
    %v1777 = vunpack.c.h.b16 %v1434
    %v1778 = vunpack.c.l.b16 %v1435
    %v1779 = vunpack.c.h.b16 %v1435
    %v1780 = vunpack.c.l.b16 %v1436
    %v1781 = vunpack.c.h.b16 %v1436
    %v1782 = vunpack.c.l.b16 %v1437
    %v1783 = vunpack.c.h.b16 %v1437
    %v1784 = vunpack.c.l.b16 %v1438
    %v1785 = vunpack.c.h.b16 %v1438
    %v1786 = vunpack.c.l.b16 %v1439
    %v1787 = vunpack.c.h.b16 %v1439
    %v1788 = vunpack.c.l.b16 %v1440
    %v1789 = vunpack.c.h.b16 %v1440
    %v1790 = vunpack.c.l.b16 %v1441
    %v1791 = vunpack.c.h.b16 %v1441
    %v1792 = vunpack.c.l.b16 %v1442
    %v1793 = vunpack.c.h.b16 %v1442
    %v1794 = vunpack.c.l.b16 %v1443
    %v1795 = vunpack.c.h.b16 %v1443
    %v1796 = vunpack.c.l.b16 %v1444
    %v1797 = vunpack.c.h.b16 %v1444
    %v1798 = vunpack.c.l.b16 %v1445
    %v1799 = vunpack.c.h.b16 %v1445
    %v1800 = vunpack.c.l.b16 %v1446
    %v1801 = vunpack.c.h.b16 %v1446
    %v1802 = vunpack.c.l.b16 %v1447
    %v1803 = vunpack.c.h.b16 %v1447
    %v1804 = vunpack.c.l.b16 %v1448
    %v1805 = vunpack.c.h.b16 %v1448
    %v1806 = vunpack.c.l.b16 %v1449
    %v1807 = vunpack.c.h.b16 %v1449
    %v1808 = vunpack.c.l.b16 %v1450
    %v1809 = vunpack.c.h.b16 %v1450
    %v1810 = vunpack.c.l.b16 %v1451
    %v1811 = vunpack.c.h.b16 %v1451
    %v1812 = vunpack.c.l.b16 %v1452
    %v1813 = vunpack.c.h.b16 %v1452
    %v1814 = vunpack.c.l.b16 %v1453
    %v1815 = vunpack.c.h.b16 %v1453
    %v1816 = vunpack.c.l.b16 %v1454
    %v1817 = vunpack.c.h.b16 %v1454
    %v1818 = vunpack.c.l.b16 %v1455
    %v1819 = vunpack.c.h.b16 %v1455
    %v1820 = vunpack.c.l.b16 %v1456
    %v1821 = vunpack.c.h.b16 %v1456
    %v1822 = vunpack.c.l.b16 %v1457
    %v1823 = vunpack.c.h.b16 %v1457
    %v1824 = vunpack.c.l.b16 %v1458
    %v1825 = vunpack.c.h.b16 %v1458
    %v1826 = vunpack.c.l.b16 %v1459
    %v1827 = vunpack.c.h.b16 %v1459
    %v1828 = vunpack.c.l.b16 %v1460
    %v1829 = vunpack.c.h.b16 %v1460
    %v1830 = vunpack.c.l.b16 %v1461
    %v1831 = vunpack.c.h.b16 %v1461
    %v1832 = vunpack.c.l.b16 %v1462
    %v1833 = vunpack.c.h.b16 %v1462
    %v1834 = vunpack.c.l.b16 %v1463
    %v1835 = vunpack.c.h.b16 %v1463
    %v1836 = vunpack.c.l.b16 %v1464
    %v1837 = vunpack.c.h.b16 %v1464
    %v1838 = vunpack.c.l.b16 %v1465
    %v1839 = vunpack.c.h.b16 %v1465
    %v1840 = vunpack.c.l.b16 %v1466
    %v1841 = vunpack.c.h.b16 %v1466
    %v1842 = vunpack.c.l.b16 %v1467
    %v1843 = vunpack.c.h.b16 %v1467
    %v1844 = vunpack.c.l.b16 %v1468
    %v1845 = vunpack.c.h.b16 %v1468
    %v1846 = vunpack.c.l.b16 %v1469
    %v1847 = vunpack.c.h.b16 %v1469
    %v1848 = vunpack.c.l.b16 %v1470
    %v1849 = vunpack.c.h.b16 %v1470
    %v1850 = vunpack.c.l.b16 %v1471
    %v1851 = vunpack.c.h.b16 %v1471
    %v1852 = vunpack.c.l.b16 %v1472
    %v1853 = vunpack.c.h.b16 %v1472
    %v1854 = vunpack.c.l.b16 %v1473
    %v1855 = vunpack.c.h.b16 %v1473
    %v1856 = vunpack.c.l.b16 %v1474
    %v1857 = vunpack.c.h.b16 %v1474
    %v1858 = vunpack.c.l.b16 %v1475
    %v1859 = vunpack.c.h.b16 %v1475
    %v1860 = vunpack.c.l.b16 %v1476
    %v1861 = vunpack.c.h.b16 %v1476
    %v1862 = vunpack.c.l.b16 %v1477
    %v1863 = vunpack.c.h.b16 %v1477
    %v1864 = vunpack.c.l.b16 %v1478
    %v1865 = vunpack.c.h.b16 %v1478
    %v1866 = vunpack.c.l.b16 %v1479
    %v1867 = vunpack.c.h.b16 %v1479
    %v1868 = vunpack.c.l.b16 %v1480
    %v1869 = vunpack.c.h.b16 %v1480
    %v1870 = vunpack.c.l.b16 %v1481
    %v1871 = vunpack.c.h.b16 %v1481
    %v1872 = vunpack.c.l.b16 %v1482
    %v1873 = vunpack.c.h.b16 %v1482
    %v1874 = vunpack.c.l.b16 %v1483
    %v1875 = vunpack.c.h.b16 %v1483
    %v1876 = vunpack.c.l.b16 %v1484
    %v1877 = vunpack.c.h.b16 %v1484
    %v1878 = vunpack.c.l.b16 %v1485
    %v1879 = vunpack.c.h.b16 %v1485
    %v1880 = vunpack.c.l.b16 %v1486
    %v1881 = vunpack.c.h.b16 %v1486
    %v1882 = vunpack.c.l.b16 %v1487
    %v1883 = vunpack.c.h.b16 %v1487
    %v1884 = vunpack.c.l.b16 %v1488
    %v1885 = vunpack.c.h.b16 %v1488
    %v1886 = vunpack.c.l.b16 %v1489
    %v1887 = vunpack.c.h.b16 %v1489
    %v1888 = vunpack.c.l.b16 %v1490
    %v1889 = vunpack.c.h.b16 %v1490
    %v1890 = vunpack.c.l.b16 %v1491
    %v1891 = vunpack.c.h.b16 %v1491
    %v1892 = vpack.c.b16 %v1702, %v1700
    %v1893 = vpack.c.b16 %v1703, %v1701
    %v1894 = vpack.c.b16 %v1706, %v1704
    %v1895 = vpack.c.b16 %v1707, %v1705
    %v1896 = vpack.c.b16 %v1710, %v1708
    %v1897 = vpack.c.b16 %v1711, %v1709
    %v1898 = vpack.c.b16 %v1714, %v1712
    %v1899 = vpack.c.b16 %v1715, %v1713
    %v1900 = vpack.c.b16 %v1718, %v1716
    %v1901 = vpack.c.b16 %v1719, %v1717
    %v1902 = vpack.c.b16 %v1722, %v1720
    %v1903 = vpack.c.b16 %v1723, %v1721
    %v1904 = vpack.c.b16 %v1726, %v1724
    %v1905 = vpack.c.b16 %v1727, %v1725
    %v1906 = vpack.c.b16 %v1730, %v1728
    %v1907 = vpack.c.b16 %v1731, %v1729
    %v1908 = vpack.c.b16 %v1734, %v1732
    %v1909 = vpack.c.b16 %v1735, %v1733
    %v1910 = vpack.c.b16 %v1738, %v1736
    %v1911 = vpack.c.b16 %v1739, %v1737
    %v1912 = vpack.c.b16 %v1742, %v1740
    %v1913 = vpack.c.b16 %v1743, %v1741
    %v1914 = vpack.c.b16 %v1746, %v1744
    %v1915 = vpack.c.b16 %v1747, %v1745
    %v1916 = vpack.c.b16 %v1750, %v1748
    %v1917 = vpack.c.b16 %v1751, %v1749
    %v1918 = vpack.c.b16 %v1754, %v1752
    %v1919 = vpack.c.b16 %v1755, %v1753
    %v1920 = vpack.c.b16 %v1758, %v1756
    %v1921 = vpack.c.b16 %v1759, %v1757
    %v1922 = vpack.c.b16 %v1762, %v1760
    %v1923 = vpack.c.b16 %v1763, %v1761
    %v1924 = vpack.c.b16 %v1766, %v1764
    %v1925 = vpack.c.b16 %v1767, %v1765
    %v1926 = vpack.c.b16 %v1770, %v1768
    %v1927 = vpack.c.b16 %v1771, %v1769
    %v1928 = vpack.c.b16 %v1774, %v1772
    %v1929 = vpack.c.b16 %v1775, %v1773
    %v1930 = vpack.c.b16 %v1778, %v1776
    %v1931 = vpack.c.b16 %v1779, %v1777
    %v1932 = vpack.c.b16 %v1782, %v1780
    %v1933 = vpack.c.b16 %v1783, %v1781
    %v1934 = vpack.c.b16 %v1786, %v1784
    %v1935 = vpack.c.b16 %v1787, %v1785
    %v1936 = vpack.c.b16 %v1790, %v1788
    %v1937 = vpack.c.b16 %v1791, %v1789
    %v1938 = vpack.c.b16 %v1794, %v1792
    %v1939 = vpack.c.b16 %v1795, %v1793
    %v1940 = vpack.c.b16 %v1798, %v1796
    %v1941 = vpack.c.b16 %v1799, %v1797
    %v1942 = vpack.c.b16 %v1802, %v1800
    %v1943 = vpack.c.b16 %v1803, %v1801
    %v1944 = vpack.c.b16 %v1806, %v1804
    %v1945 = vpack.c.b16 %v1807, %v1805
    %v1946 = vpack.c.b16 %v1810, %v1808
    %v1947 = vpack.c.b16 %v1811, %v1809
    %v1948 = vpack.c.b16 %v1814, %v1812
    %v1949 = vpack.c.b16 %v1815, %v1813
    %v1950 = vpack.c.b16 %v1818, %v1816
    %v1951 = vpack.c.b16 %v1819, %v1817
    %v1952 = vpack.c.b16 %v1822, %v1820
    %v1953 = vpack.c.b16 %v1823, %v1821
    %v1954 = vpack.c.b16 %v1826, %v1824
    %v1955 = vpack.c.b16 %v1827, %v1825
    %v1956 = vpack.c.b16 %v1830, %v1828
    %v1957 = vpack.c.b16 %v1831, %v1829
    %v1958 = vpack.c.b16 %v1834, %v1832
    %v1959 = vpack.c.b16 %v1835, %v1833
    %v1960 = vpack.c.b16 %v1838, %v1836
    %v1961 = vpack.c.b16 %v1839, %v1837
    %v1962 = vpack.c.b16 %v1842, %v1840
    %v1963 = vpack.c.b16 %v1843, %v1841
    %v1964 = vpack.c.b16 %v1846, %v1844
    %v1965 = vpack.c.b16 %v1847, %v1845
    %v1966 = vpack.c.b16 %v1850, %v1848
    %v1967 = vpack.c.b16 %v1851, %v1849
    %v1968 = vpack.c.b16 %v1854, %v1852
    %v1969 = vpack.c.b16 %v1855, %v1853
    %v1970 = vpack.c.b16 %v1858, %v1856
    %v1971 = vpack.c.b16 %v1859, %v1857
    %v1972 = vpack.c.b16 %v1862, %v1860
    %v1973 = vpack.c.b16 %v1863, %v1861
    %v1974 = vpack.c.b16 %v1866, %v1864
    %v1975 = vpack.c.b16 %v1867, %v1865
    %v1976 = vpack.c.b16 %v1870, %v1868
    %v1977 = vpack.c.b16 %v1871, %v1869
    %v1978 = vpack.c.b16 %v1874, %v1872
    %v1979 = vpack.c.b16 %v1875, %v1873
    %v1980 = vpack.c.b16 %v1878, %v1876
    %v1981 = vpack.c.b16 %v1879, %v1877
    %v1982 = vpack.c.b16 %v1882, %v1880
    %v1983 = vpack.c.b16 %v1883, %v1881
    %v1984 = vpack.c.b16 %v1886, %v1884
    %v1985 = vpack.c.b16 %v1887, %v1885
    %v1986 = vpack.c.b16 %v1890, %v1888
    %v1987 = vpack.c.b16 %v1891, %v1889
    %2084 = vmatpush.bf16.msra.mxu0 %v1906
    %2085 = vmatpush.bf16.msra.mxu0 %v1904
    %2086 = vmatpush.bf16.msra.mxu0 %v1902
    %2087 = vmatpush.bf16.msra.mxu0 %v1900
    %2088 = vmatpush.bf16.msra.mxu0 %v1898
    %2089 = vmatpush.bf16.msra.mxu0 %v1896
    %2090 = vmatpush.bf16.msra.mxu0 %v1894
    %2091 = vmatpush.bf16.msra.mxu0 %v1892
    %2092 = vmatmul.bf16.gmra.mxu0 %v1532
    %v2093 = vpop.f32.mrf.mxu0
    %v2094 = vadd.f32 0.0, %v2093
    %v2095 = vpop.f32.mrf.mxu0
    %v2096 = vadd.f32 0.0, %v2095
    %2097 = vmatmul.bf16.gmra.mxu0 %v1536
    %v2098 = vpop.f32.mrf.mxu0
    %v2099 = vadd.f32 0.0, %v2098
    %v2100 = vpop.f32.mrf.mxu0
    %v2101 = vadd.f32 0.0, %v2100
    %2102 = vmatmul.bf16.gmra.mxu0 %v1540
    %v2103 = vpop.f32.mrf.mxu0
    %v2104 = vadd.f32 0.0, %v2103
    %v2105 = vpop.f32.mrf.mxu0
    %v2106 = vadd.f32 0.0, %v2105
    %2107 = vmatmul.bf16.gmra.mxu0 %v1544
    %v2108 = vpop.f32.mrf.mxu0
    %v2109 = vadd.f32 0.0, %v2108
    %v2110 = vpop.f32.mrf.mxu0
    %v2111 = vadd.f32 0.0, %v2110
    %2112 = vmatmul.bf16.gmra.mxu0 %v1550
    %v2113 = vpop.f32.mrf.mxu0
    %v2114 = vadd.f32 0.0, %v2113
    %v2115 = vpop.f32.mrf.mxu0
    %v2116 = vadd.f32 0.0, %v2115
    %2117 = vmatmul.bf16.gmra.mxu0 %v1554
    %v2118 = vpop.f32.mrf.mxu0
    %v2119 = vadd.f32 0.0, %v2118
    %v2120 = vpop.f32.mrf.mxu0
    %v2121 = vadd.f32 0.0, %v2120
    %2122 = vmatmul.bf16.gmra.mxu0 %v1558
    %v2123 = vpop.f32.mrf.mxu0
    %v2124 = vadd.f32 0.0, %v2123
    %v2125 = vpop.f32.mrf.mxu0
    %v2126 = vadd.f32 0.0, %v2125
    %2127 = vmatmul.bf16.gmra.mxu0 %v1562
    %v2128 = vpop.f32.mrf.mxu0
    %v2129 = vadd.f32 0.0, %v2128
    %v2130 = vpop.f32.mrf.mxu0
    %v2131 = vadd.f32 0.0, %v2130
    %2132 = vdwg.mxu0
    %2133 = vmatpush.bf16.msra.mxu0 %v1922
    %2134 = vmatpush.bf16.msra.mxu0 %v1920
    %2135 = vmatpush.bf16.msra.mxu0 %v1918
    %2136 = vmatpush.bf16.msra.mxu0 %v1916
    %2137 = vmatpush.bf16.msra.mxu0 %v1914
    %2138 = vmatpush.bf16.msra.mxu0 %v1912
    %2139 = vmatpush.bf16.msra.mxu0 %v1910
    %2140 = vmatpush.bf16.msra.mxu0 %v1908
    %2141 = vmatmul.bf16.gmra.mxu0 %v1533
    %v2142 = vpop.f32.mrf.mxu0
    %v2143 = vadd.f32 %v2094, %v2142
    %v2144 = vpop.f32.mrf.mxu0
    %v2145 = vadd.f32 %v2096, %v2144
    %2146 = vmatmul.bf16.gmra.mxu0 %v1537
    %v2147 = vpop.f32.mrf.mxu0
    %v2148 = vadd.f32 %v2099, %v2147
    %v2149 = vpop.f32.mrf.mxu0
    %v2150 = vadd.f32 %v2101, %v2149
    %2151 = vmatmul.bf16.gmra.mxu0 %v1541
    %v2152 = vpop.f32.mrf.mxu0
    %v2153 = vadd.f32 %v2104, %v2152
    %v2154 = vpop.f32.mrf.mxu0
    %v2155 = vadd.f32 %v2106, %v2154
    %2156 = vmatmul.bf16.gmra.mxu0 %v1545
    %v2157 = vpop.f32.mrf.mxu0
    %v2158 = vadd.f32 %v2109, %v2157
    %v2159 = vpop.f32.mrf.mxu0
    %v2160 = vadd.f32 %v2111, %v2159
    %2161 = vmatmul.bf16.gmra.mxu0 %v1551
    %v2162 = vpop.f32.mrf.mxu0
    %v2163 = vadd.f32 %v2114, %v2162
    %v2164 = vpop.f32.mrf.mxu0
    %v2165 = vadd.f32 %v2116, %v2164
    %2166 = vmatmul.bf16.gmra.mxu0 %v1555
    %v2167 = vpop.f32.mrf.mxu0
    %v2168 = vadd.f32 %v2119, %v2167
    %v2169 = vpop.f32.mrf.mxu0
    %v2170 = vadd.f32 %v2121, %v2169
    %2171 = vmatmul.bf16.gmra.mxu0 %v1559
    %v2172 = vpop.f32.mrf.mxu0
    %v2173 = vadd.f32 %v2124, %v2172
    %v2174 = vpop.f32.mrf.mxu0
    %v2175 = vadd.f32 %v2126, %v2174
    %2176 = vmatmul.bf16.gmra.mxu0 %v1563
    %v2177 = vpop.f32.mrf.mxu0
    %v2178 = vadd.f32 %v2129, %v2177
    %v2179 = vpop.f32.mrf.mxu0
    %v2180 = vadd.f32 %v2131, %v2179
    %2181 = vdwg.mxu0
    %2182 = vmatpush.bf16.msra.mxu0 %v1938
    %2183 = vmatpush.bf16.msra.mxu0 %v1936
    %2184 = vmatpush.bf16.msra.mxu0 %v1934
    %2185 = vmatpush.bf16.msra.mxu0 %v1932
    %2186 = vmatpush.bf16.msra.mxu0 %v1930
    %2187 = vmatpush.bf16.msra.mxu0 %v1928
    %2188 = vmatpush.bf16.msra.mxu0 %v1926
    %2189 = vmatpush.bf16.msra.mxu0 %v1924
    %2190 = vmatmul.bf16.gmra.mxu0 %v1534
    %v2191 = vpop.f32.mrf.mxu0
    %v2192 = vadd.f32 %v2143, %v2191
    %v2193 = vpop.f32.mrf.mxu0
    %v2194 = vadd.f32 %v2145, %v2193
    %2195 = vmatmul.bf16.gmra.mxu0 %v1538
    %v2196 = vpop.f32.mrf.mxu0
    %v2197 = vadd.f32 %v2148, %v2196
    %v2198 = vpop.f32.mrf.mxu0
    %v2199 = vadd.f32 %v2150, %v2198
    %2200 = vmatmul.bf16.gmra.mxu0 %v1542
    %v2201 = vpop.f32.mrf.mxu0
    %v2202 = vadd.f32 %v2153, %v2201
    %v2203 = vpop.f32.mrf.mxu0
    %v2204 = vadd.f32 %v2155, %v2203
    %2205 = vmatmul.bf16.gmra.mxu0 %v1546
    %v2206 = vpop.f32.mrf.mxu0
    %v2207 = vadd.f32 %v2158, %v2206
    %v2208 = vpop.f32.mrf.mxu0
    %v2209 = vadd.f32 %v2160, %v2208
    %2210 = vmatmul.bf16.gmra.mxu0 %v1552
    %v2211 = vpop.f32.mrf.mxu0
    %v2212 = vadd.f32 %v2163, %v2211
    %v2213 = vpop.f32.mrf.mxu0
    %v2214 = vadd.f32 %v2165, %v2213
    %2215 = vmatmul.bf16.gmra.mxu0 %v1556
    %v2216 = vpop.f32.mrf.mxu0
    %v2217 = vadd.f32 %v2168, %v2216
    %v2218 = vpop.f32.mrf.mxu0
    %v2219 = vadd.f32 %v2170, %v2218
    %2220 = vmatmul.bf16.gmra.mxu0 %v1560
    %v2221 = vpop.f32.mrf.mxu0
    %v2222 = vadd.f32 %v2173, %v2221
    %v2223 = vpop.f32.mrf.mxu0
    %v2224 = vadd.f32 %v2175, %v2223
    %2225 = vmatmul.bf16.gmra.mxu0 %v1564
    %v2226 = vpop.f32.mrf.mxu0
    %v2227 = vadd.f32 %v2178, %v2226
    %v2228 = vpop.f32.mrf.mxu0
    %v2229 = vadd.f32 %v2180, %v2228
    %2230 = vdwg.mxu0
    %2231 = vmatpush.bf16.msra.mxu0 %v1954
    %2232 = vmatpush.bf16.msra.mxu0 %v1952
    %2233 = vmatpush.bf16.msra.mxu0 %v1950
    %2234 = vmatpush.bf16.msra.mxu0 %v1948
    %2235 = vmatpush.bf16.msra.mxu0 %v1946
    %2236 = vmatpush.bf16.msra.mxu0 %v1944
    %2237 = vmatpush.bf16.msra.mxu0 %v1942
    %2238 = vmatpush.bf16.msra.mxu0 %v1940
    %2239 = vmatmul.bf16.gmra.mxu0 %v1535
    %v2240 = vpop.f32.mrf.mxu0
    %v2241 = vadd.f32 %v2192, %v2240
    %v2242 = vpop.f32.mrf.mxu0
    %v2243 = vadd.f32 %v2194, %v2242
    %2244 = vmatmul.bf16.gmra.mxu0 %v1539
    %v2245 = vpop.f32.mrf.mxu0
    %v2246 = vadd.f32 %v2197, %v2245
    %v2247 = vpop.f32.mrf.mxu0
    %v2248 = vadd.f32 %v2199, %v2247
    %2249 = vmatmul.bf16.gmra.mxu0 %v1543
    %v2250 = vpop.f32.mrf.mxu0
    %v2251 = vadd.f32 %v2202, %v2250
    %v2252 = vpop.f32.mrf.mxu0
    %v2253 = vadd.f32 %v2204, %v2252
    %2254 = vmatmul.bf16.gmra.mxu0 %v1547
    %v2255 = vpop.f32.mrf.mxu0
    %v2256 = vadd.f32 %v2207, %v2255
    %v2257 = vpop.f32.mrf.mxu0
    %v2258 = vadd.f32 %v2209, %v2257
    %2259 = vmatmul.bf16.gmra.mxu0 %v1553
    %v2260 = vpop.f32.mrf.mxu0
    %v2261 = vadd.f32 %v2212, %v2260
    %v2262 = vpop.f32.mrf.mxu0
    %v2263 = vadd.f32 %v2214, %v2262
    %2264 = vmatmul.bf16.gmra.mxu0 %v1557
    %v2265 = vpop.f32.mrf.mxu0
    %v2266 = vadd.f32 %v2217, %v2265
    %v2267 = vpop.f32.mrf.mxu0
    %v2268 = vadd.f32 %v2219, %v2267
    %2269 = vmatmul.bf16.gmra.mxu0 %v1561
    %v2270 = vpop.f32.mrf.mxu0
    %v2271 = vadd.f32 %v2222, %v2270
    %v2272 = vpop.f32.mrf.mxu0
    %v2273 = vadd.f32 %v2224, %v2272
    %2274 = vmatmul.bf16.gmra.mxu0 %v1565
    %v2275 = vpop.f32.mrf.mxu0
    %v2276 = vadd.f32 %v2227, %v2275
    %v2277 = vpop.f32.mrf.mxu0
    %v2278 = vadd.f32 %v2229, %v2277
    %2279 = vdwg.mxu0
    %2280 = vmatpush.bf16.msra.mxu0 %v1970
    %2281 = vmatpush.bf16.msra.mxu0 %v1968
    %2282 = vmatpush.bf16.msra.mxu0 %v1966
    %2283 = vmatpush.bf16.msra.mxu0 %v1964
    %2284 = vmatpush.bf16.msra.mxu0 %v1962
    %2285 = vmatpush.bf16.msra.mxu0 %v1960
    %2286 = vmatpush.bf16.msra.mxu0 %v1958
    %2287 = vmatpush.bf16.msra.mxu0 %v1956
    %2288 = vmatmul.bf16.gmra.mxu0 %v1536
    %v2289 = vpop.f32.mrf.mxu0
    %v2290 = vadd.f32 %v2241, %v2289
    %v2291 = vpop.f32.mrf.mxu0
    %v2292 = vadd.f32 %v2243, %v2291
    %2293 = vmatmul.bf16.gmra.mxu0 %v1540
    %v2294 = vpop.f32.mrf.mxu0
    %v2295 = vadd.f32 %v2246, %v2294
    %v2296 = vpop.f32.mrf.mxu0
    %v2297 = vadd.f32 %v2248, %v2296
    %2298 = vmatmul.bf16.gmra.mxu0 %v1544
    %v2299 = vpop.f32.mrf.mxu0
    %v2300 = vadd.f32 %v2251, %v2299
    %v2301 = vpop.f32.mrf.mxu0
    %v2302 = vadd.f32 %v2253, %v2301
    %2303 = vmatmul.bf16.gmra.mxu0 %v1548
    %v2304 = vpop.f32.mrf.mxu0
    %v2305 = vadd.f32 %v2256, %v2304
    %v2306 = vpop.f32.mrf.mxu0
    %v2307 = vadd.f32 %v2258, %v2306
    %2308 = vmatmul.bf16.gmra.mxu0 %v1554
    %v2309 = vpop.f32.mrf.mxu0
    %v2310 = vadd.f32 %v2261, %v2309
    %v2311 = vpop.f32.mrf.mxu0
    %v2312 = vadd.f32 %v2263, %v2311
    %2313 = vmatmul.bf16.gmra.mxu0 %v1558
    %v2314 = vpop.f32.mrf.mxu0
    %v2315 = vadd.f32 %v2266, %v2314
    %v2316 = vpop.f32.mrf.mxu0
    %v2317 = vadd.f32 %v2268, %v2316
    %2318 = vmatmul.bf16.gmra.mxu0 %v1562
    %v2319 = vpop.f32.mrf.mxu0
    %v2320 = vadd.f32 %v2271, %v2319
    %v2321 = vpop.f32.mrf.mxu0
    %v2322 = vadd.f32 %v2273, %v2321
    %2323 = vmatmul.bf16.gmra.mxu0 %v1566
    %v2324 = vpop.f32.mrf.mxu0
    %v2325 = vadd.f32 %v2276, %v2324
    %v2326 = vpop.f32.mrf.mxu0
    %v2327 = vadd.f32 %v2278, %v2326
    %2328 = vdwg.mxu0
    %2329 = vmatpush.bf16.msra.mxu0 %v1986
    %2330 = vmatpush.bf16.msra.mxu0 %v1984
    %2331 = vmatpush.bf16.msra.mxu0 %v1982
    %2332 = vmatpush.bf16.msra.mxu0 %v1980
    %2333 = vmatpush.bf16.msra.mxu0 %v1978
    %2334 = vmatpush.bf16.msra.mxu0 %v1976
    %2335 = vmatpush.bf16.msra.mxu0 %v1974
    %2336 = vmatpush.bf16.msra.mxu0 %v1972
    %2337 = vmatmul.bf16.gmra.mxu0 %v1537
    %v2338 = vpop.f32.mrf.mxu0
    %v2339 = vadd.f32 %v2290, %v2338
    %v2340 = vpop.f32.mrf.mxu0
    %v2341 = vadd.f32 %v2292, %v2340
    %2342 = vmatmul.bf16.gmra.mxu0 %v1541
    %v2343 = vpop.f32.mrf.mxu0
    %v2344 = vadd.f32 %v2295, %v2343
    %v2345 = vpop.f32.mrf.mxu0
    %v2346 = vadd.f32 %v2297, %v2345
    %2347 = vmatmul.bf16.gmra.mxu0 %v1545
    %v2348 = vpop.f32.mrf.mxu0
    %v2349 = vadd.f32 %v2300, %v2348
    %v2350 = vpop.f32.mrf.mxu0
    %v2351 = vadd.f32 %v2302, %v2350
    %2352 = vmatmul.bf16.gmra.mxu0 %v1549
    %v2353 = vpop.f32.mrf.mxu0
    %v2354 = vadd.f32 %v2305, %v2353
    %v2355 = vpop.f32.mrf.mxu0
    %v2356 = vadd.f32 %v2307, %v2355
    %2357 = vmatmul.bf16.gmra.mxu0 %v1555
    %v2358 = vpop.f32.mrf.mxu0
    %v2359 = vadd.f32 %v2310, %v2358
    %v2360 = vpop.f32.mrf.mxu0
    %v2361 = vadd.f32 %v2312, %v2360
    %2362 = vmatmul.bf16.gmra.mxu0 %v1559
    %v2363 = vpop.f32.mrf.mxu0
    %v2364 = vadd.f32 %v2315, %v2363
    %v2365 = vpop.f32.mrf.mxu0
    %v2366 = vadd.f32 %v2317, %v2365
    %2367 = vmatmul.bf16.gmra.mxu0 %v1563
    %v2368 = vpop.f32.mrf.mxu0
    %v2369 = vadd.f32 %v2320, %v2368
    %v2370 = vpop.f32.mrf.mxu0
    %v2371 = vadd.f32 %v2322, %v2370
    %2372 = vmatmul.bf16.gmra.mxu0 %v1567
    %v2373 = vpop.f32.mrf.mxu0
    %v2374 = vadd.f32 %v2325, %v2373
    %v2375 = vpop.f32.mrf.mxu0
    %v2376 = vadd.f32 %v2327, %v2375
    %2377 = vdwg.mxu0
    %2378 = vmatpush.bf16.msra.mxu0 %v1907
    %2379 = vmatpush.bf16.msra.mxu0 %v1905
    %2380 = vmatpush.bf16.msra.mxu0 %v1903
    %2381 = vmatpush.bf16.msra.mxu0 %v1901
    %2382 = vmatpush.bf16.msra.mxu0 %v1899
    %2383 = vmatpush.bf16.msra.mxu0 %v1897
    %2384 = vmatpush.bf16.msra.mxu0 %v1895
    %2385 = vmatpush.bf16.msra.mxu0 %v1893
    %2386 = vmatmul.bf16.gmra.mxu0 %v1532
    %v2387 = vpop.f32.mrf.mxu0
    %v2388 = vadd.f32 0.0, %v2387
    %v2389 = vpop.f32.mrf.mxu0
    %v2390 = vadd.f32 0.0, %v2389
    %2391 = vmatmul.bf16.gmra.mxu0 %v1536
    %v2392 = vpop.f32.mrf.mxu0
    %v2393 = vadd.f32 0.0, %v2392
    %v2394 = vpop.f32.mrf.mxu0
    %v2395 = vadd.f32 0.0, %v2394
    %2396 = vmatmul.bf16.gmra.mxu0 %v1540
    %v2397 = vpop.f32.mrf.mxu0
    %v2398 = vadd.f32 0.0, %v2397
    %v2399 = vpop.f32.mrf.mxu0
    %v2400 = vadd.f32 0.0, %v2399
    %2401 = vmatmul.bf16.gmra.mxu0 %v1544
    %v2402 = vpop.f32.mrf.mxu0
    %v2403 = vadd.f32 0.0, %v2402
    %v2404 = vpop.f32.mrf.mxu0
    %v2405 = vadd.f32 0.0, %v2404
    %2406 = vmatmul.bf16.gmra.mxu0 %v1550
    %v2407 = vpop.f32.mrf.mxu0
    %v2408 = vadd.f32 0.0, %v2407
    %v2409 = vpop.f32.mrf.mxu0
    %v2410 = vadd.f32 0.0, %v2409
    %2411 = vmatmul.bf16.gmra.mxu0 %v1554
    %v2412 = vpop.f32.mrf.mxu0
    %v2413 = vadd.f32 0.0, %v2412
    %v2414 = vpop.f32.mrf.mxu0
    %v2415 = vadd.f32 0.0, %v2414
    %2416 = vmatmul.bf16.gmra.mxu0 %v1558
    %v2417 = vpop.f32.mrf.mxu0
    %v2418 = vadd.f32 0.0, %v2417
    %v2419 = vpop.f32.mrf.mxu0
    %v2420 = vadd.f32 0.0, %v2419
    %2421 = vmatmul.bf16.gmra.mxu0 %v1562
    %v2422 = vpop.f32.mrf.mxu0
    %v2423 = vadd.f32 0.0, %v2422
    %v2424 = vpop.f32.mrf.mxu0
    %v2425 = vadd.f32 0.0, %v2424
    %2426 = vdwg.mxu0
    %2427 = vmatpush.bf16.msra.mxu0 %v1923
    %2428 = vmatpush.bf16.msra.mxu0 %v1921
    %2429 = vmatpush.bf16.msra.mxu0 %v1919
    %2430 = vmatpush.bf16.msra.mxu0 %v1917
    %2431 = vmatpush.bf16.msra.mxu0 %v1915
    %2432 = vmatpush.bf16.msra.mxu0 %v1913
    %2433 = vmatpush.bf16.msra.mxu0 %v1911
    %2434 = vmatpush.bf16.msra.mxu0 %v1909
    %2435 = vmatmul.bf16.gmra.mxu0 %v1533
    %v2436 = vpop.f32.mrf.mxu0
    %v2437 = vadd.f32 %v2388, %v2436
    %v2438 = vpop.f32.mrf.mxu0
    %v2439 = vadd.f32 %v2390, %v2438
    %2440 = vmatmul.bf16.gmra.mxu0 %v1537
    %v2441 = vpop.f32.mrf.mxu0
    %v2442 = vadd.f32 %v2393, %v2441
    %v2443 = vpop.f32.mrf.mxu0
    %v2444 = vadd.f32 %v2395, %v2443
    %2445 = vmatmul.bf16.gmra.mxu0 %v1541
    %v2446 = vpop.f32.mrf.mxu0
    %v2447 = vadd.f32 %v2398, %v2446
    %v2448 = vpop.f32.mrf.mxu0
    %v2449 = vadd.f32 %v2400, %v2448
    %2450 = vmatmul.bf16.gmra.mxu0 %v1545
    %v2451 = vpop.f32.mrf.mxu0
    %v2452 = vadd.f32 %v2403, %v2451
    %v2453 = vpop.f32.mrf.mxu0
    %v2454 = vadd.f32 %v2405, %v2453
    %2455 = vmatmul.bf16.gmra.mxu0 %v1551
    %v2456 = vpop.f32.mrf.mxu0
    %v2457 = vadd.f32 %v2408, %v2456
    %v2458 = vpop.f32.mrf.mxu0
    %v2459 = vadd.f32 %v2410, %v2458
    %2460 = vmatmul.bf16.gmra.mxu0 %v1555
    %v2461 = vpop.f32.mrf.mxu0
    %v2462 = vadd.f32 %v2413, %v2461
    %v2463 = vpop.f32.mrf.mxu0
    %v2464 = vadd.f32 %v2415, %v2463
    %2465 = vmatmul.bf16.gmra.mxu0 %v1559
    %v2466 = vpop.f32.mrf.mxu0
    %v2467 = vadd.f32 %v2418, %v2466
    %v2468 = vpop.f32.mrf.mxu0
    %v2469 = vadd.f32 %v2420, %v2468
    %2470 = vmatmul.bf16.gmra.mxu0 %v1563
    %v2471 = vpop.f32.mrf.mxu0
    %v2472 = vadd.f32 %v2423, %v2471
    %v2473 = vpop.f32.mrf.mxu0
    %v2474 = vadd.f32 %v2425, %v2473
    %2475 = vdwg.mxu0
    %2476 = vmatpush.bf16.msra.mxu0 %v1939
    %2477 = vmatpush.bf16.msra.mxu0 %v1937
    %2478 = vmatpush.bf16.msra.mxu0 %v1935
    %2479 = vmatpush.bf16.msra.mxu0 %v1933
    %2480 = vmatpush.bf16.msra.mxu0 %v1931
    %2481 = vmatpush.bf16.msra.mxu0 %v1929
    %2482 = vmatpush.bf16.msra.mxu0 %v1927
    %2483 = vmatpush.bf16.msra.mxu0 %v1925
    %2484 = vmatmul.bf16.gmra.mxu0 %v1534
    %v2485 = vpop.f32.mrf.mxu0
    %v2486 = vadd.f32 %v2437, %v2485
    %v2487 = vpop.f32.mrf.mxu0
    %v2488 = vadd.f32 %v2439, %v2487
    %2489 = vmatmul.bf16.gmra.mxu0 %v1538
    %v2490 = vpop.f32.mrf.mxu0
    %v2491 = vadd.f32 %v2442, %v2490
    %v2492 = vpop.f32.mrf.mxu0
    %v2493 = vadd.f32 %v2444, %v2492
    %2494 = vmatmul.bf16.gmra.mxu0 %v1542
    %v2495 = vpop.f32.mrf.mxu0
    %v2496 = vadd.f32 %v2447, %v2495
    %v2497 = vpop.f32.mrf.mxu0
    %v2498 = vadd.f32 %v2449, %v2497
    %2499 = vmatmul.bf16.gmra.mxu0 %v1546
    %v2500 = vpop.f32.mrf.mxu0
    %v2501 = vadd.f32 %v2452, %v2500
    %v2502 = vpop.f32.mrf.mxu0
    %v2503 = vadd.f32 %v2454, %v2502
    %2504 = vmatmul.bf16.gmra.mxu0 %v1552
    %v2505 = vpop.f32.mrf.mxu0
    %v2506 = vadd.f32 %v2457, %v2505
    %v2507 = vpop.f32.mrf.mxu0
    %v2508 = vadd.f32 %v2459, %v2507
    %2509 = vmatmul.bf16.gmra.mxu0 %v1556
    %v2510 = vpop.f32.mrf.mxu0
    %v2511 = vadd.f32 %v2462, %v2510
    %v2512 = vpop.f32.mrf.mxu0
    %v2513 = vadd.f32 %v2464, %v2512
    %2514 = vmatmul.bf16.gmra.mxu0 %v1560
    %v2515 = vpop.f32.mrf.mxu0
    %v2516 = vadd.f32 %v2467, %v2515
    %v2517 = vpop.f32.mrf.mxu0
    %v2518 = vadd.f32 %v2469, %v2517
    %2519 = vmatmul.bf16.gmra.mxu0 %v1564
    %v2520 = vpop.f32.mrf.mxu0
    %v2521 = vadd.f32 %v2472, %v2520
    %v2522 = vpop.f32.mrf.mxu0
    %v2523 = vadd.f32 %v2474, %v2522
    %2524 = vdwg.mxu0
    %2525 = vmatpush.bf16.msra.mxu0 %v1955
    %2526 = vmatpush.bf16.msra.mxu0 %v1953
    %2527 = vmatpush.bf16.msra.mxu0 %v1951
    %2528 = vmatpush.bf16.msra.mxu0 %v1949
    %2529 = vmatpush.bf16.msra.mxu0 %v1947
    %2530 = vmatpush.bf16.msra.mxu0 %v1945
    %2531 = vmatpush.bf16.msra.mxu0 %v1943
    %2532 = vmatpush.bf16.msra.mxu0 %v1941
    %2533 = vmatmul.bf16.gmra.mxu0 %v1535
    %v2534 = vpop.f32.mrf.mxu0
    %v2535 = vadd.f32 %v2486, %v2534
    %v2536 = vpop.f32.mrf.mxu0
    %v2537 = vadd.f32 %v2488, %v2536
    %2538 = vmatmul.bf16.gmra.mxu0 %v1539
    %v2539 = vpop.f32.mrf.mxu0
    %v2540 = vadd.f32 %v2491, %v2539
    %v2541 = vpop.f32.mrf.mxu0
    %v2542 = vadd.f32 %v2493, %v2541
    %2543 = vmatmul.bf16.gmra.mxu0 %v1543
    %v2544 = vpop.f32.mrf.mxu0
    %v2545 = vadd.f32 %v2496, %v2544
    %v2546 = vpop.f32.mrf.mxu0
    %v2547 = vadd.f32 %v2498, %v2546
    %2548 = vmatmul.bf16.gmra.mxu0 %v1547
    %v2549 = vpop.f32.mrf.mxu0
    %v2550 = vadd.f32 %v2501, %v2549
    %v2551 = vpop.f32.mrf.mxu0
    %v2552 = vadd.f32 %v2503, %v2551
    %2553 = vmatmul.bf16.gmra.mxu0 %v1553
    %v2554 = vpop.f32.mrf.mxu0
    %v2555 = vadd.f32 %v2506, %v2554
    %v2556 = vpop.f32.mrf.mxu0
    %v2557 = vadd.f32 %v2508, %v2556
    %2558 = vmatmul.bf16.gmra.mxu0 %v1557
    %v2559 = vpop.f32.mrf.mxu0
    %v2560 = vadd.f32 %v2511, %v2559
    %v2561 = vpop.f32.mrf.mxu0
    %v2562 = vadd.f32 %v2513, %v2561
    %2563 = vmatmul.bf16.gmra.mxu0 %v1561
    %v2564 = vpop.f32.mrf.mxu0
    %v2565 = vadd.f32 %v2516, %v2564
    %v2566 = vpop.f32.mrf.mxu0
    %v2567 = vadd.f32 %v2518, %v2566
    %2568 = vmatmul.bf16.gmra.mxu0 %v1565
    %v2569 = vpop.f32.mrf.mxu0
    %v2570 = vadd.f32 %v2521, %v2569
    %v2571 = vpop.f32.mrf.mxu0
    %v2572 = vadd.f32 %v2523, %v2571
    %2573 = vdwg.mxu0
    %2574 = vmatpush.bf16.msra.mxu0 %v1971
    %2575 = vmatpush.bf16.msra.mxu0 %v1969
    %2576 = vmatpush.bf16.msra.mxu0 %v1967
    %2577 = vmatpush.bf16.msra.mxu0 %v1965
    %2578 = vmatpush.bf16.msra.mxu0 %v1963
    %2579 = vmatpush.bf16.msra.mxu0 %v1961
    %2580 = vmatpush.bf16.msra.mxu0 %v1959
    %2581 = vmatpush.bf16.msra.mxu0 %v1957
    %2582 = vmatmul.bf16.gmra.mxu0 %v1536
    %v2583 = vpop.f32.mrf.mxu0
    %v2584 = vadd.f32 %v2535, %v2583
    %v2585 = vpop.f32.mrf.mxu0
    %v2586 = vadd.f32 %v2537, %v2585
    %2587 = vmatmul.bf16.gmra.mxu0 %v1540
    %v2588 = vpop.f32.mrf.mxu0
    %v2589 = vadd.f32 %v2540, %v2588
    %v2590 = vpop.f32.mrf.mxu0
    %v2591 = vadd.f32 %v2542, %v2590
    %2592 = vmatmul.bf16.gmra.mxu0 %v1544
    %v2593 = vpop.f32.mrf.mxu0
    %v2594 = vadd.f32 %v2545, %v2593
    %v2595 = vpop.f32.mrf.mxu0
    %v2596 = vadd.f32 %v2547, %v2595
    %2597 = vmatmul.bf16.gmra.mxu0 %v1548
    %v2598 = vpop.f32.mrf.mxu0
    %v2599 = vadd.f32 %v2550, %v2598
    %v2600 = vpop.f32.mrf.mxu0
    %v2601 = vadd.f32 %v2552, %v2600
    %2602 = vmatmul.bf16.gmra.mxu0 %v1554
    %v2603 = vpop.f32.mrf.mxu0
    %v2604 = vadd.f32 %v2555, %v2603
    %v2605 = vpop.f32.mrf.mxu0
    %v2606 = vadd.f32 %v2557, %v2605
    %2607 = vmatmul.bf16.gmra.mxu0 %v1558
    %v2608 = vpop.f32.mrf.mxu0
    %v2609 = vadd.f32 %v2560, %v2608
    %v2610 = vpop.f32.mrf.mxu0
    %v2611 = vadd.f32 %v2562, %v2610
    %2612 = vmatmul.bf16.gmra.mxu0 %v1562
    %v2613 = vpop.f32.mrf.mxu0
    %v2614 = vadd.f32 %v2565, %v2613
    %v2615 = vpop.f32.mrf.mxu0
    %v2616 = vadd.f32 %v2567, %v2615
    %2617 = vmatmul.bf16.gmra.mxu0 %v1566
    %v2618 = vpop.f32.mrf.mxu0
    %v2619 = vadd.f32 %v2570, %v2618
    %v2620 = vpop.f32.mrf.mxu0
    %v2621 = vadd.f32 %v2572, %v2620
    %2622 = vdwg.mxu0
    %2623 = vmatpush.bf16.msra.mxu0 %v1987
    %2624 = vmatpush.bf16.msra.mxu0 %v1985
    %2625 = vmatpush.bf16.msra.mxu0 %v1983
    %2626 = vmatpush.bf16.msra.mxu0 %v1981
    %2627 = vmatpush.bf16.msra.mxu0 %v1979
    %2628 = vmatpush.bf16.msra.mxu0 %v1977
    %2629 = vmatpush.bf16.msra.mxu0 %v1975
    %2630 = vmatpush.bf16.msra.mxu0 %v1973
    %2631 = vmatmul.bf16.gmra.mxu0 %v1537
    %v2632 = vpop.f32.mrf.mxu0
    %v2633 = vadd.f32 %v2584, %v2632
    %v2634 = vpop.f32.mrf.mxu0
    %v2635 = vadd.f32 %v2586, %v2634
    %2636 = vmatmul.bf16.gmra.mxu0 %v1541
    %v2637 = vpop.f32.mrf.mxu0
    %v2638 = vadd.f32 %v2589, %v2637
    %v2639 = vpop.f32.mrf.mxu0
    %v2640 = vadd.f32 %v2591, %v2639
    %2641 = vmatmul.bf16.gmra.mxu0 %v1545
    %v2642 = vpop.f32.mrf.mxu0
    %v2643 = vadd.f32 %v2594, %v2642
    %v2644 = vpop.f32.mrf.mxu0
    %v2645 = vadd.f32 %v2596, %v2644
    %2646 = vmatmul.bf16.gmra.mxu0 %v1549
    %v2647 = vpop.f32.mrf.mxu0
    %v2648 = vadd.f32 %v2599, %v2647
    %v2649 = vpop.f32.mrf.mxu0
    %v2650 = vadd.f32 %v2601, %v2649
    %2651 = vmatmul.bf16.gmra.mxu0 %v1555
    %v2652 = vpop.f32.mrf.mxu0
    %v2653 = vadd.f32 %v2604, %v2652
    %v2654 = vpop.f32.mrf.mxu0
    %v2655 = vadd.f32 %v2606, %v2654
    %2656 = vmatmul.bf16.gmra.mxu0 %v1559
    %v2657 = vpop.f32.mrf.mxu0
    %v2658 = vadd.f32 %v2609, %v2657
    %v2659 = vpop.f32.mrf.mxu0
    %v2660 = vadd.f32 %v2611, %v2659
    %2661 = vmatmul.bf16.gmra.mxu0 %v1563
    %v2662 = vpop.f32.mrf.mxu0
    %v2663 = vadd.f32 %v2614, %v2662
    %v2664 = vpop.f32.mrf.mxu0
    %v2665 = vadd.f32 %v2616, %v2664
    %2666 = vmatmul.bf16.gmra.mxu0 %v1567
    %v2667 = vpop.f32.mrf.mxu0
    %v2668 = vadd.f32 %v2619, %v2667
    %v2669 = vpop.f32.mrf.mxu0
    %v2670 = vadd.f32 %v2621, %v2669
    %2671 = vdwg.mxu0
    %v2672 = vpack.c.b16 %v898, %v896
    %v2673 = vpack.c.b16 %v899, %v897
    %v2674 = vpack.c.b16 %v900, %v898
    %v2675 = vpack.c.b16 %v901, %v899
    %v2676 = vpack.c.b16 %v902, %v900
    %v2677 = vpack.c.b16 %v903, %v901
    %v2678 = vpack.c.b16 %v904, %v902
    %v2679 = vpack.c.b16 %v905, %v903
    %v2680 = vpack.c.b16 %v906, %v904
    %v2681 = vpack.c.b16 %v907, %v905
    %v2682 = vpack.c.b16 %v908, %v906
    %v2683 = vpack.c.b16 %v909, %v907
    %v2684 = vpack.c.b16 %v910, %v908
    %v2685 = vpack.c.b16 %v911, %v909
    %v2686 = vpack.c.b16 %v912, %v910
    %v2687 = vpack.c.b16 %v913, %v911
    %v2688 = vpack.c.b16 %v914, %v912
    %v2689 = vpack.c.b16 %v915, %v913
    %v2690 = vpack.c.b16 %v918, %v916
    %v2691 = vpack.c.b16 %v919, %v917
    %v2692 = vpack.c.b16 %v920, %v918
    %v2693 = vpack.c.b16 %v921, %v919
    %v2694 = vpack.c.b16 %v922, %v920
    %v2695 = vpack.c.b16 %v923, %v921
    %v2696 = vpack.c.b16 %v924, %v922
    %v2697 = vpack.c.b16 %v925, %v923
    %v2698 = vpack.c.b16 %v926, %v924
    %v2699 = vpack.c.b16 %v927, %v925
    %v2700 = vpack.c.b16 %v928, %v926
    %v2701 = vpack.c.b16 %v929, %v927
    %v2702 = vpack.c.b16 %v930, %v928
    %v2703 = vpack.c.b16 %v931, %v929
    %v2704 = vpack.c.b16 %v932, %v930
    %v2705 = vpack.c.b16 %v933, %v931
    %v2706 = vpack.c.b16 %v934, %v932
    %v2707 = vpack.c.b16 %v935, %v933
    %v2840 = vunpack.c.l.b16 %v936
    %v2841 = vunpack.c.h.b16 %v936
    %v2842 = vunpack.c.l.b16 %v937
    %v2843 = vunpack.c.h.b16 %v937
    %v2844 = vunpack.c.l.b16 %v938
    %v2845 = vunpack.c.h.b16 %v938
    %v2846 = vunpack.c.l.b16 %v939
    %v2847 = vunpack.c.h.b16 %v939
    %v2848 = vunpack.c.l.b16 %v940
    %v2849 = vunpack.c.h.b16 %v940
    %v2850 = vunpack.c.l.b16 %v941
    %v2851 = vunpack.c.h.b16 %v941
    %v2852 = vunpack.c.l.b16 %v942
    %v2853 = vunpack.c.h.b16 %v942
    %v2854 = vunpack.c.l.b16 %v943
    %v2855 = vunpack.c.h.b16 %v943
    %v2856 = vunpack.c.l.b16 %v944
    %v2857 = vunpack.c.h.b16 %v944
    %v2858 = vunpack.c.l.b16 %v945
    %v2859 = vunpack.c.h.b16 %v945
    %v2860 = vunpack.c.l.b16 %v946
    %v2861 = vunpack.c.h.b16 %v946
    %v2862 = vunpack.c.l.b16 %v947
    %v2863 = vunpack.c.h.b16 %v947
    %v2864 = vunpack.c.l.b16 %v948
    %v2865 = vunpack.c.h.b16 %v948
    %v2866 = vunpack.c.l.b16 %v949
    %v2867 = vunpack.c.h.b16 %v949
    %v2868 = vunpack.c.l.b16 %v950
    %v2869 = vunpack.c.h.b16 %v950
    %v2870 = vunpack.c.l.b16 %v951
    %v2871 = vunpack.c.h.b16 %v951
    %v2872 = vunpack.c.l.b16 %v952
    %v2873 = vunpack.c.h.b16 %v952
    %v2874 = vunpack.c.l.b16 %v953
    %v2875 = vunpack.c.h.b16 %v953
    %v2876 = vunpack.c.l.b16 %v954
    %v2877 = vunpack.c.h.b16 %v954
    %v2878 = vunpack.c.l.b16 %v955
    %v2879 = vunpack.c.h.b16 %v955
    %v2880 = vunpack.c.l.b16 %v956
    %v2881 = vunpack.c.h.b16 %v956
    %v2882 = vunpack.c.l.b16 %v957
    %v2883 = vunpack.c.h.b16 %v957
    %v2884 = vunpack.c.l.b16 %v958
    %v2885 = vunpack.c.h.b16 %v958
    %v2886 = vunpack.c.l.b16 %v959
    %v2887 = vunpack.c.h.b16 %v959
    %v2888 = vunpack.c.l.b16 %v960
    %v2889 = vunpack.c.h.b16 %v960
    %v2890 = vunpack.c.l.b16 %v961
    %v2891 = vunpack.c.h.b16 %v961
    %v2892 = vunpack.c.l.b16 %v962
    %v2893 = vunpack.c.h.b16 %v962
    %v2894 = vunpack.c.l.b16 %v963
    %v2895 = vunpack.c.h.b16 %v963
    %v2896 = vunpack.c.l.b16 %v964
    %v2897 = vunpack.c.h.b16 %v964
    %v2898 = vunpack.c.l.b16 %v965
    %v2899 = vunpack.c.h.b16 %v965
    %v2900 = vunpack.c.l.b16 %v966
    %v2901 = vunpack.c.h.b16 %v966
    %v2902 = vunpack.c.l.b16 %v967
    %v2903 = vunpack.c.h.b16 %v967
    %v2904 = vunpack.c.l.b16 %v968
    %v2905 = vunpack.c.h.b16 %v968
    %v2906 = vunpack.c.l.b16 %v969
    %v2907 = vunpack.c.h.b16 %v969
    %v2908 = vunpack.c.l.b16 %v970
    %v2909 = vunpack.c.h.b16 %v970
    %v2910 = vunpack.c.l.b16 %v971
    %v2911 = vunpack.c.h.b16 %v971
    %v2912 = vunpack.c.l.b16 %v972
    %v2913 = vunpack.c.h.b16 %v972
    %v2914 = vunpack.c.l.b16 %v973
    %v2915 = vunpack.c.h.b16 %v973
    %v2916 = vunpack.c.l.b16 %v974
    %v2917 = vunpack.c.h.b16 %v974
    %v2918 = vunpack.c.l.b16 %v975
    %v2919 = vunpack.c.h.b16 %v975
    %v2920 = vunpack.c.l.b16 %v976
    %v2921 = vunpack.c.h.b16 %v976
    %v2922 = vunpack.c.l.b16 %v977
    %v2923 = vunpack.c.h.b16 %v977
    %v2924 = vunpack.c.l.b16 %v978
    %v2925 = vunpack.c.h.b16 %v978
    %v2926 = vunpack.c.l.b16 %v979
    %v2927 = vunpack.c.h.b16 %v979
    %v2928 = vunpack.c.l.b16 %v980
    %v2929 = vunpack.c.h.b16 %v980
    %v2930 = vunpack.c.l.b16 %v981
    %v2931 = vunpack.c.h.b16 %v981
    %v2932 = vunpack.c.l.b16 %v982
    %v2933 = vunpack.c.h.b16 %v982
    %v2934 = vunpack.c.l.b16 %v983
    %v2935 = vunpack.c.h.b16 %v983
    %v2936 = vunpack.c.l.b16 %v984
    %v2937 = vunpack.c.h.b16 %v984
    %v2938 = vunpack.c.l.b16 %v985
    %v2939 = vunpack.c.h.b16 %v985
    %v2940 = vunpack.c.l.b16 %v986
    %v2941 = vunpack.c.h.b16 %v986
    %v2942 = vunpack.c.l.b16 %v987
    %v2943 = vunpack.c.h.b16 %v987
    %v2944 = vunpack.c.l.b16 %v988
    %v2945 = vunpack.c.h.b16 %v988
    %v2946 = vunpack.c.l.b16 %v989
    %v2947 = vunpack.c.h.b16 %v989
    %v2948 = vunpack.c.l.b16 %v990
    %v2949 = vunpack.c.h.b16 %v990
    %v2950 = vunpack.c.l.b16 %v991
    %v2951 = vunpack.c.h.b16 %v991
    %v2952 = vunpack.c.l.b16 %v992
    %v2953 = vunpack.c.h.b16 %v992
    %v2954 = vunpack.c.l.b16 %v993
    %v2955 = vunpack.c.h.b16 %v993
    %v2956 = vunpack.c.l.b16 %v994
    %v2957 = vunpack.c.h.b16 %v994
    %v2958 = vunpack.c.l.b16 %v995
    %v2959 = vunpack.c.h.b16 %v995
    %v2960 = vunpack.c.l.b16 %v996
    %v2961 = vunpack.c.h.b16 %v996
    %v2962 = vunpack.c.l.b16 %v997
    %v2963 = vunpack.c.h.b16 %v997
    %v2964 = vunpack.c.l.b16 %v998
    %v2965 = vunpack.c.h.b16 %v998
    %v2966 = vunpack.c.l.b16 %v999
    %v2967 = vunpack.c.h.b16 %v999
    %v2968 = vunpack.c.l.b16 %v1000
    %v2969 = vunpack.c.h.b16 %v1000
    %v2970 = vunpack.c.l.b16 %v1001
    %v2971 = vunpack.c.h.b16 %v1001
    %v2972 = vunpack.c.l.b16 %v1002
    %v2973 = vunpack.c.h.b16 %v1002
    %v2974 = vunpack.c.l.b16 %v1003
    %v2975 = vunpack.c.h.b16 %v1003
    %v2976 = vunpack.c.l.b16 %v1004
    %v2977 = vunpack.c.h.b16 %v1004
    %v2978 = vunpack.c.l.b16 %v1005
    %v2979 = vunpack.c.h.b16 %v1005
    %v2980 = vunpack.c.l.b16 %v1006
    %v2981 = vunpack.c.h.b16 %v1006
    %v2982 = vunpack.c.l.b16 %v1007
    %v2983 = vunpack.c.h.b16 %v1007
    %v2984 = vunpack.c.l.b16 %v1008
    %v2985 = vunpack.c.h.b16 %v1008
    %v2986 = vunpack.c.l.b16 %v1009
    %v2987 = vunpack.c.h.b16 %v1009
    %v2988 = vunpack.c.l.b16 %v1010
    %v2989 = vunpack.c.h.b16 %v1010
    %v2990 = vunpack.c.l.b16 %v1011
    %v2991 = vunpack.c.h.b16 %v1011
    %v2992 = vunpack.c.l.b16 %v1012
    %v2993 = vunpack.c.h.b16 %v1012
    %v2994 = vunpack.c.l.b16 %v1013
    %v2995 = vunpack.c.h.b16 %v1013
    %v2996 = vunpack.c.l.b16 %v1014
    %v2997 = vunpack.c.h.b16 %v1014
    %v2998 = vunpack.c.l.b16 %v1015
    %v2999 = vunpack.c.h.b16 %v1015
    %v3000 = vunpack.c.l.b16 %v1016
    %v3001 = vunpack.c.h.b16 %v1016
    %v3002 = vunpack.c.l.b16 %v1017
    %v3003 = vunpack.c.h.b16 %v1017
    %v3004 = vunpack.c.l.b16 %v1018
    %v3005 = vunpack.c.h.b16 %v1018
    %v3006 = vunpack.c.l.b16 %v1019
    %v3007 = vunpack.c.h.b16 %v1019
    %v3008 = vunpack.c.l.b16 %v1020
    %v3009 = vunpack.c.h.b16 %v1020
    %v3010 = vunpack.c.l.b16 %v1021
    %v3011 = vunpack.c.h.b16 %v1021
    %v3012 = vunpack.c.l.b16 %v1022
    %v3013 = vunpack.c.h.b16 %v1022
    %v3014 = vunpack.c.l.b16 %v1023
    %v3015 = vunpack.c.h.b16 %v1023
    %v3016 = vunpack.c.l.b16 %v1024
    %v3017 = vunpack.c.h.b16 %v1024
    %v3018 = vunpack.c.l.b16 %v1025
    %v3019 = vunpack.c.h.b16 %v1025
    %v3020 = vunpack.c.l.b16 %v1026
    %v3021 = vunpack.c.h.b16 %v1026
    %v3022 = vunpack.c.l.b16 %v1027
    %v3023 = vunpack.c.h.b16 %v1027
    %v3024 = vunpack.c.l.b16 %v1028
    %v3025 = vunpack.c.h.b16 %v1028
    %v3026 = vunpack.c.l.b16 %v1029
    %v3027 = vunpack.c.h.b16 %v1029
    %v3028 = vunpack.c.l.b16 %v1030
    %v3029 = vunpack.c.h.b16 %v1030
    %v3030 = vunpack.c.l.b16 %v1031
    %v3031 = vunpack.c.h.b16 %v1031
    %v3032 = vpack.c.b16 %v2842, %v2840
    %v3033 = vpack.c.b16 %v2843, %v2841
    %v3034 = vpack.c.b16 %v2846, %v2844
    %v3035 = vpack.c.b16 %v2847, %v2845
    %v3036 = vpack.c.b16 %v2850, %v2848
    %v3037 = vpack.c.b16 %v2851, %v2849
    %v3038 = vpack.c.b16 %v2854, %v2852
    %v3039 = vpack.c.b16 %v2855, %v2853
    %v3040 = vpack.c.b16 %v2858, %v2856
    %v3041 = vpack.c.b16 %v2859, %v2857
    %v3042 = vpack.c.b16 %v2862, %v2860
    %v3043 = vpack.c.b16 %v2863, %v2861
    %v3044 = vpack.c.b16 %v2866, %v2864
    %v3045 = vpack.c.b16 %v2867, %v2865
    %v3046 = vpack.c.b16 %v2870, %v2868
    %v3047 = vpack.c.b16 %v2871, %v2869
    %v3048 = vpack.c.b16 %v2874, %v2872
    %v3049 = vpack.c.b16 %v2875, %v2873
    %v3050 = vpack.c.b16 %v2878, %v2876
    %v3051 = vpack.c.b16 %v2879, %v2877
    %v3052 = vpack.c.b16 %v2882, %v2880
    %v3053 = vpack.c.b16 %v2883, %v2881
    %v3054 = vpack.c.b16 %v2886, %v2884
    %v3055 = vpack.c.b16 %v2887, %v2885
    %v3056 = vpack.c.b16 %v2890, %v2888
    %v3057 = vpack.c.b16 %v2891, %v2889
    %v3058 = vpack.c.b16 %v2894, %v2892
    %v3059 = vpack.c.b16 %v2895, %v2893
    %v3060 = vpack.c.b16 %v2898, %v2896
    %v3061 = vpack.c.b16 %v2899, %v2897
    %v3062 = vpack.c.b16 %v2902, %v2900
    %v3063 = vpack.c.b16 %v2903, %v2901
    %v3064 = vpack.c.b16 %v2906, %v2904
    %v3065 = vpack.c.b16 %v2907, %v2905
    %v3066 = vpack.c.b16 %v2910, %v2908
    %v3067 = vpack.c.b16 %v2911, %v2909
    %v3068 = vpack.c.b16 %v2914, %v2912
    %v3069 = vpack.c.b16 %v2915, %v2913
    %v3070 = vpack.c.b16 %v2918, %v2916
    %v3071 = vpack.c.b16 %v2919, %v2917
    %v3072 = vpack.c.b16 %v2922, %v2920
    %v3073 = vpack.c.b16 %v2923, %v2921
    %v3074 = vpack.c.b16 %v2926, %v2924
    %v3075 = vpack.c.b16 %v2927, %v2925
    %v3076 = vpack.c.b16 %v2930, %v2928
    %v3077 = vpack.c.b16 %v2931, %v2929
    %v3078 = vpack.c.b16 %v2934, %v2932
    %v3079 = vpack.c.b16 %v2935, %v2933
    %v3080 = vpack.c.b16 %v2938, %v2936
    %v3081 = vpack.c.b16 %v2939, %v2937
    %v3082 = vpack.c.b16 %v2942, %v2940
    %v3083 = vpack.c.b16 %v2943, %v2941
    %v3084 = vpack.c.b16 %v2946, %v2944
    %v3085 = vpack.c.b16 %v2947, %v2945
    %v3086 = vpack.c.b16 %v2950, %v2948
    %v3087 = vpack.c.b16 %v2951, %v2949
    %v3088 = vpack.c.b16 %v2954, %v2952
    %v3089 = vpack.c.b16 %v2955, %v2953
    %v3090 = vpack.c.b16 %v2958, %v2956
    %v3091 = vpack.c.b16 %v2959, %v2957
    %v3092 = vpack.c.b16 %v2962, %v2960
    %v3093 = vpack.c.b16 %v2963, %v2961
    %v3094 = vpack.c.b16 %v2966, %v2964
    %v3095 = vpack.c.b16 %v2967, %v2965
    %v3096 = vpack.c.b16 %v2970, %v2968
    %v3097 = vpack.c.b16 %v2971, %v2969
    %v3098 = vpack.c.b16 %v2974, %v2972
    %v3099 = vpack.c.b16 %v2975, %v2973
    %v3100 = vpack.c.b16 %v2978, %v2976
    %v3101 = vpack.c.b16 %v2979, %v2977
    %v3102 = vpack.c.b16 %v2982, %v2980
    %v3103 = vpack.c.b16 %v2983, %v2981
    %v3104 = vpack.c.b16 %v2986, %v2984
    %v3105 = vpack.c.b16 %v2987, %v2985
    %v3106 = vpack.c.b16 %v2990, %v2988
    %v3107 = vpack.c.b16 %v2991, %v2989
    %v3108 = vpack.c.b16 %v2994, %v2992
    %v3109 = vpack.c.b16 %v2995, %v2993
    %v3110 = vpack.c.b16 %v2998, %v2996
    %v3111 = vpack.c.b16 %v2999, %v2997
    %v3112 = vpack.c.b16 %v3002, %v3000
    %v3113 = vpack.c.b16 %v3003, %v3001
    %v3114 = vpack.c.b16 %v3006, %v3004
    %v3115 = vpack.c.b16 %v3007, %v3005
    %v3116 = vpack.c.b16 %v3010, %v3008
    %v3117 = vpack.c.b16 %v3011, %v3009
    %v3118 = vpack.c.b16 %v3014, %v3012
    %v3119 = vpack.c.b16 %v3015, %v3013
    %v3120 = vpack.c.b16 %v3018, %v3016
    %v3121 = vpack.c.b16 %v3019, %v3017
    %v3122 = vpack.c.b16 %v3022, %v3020
    %v3123 = vpack.c.b16 %v3023, %v3021
    %v3124 = vpack.c.b16 %v3026, %v3024
    %v3125 = vpack.c.b16 %v3027, %v3025
    %v3126 = vpack.c.b16 %v3030, %v3028
    %v3127 = vpack.c.b16 %v3031, %v3029
    %3224 = vmatpush.bf16.msra.mxu0 %v3046
    %3225 = vmatpush.bf16.msra.mxu0 %v3044
    %3226 = vmatpush.bf16.msra.mxu0 %v3042
    %3227 = vmatpush.bf16.msra.mxu0 %v3040
    %3228 = vmatpush.bf16.msra.mxu0 %v3038
    %3229 = vmatpush.bf16.msra.mxu0 %v3036
    %3230 = vmatpush.bf16.msra.mxu0 %v3034
    %3231 = vmatpush.bf16.msra.mxu0 %v3032
    %3232 = vmatmul.bf16.gmra.mxu0 %v2672
    %v3233 = vpop.f32.mrf.mxu0
    %v3234 = vadd.f32 %v2339, %v3233
    %v3235 = vpop.f32.mrf.mxu0
    %v3236 = vadd.f32 %v2341, %v3235
    %3237 = vmatmul.bf16.gmra.mxu0 %v2676
    %v3238 = vpop.f32.mrf.mxu0
    %v3239 = vadd.f32 %v2344, %v3238
    %v3240 = vpop.f32.mrf.mxu0
    %v3241 = vadd.f32 %v2346, %v3240
    %3242 = vmatmul.bf16.gmra.mxu0 %v2680
    %v3243 = vpop.f32.mrf.mxu0
    %v3244 = vadd.f32 %v2349, %v3243
    %v3245 = vpop.f32.mrf.mxu0
    %v3246 = vadd.f32 %v2351, %v3245
    %3247 = vmatmul.bf16.gmra.mxu0 %v2684
    %v3248 = vpop.f32.mrf.mxu0
    %v3249 = vadd.f32 %v2354, %v3248
    %v3250 = vpop.f32.mrf.mxu0
    %v3251 = vadd.f32 %v2356, %v3250
    %3252 = vmatmul.bf16.gmra.mxu0 %v2690
    %v3253 = vpop.f32.mrf.mxu0
    %v3254 = vadd.f32 %v2359, %v3253
    %v3255 = vpop.f32.mrf.mxu0
    %v3256 = vadd.f32 %v2361, %v3255
    %3257 = vmatmul.bf16.gmra.mxu0 %v2694
    %v3258 = vpop.f32.mrf.mxu0
    %v3259 = vadd.f32 %v2364, %v3258
    %v3260 = vpop.f32.mrf.mxu0
    %v3261 = vadd.f32 %v2366, %v3260
    %3262 = vmatmul.bf16.gmra.mxu0 %v2698
    %v3263 = vpop.f32.mrf.mxu0
    %v3264 = vadd.f32 %v2369, %v3263
    %v3265 = vpop.f32.mrf.mxu0
    %v3266 = vadd.f32 %v2371, %v3265
    %3267 = vmatmul.bf16.gmra.mxu0 %v2702
    %v3268 = vpop.f32.mrf.mxu0
    %v3269 = vadd.f32 %v2374, %v3268
    %v3270 = vpop.f32.mrf.mxu0
    %v3271 = vadd.f32 %v2376, %v3270
    %3272 = vdwg.mxu0
    %3273 = vmatpush.bf16.msra.mxu0 %v3062
    %3274 = vmatpush.bf16.msra.mxu0 %v3060
    %3275 = vmatpush.bf16.msra.mxu0 %v3058
    %3276 = vmatpush.bf16.msra.mxu0 %v3056
    %3277 = vmatpush.bf16.msra.mxu0 %v3054
    %3278 = vmatpush.bf16.msra.mxu0 %v3052
    %3279 = vmatpush.bf16.msra.mxu0 %v3050
    %3280 = vmatpush.bf16.msra.mxu0 %v3048
    %3281 = vmatmul.bf16.gmra.mxu0 %v2673
    %v3282 = vpop.f32.mrf.mxu0
    %v3283 = vadd.f32 %v3234, %v3282
    %v3284 = vpop.f32.mrf.mxu0
    %v3285 = vadd.f32 %v3236, %v3284
    %3286 = vmatmul.bf16.gmra.mxu0 %v2677
    %v3287 = vpop.f32.mrf.mxu0
    %v3288 = vadd.f32 %v3239, %v3287
    %v3289 = vpop.f32.mrf.mxu0
    %v3290 = vadd.f32 %v3241, %v3289
    %3291 = vmatmul.bf16.gmra.mxu0 %v2681
    %v3292 = vpop.f32.mrf.mxu0
    %v3293 = vadd.f32 %v3244, %v3292
    %v3294 = vpop.f32.mrf.mxu0
    %v3295 = vadd.f32 %v3246, %v3294
    %3296 = vmatmul.bf16.gmra.mxu0 %v2685
    %v3297 = vpop.f32.mrf.mxu0
    %v3298 = vadd.f32 %v3249, %v3297
    %v3299 = vpop.f32.mrf.mxu0
    %v3300 = vadd.f32 %v3251, %v3299
    %3301 = vmatmul.bf16.gmra.mxu0 %v2691
    %v3302 = vpop.f32.mrf.mxu0
    %v3303 = vadd.f32 %v3254, %v3302
    %v3304 = vpop.f32.mrf.mxu0
    %v3305 = vadd.f32 %v3256, %v3304
    %3306 = vmatmul.bf16.gmra.mxu0 %v2695
    %v3307 = vpop.f32.mrf.mxu0
    %v3308 = vadd.f32 %v3259, %v3307
    %v3309 = vpop.f32.mrf.mxu0
    %v3310 = vadd.f32 %v3261, %v3309
    %3311 = vmatmul.bf16.gmra.mxu0 %v2699
    %v3312 = vpop.f32.mrf.mxu0
    %v3313 = vadd.f32 %v3264, %v3312
    %v3314 = vpop.f32.mrf.mxu0
    %v3315 = vadd.f32 %v3266, %v3314
    %3316 = vmatmul.bf16.gmra.mxu0 %v2703
    %v3317 = vpop.f32.mrf.mxu0
    %v3318 = vadd.f32 %v3269, %v3317
    %v3319 = vpop.f32.mrf.mxu0
    %v3320 = vadd.f32 %v3271, %v3319
    %3321 = vdwg.mxu0
    %3322 = vmatpush.bf16.msra.mxu0 %v3078
    %3323 = vmatpush.bf16.msra.mxu0 %v3076
    %3324 = vmatpush.bf16.msra.mxu0 %v3074
    %3325 = vmatpush.bf16.msra.mxu0 %v3072
    %3326 = vmatpush.bf16.msra.mxu0 %v3070
    %3327 = vmatpush.bf16.msra.mxu0 %v3068
    %3328 = vmatpush.bf16.msra.mxu0 %v3066
    %3329 = vmatpush.bf16.msra.mxu0 %v3064
    %3330 = vmatmul.bf16.gmra.mxu0 %v2674
    %v3331 = vpop.f32.mrf.mxu0
    %v3332 = vadd.f32 %v3283, %v3331
    %v3333 = vpop.f32.mrf.mxu0
    %v3334 = vadd.f32 %v3285, %v3333
    %3335 = vmatmul.bf16.gmra.mxu0 %v2678
    %v3336 = vpop.f32.mrf.mxu0
    %v3337 = vadd.f32 %v3288, %v3336
    %v3338 = vpop.f32.mrf.mxu0
    %v3339 = vadd.f32 %v3290, %v3338
    %3340 = vmatmul.bf16.gmra.mxu0 %v2682
    %v3341 = vpop.f32.mrf.mxu0
    %v3342 = vadd.f32 %v3293, %v3341
    %v3343 = vpop.f32.mrf.mxu0
    %v3344 = vadd.f32 %v3295, %v3343
    %3345 = vmatmul.bf16.gmra.mxu0 %v2686
    %v3346 = vpop.f32.mrf.mxu0
    %v3347 = vadd.f32 %v3298, %v3346
    %v3348 = vpop.f32.mrf.mxu0
    %v3349 = vadd.f32 %v3300, %v3348
    %3350 = vmatmul.bf16.gmra.mxu0 %v2692
    %v3351 = vpop.f32.mrf.mxu0
    %v3352 = vadd.f32 %v3303, %v3351
    %v3353 = vpop.f32.mrf.mxu0
    %v3354 = vadd.f32 %v3305, %v3353
    %3355 = vmatmul.bf16.gmra.mxu0 %v2696
    %v3356 = vpop.f32.mrf.mxu0
    %v3357 = vadd.f32 %v3308, %v3356
    %v3358 = vpop.f32.mrf.mxu0
    %v3359 = vadd.f32 %v3310, %v3358
    %3360 = vmatmul.bf16.gmra.mxu0 %v2700
    %v3361 = vpop.f32.mrf.mxu0
    %v3362 = vadd.f32 %v3313, %v3361
    %v3363 = vpop.f32.mrf.mxu0
    %v3364 = vadd.f32 %v3315, %v3363
    %3365 = vmatmul.bf16.gmra.mxu0 %v2704
    %v3366 = vpop.f32.mrf.mxu0
    %v3367 = vadd.f32 %v3318, %v3366
    %v3368 = vpop.f32.mrf.mxu0
    %v3369 = vadd.f32 %v3320, %v3368
    %3370 = vdwg.mxu0
    %3371 = vmatpush.bf16.msra.mxu0 %v3094
    %3372 = vmatpush.bf16.msra.mxu0 %v3092
    %3373 = vmatpush.bf16.msra.mxu0 %v3090
    %3374 = vmatpush.bf16.msra.mxu0 %v3088
    %3375 = vmatpush.bf16.msra.mxu0 %v3086
    %3376 = vmatpush.bf16.msra.mxu0 %v3084
    %3377 = vmatpush.bf16.msra.mxu0 %v3082
    %3378 = vmatpush.bf16.msra.mxu0 %v3080
    %3379 = vmatmul.bf16.gmra.mxu0 %v2675
    %v3380 = vpop.f32.mrf.mxu0
    %v3381 = vadd.f32 %v3332, %v3380
    %v3382 = vpop.f32.mrf.mxu0
    %v3383 = vadd.f32 %v3334, %v3382
    %3384 = vmatmul.bf16.gmra.mxu0 %v2679
    %v3385 = vpop.f32.mrf.mxu0
    %v3386 = vadd.f32 %v3337, %v3385
    %v3387 = vpop.f32.mrf.mxu0
    %v3388 = vadd.f32 %v3339, %v3387
    %3389 = vmatmul.bf16.gmra.mxu0 %v2683
    %v3390 = vpop.f32.mrf.mxu0
    %v3391 = vadd.f32 %v3342, %v3390
    %v3392 = vpop.f32.mrf.mxu0
    %v3393 = vadd.f32 %v3344, %v3392
    %3394 = vmatmul.bf16.gmra.mxu0 %v2687
    %v3395 = vpop.f32.mrf.mxu0
    %v3396 = vadd.f32 %v3347, %v3395
    %v3397 = vpop.f32.mrf.mxu0
    %v3398 = vadd.f32 %v3349, %v3397
    %3399 = vmatmul.bf16.gmra.mxu0 %v2693
    %v3400 = vpop.f32.mrf.mxu0
    %v3401 = vadd.f32 %v3352, %v3400
    %v3402 = vpop.f32.mrf.mxu0
    %v3403 = vadd.f32 %v3354, %v3402
    %3404 = vmatmul.bf16.gmra.mxu0 %v2697
    %v3405 = vpop.f32.mrf.mxu0
    %v3406 = vadd.f32 %v3357, %v3405
    %v3407 = vpop.f32.mrf.mxu0
    %v3408 = vadd.f32 %v3359, %v3407
    %3409 = vmatmul.bf16.gmra.mxu0 %v2701
    %v3410 = vpop.f32.mrf.mxu0
    %v3411 = vadd.f32 %v3362, %v3410
    %v3412 = vpop.f32.mrf.mxu0
    %v3413 = vadd.f32 %v3364, %v3412
    %3414 = vmatmul.bf16.gmra.mxu0 %v2705
    %v3415 = vpop.f32.mrf.mxu0
    %v3416 = vadd.f32 %v3367, %v3415
    %v3417 = vpop.f32.mrf.mxu0
    %v3418 = vadd.f32 %v3369, %v3417
    %3419 = vdwg.mxu0
    %3420 = vmatpush.bf16.msra.mxu0 %v3110
    %3421 = vmatpush.bf16.msra.mxu0 %v3108
    %3422 = vmatpush.bf16.msra.mxu0 %v3106
    %3423 = vmatpush.bf16.msra.mxu0 %v3104
    %3424 = vmatpush.bf16.msra.mxu0 %v3102
    %3425 = vmatpush.bf16.msra.mxu0 %v3100
    %3426 = vmatpush.bf16.msra.mxu0 %v3098
    %3427 = vmatpush.bf16.msra.mxu0 %v3096
    %3428 = vmatmul.bf16.gmra.mxu0 %v2676
    %v3429 = vpop.f32.mrf.mxu0
    %v3430 = vadd.f32 %v3381, %v3429
    %v3431 = vpop.f32.mrf.mxu0
    %v3432 = vadd.f32 %v3383, %v3431
    %3433 = vmatmul.bf16.gmra.mxu0 %v2680
    %v3434 = vpop.f32.mrf.mxu0
    %v3435 = vadd.f32 %v3386, %v3434
    %v3436 = vpop.f32.mrf.mxu0
    %v3437 = vadd.f32 %v3388, %v3436
    %3438 = vmatmul.bf16.gmra.mxu0 %v2684
    %v3439 = vpop.f32.mrf.mxu0
    %v3440 = vadd.f32 %v3391, %v3439
    %v3441 = vpop.f32.mrf.mxu0
    %v3442 = vadd.f32 %v3393, %v3441
    %3443 = vmatmul.bf16.gmra.mxu0 %v2688
    %v3444 = vpop.f32.mrf.mxu0
    %v3445 = vadd.f32 %v3396, %v3444
    %v3446 = vpop.f32.mrf.mxu0
    %v3447 = vadd.f32 %v3398, %v3446
    %3448 = vmatmul.bf16.gmra.mxu0 %v2694
    %v3449 = vpop.f32.mrf.mxu0
    %v3450 = vadd.f32 %v3401, %v3449
    %v3451 = vpop.f32.mrf.mxu0
    %v3452 = vadd.f32 %v3403, %v3451
    %3453 = vmatmul.bf16.gmra.mxu0 %v2698
    %v3454 = vpop.f32.mrf.mxu0
    %v3455 = vadd.f32 %v3406, %v3454
    %v3456 = vpop.f32.mrf.mxu0
    %v3457 = vadd.f32 %v3408, %v3456
    %3458 = vmatmul.bf16.gmra.mxu0 %v2702
    %v3459 = vpop.f32.mrf.mxu0
    %v3460 = vadd.f32 %v3411, %v3459
    %v3461 = vpop.f32.mrf.mxu0
    %v3462 = vadd.f32 %v3413, %v3461
    %3463 = vmatmul.bf16.gmra.mxu0 %v2706
    %v3464 = vpop.f32.mrf.mxu0
    %v3465 = vadd.f32 %v3416, %v3464
    %v3466 = vpop.f32.mrf.mxu0
    %v3467 = vadd.f32 %v3418, %v3466
    %3468 = vdwg.mxu0
    %3469 = vmatpush.bf16.msra.mxu0 %v3126
    %3470 = vmatpush.bf16.msra.mxu0 %v3124
    %3471 = vmatpush.bf16.msra.mxu0 %v3122
    %3472 = vmatpush.bf16.msra.mxu0 %v3120
    %3473 = vmatpush.bf16.msra.mxu0 %v3118
    %3474 = vmatpush.bf16.msra.mxu0 %v3116
    %3475 = vmatpush.bf16.msra.mxu0 %v3114
    %3476 = vmatpush.bf16.msra.mxu0 %v3112
    %3477 = vmatmul.bf16.gmra.mxu0 %v2677
    %v3478 = vpop.f32.mrf.mxu0
    %v3479 = vadd.f32 %v3430, %v3478
    %v3480 = vpop.f32.mrf.mxu0
    %v3481 = vadd.f32 %v3432, %v3480
    %3482 = vmatmul.bf16.gmra.mxu0 %v2681
    %v3483 = vpop.f32.mrf.mxu0
    %v3484 = vadd.f32 %v3435, %v3483
    %v3485 = vpop.f32.mrf.mxu0
    %v3486 = vadd.f32 %v3437, %v3485
    %3487 = vmatmul.bf16.gmra.mxu0 %v2685
    %v3488 = vpop.f32.mrf.mxu0
    %v3489 = vadd.f32 %v3440, %v3488
    %v3490 = vpop.f32.mrf.mxu0
    %v3491 = vadd.f32 %v3442, %v3490
    %3492 = vmatmul.bf16.gmra.mxu0 %v2689
    %v3493 = vpop.f32.mrf.mxu0
    %v3494 = vadd.f32 %v3445, %v3493
    %v3495 = vpop.f32.mrf.mxu0
    %v3496 = vadd.f32 %v3447, %v3495
    %3497 = vmatmul.bf16.gmra.mxu0 %v2695
    %v3498 = vpop.f32.mrf.mxu0
    %v3499 = vadd.f32 %v3450, %v3498
    %v3500 = vpop.f32.mrf.mxu0
    %v3501 = vadd.f32 %v3452, %v3500
    %3502 = vmatmul.bf16.gmra.mxu0 %v2699
    %v3503 = vpop.f32.mrf.mxu0
    %v3504 = vadd.f32 %v3455, %v3503
    %v3505 = vpop.f32.mrf.mxu0
    %v3506 = vadd.f32 %v3457, %v3505
    %3507 = vmatmul.bf16.gmra.mxu0 %v2703
    %v3508 = vpop.f32.mrf.mxu0
    %v3509 = vadd.f32 %v3460, %v3508
    %v3510 = vpop.f32.mrf.mxu0
    %v3511 = vadd.f32 %v3462, %v3510
    %3512 = vmatmul.bf16.gmra.mxu0 %v2707
    %v3513 = vpop.f32.mrf.mxu0
    %v3514 = vadd.f32 %v3465, %v3513
    %v3515 = vpop.f32.mrf.mxu0
    %v3516 = vadd.f32 %v3467, %v3515
    %3517 = vdwg.mxu0
    %3518 = vmatpush.bf16.msra.mxu0 %v3047
    %3519 = vmatpush.bf16.msra.mxu0 %v3045
    %3520 = vmatpush.bf16.msra.mxu0 %v3043
    %3521 = vmatpush.bf16.msra.mxu0 %v3041
    %3522 = vmatpush.bf16.msra.mxu0 %v3039
    %3523 = vmatpush.bf16.msra.mxu0 %v3037
    %3524 = vmatpush.bf16.msra.mxu0 %v3035
    %3525 = vmatpush.bf16.msra.mxu0 %v3033
    %3526 = vmatmul.bf16.gmra.mxu0 %v2672
    %v3527 = vpop.f32.mrf.mxu0
    %v3528 = vadd.f32 %v2633, %v3527
    %v3529 = vpop.f32.mrf.mxu0
    %v3530 = vadd.f32 %v2635, %v3529
    %3531 = vmatmul.bf16.gmra.mxu0 %v2676
    %v3532 = vpop.f32.mrf.mxu0
    %v3533 = vadd.f32 %v2638, %v3532
    %v3534 = vpop.f32.mrf.mxu0
    %v3535 = vadd.f32 %v2640, %v3534
    %3536 = vmatmul.bf16.gmra.mxu0 %v2680
    %v3537 = vpop.f32.mrf.mxu0
    %v3538 = vadd.f32 %v2643, %v3537
    %v3539 = vpop.f32.mrf.mxu0
    %v3540 = vadd.f32 %v2645, %v3539
    %3541 = vmatmul.bf16.gmra.mxu0 %v2684
    %v3542 = vpop.f32.mrf.mxu0
    %v3543 = vadd.f32 %v2648, %v3542
    %v3544 = vpop.f32.mrf.mxu0
    %v3545 = vadd.f32 %v2650, %v3544
    %3546 = vmatmul.bf16.gmra.mxu0 %v2690
    %v3547 = vpop.f32.mrf.mxu0
    %v3548 = vadd.f32 %v2653, %v3547
    %v3549 = vpop.f32.mrf.mxu0
    %v3550 = vadd.f32 %v2655, %v3549
    %3551 = vmatmul.bf16.gmra.mxu0 %v2694
    %v3552 = vpop.f32.mrf.mxu0
    %v3553 = vadd.f32 %v2658, %v3552
    %v3554 = vpop.f32.mrf.mxu0
    %v3555 = vadd.f32 %v2660, %v3554
    %3556 = vmatmul.bf16.gmra.mxu0 %v2698
    %v3557 = vpop.f32.mrf.mxu0
    %v3558 = vadd.f32 %v2663, %v3557
    %v3559 = vpop.f32.mrf.mxu0
    %v3560 = vadd.f32 %v2665, %v3559
    %3561 = vmatmul.bf16.gmra.mxu0 %v2702
    %v3562 = vpop.f32.mrf.mxu0
    %v3563 = vadd.f32 %v2668, %v3562
    %v3564 = vpop.f32.mrf.mxu0
    %v3565 = vadd.f32 %v2670, %v3564
    %3566 = vdwg.mxu0
    %3567 = vmatpush.bf16.msra.mxu0 %v3063
    %3568 = vmatpush.bf16.msra.mxu0 %v3061
    %3569 = vmatpush.bf16.msra.mxu0 %v3059
    %3570 = vmatpush.bf16.msra.mxu0 %v3057
    %3571 = vmatpush.bf16.msra.mxu0 %v3055
    %3572 = vmatpush.bf16.msra.mxu0 %v3053
    %3573 = vmatpush.bf16.msra.mxu0 %v3051
    %3574 = vmatpush.bf16.msra.mxu0 %v3049
    %3575 = vmatmul.bf16.gmra.mxu0 %v2673
    %v3576 = vpop.f32.mrf.mxu0
    %v3577 = vadd.f32 %v3528, %v3576
    %v3578 = vpop.f32.mrf.mxu0
    %v3579 = vadd.f32 %v3530, %v3578
    %3580 = vmatmul.bf16.gmra.mxu0 %v2677
    %v3581 = vpop.f32.mrf.mxu0
    %v3582 = vadd.f32 %v3533, %v3581
    %v3583 = vpop.f32.mrf.mxu0
    %v3584 = vadd.f32 %v3535, %v3583
    %3585 = vmatmul.bf16.gmra.mxu0 %v2681
    %v3586 = vpop.f32.mrf.mxu0
    %v3587 = vadd.f32 %v3538, %v3586
    %v3588 = vpop.f32.mrf.mxu0
    %v3589 = vadd.f32 %v3540, %v3588
    %3590 = vmatmul.bf16.gmra.mxu0 %v2685
    %v3591 = vpop.f32.mrf.mxu0
    %v3592 = vadd.f32 %v3543, %v3591
    %v3593 = vpop.f32.mrf.mxu0
    %v3594 = vadd.f32 %v3545, %v3593
    %3595 = vmatmul.bf16.gmra.mxu0 %v2691
    %v3596 = vpop.f32.mrf.mxu0
    %v3597 = vadd.f32 %v3548, %v3596
    %v3598 = vpop.f32.mrf.mxu0
    %v3599 = vadd.f32 %v3550, %v3598
    %3600 = vmatmul.bf16.gmra.mxu0 %v2695
    %v3601 = vpop.f32.mrf.mxu0
    %v3602 = vadd.f32 %v3553, %v3601
    %v3603 = vpop.f32.mrf.mxu0
    %v3604 = vadd.f32 %v3555, %v3603
    %3605 = vmatmul.bf16.gmra.mxu0 %v2699
    %v3606 = vpop.f32.mrf.mxu0
    %v3607 = vadd.f32 %v3558, %v3606
    %v3608 = vpop.f32.mrf.mxu0
    %v3609 = vadd.f32 %v3560, %v3608
    %3610 = vmatmul.bf16.gmra.mxu0 %v2703
    %v3611 = vpop.f32.mrf.mxu0
    %v3612 = vadd.f32 %v3563, %v3611
    %v3613 = vpop.f32.mrf.mxu0
    %v3614 = vadd.f32 %v3565, %v3613
    %3615 = vdwg.mxu0
    %3616 = vmatpush.bf16.msra.mxu0 %v3079
    %3617 = vmatpush.bf16.msra.mxu0 %v3077
    %3618 = vmatpush.bf16.msra.mxu0 %v3075
    %3619 = vmatpush.bf16.msra.mxu0 %v3073
    %3620 = vmatpush.bf16.msra.mxu0 %v3071
    %3621 = vmatpush.bf16.msra.mxu0 %v3069
    %3622 = vmatpush.bf16.msra.mxu0 %v3067
    %3623 = vmatpush.bf16.msra.mxu0 %v3065
    %3624 = vmatmul.bf16.gmra.mxu0 %v2674
    %v3625 = vpop.f32.mrf.mxu0
    %v3626 = vadd.f32 %v3577, %v3625
    %v3627 = vpop.f32.mrf.mxu0
    %v3628 = vadd.f32 %v3579, %v3627
    %3629 = vmatmul.bf16.gmra.mxu0 %v2678
    %v3630 = vpop.f32.mrf.mxu0
    %v3631 = vadd.f32 %v3582, %v3630
    %v3632 = vpop.f32.mrf.mxu0
    %v3633 = vadd.f32 %v3584, %v3632
    %3634 = vmatmul.bf16.gmra.mxu0 %v2682
    %v3635 = vpop.f32.mrf.mxu0
    %v3636 = vadd.f32 %v3587, %v3635
    %v3637 = vpop.f32.mrf.mxu0
    %v3638 = vadd.f32 %v3589, %v3637
    %3639 = vmatmul.bf16.gmra.mxu0 %v2686
    %v3640 = vpop.f32.mrf.mxu0
    %v3641 = vadd.f32 %v3592, %v3640
    %v3642 = vpop.f32.mrf.mxu0
    %v3643 = vadd.f32 %v3594, %v3642
    %3644 = vmatmul.bf16.gmra.mxu0 %v2692
    %v3645 = vpop.f32.mrf.mxu0
    %v3646 = vadd.f32 %v3597, %v3645
    %v3647 = vpop.f32.mrf.mxu0
    %v3648 = vadd.f32 %v3599, %v3647
    %3649 = vmatmul.bf16.gmra.mxu0 %v2696
    %v3650 = vpop.f32.mrf.mxu0
    %v3651 = vadd.f32 %v3602, %v3650
    %v3652 = vpop.f32.mrf.mxu0
    %v3653 = vadd.f32 %v3604, %v3652
    %3654 = vmatmul.bf16.gmra.mxu0 %v2700
    %v3655 = vpop.f32.mrf.mxu0
    %v3656 = vadd.f32 %v3607, %v3655
    %v3657 = vpop.f32.mrf.mxu0
    %v3658 = vadd.f32 %v3609, %v3657
    %3659 = vmatmul.bf16.gmra.mxu0 %v2704
    %v3660 = vpop.f32.mrf.mxu0
    %v3661 = vadd.f32 %v3612, %v3660
    %v3662 = vpop.f32.mrf.mxu0
    %v3663 = vadd.f32 %v3614, %v3662
    %3664 = vdwg.mxu0
    %3665 = vmatpush.bf16.msra.mxu0 %v3095
    %3666 = vmatpush.bf16.msra.mxu0 %v3093
    %3667 = vmatpush.bf16.msra.mxu0 %v3091
    %3668 = vmatpush.bf16.msra.mxu0 %v3089
    %3669 = vmatpush.bf16.msra.mxu0 %v3087
    %3670 = vmatpush.bf16.msra.mxu0 %v3085
    %3671 = vmatpush.bf16.msra.mxu0 %v3083
    %3672 = vmatpush.bf16.msra.mxu0 %v3081
    %3673 = vmatmul.bf16.gmra.mxu0 %v2675
    %v3674 = vpop.f32.mrf.mxu0
    %v3675 = vadd.f32 %v3626, %v3674
    %v3676 = vpop.f32.mrf.mxu0
    %v3677 = vadd.f32 %v3628, %v3676
    %3678 = vmatmul.bf16.gmra.mxu0 %v2679
    %v3679 = vpop.f32.mrf.mxu0
    %v3680 = vadd.f32 %v3631, %v3679
    %v3681 = vpop.f32.mrf.mxu0
    %v3682 = vadd.f32 %v3633, %v3681
    %3683 = vmatmul.bf16.gmra.mxu0 %v2683
    %v3684 = vpop.f32.mrf.mxu0
    %v3685 = vadd.f32 %v3636, %v3684
    %v3686 = vpop.f32.mrf.mxu0
    %v3687 = vadd.f32 %v3638, %v3686
    %3688 = vmatmul.bf16.gmra.mxu0 %v2687
    %v3689 = vpop.f32.mrf.mxu0
    %v3690 = vadd.f32 %v3641, %v3689
    %v3691 = vpop.f32.mrf.mxu0
    %v3692 = vadd.f32 %v3643, %v3691
    %3693 = vmatmul.bf16.gmra.mxu0 %v2693
    %v3694 = vpop.f32.mrf.mxu0
    %v3695 = vadd.f32 %v3646, %v3694
    %v3696 = vpop.f32.mrf.mxu0
    %v3697 = vadd.f32 %v3648, %v3696
    %3698 = vmatmul.bf16.gmra.mxu0 %v2697
    %v3699 = vpop.f32.mrf.mxu0
    %v3700 = vadd.f32 %v3651, %v3699
    %v3701 = vpop.f32.mrf.mxu0
    %v3702 = vadd.f32 %v3653, %v3701
    %3703 = vmatmul.bf16.gmra.mxu0 %v2701
    %v3704 = vpop.f32.mrf.mxu0
    %v3705 = vadd.f32 %v3656, %v3704
    %v3706 = vpop.f32.mrf.mxu0
    %v3707 = vadd.f32 %v3658, %v3706
    %3708 = vmatmul.bf16.gmra.mxu0 %v2705
    %v3709 = vpop.f32.mrf.mxu0
    %v3710 = vadd.f32 %v3661, %v3709
    %v3711 = vpop.f32.mrf.mxu0
    %v3712 = vadd.f32 %v3663, %v3711
    %3713 = vdwg.mxu0
    %3714 = vmatpush.bf16.msra.mxu0 %v3111
    %3715 = vmatpush.bf16.msra.mxu0 %v3109
    %3716 = vmatpush.bf16.msra.mxu0 %v3107
    %3717 = vmatpush.bf16.msra.mxu0 %v3105
    %3718 = vmatpush.bf16.msra.mxu0 %v3103
    %3719 = vmatpush.bf16.msra.mxu0 %v3101
    %3720 = vmatpush.bf16.msra.mxu0 %v3099
    %3721 = vmatpush.bf16.msra.mxu0 %v3097
    %3722 = vmatmul.bf16.gmra.mxu0 %v2676
    %v3723 = vpop.f32.mrf.mxu0
    %v3724 = vadd.f32 %v3675, %v3723
    %v3725 = vpop.f32.mrf.mxu0
    %v3726 = vadd.f32 %v3677, %v3725
    %3727 = vmatmul.bf16.gmra.mxu0 %v2680
    %v3728 = vpop.f32.mrf.mxu0
    %v3729 = vadd.f32 %v3680, %v3728
    %v3730 = vpop.f32.mrf.mxu0
    %v3731 = vadd.f32 %v3682, %v3730
    %3732 = vmatmul.bf16.gmra.mxu0 %v2684
    %v3733 = vpop.f32.mrf.mxu0
    %v3734 = vadd.f32 %v3685, %v3733
    %v3735 = vpop.f32.mrf.mxu0
    %v3736 = vadd.f32 %v3687, %v3735
    %3737 = vmatmul.bf16.gmra.mxu0 %v2688
    %v3738 = vpop.f32.mrf.mxu0
    %v3739 = vadd.f32 %v3690, %v3738
    %v3740 = vpop.f32.mrf.mxu0
    %v3741 = vadd.f32 %v3692, %v3740
    %3742 = vmatmul.bf16.gmra.mxu0 %v2694
    %v3743 = vpop.f32.mrf.mxu0
    %v3744 = vadd.f32 %v3695, %v3743
    %v3745 = vpop.f32.mrf.mxu0
    %v3746 = vadd.f32 %v3697, %v3745
    %3747 = vmatmul.bf16.gmra.mxu0 %v2698
    %v3748 = vpop.f32.mrf.mxu0
    %v3749 = vadd.f32 %v3700, %v3748
    %v3750 = vpop.f32.mrf.mxu0
    %v3751 = vadd.f32 %v3702, %v3750
    %3752 = vmatmul.bf16.gmra.mxu0 %v2702
    %v3753 = vpop.f32.mrf.mxu0
    %v3754 = vadd.f32 %v3705, %v3753
    %v3755 = vpop.f32.mrf.mxu0
    %v3756 = vadd.f32 %v3707, %v3755
    %3757 = vmatmul.bf16.gmra.mxu0 %v2706
    %v3758 = vpop.f32.mrf.mxu0
    %v3759 = vadd.f32 %v3710, %v3758
    %v3760 = vpop.f32.mrf.mxu0
    %v3761 = vadd.f32 %v3712, %v3760
    %3762 = vdwg.mxu0
    %3763 = vmatpush.bf16.msra.mxu0 %v3127
    %3764 = vmatpush.bf16.msra.mxu0 %v3125
    %3765 = vmatpush.bf16.msra.mxu0 %v3123
    %3766 = vmatpush.bf16.msra.mxu0 %v3121
    %3767 = vmatpush.bf16.msra.mxu0 %v3119
    %3768 = vmatpush.bf16.msra.mxu0 %v3117
    %3769 = vmatpush.bf16.msra.mxu0 %v3115
    %3770 = vmatpush.bf16.msra.mxu0 %v3113
    %3771 = vmatmul.bf16.gmra.mxu0 %v2677
    %v3772 = vpop.f32.mrf.mxu0
    %v3773 = vadd.f32 %v3724, %v3772
    %v3774 = vpop.f32.mrf.mxu0
    %v3775 = vadd.f32 %v3726, %v3774
    %3776 = vmatmul.bf16.gmra.mxu0 %v2681
    %v3777 = vpop.f32.mrf.mxu0
    %v3778 = vadd.f32 %v3729, %v3777
    %v3779 = vpop.f32.mrf.mxu0
    %v3780 = vadd.f32 %v3731, %v3779
    %3781 = vmatmul.bf16.gmra.mxu0 %v2685
    %v3782 = vpop.f32.mrf.mxu0
    %v3783 = vadd.f32 %v3734, %v3782
    %v3784 = vpop.f32.mrf.mxu0
    %v3785 = vadd.f32 %v3736, %v3784
    %3786 = vmatmul.bf16.gmra.mxu0 %v2689
    %v3787 = vpop.f32.mrf.mxu0
    %v3788 = vadd.f32 %v3739, %v3787
    %v3789 = vpop.f32.mrf.mxu0
    %v3790 = vadd.f32 %v3741, %v3789
    %3791 = vmatmul.bf16.gmra.mxu0 %v2695
    %v3792 = vpop.f32.mrf.mxu0
    %v3793 = vadd.f32 %v3744, %v3792
    %v3794 = vpop.f32.mrf.mxu0
    %v3795 = vadd.f32 %v3746, %v3794
    %3796 = vmatmul.bf16.gmra.mxu0 %v2699
    %v3797 = vpop.f32.mrf.mxu0
    %v3798 = vadd.f32 %v3749, %v3797
    %v3799 = vpop.f32.mrf.mxu0
    %v3800 = vadd.f32 %v3751, %v3799
    %3801 = vmatmul.bf16.gmra.mxu0 %v2703
    %v3802 = vpop.f32.mrf.mxu0
    %v3803 = vadd.f32 %v3754, %v3802
    %v3804 = vpop.f32.mrf.mxu0
    %v3805 = vadd.f32 %v3756, %v3804
    %3806 = vmatmul.bf16.gmra.mxu0 %v2707
    %v3807 = vpop.f32.mrf.mxu0
    %v3808 = vadd.f32 %v3759, %v3807
    %v3809 = vpop.f32.mrf.mxu0
    %v3810 = vadd.f32 %v3761, %v3809
    %3811 = vdwg.mxu0
    %vm3812 = vcmask 1042432
    %vm3813 = vcmask 1046532
    %vm3814 = vmor %vm3812, %vm3813
    %v3815 = vrot.slane %v1072, 5
    %v3816 = vrot.slane %v3815, 4
    %v3817 = vrot.slane %v1075, 5
    %v3818 = vsel %vm3814, %v3816, %v3817
    %v3819 = vrot.slane %v1073, 5
    %v3820 = vrot.slane %v3819, 4
    %v3821 = vrot.slane %v1076, 5
    %v3822 = vsel %vm3814, %v3820, %v3821
    %v3823 = vrot.slane %v1074, 5
    %v3824 = vrot.slane %v3823, 4
    %v3825 = vrot.slane %v1077, 5
    %v3826 = vsel %vm3814, %v3824, %v3825
    %v3827 = vrot.slane %v1078, 5
    %v3828 = vrot.slane %v3827, 4
    %v3829 = vrot.slane %v1079, 5
    %v3830 = vsel %vm3814, %v3828, %v3829
    %v3831 = vrot.slane %v1080, 5
    %v3832 = vrot.slane %v3831, 4
    %v3833 = vrot.slane %v1081, 5
    %v3834 = vsel %vm3814, %v3832, %v3833
    %v3835 = vrot.slane %v1082, 5
    %v3836 = vrot.slane %v3835, 4
    %v3837 = vrot.slane %v1083, 5
    %v3838 = vsel %vm3814, %v3836, %v3837
    %v3839 = vrot.slane %v1084, 5
    %v3840 = vrot.slane %v3839, 4
    %v3841 = vrot.slane %v1085, 5
    %v3842 = vsel %vm3814, %v3840, %v3841
    %v3843 = vrot.slane %v1086, 5
    %v3844 = vrot.slane %v3843, 4
    %v3845 = vrot.slane %v1087, 5
    %v3846 = vsel %vm3814, %v3844, %v3845
    %v3847 = vrot.slane %v1088, 5
    %v3848 = vrot.slane %v3847, 4
    %v3849 = vrot.slane %v1089, 5
    %v3850 = vsel %vm3814, %v3848, %v3849
    %v3851 = vrot.slane %v1090, 5
    %v3852 = vrot.slane %v3851, 4
    %v3853 = vrot.slane %v1091, 5
    %v3854 = vsel %vm3814, %v3852, %v3853
    %v3855 = vrot.slane %v1092, 5
    %v3856 = vrot.slane %v3855, 4
    %v3857 = vrot.slane %v1095, 5
    %v3858 = vsel %vm3814, %v3856, %v3857
    %v3859 = vrot.slane %v1093, 5
    %v3860 = vrot.slane %v3859, 4
    %v3861 = vrot.slane %v1096, 5
    %v3862 = vsel %vm3814, %v3860, %v3861
    %v3863 = vrot.slane %v1094, 5
    %v3864 = vrot.slane %v3863, 4
    %v3865 = vrot.slane %v1097, 5
    %v3866 = vsel %vm3814, %v3864, %v3865
    %v3867 = vrot.slane %v1098, 5
    %v3868 = vrot.slane %v3867, 4
    %v3869 = vrot.slane %v1099, 5
    %v3870 = vsel %vm3814, %v3868, %v3869
    %v3871 = vrot.slane %v1100, 5
    %v3872 = vrot.slane %v3871, 4
    %v3873 = vrot.slane %v1101, 5
    %v3874 = vsel %vm3814, %v3872, %v3873
    %v3875 = vrot.slane %v1102, 5
    %v3876 = vrot.slane %v3875, 4
    %v3877 = vrot.slane %v1103, 5
    %v3878 = vsel %vm3814, %v3876, %v3877
    %v3879 = vrot.slane %v1104, 5
    %v3880 = vrot.slane %v3879, 4
    %v3881 = vrot.slane %v1105, 5
    %v3882 = vsel %vm3814, %v3880, %v3881
    %v3883 = vrot.slane %v1106, 5
    %v3884 = vrot.slane %v3883, 4
    %v3885 = vrot.slane %v1107, 5
    %v3886 = vsel %vm3814, %v3884, %v3885
    %v3887 = vrot.slane %v1108, 5
    %v3888 = vrot.slane %v3887, 4
    %v3889 = vrot.slane %v1109, 5
    %v3890 = vsel %vm3814, %v3888, %v3889
    %v3891 = vrot.slane %v1110, 5
    %v3892 = vrot.slane %v3891, 4
    %v3893 = vrot.slane %v1111, 5
    %v3894 = vsel %vm3814, %v3892, %v3893
    %s3895 = scalar_lea.vmem %s3, 1536
    %v3896 = vld [vmem:[%s3895] sm:$0xff]
    %v3897 = vld [vmem:[%s3895 + $0x8] sm:$0xff]
    %v3898 = vld [vmem:[%s3895 + $0x10] sm:$0xff]
    %v3899 = vld [vmem:[%s3895 + $0x18] sm:$0xff]
    %v3900 = vld [vmem:[%s3895 + $0x20] sm:$0xff]
    %v3901 = vld [vmem:[%s3895 + $0x28] sm:$0xff]
    %v3902 = vld [vmem:[%s3895 + $0x30] sm:$0xff]
    %v3903 = vld [vmem:[%s3895 + $0x38] sm:$0xff]
    %v3904 = vld [vmem:[%s3895 + $0x40] sm:$0xff]
    %v3905 = vld [vmem:[%s3895 + $0x48] sm:$0xff]
    %v3906 = vld [vmem:[%s3895 + $0x50] sm:$0xff]
    %v3907 = vld [vmem:[%s3895 + $0x58] sm:$0xff]
    %v3908 = vld [vmem:[%s3895 + $0x60] sm:$0xff]
    %v3909 = vld [vmem:[%s3895 + $0x68] sm:$0xff]
    %v3910 = vld [vmem:[%s3895 + $0x70] sm:$0xff]
    %v3911 = vld [vmem:[%s3895 + $0x78] sm:$0xff]
    %v3912 = vld [vmem:[%s3895 + $0x80] sm:$0xff]
    %v3913 = vld [vmem:[%s3895 + $0x88] sm:$0xff]
    %v3914 = vld [vmem:[%s3895 + $0x90] sm:$0xff]
    %v3915 = vld [vmem:[%s3895 + $0x98] sm:$0xff]
    %v3916 = vld [vmem:[%s3895 + $0xa0] sm:$0xff]
    %v3917 = vld [vmem:[%s3895 + $0xa8] sm:$0xff]
    %v3918 = vld [vmem:[%s3895 + $0xb0] sm:$0xff]
    %v3919 = vld [vmem:[%s3895 + $0xb8] sm:$0xff]
    %v3920 = vld [vmem:[%s3895 + $0xc0] sm:$0xff]
    %v3921 = vld [vmem:[%s3895 + $0xc8] sm:$0xff]
    %v3922 = vld [vmem:[%s3895 + $0xd0] sm:$0xff]
    %v3923 = vld [vmem:[%s3895 + $0xd8] sm:$0xff]
    %v3924 = vld [vmem:[%s3895 + $0xe0] sm:$0xff]
    %v3925 = vld [vmem:[%s3895 + $0xe8] sm:$0xff]
    %v3926 = vld [vmem:[%s3895 + $0xf0] sm:$0xff]
    %v3927 = vld [vmem:[%s3895 + $0xf8] sm:$0xff]
    %v3928 = vld [vmem:[%s3895 + $0x100] sm:$0xff]
    %v3929 = vld [vmem:[%s3895 + $0x108] sm:$0xff]
    %v3930 = vld [vmem:[%s3895 + $0x110] sm:$0xff]
    %v3931 = vld [vmem:[%s3895 + $0x118] sm:$0xff]
    %v3932 = vld [vmem:[%s3895 + $0x120] sm:$0xff]
    %v3933 = vld [vmem:[%s3895 + $0x128] sm:$0xff]
    %v3934 = vld [vmem:[%s3895 + $0x130] sm:$0xff]
    %v3935 = vld [vmem:[%s3895 + $0x138] sm:$0xff]
    %v3936 = vld [vmem:[%s3895 + $0x140] sm:$0xff]
    %v3937 = vld [vmem:[%s3895 + $0x148] sm:$0xff]
    %v3938 = vld [vmem:[%s3895 + $0x150] sm:$0xff]
    %v3939 = vld [vmem:[%s3895 + $0x158] sm:$0xff]
    %v3940 = vld [vmem:[%s3895 + $0x160] sm:$0xff]
    %v3941 = vld [vmem:[%s3895 + $0x168] sm:$0xff]
    %v3942 = vld [vmem:[%s3895 + $0x170] sm:$0xff]
    %v3943 = vld [vmem:[%s3895 + $0x178] sm:$0xff]
    %v3944 = vld [vmem:[%s3895 + $0x180] sm:$0xff]
    %v3945 = vld [vmem:[%s3895 + $0x188] sm:$0xff]
    %v3946 = vld [vmem:[%s3895 + $0x190] sm:$0xff]
    %v3947 = vld [vmem:[%s3895 + $0x198] sm:$0xff]
    %v3948 = vld [vmem:[%s3895 + $0x1a0] sm:$0xff]
    %v3949 = vld [vmem:[%s3895 + $0x1a8] sm:$0xff]
    %v3950 = vld [vmem:[%s3895 + $0x1b0] sm:$0xff]
    %v3951 = vld [vmem:[%s3895 + $0x1b8] sm:$0xff]
    %v3952 = vld [vmem:[%s3895 + $0x1c0] sm:$0xff]
    %v3953 = vld [vmem:[%s3895 + $0x1c8] sm:$0xff]
    %v3954 = vld [vmem:[%s3895 + $0x1d0] sm:$0xff]
    %v3955 = vld [vmem:[%s3895 + $0x1d8] sm:$0xff]
    %v3956 = vld [vmem:[%s3895 + $0x1e0] sm:$0xff]
    %v3957 = vld [vmem:[%s3895 + $0x1e8] sm:$0xff]
    %v3958 = vld [vmem:[%s3895 + $0x1f0] sm:$0xff]
    %v3959 = vld [vmem:[%s3895 + $0x1f8] sm:$0xff]
    %v3960 = vld [vmem:[%s3895 + $0x200] sm:$0xff]
    %v3961 = vld [vmem:[%s3895 + $0x208] sm:$0xff]
    %v3962 = vld [vmem:[%s3895 + $0x210] sm:$0xff]
    %v3963 = vld [vmem:[%s3895 + $0x218] sm:$0xff]
    %v3964 = vld [vmem:[%s3895 + $0x220] sm:$0xff]
    %v3965 = vld [vmem:[%s3895 + $0x228] sm:$0xff]
    %v3966 = vld [vmem:[%s3895 + $0x230] sm:$0xff]
    %v3967 = vld [vmem:[%s3895 + $0x238] sm:$0xff]
    %v3968 = vld [vmem:[%s3895 + $0x240] sm:$0xff]
    %v3969 = vld [vmem:[%s3895 + $0x248] sm:$0xff]
    %v3970 = vld [vmem:[%s3895 + $0x250] sm:$0xff]
    %v3971 = vld [vmem:[%s3895 + $0x258] sm:$0xff]
    %v3972 = vld [vmem:[%s3895 + $0x260] sm:$0xff]
    %v3973 = vld [vmem:[%s3895 + $0x268] sm:$0xff]
    %v3974 = vld [vmem:[%s3895 + $0x270] sm:$0xff]
    %v3975 = vld [vmem:[%s3895 + $0x278] sm:$0xff]
    %v3976 = vld [vmem:[%s3895 + $0x280] sm:$0xff]
    %v3977 = vld [vmem:[%s3895 + $0x288] sm:$0xff]
    %v3978 = vld [vmem:[%s3895 + $0x290] sm:$0xff]
    %v3979 = vld [vmem:[%s3895 + $0x298] sm:$0xff]
    %v3980 = vld [vmem:[%s3895 + $0x2a0] sm:$0xff]
    %v3981 = vld [vmem:[%s3895 + $0x2a8] sm:$0xff]
    %v3982 = vld [vmem:[%s3895 + $0x2b0] sm:$0xff]
    %v3983 = vld [vmem:[%s3895 + $0x2b8] sm:$0xff]
    %v3984 = vld [vmem:[%s3895 + $0x2c0] sm:$0xff]
    %v3985 = vld [vmem:[%s3895 + $0x2c8] sm:$0xff]
    %v3986 = vld [vmem:[%s3895 + $0x2d0] sm:$0xff]
    %v3987 = vld [vmem:[%s3895 + $0x2d8] sm:$0xff]
    %v3988 = vld [vmem:[%s3895 + $0x2e0] sm:$0xff]
    %v3989 = vld [vmem:[%s3895 + $0x2e8] sm:$0xff]
    %v3990 = vld [vmem:[%s3895 + $0x2f0] sm:$0xff]
    %v3991 = vld [vmem:[%s3895 + $0x2f8] sm:$0xff]
    %v3992 = vunpack.c.l.b16 %v3818
    %v3993 = vunpack.c.h.b16 %v3818
    %v3994 = vunpack.c.l.b16 %v3822
    %v3995 = vunpack.c.h.b16 %v3822
    %v3996 = vunpack.c.l.b16 %v3826
    %v3997 = vunpack.c.h.b16 %v3826
    %v3998 = vunpack.c.l.b16 %v3830
    %v3999 = vunpack.c.h.b16 %v3830
    %v4000 = vunpack.c.l.b16 %v3834
    %v4001 = vunpack.c.h.b16 %v3834
    %v4002 = vunpack.c.l.b16 %v3838
    %v4003 = vunpack.c.h.b16 %v3838
    %v4004 = vunpack.c.l.b16 %v3842
    %v4005 = vunpack.c.h.b16 %v3842
    %v4006 = vunpack.c.l.b16 %v3846
    %v4007 = vunpack.c.h.b16 %v3846
    %v4008 = vunpack.c.l.b16 %v3850
    %v4009 = vunpack.c.h.b16 %v3850
    %v4010 = vunpack.c.l.b16 %v3854
    %v4011 = vunpack.c.h.b16 %v3854
    %v4012 = vunpack.c.l.b16 %v3858
    %v4013 = vunpack.c.h.b16 %v3858
    %v4014 = vunpack.c.l.b16 %v3862
    %v4015 = vunpack.c.h.b16 %v3862
    %v4016 = vunpack.c.l.b16 %v3866
    %v4017 = vunpack.c.h.b16 %v3866
    %v4018 = vunpack.c.l.b16 %v3870
    %v4019 = vunpack.c.h.b16 %v3870
    %v4020 = vunpack.c.l.b16 %v3874
    %v4021 = vunpack.c.h.b16 %v3874
    %v4022 = vunpack.c.l.b16 %v3878
    %v4023 = vunpack.c.h.b16 %v3878
    %v4024 = vunpack.c.l.b16 %v3882
    %v4025 = vunpack.c.h.b16 %v3882
    %v4026 = vunpack.c.l.b16 %v3886
    %v4027 = vunpack.c.h.b16 %v3886
    %v4028 = vunpack.c.l.b16 %v3890
    %v4029 = vunpack.c.h.b16 %v3890
    %v4030 = vunpack.c.l.b16 %v3894
    %v4031 = vunpack.c.h.b16 %v3894
    %v4032 = vpack.c.b16 %v3994, %v3992
    %v4033 = vpack.c.b16 %v3995, %v3993
    %v4034 = vpack.c.b16 %v3996, %v3994
    %v4035 = vpack.c.b16 %v3997, %v3995
    %v4036 = vpack.c.b16 %v3998, %v3996
    %v4037 = vpack.c.b16 %v3999, %v3997
    %v4038 = vpack.c.b16 %v4000, %v3998
    %v4039 = vpack.c.b16 %v4001, %v3999
    %v4040 = vpack.c.b16 %v4002, %v4000
    %v4041 = vpack.c.b16 %v4003, %v4001
    %v4042 = vpack.c.b16 %v4004, %v4002
    %v4043 = vpack.c.b16 %v4005, %v4003
    %v4044 = vpack.c.b16 %v4006, %v4004
    %v4045 = vpack.c.b16 %v4007, %v4005
    %v4046 = vpack.c.b16 %v4008, %v4006
    %v4047 = vpack.c.b16 %v4009, %v4007
    %v4048 = vpack.c.b16 %v4010, %v4008
    %v4049 = vpack.c.b16 %v4011, %v4009
    %v4050 = vpack.c.b16 %v4014, %v4012
    %v4051 = vpack.c.b16 %v4015, %v4013
    %v4052 = vpack.c.b16 %v4016, %v4014
    %v4053 = vpack.c.b16 %v4017, %v4015
    %v4054 = vpack.c.b16 %v4018, %v4016
    %v4055 = vpack.c.b16 %v4019, %v4017
    %v4056 = vpack.c.b16 %v4020, %v4018
    %v4057 = vpack.c.b16 %v4021, %v4019
    %v4058 = vpack.c.b16 %v4022, %v4020
    %v4059 = vpack.c.b16 %v4023, %v4021
    %v4060 = vpack.c.b16 %v4024, %v4022
    %v4061 = vpack.c.b16 %v4025, %v4023
    %v4062 = vpack.c.b16 %v4026, %v4024
    %v4063 = vpack.c.b16 %v4027, %v4025
    %v4064 = vpack.c.b16 %v4028, %v4026
    %v4065 = vpack.c.b16 %v4029, %v4027
    %v4066 = vpack.c.b16 %v4030, %v4028
    %v4067 = vpack.c.b16 %v4031, %v4029
    %v4200 = vunpack.c.l.b16 %v3896
    %v4201 = vunpack.c.h.b16 %v3896
    %v4202 = vunpack.c.l.b16 %v3897
    %v4203 = vunpack.c.h.b16 %v3897
    %v4204 = vunpack.c.l.b16 %v3898
    %v4205 = vunpack.c.h.b16 %v3898
    %v4206 = vunpack.c.l.b16 %v3899
    %v4207 = vunpack.c.h.b16 %v3899
    %v4208 = vunpack.c.l.b16 %v3900
    %v4209 = vunpack.c.h.b16 %v3900
    %v4210 = vunpack.c.l.b16 %v3901
    %v4211 = vunpack.c.h.b16 %v3901
    %v4212 = vunpack.c.l.b16 %v3902
    %v4213 = vunpack.c.h.b16 %v3902
    %v4214 = vunpack.c.l.b16 %v3903
    %v4215 = vunpack.c.h.b16 %v3903
    %v4216 = vunpack.c.l.b16 %v3904
    %v4217 = vunpack.c.h.b16 %v3904
    %v4218 = vunpack.c.l.b16 %v3905
    %v4219 = vunpack.c.h.b16 %v3905
    %v4220 = vunpack.c.l.b16 %v3906
    %v4221 = vunpack.c.h.b16 %v3906
    %v4222 = vunpack.c.l.b16 %v3907
    %v4223 = vunpack.c.h.b16 %v3907
    %v4224 = vunpack.c.l.b16 %v3908
    %v4225 = vunpack.c.h.b16 %v3908
    %v4226 = vunpack.c.l.b16 %v3909
    %v4227 = vunpack.c.h.b16 %v3909
    %v4228 = vunpack.c.l.b16 %v3910
    %v4229 = vunpack.c.h.b16 %v3910
    %v4230 = vunpack.c.l.b16 %v3911
    %v4231 = vunpack.c.h.b16 %v3911
    %v4232 = vunpack.c.l.b16 %v3912
    %v4233 = vunpack.c.h.b16 %v3912
    %v4234 = vunpack.c.l.b16 %v3913
    %v4235 = vunpack.c.h.b16 %v3913
    %v4236 = vunpack.c.l.b16 %v3914
    %v4237 = vunpack.c.h.b16 %v3914
    %v4238 = vunpack.c.l.b16 %v3915
    %v4239 = vunpack.c.h.b16 %v3915
    %v4240 = vunpack.c.l.b16 %v3916
    %v4241 = vunpack.c.h.b16 %v3916
    %v4242 = vunpack.c.l.b16 %v3917
    %v4243 = vunpack.c.h.b16 %v3917
    %v4244 = vunpack.c.l.b16 %v3918
    %v4245 = vunpack.c.h.b16 %v3918
    %v4246 = vunpack.c.l.b16 %v3919
    %v4247 = vunpack.c.h.b16 %v3919
    %v4248 = vunpack.c.l.b16 %v3920
    %v4249 = vunpack.c.h.b16 %v3920
    %v4250 = vunpack.c.l.b16 %v3921
    %v4251 = vunpack.c.h.b16 %v3921
    %v4252 = vunpack.c.l.b16 %v3922
    %v4253 = vunpack.c.h.b16 %v3922
    %v4254 = vunpack.c.l.b16 %v3923
    %v4255 = vunpack.c.h.b16 %v3923
    %v4256 = vunpack.c.l.b16 %v3924
    %v4257 = vunpack.c.h.b16 %v3924
    %v4258 = vunpack.c.l.b16 %v3925
    %v4259 = vunpack.c.h.b16 %v3925
    %v4260 = vunpack.c.l.b16 %v3926
    %v4261 = vunpack.c.h.b16 %v3926
    %v4262 = vunpack.c.l.b16 %v3927
    %v4263 = vunpack.c.h.b16 %v3927
    %v4264 = vunpack.c.l.b16 %v3928
    %v4265 = vunpack.c.h.b16 %v3928
    %v4266 = vunpack.c.l.b16 %v3929
    %v4267 = vunpack.c.h.b16 %v3929
    %v4268 = vunpack.c.l.b16 %v3930
    %v4269 = vunpack.c.h.b16 %v3930
    %v4270 = vunpack.c.l.b16 %v3931
    %v4271 = vunpack.c.h.b16 %v3931
    %v4272 = vunpack.c.l.b16 %v3932
    %v4273 = vunpack.c.h.b16 %v3932
    %v4274 = vunpack.c.l.b16 %v3933
    %v4275 = vunpack.c.h.b16 %v3933
    %v4276 = vunpack.c.l.b16 %v3934
    %v4277 = vunpack.c.h.b16 %v3934
    %v4278 = vunpack.c.l.b16 %v3935
    %v4279 = vunpack.c.h.b16 %v3935
    %v4280 = vunpack.c.l.b16 %v3936
    %v4281 = vunpack.c.h.b16 %v3936
    %v4282 = vunpack.c.l.b16 %v3937
    %v4283 = vunpack.c.h.b16 %v3937
    %v4284 = vunpack.c.l.b16 %v3938
    %v4285 = vunpack.c.h.b16 %v3938
    %v4286 = vunpack.c.l.b16 %v3939
    %v4287 = vunpack.c.h.b16 %v3939
    %v4288 = vunpack.c.l.b16 %v3940
    %v4289 = vunpack.c.h.b16 %v3940
    %v4290 = vunpack.c.l.b16 %v3941
    %v4291 = vunpack.c.h.b16 %v3941
    %v4292 = vunpack.c.l.b16 %v3942
    %v4293 = vunpack.c.h.b16 %v3942
    %v4294 = vunpack.c.l.b16 %v3943
    %v4295 = vunpack.c.h.b16 %v3943
    %v4296 = vunpack.c.l.b16 %v3944
    %v4297 = vunpack.c.h.b16 %v3944
    %v4298 = vunpack.c.l.b16 %v3945
    %v4299 = vunpack.c.h.b16 %v3945
    %v4300 = vunpack.c.l.b16 %v3946
    %v4301 = vunpack.c.h.b16 %v3946
    %v4302 = vunpack.c.l.b16 %v3947
    %v4303 = vunpack.c.h.b16 %v3947
    %v4304 = vunpack.c.l.b16 %v3948
    %v4305 = vunpack.c.h.b16 %v3948
    %v4306 = vunpack.c.l.b16 %v3949
    %v4307 = vunpack.c.h.b16 %v3949
    %v4308 = vunpack.c.l.b16 %v3950
    %v4309 = vunpack.c.h.b16 %v3950
    %v4310 = vunpack.c.l.b16 %v3951
    %v4311 = vunpack.c.h.b16 %v3951
    %v4312 = vunpack.c.l.b16 %v3952
    %v4313 = vunpack.c.h.b16 %v3952
    %v4314 = vunpack.c.l.b16 %v3953
    %v4315 = vunpack.c.h.b16 %v3953
    %v4316 = vunpack.c.l.b16 %v3954
    %v4317 = vunpack.c.h.b16 %v3954
    %v4318 = vunpack.c.l.b16 %v3955
    %v4319 = vunpack.c.h.b16 %v3955
    %v4320 = vunpack.c.l.b16 %v3956
    %v4321 = vunpack.c.h.b16 %v3956
    %v4322 = vunpack.c.l.b16 %v3957
    %v4323 = vunpack.c.h.b16 %v3957
    %v4324 = vunpack.c.l.b16 %v3958
    %v4325 = vunpack.c.h.b16 %v3958
    %v4326 = vunpack.c.l.b16 %v3959
    %v4327 = vunpack.c.h.b16 %v3959
    %v4328 = vunpack.c.l.b16 %v3960
    %v4329 = vunpack.c.h.b16 %v3960
    %v4330 = vunpack.c.l.b16 %v3961
    %v4331 = vunpack.c.h.b16 %v3961
    %v4332 = vunpack.c.l.b16 %v3962
    %v4333 = vunpack.c.h.b16 %v3962
    %v4334 = vunpack.c.l.b16 %v3963
    %v4335 = vunpack.c.h.b16 %v3963
    %v4336 = vunpack.c.l.b16 %v3964
    %v4337 = vunpack.c.h.b16 %v3964
    %v4338 = vunpack.c.l.b16 %v3965
    %v4339 = vunpack.c.h.b16 %v3965
    %v4340 = vunpack.c.l.b16 %v3966
    %v4341 = vunpack.c.h.b16 %v3966
    %v4342 = vunpack.c.l.b16 %v3967
    %v4343 = vunpack.c.h.b16 %v3967
    %v4344 = vunpack.c.l.b16 %v3968
    %v4345 = vunpack.c.h.b16 %v3968
    %v4346 = vunpack.c.l.b16 %v3969
    %v4347 = vunpack.c.h.b16 %v3969
    %v4348 = vunpack.c.l.b16 %v3970
    %v4349 = vunpack.c.h.b16 %v3970
    %v4350 = vunpack.c.l.b16 %v3971
    %v4351 = vunpack.c.h.b16 %v3971
    %v4352 = vunpack.c.l.b16 %v3972
    %v4353 = vunpack.c.h.b16 %v3972
    %v4354 = vunpack.c.l.b16 %v3973
    %v4355 = vunpack.c.h.b16 %v3973
    %v4356 = vunpack.c.l.b16 %v3974
    %v4357 = vunpack.c.h.b16 %v3974
    %v4358 = vunpack.c.l.b16 %v3975
    %v4359 = vunpack.c.h.b16 %v3975
    %v4360 = vunpack.c.l.b16 %v3976
    %v4361 = vunpack.c.h.b16 %v3976
    %v4362 = vunpack.c.l.b16 %v3977
    %v4363 = vunpack.c.h.b16 %v3977
    %v4364 = vunpack.c.l.b16 %v3978
    %v4365 = vunpack.c.h.b16 %v3978
    %v4366 = vunpack.c.l.b16 %v3979
    %v4367 = vunpack.c.h.b16 %v3979
    %v4368 = vunpack.c.l.b16 %v3980
    %v4369 = vunpack.c.h.b16 %v3980
    %v4370 = vunpack.c.l.b16 %v3981
    %v4371 = vunpack.c.h.b16 %v3981
    %v4372 = vunpack.c.l.b16 %v3982
    %v4373 = vunpack.c.h.b16 %v3982
    %v4374 = vunpack.c.l.b16 %v3983
    %v4375 = vunpack.c.h.b16 %v3983
    %v4376 = vunpack.c.l.b16 %v3984
    %v4377 = vunpack.c.h.b16 %v3984
    %v4378 = vunpack.c.l.b16 %v3985
    %v4379 = vunpack.c.h.b16 %v3985
    %v4380 = vunpack.c.l.b16 %v3986
    %v4381 = vunpack.c.h.b16 %v3986
    %v4382 = vunpack.c.l.b16 %v3987
    %v4383 = vunpack.c.h.b16 %v3987
    %v4384 = vunpack.c.l.b16 %v3988
    %v4385 = vunpack.c.h.b16 %v3988
    %v4386 = vunpack.c.l.b16 %v3989
    %v4387 = vunpack.c.h.b16 %v3989
    %v4388 = vunpack.c.l.b16 %v3990
    %v4389 = vunpack.c.h.b16 %v3990
    %v4390 = vunpack.c.l.b16 %v3991
    %v4391 = vunpack.c.h.b16 %v3991
    %v4392 = vpack.c.b16 %v4202, %v4200
    %v4393 = vpack.c.b16 %v4203, %v4201
    %v4394 = vpack.c.b16 %v4206, %v4204
    %v4395 = vpack.c.b16 %v4207, %v4205
    %v4396 = vpack.c.b16 %v4210, %v4208
    %v4397 = vpack.c.b16 %v4211, %v4209
    %v4398 = vpack.c.b16 %v4214, %v4212
    %v4399 = vpack.c.b16 %v4215, %v4213
    %v4400 = vpack.c.b16 %v4218, %v4216
    %v4401 = vpack.c.b16 %v4219, %v4217
    %v4402 = vpack.c.b16 %v4222, %v4220
    %v4403 = vpack.c.b16 %v4223, %v4221
    %v4404 = vpack.c.b16 %v4226, %v4224
    %v4405 = vpack.c.b16 %v4227, %v4225
    %v4406 = vpack.c.b16 %v4230, %v4228
    %v4407 = vpack.c.b16 %v4231, %v4229
    %v4408 = vpack.c.b16 %v4234, %v4232
    %v4409 = vpack.c.b16 %v4235, %v4233
    %v4410 = vpack.c.b16 %v4238, %v4236
    %v4411 = vpack.c.b16 %v4239, %v4237
    %v4412 = vpack.c.b16 %v4242, %v4240
    %v4413 = vpack.c.b16 %v4243, %v4241
    %v4414 = vpack.c.b16 %v4246, %v4244
    %v4415 = vpack.c.b16 %v4247, %v4245
    %v4416 = vpack.c.b16 %v4250, %v4248
    %v4417 = vpack.c.b16 %v4251, %v4249
    %v4418 = vpack.c.b16 %v4254, %v4252
    %v4419 = vpack.c.b16 %v4255, %v4253
    %v4420 = vpack.c.b16 %v4258, %v4256
    %v4421 = vpack.c.b16 %v4259, %v4257
    %v4422 = vpack.c.b16 %v4262, %v4260
    %v4423 = vpack.c.b16 %v4263, %v4261
    %v4424 = vpack.c.b16 %v4266, %v4264
    %v4425 = vpack.c.b16 %v4267, %v4265
    %v4426 = vpack.c.b16 %v4270, %v4268
    %v4427 = vpack.c.b16 %v4271, %v4269
    %v4428 = vpack.c.b16 %v4274, %v4272
    %v4429 = vpack.c.b16 %v4275, %v4273
    %v4430 = vpack.c.b16 %v4278, %v4276
    %v4431 = vpack.c.b16 %v4279, %v4277
    %v4432 = vpack.c.b16 %v4282, %v4280
    %v4433 = vpack.c.b16 %v4283, %v4281
    %v4434 = vpack.c.b16 %v4286, %v4284
    %v4435 = vpack.c.b16 %v4287, %v4285
    %v4436 = vpack.c.b16 %v4290, %v4288
    %v4437 = vpack.c.b16 %v4291, %v4289
    %v4438 = vpack.c.b16 %v4294, %v4292
    %v4439 = vpack.c.b16 %v4295, %v4293
    %v4440 = vpack.c.b16 %v4298, %v4296
    %v4441 = vpack.c.b16 %v4299, %v4297
    %v4442 = vpack.c.b16 %v4302, %v4300
    %v4443 = vpack.c.b16 %v4303, %v4301
    %v4444 = vpack.c.b16 %v4306, %v4304
    %v4445 = vpack.c.b16 %v4307, %v4305
    %v4446 = vpack.c.b16 %v4310, %v4308
    %v4447 = vpack.c.b16 %v4311, %v4309
    %v4448 = vpack.c.b16 %v4314, %v4312
    %v4449 = vpack.c.b16 %v4315, %v4313
    %v4450 = vpack.c.b16 %v4318, %v4316
    %v4451 = vpack.c.b16 %v4319, %v4317
    %v4452 = vpack.c.b16 %v4322, %v4320
    %v4453 = vpack.c.b16 %v4323, %v4321
    %v4454 = vpack.c.b16 %v4326, %v4324
    %v4455 = vpack.c.b16 %v4327, %v4325
    %v4456 = vpack.c.b16 %v4330, %v4328
    %v4457 = vpack.c.b16 %v4331, %v4329
    %v4458 = vpack.c.b16 %v4334, %v4332
    %v4459 = vpack.c.b16 %v4335, %v4333
    %v4460 = vpack.c.b16 %v4338, %v4336
    %v4461 = vpack.c.b16 %v4339, %v4337
    %v4462 = vpack.c.b16 %v4342, %v4340
    %v4463 = vpack.c.b16 %v4343, %v4341
    %v4464 = vpack.c.b16 %v4346, %v4344
    %v4465 = vpack.c.b16 %v4347, %v4345
    %v4466 = vpack.c.b16 %v4350, %v4348
    %v4467 = vpack.c.b16 %v4351, %v4349
    %v4468 = vpack.c.b16 %v4354, %v4352
    %v4469 = vpack.c.b16 %v4355, %v4353
    %v4470 = vpack.c.b16 %v4358, %v4356
    %v4471 = vpack.c.b16 %v4359, %v4357
    %v4472 = vpack.c.b16 %v4362, %v4360
    %v4473 = vpack.c.b16 %v4363, %v4361
    %v4474 = vpack.c.b16 %v4366, %v4364
    %v4475 = vpack.c.b16 %v4367, %v4365
    %v4476 = vpack.c.b16 %v4370, %v4368
    %v4477 = vpack.c.b16 %v4371, %v4369
    %v4478 = vpack.c.b16 %v4374, %v4372
    %v4479 = vpack.c.b16 %v4375, %v4373
    %v4480 = vpack.c.b16 %v4378, %v4376
    %v4481 = vpack.c.b16 %v4379, %v4377
    %v4482 = vpack.c.b16 %v4382, %v4380
    %v4483 = vpack.c.b16 %v4383, %v4381
    %v4484 = vpack.c.b16 %v4386, %v4384
    %v4485 = vpack.c.b16 %v4387, %v4385
    %v4486 = vpack.c.b16 %v4390, %v4388
    %v4487 = vpack.c.b16 %v4391, %v4389
    %4584 = vmatpush.bf16.msra.mxu0 %v4406
    %4585 = vmatpush.bf16.msra.mxu0 %v4404
    %4586 = vmatpush.bf16.msra.mxu0 %v4402
    %4587 = vmatpush.bf16.msra.mxu0 %v4400
    %4588 = vmatpush.bf16.msra.mxu0 %v4398
    %4589 = vmatpush.bf16.msra.mxu0 %v4396
    %4590 = vmatpush.bf16.msra.mxu0 %v4394
    %4591 = vmatpush.bf16.msra.mxu0 %v4392
    %4592 = vmatmul.bf16.gmra.mxu0 %v4032
    %v4593 = vpop.f32.mrf.mxu0
    %v4594 = vadd.f32 0.0, %v4593
    %v4595 = vpop.f32.mrf.mxu0
    %v4596 = vadd.f32 0.0, %v4595
    %4597 = vmatmul.bf16.gmra.mxu0 %v4036
    %v4598 = vpop.f32.mrf.mxu0
    %v4599 = vadd.f32 0.0, %v4598
    %v4600 = vpop.f32.mrf.mxu0
    %v4601 = vadd.f32 0.0, %v4600
    %4602 = vmatmul.bf16.gmra.mxu0 %v4040
    %v4603 = vpop.f32.mrf.mxu0
    %v4604 = vadd.f32 0.0, %v4603
    %v4605 = vpop.f32.mrf.mxu0
    %v4606 = vadd.f32 0.0, %v4605
    %4607 = vmatmul.bf16.gmra.mxu0 %v4044
    %v4608 = vpop.f32.mrf.mxu0
    %v4609 = vadd.f32 0.0, %v4608
    %v4610 = vpop.f32.mrf.mxu0
    %v4611 = vadd.f32 0.0, %v4610
    %4612 = vmatmul.bf16.gmra.mxu0 %v4050
    %v4613 = vpop.f32.mrf.mxu0
    %v4614 = vadd.f32 0.0, %v4613
    %v4615 = vpop.f32.mrf.mxu0
    %v4616 = vadd.f32 0.0, %v4615
    %4617 = vmatmul.bf16.gmra.mxu0 %v4054
    %v4618 = vpop.f32.mrf.mxu0
    %v4619 = vadd.f32 0.0, %v4618
    %v4620 = vpop.f32.mrf.mxu0
    %v4621 = vadd.f32 0.0, %v4620
    %4622 = vmatmul.bf16.gmra.mxu0 %v4058
    %v4623 = vpop.f32.mrf.mxu0
    %v4624 = vadd.f32 0.0, %v4623
    %v4625 = vpop.f32.mrf.mxu0
    %v4626 = vadd.f32 0.0, %v4625
    %4627 = vmatmul.bf16.gmra.mxu0 %v4062
    %v4628 = vpop.f32.mrf.mxu0
    %v4629 = vadd.f32 0.0, %v4628
    %v4630 = vpop.f32.mrf.mxu0
    %v4631 = vadd.f32 0.0, %v4630
    %4632 = vdwg.mxu0
    %4633 = vmatpush.bf16.msra.mxu0 %v4422
    %4634 = vmatpush.bf16.msra.mxu0 %v4420
    %4635 = vmatpush.bf16.msra.mxu0 %v4418
    %4636 = vmatpush.bf16.msra.mxu0 %v4416
    %4637 = vmatpush.bf16.msra.mxu0 %v4414
    %4638 = vmatpush.bf16.msra.mxu0 %v4412
    %4639 = vmatpush.bf16.msra.mxu0 %v4410
    %4640 = vmatpush.bf16.msra.mxu0 %v4408
    %4641 = vmatmul.bf16.gmra.mxu0 %v4033
    %v4642 = vpop.f32.mrf.mxu0
    %v4643 = vadd.f32 %v4594, %v4642
    %v4644 = vpop.f32.mrf.mxu0
    %v4645 = vadd.f32 %v4596, %v4644
    %4646 = vmatmul.bf16.gmra.mxu0 %v4037
    %v4647 = vpop.f32.mrf.mxu0
    %v4648 = vadd.f32 %v4599, %v4647
    %v4649 = vpop.f32.mrf.mxu0
    %v4650 = vadd.f32 %v4601, %v4649
    %4651 = vmatmul.bf16.gmra.mxu0 %v4041
    %v4652 = vpop.f32.mrf.mxu0
    %v4653 = vadd.f32 %v4604, %v4652
    %v4654 = vpop.f32.mrf.mxu0
    %v4655 = vadd.f32 %v4606, %v4654
    %4656 = vmatmul.bf16.gmra.mxu0 %v4045
    %v4657 = vpop.f32.mrf.mxu0
    %v4658 = vadd.f32 %v4609, %v4657
    %v4659 = vpop.f32.mrf.mxu0
    %v4660 = vadd.f32 %v4611, %v4659
    %4661 = vmatmul.bf16.gmra.mxu0 %v4051
    %v4662 = vpop.f32.mrf.mxu0
    %v4663 = vadd.f32 %v4614, %v4662
    %v4664 = vpop.f32.mrf.mxu0
    %v4665 = vadd.f32 %v4616, %v4664
    %4666 = vmatmul.bf16.gmra.mxu0 %v4055
    %v4667 = vpop.f32.mrf.mxu0
    %v4668 = vadd.f32 %v4619, %v4667
    %v4669 = vpop.f32.mrf.mxu0
    %v4670 = vadd.f32 %v4621, %v4669
    %4671 = vmatmul.bf16.gmra.mxu0 %v4059
    %v4672 = vpop.f32.mrf.mxu0
    %v4673 = vadd.f32 %v4624, %v4672
    %v4674 = vpop.f32.mrf.mxu0
    %v4675 = vadd.f32 %v4626, %v4674
    %4676 = vmatmul.bf16.gmra.mxu0 %v4063
    %v4677 = vpop.f32.mrf.mxu0
    %v4678 = vadd.f32 %v4629, %v4677
    %v4679 = vpop.f32.mrf.mxu0
    %v4680 = vadd.f32 %v4631, %v4679
    %4681 = vdwg.mxu0
    %4682 = vmatpush.bf16.msra.mxu0 %v4438
    %4683 = vmatpush.bf16.msra.mxu0 %v4436
    %4684 = vmatpush.bf16.msra.mxu0 %v4434
    %4685 = vmatpush.bf16.msra.mxu0 %v4432
    %4686 = vmatpush.bf16.msra.mxu0 %v4430
    %4687 = vmatpush.bf16.msra.mxu0 %v4428
    %4688 = vmatpush.bf16.msra.mxu0 %v4426
    %4689 = vmatpush.bf16.msra.mxu0 %v4424
    %4690 = vmatmul.bf16.gmra.mxu0 %v4034
    %v4691 = vpop.f32.mrf.mxu0
    %v4692 = vadd.f32 %v4643, %v4691
    %v4693 = vpop.f32.mrf.mxu0
    %v4694 = vadd.f32 %v4645, %v4693
    %4695 = vmatmul.bf16.gmra.mxu0 %v4038
    %v4696 = vpop.f32.mrf.mxu0
    %v4697 = vadd.f32 %v4648, %v4696
    %v4698 = vpop.f32.mrf.mxu0
    %v4699 = vadd.f32 %v4650, %v4698
    %4700 = vmatmul.bf16.gmra.mxu0 %v4042
    %v4701 = vpop.f32.mrf.mxu0
    %v4702 = vadd.f32 %v4653, %v4701
    %v4703 = vpop.f32.mrf.mxu0
    %v4704 = vadd.f32 %v4655, %v4703
    %4705 = vmatmul.bf16.gmra.mxu0 %v4046
    %v4706 = vpop.f32.mrf.mxu0
    %v4707 = vadd.f32 %v4658, %v4706
    %v4708 = vpop.f32.mrf.mxu0
    %v4709 = vadd.f32 %v4660, %v4708
    %4710 = vmatmul.bf16.gmra.mxu0 %v4052
    %v4711 = vpop.f32.mrf.mxu0
    %v4712 = vadd.f32 %v4663, %v4711
    %v4713 = vpop.f32.mrf.mxu0
    %v4714 = vadd.f32 %v4665, %v4713
    %4715 = vmatmul.bf16.gmra.mxu0 %v4056
    %v4716 = vpop.f32.mrf.mxu0
    %v4717 = vadd.f32 %v4668, %v4716
    %v4718 = vpop.f32.mrf.mxu0
    %v4719 = vadd.f32 %v4670, %v4718
    %4720 = vmatmul.bf16.gmra.mxu0 %v4060
    %v4721 = vpop.f32.mrf.mxu0
    %v4722 = vadd.f32 %v4673, %v4721
    %v4723 = vpop.f32.mrf.mxu0
    %v4724 = vadd.f32 %v4675, %v4723
    %4725 = vmatmul.bf16.gmra.mxu0 %v4064
    %v4726 = vpop.f32.mrf.mxu0
    %v4727 = vadd.f32 %v4678, %v4726
    %v4728 = vpop.f32.mrf.mxu0
    %v4729 = vadd.f32 %v4680, %v4728
    %4730 = vdwg.mxu0
    %4731 = vmatpush.bf16.msra.mxu0 %v4454
    %4732 = vmatpush.bf16.msra.mxu0 %v4452
    %4733 = vmatpush.bf16.msra.mxu0 %v4450
    %4734 = vmatpush.bf16.msra.mxu0 %v4448
    %4735 = vmatpush.bf16.msra.mxu0 %v4446
    %4736 = vmatpush.bf16.msra.mxu0 %v4444
    %4737 = vmatpush.bf16.msra.mxu0 %v4442
    %4738 = vmatpush.bf16.msra.mxu0 %v4440
    %4739 = vmatmul.bf16.gmra.mxu0 %v4035
    %v4740 = vpop.f32.mrf.mxu0
    %v4741 = vadd.f32 %v4692, %v4740
    %v4742 = vpop.f32.mrf.mxu0
    %v4743 = vadd.f32 %v4694, %v4742
    %4744 = vmatmul.bf16.gmra.mxu0 %v4039
    %v4745 = vpop.f32.mrf.mxu0
    %v4746 = vadd.f32 %v4697, %v4745
    %v4747 = vpop.f32.mrf.mxu0
    %v4748 = vadd.f32 %v4699, %v4747
    %4749 = vmatmul.bf16.gmra.mxu0 %v4043
    %v4750 = vpop.f32.mrf.mxu0
    %v4751 = vadd.f32 %v4702, %v4750
    %v4752 = vpop.f32.mrf.mxu0
    %v4753 = vadd.f32 %v4704, %v4752
    %4754 = vmatmul.bf16.gmra.mxu0 %v4047
    %v4755 = vpop.f32.mrf.mxu0
    %v4756 = vadd.f32 %v4707, %v4755
    %v4757 = vpop.f32.mrf.mxu0
    %v4758 = vadd.f32 %v4709, %v4757
    %4759 = vmatmul.bf16.gmra.mxu0 %v4053
    %v4760 = vpop.f32.mrf.mxu0
    %v4761 = vadd.f32 %v4712, %v4760
    %v4762 = vpop.f32.mrf.mxu0
    %v4763 = vadd.f32 %v4714, %v4762
    %4764 = vmatmul.bf16.gmra.mxu0 %v4057
    %v4765 = vpop.f32.mrf.mxu0
    %v4766 = vadd.f32 %v4717, %v4765
    %v4767 = vpop.f32.mrf.mxu0
    %v4768 = vadd.f32 %v4719, %v4767
    %4769 = vmatmul.bf16.gmra.mxu0 %v4061
    %v4770 = vpop.f32.mrf.mxu0
    %v4771 = vadd.f32 %v4722, %v4770
    %v4772 = vpop.f32.mrf.mxu0
    %v4773 = vadd.f32 %v4724, %v4772
    %4774 = vmatmul.bf16.gmra.mxu0 %v4065
    %v4775 = vpop.f32.mrf.mxu0
    %v4776 = vadd.f32 %v4727, %v4775
    %v4777 = vpop.f32.mrf.mxu0
    %v4778 = vadd.f32 %v4729, %v4777
    %4779 = vdwg.mxu0
    %4780 = vmatpush.bf16.msra.mxu0 %v4470
    %4781 = vmatpush.bf16.msra.mxu0 %v4468
    %4782 = vmatpush.bf16.msra.mxu0 %v4466
    %4783 = vmatpush.bf16.msra.mxu0 %v4464
    %4784 = vmatpush.bf16.msra.mxu0 %v4462
    %4785 = vmatpush.bf16.msra.mxu0 %v4460
    %4786 = vmatpush.bf16.msra.mxu0 %v4458
    %4787 = vmatpush.bf16.msra.mxu0 %v4456
    %4788 = vmatmul.bf16.gmra.mxu0 %v4036
    %v4789 = vpop.f32.mrf.mxu0
    %v4790 = vadd.f32 %v4741, %v4789
    %v4791 = vpop.f32.mrf.mxu0
    %v4792 = vadd.f32 %v4743, %v4791
    %4793 = vmatmul.bf16.gmra.mxu0 %v4040
    %v4794 = vpop.f32.mrf.mxu0
    %v4795 = vadd.f32 %v4746, %v4794
    %v4796 = vpop.f32.mrf.mxu0
    %v4797 = vadd.f32 %v4748, %v4796
    %4798 = vmatmul.bf16.gmra.mxu0 %v4044
    %v4799 = vpop.f32.mrf.mxu0
    %v4800 = vadd.f32 %v4751, %v4799
    %v4801 = vpop.f32.mrf.mxu0
    %v4802 = vadd.f32 %v4753, %v4801
    %4803 = vmatmul.bf16.gmra.mxu0 %v4048
    %v4804 = vpop.f32.mrf.mxu0
    %v4805 = vadd.f32 %v4756, %v4804
    %v4806 = vpop.f32.mrf.mxu0
    %v4807 = vadd.f32 %v4758, %v4806
    %4808 = vmatmul.bf16.gmra.mxu0 %v4054
    %v4809 = vpop.f32.mrf.mxu0
    %v4810 = vadd.f32 %v4761, %v4809
    %v4811 = vpop.f32.mrf.mxu0
    %v4812 = vadd.f32 %v4763, %v4811
    %4813 = vmatmul.bf16.gmra.mxu0 %v4058
    %v4814 = vpop.f32.mrf.mxu0
    %v4815 = vadd.f32 %v4766, %v4814
    %v4816 = vpop.f32.mrf.mxu0
    %v4817 = vadd.f32 %v4768, %v4816
    %4818 = vmatmul.bf16.gmra.mxu0 %v4062
    %v4819 = vpop.f32.mrf.mxu0
    %v4820 = vadd.f32 %v4771, %v4819
    %v4821 = vpop.f32.mrf.mxu0
    %v4822 = vadd.f32 %v4773, %v4821
    %4823 = vmatmul.bf16.gmra.mxu0 %v4066
    %v4824 = vpop.f32.mrf.mxu0
    %v4825 = vadd.f32 %v4776, %v4824
    %v4826 = vpop.f32.mrf.mxu0
    %v4827 = vadd.f32 %v4778, %v4826
    %4828 = vdwg.mxu0
    %4829 = vmatpush.bf16.msra.mxu0 %v4486
    %4830 = vmatpush.bf16.msra.mxu0 %v4484
    %4831 = vmatpush.bf16.msra.mxu0 %v4482
    %4832 = vmatpush.bf16.msra.mxu0 %v4480
    %4833 = vmatpush.bf16.msra.mxu0 %v4478
    %4834 = vmatpush.bf16.msra.mxu0 %v4476
    %4835 = vmatpush.bf16.msra.mxu0 %v4474
    %4836 = vmatpush.bf16.msra.mxu0 %v4472
    %4837 = vmatmul.bf16.gmra.mxu0 %v4037
    %v4838 = vpop.f32.mrf.mxu0
    %v4839 = vadd.f32 %v4790, %v4838
    %v4840 = vpop.f32.mrf.mxu0
    %v4841 = vadd.f32 %v4792, %v4840
    %4842 = vmatmul.bf16.gmra.mxu0 %v4041
    %v4843 = vpop.f32.mrf.mxu0
    %v4844 = vadd.f32 %v4795, %v4843
    %v4845 = vpop.f32.mrf.mxu0
    %v4846 = vadd.f32 %v4797, %v4845
    %4847 = vmatmul.bf16.gmra.mxu0 %v4045
    %v4848 = vpop.f32.mrf.mxu0
    %v4849 = vadd.f32 %v4800, %v4848
    %v4850 = vpop.f32.mrf.mxu0
    %v4851 = vadd.f32 %v4802, %v4850
    %4852 = vmatmul.bf16.gmra.mxu0 %v4049
    %v4853 = vpop.f32.mrf.mxu0
    %v4854 = vadd.f32 %v4805, %v4853
    %v4855 = vpop.f32.mrf.mxu0
    %v4856 = vadd.f32 %v4807, %v4855
    %4857 = vmatmul.bf16.gmra.mxu0 %v4055
    %v4858 = vpop.f32.mrf.mxu0
    %v4859 = vadd.f32 %v4810, %v4858
    %v4860 = vpop.f32.mrf.mxu0
    %v4861 = vadd.f32 %v4812, %v4860
    %4862 = vmatmul.bf16.gmra.mxu0 %v4059
    %v4863 = vpop.f32.mrf.mxu0
    %v4864 = vadd.f32 %v4815, %v4863
    %v4865 = vpop.f32.mrf.mxu0
    %v4866 = vadd.f32 %v4817, %v4865
    %4867 = vmatmul.bf16.gmra.mxu0 %v4063
    %v4868 = vpop.f32.mrf.mxu0
    %v4869 = vadd.f32 %v4820, %v4868
    %v4870 = vpop.f32.mrf.mxu0
    %v4871 = vadd.f32 %v4822, %v4870
    %4872 = vmatmul.bf16.gmra.mxu0 %v4067
    %v4873 = vpop.f32.mrf.mxu0
    %v4874 = vadd.f32 %v4825, %v4873
    %v4875 = vpop.f32.mrf.mxu0
    %v4876 = vadd.f32 %v4827, %v4875
    %4877 = vdwg.mxu0
    %4878 = vmatpush.bf16.msra.mxu0 %v4407
    %4879 = vmatpush.bf16.msra.mxu0 %v4405
    %4880 = vmatpush.bf16.msra.mxu0 %v4403
    %4881 = vmatpush.bf16.msra.mxu0 %v4401
    %4882 = vmatpush.bf16.msra.mxu0 %v4399
    %4883 = vmatpush.bf16.msra.mxu0 %v4397
    %4884 = vmatpush.bf16.msra.mxu0 %v4395
    %4885 = vmatpush.bf16.msra.mxu0 %v4393
    %4886 = vmatmul.bf16.gmra.mxu0 %v4032
    %v4887 = vpop.f32.mrf.mxu0
    %v4888 = vadd.f32 0.0, %v4887
    %v4889 = vpop.f32.mrf.mxu0
    %v4890 = vadd.f32 0.0, %v4889
    %4891 = vmatmul.bf16.gmra.mxu0 %v4036
    %v4892 = vpop.f32.mrf.mxu0
    %v4893 = vadd.f32 0.0, %v4892
    %v4894 = vpop.f32.mrf.mxu0
    %v4895 = vadd.f32 0.0, %v4894
    %4896 = vmatmul.bf16.gmra.mxu0 %v4040
    %v4897 = vpop.f32.mrf.mxu0
    %v4898 = vadd.f32 0.0, %v4897
    %v4899 = vpop.f32.mrf.mxu0
    %v4900 = vadd.f32 0.0, %v4899
    %4901 = vmatmul.bf16.gmra.mxu0 %v4044
    %v4902 = vpop.f32.mrf.mxu0
    %v4903 = vadd.f32 0.0, %v4902
    %v4904 = vpop.f32.mrf.mxu0
    %v4905 = vadd.f32 0.0, %v4904
    %4906 = vmatmul.bf16.gmra.mxu0 %v4050
    %v4907 = vpop.f32.mrf.mxu0
    %v4908 = vadd.f32 0.0, %v4907
    %v4909 = vpop.f32.mrf.mxu0
    %v4910 = vadd.f32 0.0, %v4909
    %4911 = vmatmul.bf16.gmra.mxu0 %v4054
    %v4912 = vpop.f32.mrf.mxu0
    %v4913 = vadd.f32 0.0, %v4912
    %v4914 = vpop.f32.mrf.mxu0
    %v4915 = vadd.f32 0.0, %v4914
    %4916 = vmatmul.bf16.gmra.mxu0 %v4058
    %v4917 = vpop.f32.mrf.mxu0
    %v4918 = vadd.f32 0.0, %v4917
    %v4919 = vpop.f32.mrf.mxu0
    %v4920 = vadd.f32 0.0, %v4919
    %4921 = vmatmul.bf16.gmra.mxu0 %v4062
    %v4922 = vpop.f32.mrf.mxu0
    %v4923 = vadd.f32 0.0, %v4922
    %v4924 = vpop.f32.mrf.mxu0
    %v4925 = vadd.f32 0.0, %v4924
    %4926 = vdwg.mxu0
    %4927 = vmatpush.bf16.msra.mxu0 %v4423
    %4928 = vmatpush.bf16.msra.mxu0 %v4421
    %4929 = vmatpush.bf16.msra.mxu0 %v4419
    %4930 = vmatpush.bf16.msra.mxu0 %v4417
    %4931 = vmatpush.bf16.msra.mxu0 %v4415
    %4932 = vmatpush.bf16.msra.mxu0 %v4413
    %4933 = vmatpush.bf16.msra.mxu0 %v4411
    %4934 = vmatpush.bf16.msra.mxu0 %v4409
    %4935 = vmatmul.bf16.gmra.mxu0 %v4033
    %v4936 = vpop.f32.mrf.mxu0
    %v4937 = vadd.f32 %v4888, %v4936
    %v4938 = vpop.f32.mrf.mxu0
    %v4939 = vadd.f32 %v4890, %v4938
    %4940 = vmatmul.bf16.gmra.mxu0 %v4037
    %v4941 = vpop.f32.mrf.mxu0
    %v4942 = vadd.f32 %v4893, %v4941
    %v4943 = vpop.f32.mrf.mxu0
    %v4944 = vadd.f32 %v4895, %v4943
    %4945 = vmatmul.bf16.gmra.mxu0 %v4041
    %v4946 = vpop.f32.mrf.mxu0
    %v4947 = vadd.f32 %v4898, %v4946
    %v4948 = vpop.f32.mrf.mxu0
    %v4949 = vadd.f32 %v4900, %v4948
    %4950 = vmatmul.bf16.gmra.mxu0 %v4045
    %v4951 = vpop.f32.mrf.mxu0
    %v4952 = vadd.f32 %v4903, %v4951
    %v4953 = vpop.f32.mrf.mxu0
    %v4954 = vadd.f32 %v4905, %v4953
    %4955 = vmatmul.bf16.gmra.mxu0 %v4051
    %v4956 = vpop.f32.mrf.mxu0
    %v4957 = vadd.f32 %v4908, %v4956
    %v4958 = vpop.f32.mrf.mxu0
    %v4959 = vadd.f32 %v4910, %v4958
    %4960 = vmatmul.bf16.gmra.mxu0 %v4055
    %v4961 = vpop.f32.mrf.mxu0
    %v4962 = vadd.f32 %v4913, %v4961
    %v4963 = vpop.f32.mrf.mxu0
    %v4964 = vadd.f32 %v4915, %v4963
    %4965 = vmatmul.bf16.gmra.mxu0 %v4059
    %v4966 = vpop.f32.mrf.mxu0
    %v4967 = vadd.f32 %v4918, %v4966
    %v4968 = vpop.f32.mrf.mxu0
    %v4969 = vadd.f32 %v4920, %v4968
    %4970 = vmatmul.bf16.gmra.mxu0 %v4063
    %v4971 = vpop.f32.mrf.mxu0
    %v4972 = vadd.f32 %v4923, %v4971
    %v4973 = vpop.f32.mrf.mxu0
    %v4974 = vadd.f32 %v4925, %v4973
    %4975 = vdwg.mxu0
    %4976 = vmatpush.bf16.msra.mxu0 %v4439
    %4977 = vmatpush.bf16.msra.mxu0 %v4437
    %4978 = vmatpush.bf16.msra.mxu0 %v4435
    %4979 = vmatpush.bf16.msra.mxu0 %v4433
    %4980 = vmatpush.bf16.msra.mxu0 %v4431
    %4981 = vmatpush.bf16.msra.mxu0 %v4429
    %4982 = vmatpush.bf16.msra.mxu0 %v4427
    %4983 = vmatpush.bf16.msra.mxu0 %v4425
    %4984 = vmatmul.bf16.gmra.mxu0 %v4034
    %v4985 = vpop.f32.mrf.mxu0
    %v4986 = vadd.f32 %v4937, %v4985
    %v4987 = vpop.f32.mrf.mxu0
    %v4988 = vadd.f32 %v4939, %v4987
    %4989 = vmatmul.bf16.gmra.mxu0 %v4038
    %v4990 = vpop.f32.mrf.mxu0
    %v4991 = vadd.f32 %v4942, %v4990
    %v4992 = vpop.f32.mrf.mxu0
    %v4993 = vadd.f32 %v4944, %v4992
    %4994 = vmatmul.bf16.gmra.mxu0 %v4042
    %v4995 = vpop.f32.mrf.mxu0
    %v4996 = vadd.f32 %v4947, %v4995
    %v4997 = vpop.f32.mrf.mxu0
    %v4998 = vadd.f32 %v4949, %v4997
    %4999 = vmatmul.bf16.gmra.mxu0 %v4046
    %v5000 = vpop.f32.mrf.mxu0
    %v5001 = vadd.f32 %v4952, %v5000
    %v5002 = vpop.f32.mrf.mxu0
    %v5003 = vadd.f32 %v4954, %v5002
    %5004 = vmatmul.bf16.gmra.mxu0 %v4052
    %v5005 = vpop.f32.mrf.mxu0
    %v5006 = vadd.f32 %v4957, %v5005
    %v5007 = vpop.f32.mrf.mxu0
    %v5008 = vadd.f32 %v4959, %v5007
    %5009 = vmatmul.bf16.gmra.mxu0 %v4056
    %v5010 = vpop.f32.mrf.mxu0
    %v5011 = vadd.f32 %v4962, %v5010
    %v5012 = vpop.f32.mrf.mxu0
    %v5013 = vadd.f32 %v4964, %v5012
    %5014 = vmatmul.bf16.gmra.mxu0 %v4060
    %v5015 = vpop.f32.mrf.mxu0
    %v5016 = vadd.f32 %v4967, %v5015
    %v5017 = vpop.f32.mrf.mxu0
    %v5018 = vadd.f32 %v4969, %v5017
    %5019 = vmatmul.bf16.gmra.mxu0 %v4064
    %v5020 = vpop.f32.mrf.mxu0
    %v5021 = vadd.f32 %v4972, %v5020
    %v5022 = vpop.f32.mrf.mxu0
    %v5023 = vadd.f32 %v4974, %v5022
    %5024 = vdwg.mxu0
    %5025 = vmatpush.bf16.msra.mxu0 %v4455
    %5026 = vmatpush.bf16.msra.mxu0 %v4453
    %5027 = vmatpush.bf16.msra.mxu0 %v4451
    %5028 = vmatpush.bf16.msra.mxu0 %v4449
    %5029 = vmatpush.bf16.msra.mxu0 %v4447
    %5030 = vmatpush.bf16.msra.mxu0 %v4445
    %5031 = vmatpush.bf16.msra.mxu0 %v4443
    %5032 = vmatpush.bf16.msra.mxu0 %v4441
    %5033 = vmatmul.bf16.gmra.mxu0 %v4035
    %v5034 = vpop.f32.mrf.mxu0
    %v5035 = vadd.f32 %v4986, %v5034
    %v5036 = vpop.f32.mrf.mxu0
    %v5037 = vadd.f32 %v4988, %v5036
    %5038 = vmatmul.bf16.gmra.mxu0 %v4039
    %v5039 = vpop.f32.mrf.mxu0
    %v5040 = vadd.f32 %v4991, %v5039
    %v5041 = vpop.f32.mrf.mxu0
    %v5042 = vadd.f32 %v4993, %v5041
    %5043 = vmatmul.bf16.gmra.mxu0 %v4043
    %v5044 = vpop.f32.mrf.mxu0
    %v5045 = vadd.f32 %v4996, %v5044
    %v5046 = vpop.f32.mrf.mxu0
    %v5047 = vadd.f32 %v4998, %v5046
    %5048 = vmatmul.bf16.gmra.mxu0 %v4047
    %v5049 = vpop.f32.mrf.mxu0
    %v5050 = vadd.f32 %v5001, %v5049
    %v5051 = vpop.f32.mrf.mxu0
    %v5052 = vadd.f32 %v5003, %v5051
    %5053 = vmatmul.bf16.gmra.mxu0 %v4053
    %v5054 = vpop.f32.mrf.mxu0
    %v5055 = vadd.f32 %v5006, %v5054
    %v5056 = vpop.f32.mrf.mxu0
    %v5057 = vadd.f32 %v5008, %v5056
    %5058 = vmatmul.bf16.gmra.mxu0 %v4057
    %v5059 = vpop.f32.mrf.mxu0
    %v5060 = vadd.f32 %v5011, %v5059
    %v5061 = vpop.f32.mrf.mxu0
    %v5062 = vadd.f32 %v5013, %v5061
    %5063 = vmatmul.bf16.gmra.mxu0 %v4061
    %v5064 = vpop.f32.mrf.mxu0
    %v5065 = vadd.f32 %v5016, %v5064
    %v5066 = vpop.f32.mrf.mxu0
    %v5067 = vadd.f32 %v5018, %v5066
    %5068 = vmatmul.bf16.gmra.mxu0 %v4065
    %v5069 = vpop.f32.mrf.mxu0
    %v5070 = vadd.f32 %v5021, %v5069
    %v5071 = vpop.f32.mrf.mxu0
    %v5072 = vadd.f32 %v5023, %v5071
    %5073 = vdwg.mxu0
    %5074 = vmatpush.bf16.msra.mxu0 %v4471
    %5075 = vmatpush.bf16.msra.mxu0 %v4469
    %5076 = vmatpush.bf16.msra.mxu0 %v4467
    %5077 = vmatpush.bf16.msra.mxu0 %v4465
    %5078 = vmatpush.bf16.msra.mxu0 %v4463
    %5079 = vmatpush.bf16.msra.mxu0 %v4461
    %5080 = vmatpush.bf16.msra.mxu0 %v4459
    %5081 = vmatpush.bf16.msra.mxu0 %v4457
    %5082 = vmatmul.bf16.gmra.mxu0 %v4036
    %v5083 = vpop.f32.mrf.mxu0
    %v5084 = vadd.f32 %v5035, %v5083
    %v5085 = vpop.f32.mrf.mxu0
    %v5086 = vadd.f32 %v5037, %v5085
    %5087 = vmatmul.bf16.gmra.mxu0 %v4040
    %v5088 = vpop.f32.mrf.mxu0
    %v5089 = vadd.f32 %v5040, %v5088
    %v5090 = vpop.f32.mrf.mxu0
    %v5091 = vadd.f32 %v5042, %v5090
    %5092 = vmatmul.bf16.gmra.mxu0 %v4044
    %v5093 = vpop.f32.mrf.mxu0
    %v5094 = vadd.f32 %v5045, %v5093
    %v5095 = vpop.f32.mrf.mxu0
    %v5096 = vadd.f32 %v5047, %v5095
    %5097 = vmatmul.bf16.gmra.mxu0 %v4048
    %v5098 = vpop.f32.mrf.mxu0
    %v5099 = vadd.f32 %v5050, %v5098
    %v5100 = vpop.f32.mrf.mxu0
    %v5101 = vadd.f32 %v5052, %v5100
    %5102 = vmatmul.bf16.gmra.mxu0 %v4054
    %v5103 = vpop.f32.mrf.mxu0
    %v5104 = vadd.f32 %v5055, %v5103
    %v5105 = vpop.f32.mrf.mxu0
    %v5106 = vadd.f32 %v5057, %v5105
    %5107 = vmatmul.bf16.gmra.mxu0 %v4058
    %v5108 = vpop.f32.mrf.mxu0
    %v5109 = vadd.f32 %v5060, %v5108
    %v5110 = vpop.f32.mrf.mxu0
    %v5111 = vadd.f32 %v5062, %v5110
    %5112 = vmatmul.bf16.gmra.mxu0 %v4062
    %v5113 = vpop.f32.mrf.mxu0
    %v5114 = vadd.f32 %v5065, %v5113
    %v5115 = vpop.f32.mrf.mxu0
    %v5116 = vadd.f32 %v5067, %v5115
    %5117 = vmatmul.bf16.gmra.mxu0 %v4066
    %v5118 = vpop.f32.mrf.mxu0
    %v5119 = vadd.f32 %v5070, %v5118
    %v5120 = vpop.f32.mrf.mxu0
    %v5121 = vadd.f32 %v5072, %v5120
    %5122 = vdwg.mxu0
    %5123 = vmatpush.bf16.msra.mxu0 %v4487
    %5124 = vmatpush.bf16.msra.mxu0 %v4485
    %5125 = vmatpush.bf16.msra.mxu0 %v4483
    %5126 = vmatpush.bf16.msra.mxu0 %v4481
    %5127 = vmatpush.bf16.msra.mxu0 %v4479
    %5128 = vmatpush.bf16.msra.mxu0 %v4477
    %5129 = vmatpush.bf16.msra.mxu0 %v4475
    %5130 = vmatpush.bf16.msra.mxu0 %v4473
    %5131 = vmatmul.bf16.gmra.mxu0 %v4037
    %v5132 = vpop.f32.mrf.mxu0
    %v5133 = vadd.f32 %v5084, %v5132
    %v5134 = vpop.f32.mrf.mxu0
    %v5135 = vadd.f32 %v5086, %v5134
    %5136 = vmatmul.bf16.gmra.mxu0 %v4041
    %v5137 = vpop.f32.mrf.mxu0
    %v5138 = vadd.f32 %v5089, %v5137
    %v5139 = vpop.f32.mrf.mxu0
    %v5140 = vadd.f32 %v5091, %v5139
    %5141 = vmatmul.bf16.gmra.mxu0 %v4045
    %v5142 = vpop.f32.mrf.mxu0
    %v5143 = vadd.f32 %v5094, %v5142
    %v5144 = vpop.f32.mrf.mxu0
    %v5145 = vadd.f32 %v5096, %v5144
    %5146 = vmatmul.bf16.gmra.mxu0 %v4049
    %v5147 = vpop.f32.mrf.mxu0
    %v5148 = vadd.f32 %v5099, %v5147
    %v5149 = vpop.f32.mrf.mxu0
    %v5150 = vadd.f32 %v5101, %v5149
    %5151 = vmatmul.bf16.gmra.mxu0 %v4055
    %v5152 = vpop.f32.mrf.mxu0
    %v5153 = vadd.f32 %v5104, %v5152
    %v5154 = vpop.f32.mrf.mxu0
    %v5155 = vadd.f32 %v5106, %v5154
    %5156 = vmatmul.bf16.gmra.mxu0 %v4059
    %v5157 = vpop.f32.mrf.mxu0
    %v5158 = vadd.f32 %v5109, %v5157
    %v5159 = vpop.f32.mrf.mxu0
    %v5160 = vadd.f32 %v5111, %v5159
    %5161 = vmatmul.bf16.gmra.mxu0 %v4063
    %v5162 = vpop.f32.mrf.mxu0
    %v5163 = vadd.f32 %v5114, %v5162
    %v5164 = vpop.f32.mrf.mxu0
    %v5165 = vadd.f32 %v5116, %v5164
    %5166 = vmatmul.bf16.gmra.mxu0 %v4067
    %v5167 = vpop.f32.mrf.mxu0
    %v5168 = vadd.f32 %v5119, %v5167
    %v5169 = vpop.f32.mrf.mxu0
    %v5170 = vadd.f32 %v5121, %v5169
    %5171 = vdwg.mxu0
    %v5172 = vadd.f32 %v3479, %v4839
    %v5173 = vadd.f32 %v3773, %v5133
    %v5174 = vadd.f32 %v3481, %v4841
    %v5175 = vadd.f32 %v3775, %v5135
    %v5176 = vadd.f32 %v3484, %v4844
    %v5177 = vadd.f32 %v3778, %v5138
    %v5178 = vadd.f32 %v3486, %v4846
    %v5179 = vadd.f32 %v3780, %v5140
    %v5180 = vadd.f32 %v3489, %v4849
    %v5181 = vadd.f32 %v3783, %v5143
    %v5182 = vadd.f32 %v3491, %v4851
    %v5183 = vadd.f32 %v3785, %v5145
    %v5184 = vadd.f32 %v3494, %v4854
    %v5185 = vadd.f32 %v3788, %v5148
    %v5186 = vadd.f32 %v3496, %v4856
    %v5187 = vadd.f32 %v3790, %v5150
    %v5188 = vadd.f32 %v3499, %v4859
    %v5189 = vadd.f32 %v3793, %v5153
    %v5190 = vadd.f32 %v3501, %v4861
    %v5191 = vadd.f32 %v3795, %v5155
    %v5192 = vadd.f32 %v3504, %v4864
    %v5193 = vadd.f32 %v3798, %v5158
    %v5194 = vadd.f32 %v3506, %v4866
    %v5195 = vadd.f32 %v3800, %v5160
    %v5196 = vadd.f32 %v3509, %v4869
    %v5197 = vadd.f32 %v3803, %v5163
    %v5198 = vadd.f32 %v3511, %v4871
    %v5199 = vadd.f32 %v3805, %v5165
    %v5200 = vadd.f32 %v3514, %v4874
    %v5201 = vadd.f32 %v3808, %v5168
    %v5202 = vadd.f32 %v3516, %v4876
    %v5203 = vadd.f32 %v3810, %v5170
    %v5204 = vadd.f32 %v5172, %v5174
    %v5205 = vadd.f32 %v5204, %v5176
    %v5206 = vadd.f32 %v5205, %v5178
    %v5207 = vadd.f32 %v5206, %v5180
    %v5208 = vadd.f32 %v5207, %v5182
    %v5209 = vadd.f32 %v5208, %v5184
    %v5210 = vadd.f32 %v5209, %v5186
    %v5211 = vadd.f32 %v5210, %v5188
    %v5212 = vadd.f32 %v5211, %v5190
    %v5213 = vadd.f32 %v5212, %v5192
    %v5214 = vadd.f32 %v5213, %v5194
    %v5215 = vadd.f32 %v5214, %v5196
    %v5216 = vadd.f32 %v5215, %v5198
    %v5217 = vadd.f32 %v5216, %v5200
    %v5218 = vadd.f32 %v5217, %v5202
    %v5219 = vrot.slane %v5218, 4
    %v5220 = vadd.f32 %v5218, %v5219
    %v5221 = vrot.slane %v5220, 2
    %v5222 = vadd.f32 %v5220, %v5221
    %v5223 = vrot.slane %v5222, 1
    %v5224 = vadd.f32 %v5222, %v5223
    %v5225 = vadd.f32 %v5173, %v5175
    %v5226 = vadd.f32 %v5225, %v5177
    %v5227 = vadd.f32 %v5226, %v5179
    %v5228 = vadd.f32 %v5227, %v5181
    %v5229 = vadd.f32 %v5228, %v5183
    %v5230 = vadd.f32 %v5229, %v5185
    %v5231 = vadd.f32 %v5230, %v5187
    %v5232 = vadd.f32 %v5231, %v5189
    %v5233 = vadd.f32 %v5232, %v5191
    %v5234 = vadd.f32 %v5233, %v5193
    %v5235 = vadd.f32 %v5234, %v5195
    %v5236 = vadd.f32 %v5235, %v5197
    %v5237 = vadd.f32 %v5236, %v5199
    %v5238 = vadd.f32 %v5237, %v5201
    %v5239 = vadd.f32 %v5238, %v5203
    %v5240 = vrot.slane %v5239, 4
    %v5241 = vadd.f32 %v5239, %v5240
    %v5242 = vrot.slane %v5241, 2
    %v5243 = vadd.f32 %v5241, %v5242
    %v5244 = vrot.slane %v5243, 1
    %v5245 = vadd.f32 %v5243, %v5244
    %v5246 = vmul.f32 %v5172, %v5172
    %v5247 = vmul.f32 %v5173, %v5173
    %v5248 = vmul.f32 %v5174, %v5174
    %v5249 = vmul.f32 %v5175, %v5175
    %v5250 = vmul.f32 %v5176, %v5176
    %v5251 = vmul.f32 %v5177, %v5177
    %v5252 = vmul.f32 %v5178, %v5178
    %v5253 = vmul.f32 %v5179, %v5179
    %v5254 = vmul.f32 %v5180, %v5180
    %v5255 = vmul.f32 %v5181, %v5181
    %v5256 = vmul.f32 %v5182, %v5182
    %v5257 = vmul.f32 %v5183, %v5183
    %v5258 = vmul.f32 %v5184, %v5184
    %v5259 = vmul.f32 %v5185, %v5185
    %v5260 = vmul.f32 %v5186, %v5186
    %v5261 = vmul.f32 %v5187, %v5187
    %v5262 = vmul.f32 %v5188, %v5188
    %v5263 = vmul.f32 %v5189, %v5189
    %v5264 = vmul.f32 %v5190, %v5190
    %v5265 = vmul.f32 %v5191, %v5191
    %v5266 = vmul.f32 %v5192, %v5192
    %v5267 = vmul.f32 %v5193, %v5193
    %v5268 = vmul.f32 %v5194, %v5194
    %v5269 = vmul.f32 %v5195, %v5195
    %v5270 = vmul.f32 %v5196, %v5196
    %v5271 = vmul.f32 %v5197, %v5197
    %v5272 = vmul.f32 %v5198, %v5198
    %v5273 = vmul.f32 %v5199, %v5199
    %v5274 = vmul.f32 %v5200, %v5200
    %v5275 = vmul.f32 %v5201, %v5201
    %v5276 = vmul.f32 %v5202, %v5202
    %v5277 = vmul.f32 %v5203, %v5203
    %v5278 = vadd.f32 %v5246, %v5248
    %v5279 = vadd.f32 %v5278, %v5250
    %v5280 = vadd.f32 %v5279, %v5252
    %v5281 = vadd.f32 %v5280, %v5254
    %v5282 = vadd.f32 %v5281, %v5256
    %v5283 = vadd.f32 %v5282, %v5258
    %v5284 = vadd.f32 %v5283, %v5260
    %v5285 = vadd.f32 %v5284, %v5262
    %v5286 = vadd.f32 %v5285, %v5264
    %v5287 = vadd.f32 %v5286, %v5266
    %v5288 = vadd.f32 %v5287, %v5268
    %v5289 = vadd.f32 %v5288, %v5270
    %v5290 = vadd.f32 %v5289, %v5272
    %v5291 = vadd.f32 %v5290, %v5274
    %v5292 = vadd.f32 %v5291, %v5276
    %v5293 = vrot.slane %v5292, 4
    %v5294 = vadd.f32 %v5292, %v5293
    %v5295 = vrot.slane %v5294, 2
    %v5296 = vadd.f32 %v5294, %v5295
    %v5297 = vrot.slane %v5296, 1
    %v5298 = vadd.f32 %v5296, %v5297
    %v5299 = vadd.f32 %v5247, %v5249
    %v5300 = vadd.f32 %v5299, %v5251
    %v5301 = vadd.f32 %v5300, %v5253
    %v5302 = vadd.f32 %v5301, %v5255
    %v5303 = vadd.f32 %v5302, %v5257
    %v5304 = vadd.f32 %v5303, %v5259
    %v5305 = vadd.f32 %v5304, %v5261
    %v5306 = vadd.f32 %v5305, %v5263
    %v5307 = vadd.f32 %v5306, %v5265
    %v5308 = vadd.f32 %v5307, %v5267
    %v5309 = vadd.f32 %v5308, %v5269
    %v5310 = vadd.f32 %v5309, %v5271
    %v5311 = vadd.f32 %v5310, %v5273
    %v5312 = vadd.f32 %v5311, %v5275
    %v5313 = vadd.f32 %v5312, %v5277
    %v5314 = vrot.slane %v5313, 4
    %v5315 = vadd.f32 %v5313, %v5314
    %v5316 = vrot.slane %v5315, 2
    %v5317 = vadd.f32 %v5315, %v5316
    %v5318 = vrot.slane %v5317, 1
    %v5319 = vadd.f32 %v5317, %v5318
    %vm5320 = vcmask 1040384
    %v5321 = vsel %vm5320, %v5224, %v5298
    %v5322 = vsel %vm5320, %v5245, %v5319
    %v5325 = vrot.slane %v5322, 6
    %vm5326 = vcmask 1041408
    %v5327 = vsel %vm5326, %v5321, %v5325
    %5329 = vst [vmem:[%s7] sm:$0xf] %v5327
    %v5330 = vpack.c.bf16 %v5173, %v5172
    %v5331 = vpack.c.bf16 %v5175, %v5174
    %v5332 = vpack.c.bf16 %v5177, %v5176
    %v5333 = vpack.c.bf16 %v5179, %v5178
    %v5334 = vpack.c.bf16 %v5181, %v5180
    %v5335 = vpack.c.bf16 %v5183, %v5182
    %v5336 = vpack.c.bf16 %v5185, %v5184
    %v5337 = vpack.c.bf16 %v5187, %v5186
    %v5338 = vpack.c.bf16 %v5189, %v5188
    %v5339 = vpack.c.bf16 %v5191, %v5190
    %v5340 = vpack.c.bf16 %v5193, %v5192
    %v5341 = vpack.c.bf16 %v5195, %v5194
    %v5342 = vpack.c.bf16 %v5197, %v5196
    %v5343 = vpack.c.bf16 %v5199, %v5198
    %v5344 = vpack.c.bf16 %v5201, %v5200
    %v5345 = vpack.c.bf16 %v5203, %v5202
    %5346 = vst [vmem:[%s6] sm:$0xff] %v5330
    %5347 = vst [vmem:[%s6 + $0x8] sm:$0xff] %v5331
    %5348 = vst [vmem:[%s6 + $0x10] sm:$0xff] %v5332
    %5349 = vst [vmem:[%s6 + $0x18] sm:$0xff] %v5333
    %5350 = vst [vmem:[%s6 + $0x20] sm:$0xff] %v5334
    %5351 = vst [vmem:[%s6 + $0x28] sm:$0xff] %v5335
    %5352 = vst [vmem:[%s6 + $0x30] sm:$0xff] %v5336
    %5353 = vst [vmem:[%s6 + $0x38] sm:$0xff] %v5337
    %5354 = vst [vmem:[%s6 + $0x40] sm:$0xff] %v5338
    %5355 = vst [vmem:[%s6 + $0x48] sm:$0xff] %v5339
    %5356 = vst [vmem:[%s6 + $0x50] sm:$0xff] %v5340
    %5357 = vst [vmem:[%s6 + $0x58] sm:$0xff] %v5341
    %5358 = vst [vmem:[%s6 + $0x60] sm:$0xff] %v5342
    %5359 = vst [vmem:[%s6 + $0x68] sm:$0xff] %v5343
    %5360 = vst [vmem:[%s6 + $0x70] sm:$0xff] %v5344
    %5361 = vst [vmem:[%s6 + $0x78] sm:$0xff] %v5345
    // Predicated region
    $region102: #{down_forward.6} parent=1 // pred_check
      _
    $region103: #{down_forward.6} parent=1 // pred_check_branch
      %5363 = sbr.rel (0) target = $region105
    $region104: #{down_forward.6} parent=1 // pred_region
      _
    $region105: #{down_forward.6} parent=1 // pred_fallthru
      _
    // Predicated region
    $region106: #{down_forward.6} parent=1 // pred_check
      _
    $region107: #{down_forward.6} parent=1 // pred_check_branch
      %5365 = sbr.rel (0) target = $region109
    $region108: #{down_forward.6} parent=1 // pred_region
      _
    $region109: #{down_forward.6} parent=1 // pred_fallthru
      _
    // Predicated region
    $region110: #{down_forward.6} parent=1 // pred_check
      _
    $region111: #{down_forward.6} parent=1 // pred_check_branch
      %5367 = sbr.rel (0) target = $region113
    $region112: #{down_forward.6} parent=1 // pred_region
      _
    $region113: #{down_forward.6} parent=1 // pred_fallthru
      _
    // Predicated region
    $region114: #{down_forward.6} parent=1 // pred_check
      _
    $region115: #{down_forward.6} parent=1 // pred_check_branch
      %5369 = sbr.rel (0) target = $region117
    $region116: #{down_forward.6} parent=1 // pred_region
      _
    $region117: #{down_forward.6} parent=1 // pred_fallthru
      _

</llo_original>
